<compile_context>
chip_gen: v6e
topology: v6e:2x2x1
jax: 0.10.0
libtpu: 0.0.40
codegen_flags: <defaults>
</compile_context>

<pallas_src>
import math
import functools

import jax
import jax.numpy as jnp
from jax.experimental import pallas as pl
from jax.experimental.pallas import tpu as pltpu

D_MODEL = 32
NHEAD = 4
DIM_FF = 2048          # PyTorch TransformerEncoderLayer default dim_feedforward
NUM_LAYERS = 2
LN_EPS = 1e-5
# TODO(synk): dropout (p=0.1) in PositionalEncoding and the encoder layers is
# identity under eval(); training-mode stochastic dropout is not implemented.
# TODO(synk): for large S (module advertises max_len=5000) the resident [S,S]
# score matrix and [S,dim_ff] FFN intermediate must be tiled flash-style over
# S (tq/tk ~ 256) to fit v7x's 64 MiB VMEM; current kernel assumes a small,
# whole-sequence-resident S.


# ----------------------------------------------------------------------------
# Fused kernel: (Linear(1->D) + PE add) -> num_layers x TransformerEncoderLayer
# One grid step per batch element; all weights VMEM-resident (constant blocks).
# ----------------------------------------------------------------------------
def _fused_encoder_kernel(x_ref, pe_ref, wenc_ref, benc_ref,
                          wqkv_ref, bqkv_ref, wo_ref, bo_ref,
                          g1_ref, be1_ref, w1_ref, b1_ref, w2_ref, b2_ref,
                          g2_ref, be2_ref, o_ref,
                          *, nhead, num_layers, compute_dtype):
    S, D = pe_ref.shape
    dh = D // nhead
    scale = 1.0 / math.sqrt(dh)
    cd = compute_dtype
    approx_recip = (cd != jnp.float32)   # exact reciprocal in f32 mode (tight tol)

    # --- input encoding: x * W_enc + b_enc + positional encoding ---
    x_in = x_ref[0]                                              # [S, 1]
    h = x_in * wenc_ref[...] + benc_ref[...] + pe_ref[...]       # [S, D] f32

    for l in range(num_layers):                                  # static unroll
        # ---- multi-head self-attention; heads batched in one dot_general ----
        x_b = jnp.broadcast_to(h.astype(cd), (nhead, S, D))      # [H, S, D]
        qkv = jnp.einsum('hsd,hde->hse', x_b, wqkv_ref[l],
                         preferred_element_type=jnp.float32) + bqkv_ref[l]   # [H,S,3dh]
        q = qkv[:, :, 0:dh] * scale
        k = qkv[:, :, dh:2 * dh]
        v = qkv[:, :, 2 * dh:3 * dh]

        s = jnp.einsum('hqe,hke->hqk', q.astype(cd), k.astype(cd),
                       preferred_element_type=jnp.float32)       # [H, S, S]
        s = s - jnp.max(s, axis=-1, keepdims=True)
        p = jnp.exp(s)
        p = p * pl.reciprocal(jnp.sum(p, axis=-1, keepdims=True),
                              approx=approx_recip)

        o_h = jnp.einsum('hqk,hke->hqe', p.astype(cd), v.astype(cd),
                         preferred_element_type=jnp.float32)     # [H, S, dh]
        attn = jnp.einsum('hse,hed->hsd', o_h.astype(cd), wo_ref[l],
                          preferred_element_type=jnp.float32)    # [H, S, D]
        attn = jnp.sum(attn, axis=0) + bo_ref[l]                 # [S, D]

        # ---- residual + LayerNorm 1 (f32) ----
        h1 = h + attn
        mu1 = jnp.mean(h1, axis=-1, keepdims=True)
        var1 = jnp.mean((h1 - mu1) ** 2, axis=-1, keepdims=True)
        h1 = (h1 - mu1) * jax.lax.rsqrt(var1 + LN_EPS) * g1_ref[l] + be1_ref[l]

        # ---- feed-forward: linear -> relu -> linear ----
        f = jnp.dot(h1.astype(cd), w1_ref[l],
                    preferred_element_type=jnp.float32) + b1_ref[l]          # [S, F]
        f = jnp.maximum(f, 0.0)
        # w2 stored as [D, F] (lane-dense); contract on its last axis.
        ffn = jax.lax.dot_general(f.astype(cd), w2_ref[l],
                                  (((1,), (1,)), ((), ())),
                                  preferred_element_type=jnp.float32) + b2_ref[l]

        # ---- residual + LayerNorm 2 (f32) ----
        h2 = h1 + ffn
        mu2 = jnp.mean(h2, axis=-1, keepdims=True)
        var2 = jnp.mean((h2 - mu2) ** 2, axis=-1, keepdims=True)
        h = (h2 - mu2) * jax.lax.rsqrt(var2 + LN_EPS) * g2_ref[l] + be2_ref[l]

    o_ref[0] = h.astype(o_ref.dtype)


# ----------------------------------------------------------------------------
# Host-side (wrapper) layout plumbing: arrange weights per-head / lane-dense
# and stack across layers so the kernel can index a static layer axis.
# ----------------------------------------------------------------------------
def _pack_layer_params(layers, nhead, compute_dtype):
    D = layers[0]["wqkv"].shape[0]
    dh = D // nhead
    cd = compute_dtype

    def per_head_cols(w):                      # [D, D] -> [H, D, dh]
        return jnp.transpose(w.reshape(D, nhead, dh), (1, 0, 2))

    keys = ("wqkv", "bqkv", "wo", "bo", "g1", "be1",
            "w1", "b1", "w2", "b2", "g2", "be2")
    packs = {k: [] for k in keys}
    for lp in layers:
        wq, wk, wv = (lp["wqkv"][:, i * D:(i + 1) * D] for i in range(3))
        bq, bk, bv = (lp["bqkv"][0, i * D:(i + 1) * D] for i in range(3))
        packs["wqkv"].append(jnp.concatenate(
            [per_head_cols(wq), per_head_cols(wk), per_head_cols(wv)],
            axis=-1).astype(cd))                                    # [H, D, 3dh]
        packs["bqkv"].append(jnp.concatenate(
            [b.reshape(nhead, 1, dh) for b in (bq, bk, bv)], axis=-1))  # [H,1,3dh]
        packs["wo"].append(lp["wo"].reshape(nhead, dh, D).astype(cd))   # [H,dh,D]
        packs["bo"].append(lp["bo"])
        packs["g1"].append(lp["g1"]); packs["be1"].append(lp["be1"])
        packs["w1"].append(lp["w1"].astype(cd))                         # [D, F]
        packs["b1"].append(lp["b1"])
        packs["w2"].append(lp["w2"].T.astype(cd))                       # [D, F]
        packs["b2"].append(lp["b2"])
        packs["g2"].append(lp["g2"]); packs["be2"].append(lp["be2"])
    return {k: jnp.stack(v) for k, v in packs.items()}


def transformer_encoder_forward(x_sb1, params, nhead=NHEAD,
                                compute_dtype=jnp.float32):
    S, B, _ = x_sb1.shape
    D = params["enc_w"].shape[1]
    L = len(params["layers"])
    F = params["layers"][0]["w1"].shape[1]
    dh = D // nhead

    x_bs1 = jnp.transpose(x_sb1, (1, 0, 2))                  # [B, S, 1]
    pe = params["pe"][:S]                                    # [S, D]
    pk = _pack_layer_params(params["layers"], nhead, compute_dtype)

    def _full(shape):
        n = len(shape)
        return pl.BlockSpec(shape, lambda b: (0,) * n)

    kern = functools.partial(_fused_encoder_kernel, nhead=nhead,
                             num_layers=L, compute_dtype=compute_dtype)

    out = pl.pallas_call(
        kern,
        out_shape=jax.ShapeDtypeStruct((B, S, D), jnp.float32),
        grid=(B,),
        in_specs=[
            pl.BlockSpec((1, S, 1), lambda b: (b, 0, 0)),    # x (per batch)
            _full((S, D)),                                   # pe
            _full((1, D)), _full((1, D)),                    # enc_w, enc_b
            _full((L, nhead, D, 3 * dh)),                    # wqkv (per head)
            _full((L, nhead, 1, 3 * dh)),                    # bqkv
            _full((L, nhead, dh, D)),                        # wo (per head)
            _full((L, 1, D)),                                # bo
            _full((L, 1, D)), _full((L, 1, D)),              # g1, be1
            _full((L, D, F)),                                # w1
            _full((L, 1, F)),                                # b1
            _full((L, D, F)),                                # w2 (lane-dense)
            _full((L, 1, D)),                                # b2
            _full((L, 1, D)), _full((L, 1, D)),              # g2, be2
        ],
        out_specs=pl.BlockSpec((1, S, D), lambda b: (b, 0, 0)),
        compiler_params=pltpu.CompilerParams(
            dimension_semantics=("parallel",)),              # 2 TCs on v7x
    )(x_bs1, pe, params["enc_w"], params["enc_b"],
      pk["wqkv"], pk["bqkv"], pk["wo"], pk["bo"],
      pk["g1"], pk["be1"], pk["w1"], pk["b1"], pk["w2"], pk["b2"],
      pk["g2"], pk["be2"])

    return jnp.transpose(out, (1, 0, 2))                     # [S, B, D]


# ----------------------------------------------------------------------------
# Deterministic parameter construction (synthetic, not a checkpoint).
# Canonical layouts match PyTorch (transposed so x @ W works).
# ----------------------------------------------------------------------------
def make_positional_encoding(max_len, d_model):
    position = jnp.arange(max_len, dtype=jnp.float32)[:, None]
    div_term = jnp.exp(jnp.arange(0, d_model, 2, dtype=jnp.float32)
                       * (-math.log(10000.0) / d_model))
    pe = jnp.zeros((max_len, d_model), dtype=jnp.float32)
    pe = pe.at[:, 0::2].set(jnp.sin(position * div_term))
    pe = pe.at[:, 1::2].set(jnp.cos(position * div_term))
    return pe


def init_params(key, d_model=D_MODEL, dim_ff=DIM_FF, num_layers=NUM_LAYERS,
                max_len=5000):
    def nrm(k, shape, scale=0.05):
        return (scale * jax.random.normal(k, shape)).astype(jnp.float32)

    keys = jax.random.split(key, 2 + num_layers)
    params = {
        "enc_w": nrm(keys[0], (1, d_model), 0.5),    # nn.Linear(1, d_model).weight.T
        "enc_b": nrm(keys[1], (1, d_model), 0.1),
        "pe": make_positional_encoding(max_len, d_model),
        "layers": [],
    }
    for l in range(num_layers):
        kk = jax.random.split(keys[2 + l], 8)
        params["layers"].append({
            "wqkv": nrm(kk[0], (d_model, 3 * d_model)),      # in_proj_weight.T
            "bqkv": nrm(kk[1], (1, 3 * d_model), 0.02),
            "wo":   nrm(kk[2], (d_model, d_model)),          # out_proj.weight.T
            "bo":   nrm(kk[3], (1, d_model), 0.02),
            "g1":   jnp.ones((1, d_model), jnp.float32),
            "be1":  jnp.zeros((1, d_model), jnp.float32),
            "w1":   nrm(kk[4], (d_model, dim_ff)),           # linear1.weight.T
            "b1":   nrm(kk[5], (1, dim_ff), 0.02),
            "w2":   nrm(kk[6], (dim_ff, d_model)),           # linear2.weight.T
            "b2":   nrm(kk[7], (1, d_model), 0.02),
            "g2":   jnp.ones((1, d_model), jnp.float32),
            "be2":  jnp.zeros((1, d_model), jnp.float32),
        })
    return params


# ----------------------------------------------------------------------------
# Pure-JAX reference (same math, seq-first like PyTorch) for validation.
# ----------------------------------------------------------------------------
def _ln(x, g, b):
    mu = jnp.mean(x, axis=-1, keepdims=True)
    var = jnp.mean((x - mu) ** 2, axis=-1, keepdims=True)
    return (x - mu) * jax.lax.rsqrt(var + LN_EPS) * g + b


def ref_forward(x_sb1, params, nhead=NHEAD):
    S, B, _ = x_sb1.shape
    D = params["enc_w"].shape[1]
    dh = D // nhead
    scale = 1.0 / math.sqrt(dh)
    x = x_sb1 @ params["enc_w"] + params["enc_b"][0]          # [S, B, D]
    x = x + params["pe"][:S][:, None, :]
    for lp in params["layers"]:
        qkv = x @ lp["wqkv"] + lp["bqkv"][0]
        q = qkv[..., :D].reshape(S, B, nhead, dh) * scale
        k = qkv[..., D:2 * D].reshape(S, B, nhead, dh)
        v = qkv[..., 2 * D:].reshape(S, B, nhead, dh)
        s = jnp.einsum("sbhd,tbhd->bhst", q, k)
        p = jax.nn.softmax(s, axis=-1)
        o = jnp.einsum("bhst,tbhd->sbhd", p, v).reshape(S, B, D)
        attn = o @ lp["wo"] + lp["bo"][0]
        h1 = _ln(x + attn, lp["g1"][0], lp["be1"][0])
        f = jax.nn.relu(h1 @ lp["w1"] + lp["b1"][0]) @ lp["w2"] + lp["b2"][0]
        x = _ln(h1 + f, lp["g2"][0], lp["be2"][0])
    return x


if __name__ == "__main__":
    key = jax.random.PRNGKey(0)
    kp, kx = jax.random.split(key)
    params = init_params(kp)

    S, B = 8, 2
    x = jax.random.normal(kx, (S, B, 1), dtype=jnp.float32)   # [seq, batch, 1]

    ref = ref_forward(x, params)

    # f32 path (v5e / tight-accuracy): exact reciprocal, f32 matmuls.
    fwd_f32 = jax.jit(lambda xx, pp: transformer_encoder_forward(
        xx, pp, compute_dtype=jnp.float32))
    out = jax.block_until_ready(fwd_f32(x, params))
    assert out.shape == (S, B, D_MODEL), out.shape
    assert bool(jnp.all(jnp.isfinite(out)))
    assert bool(jnp.allclose(out, ref, rtol=1e-4, atol=1e-4)), \
        float(jnp.max(jnp.abs(out - ref)))

    # bf16 matmul path (v6e/v7x): bf16 operands, f32 accumulation, loose check.
    fwd_bf16 = jax.jit(lambda xx, pp: transformer_encoder_forward(
        xx, pp, compute_dtype=jnp.bfloat16))
    out_bf = jax.block_until_ready(fwd_bf16(x, params))
    assert bool(jnp.all(jnp.isfinite(out_bf)))
    assert float(jnp.max(jnp.abs(out_bf - ref))) < 1e-1

    print("KERNEL_OK")
</pallas_src>

<mosaic_0001>
module attributes {stable_mosaic.version = 11 : i64} {
  func.func @_fused_encoder_kernel(%arg0: i32, %arg1: memref<1x8x1xf32, #tpu.memory_space<vmem>>, %arg2: memref<8x32xf32, #tpu.memory_space<vmem>>, %arg3: memref<1x32xf32, #tpu.memory_space<vmem>>, %arg4: memref<1x32xf32, #tpu.memory_space<vmem>>, %arg5: memref<2x4x32x24xf32, #tpu.memory_space<vmem>>, %arg6: memref<2x4x1x24xf32, #tpu.memory_space<vmem>>, %arg7: memref<2x4x8x32xf32, #tpu.memory_space<vmem>>, %arg8: memref<2x1x32xf32, #tpu.memory_space<vmem>>, %arg9: memref<2x1x32xf32, #tpu.memory_space<vmem>>, %arg10: memref<2x1x32xf32, #tpu.memory_space<vmem>>, %arg11: memref<2x32x2048xf32, #tpu.memory_space<vmem>>, %arg12: memref<2x1x2048xf32, #tpu.memory_space<vmem>>, %arg13: memref<2x32x2048xf32, #tpu.memory_space<vmem>>, %arg14: memref<2x1x32xf32, #tpu.memory_space<vmem>>, %arg15: memref<2x1x32xf32, #tpu.memory_space<vmem>>, %arg16: memref<2x1x32xf32, #tpu.memory_space<vmem>>, %arg17: memref<1x8x32xf32, #tpu.memory_space<vmem>>) attributes {dimension_semantics = [#tpu.dimension_semantics<parallel>], iteration_bounds = array<i64: 2>, scalar_prefetch = 0 : i64, scratch_operands = 0 : i64, tpu.core_type = #tpu.core_type<tc>, window_params = [{transform_indices = @transform_0, window_bounds = array<i64: 1, 8, 1>}, {pipeline_mode = #tpu.pipeline_mode<synchronous>, transform_indices = @transform_1, window_bounds = array<i64: 8, 32>}, {pipeline_mode = #tpu.pipeline_mode<synchronous>, transform_indices = @transform_2, window_bounds = array<i64: 1, 32>}, {pipeline_mode = #tpu.pipeline_mode<synchronous>, transform_indices = @transform_3, window_bounds = array<i64: 1, 32>}, {pipeline_mode = #tpu.pipeline_mode<synchronous>, transform_indices = @transform_4, window_bounds = array<i64: 2, 4, 32, 24>}, {pipeline_mode = #tpu.pipeline_mode<synchronous>, transform_indices = @transform_5, window_bounds = array<i64: 2, 4, 1, 24>}, {pipeline_mode = #tpu.pipeline_mode<synchronous>, transform_indices = @transform_6, window_bounds = array<i64: 2, 4, 8, 32>}, {pipeline_mode = #tpu.pipeline_mode<synchronous>, transform_indices = @transform_7, window_bounds = array<i64: 2, 1, 32>}, {pipeline_mode = #tpu.pipeline_mode<synchronous>, transform_indices = @transform_8, window_bounds = array<i64: 2, 1, 32>}, {pipeline_mode = #tpu.pipeline_mode<synchronous>, transform_indices = @transform_9, window_bounds = array<i64: 2, 1, 32>}, {pipeline_mode = #tpu.pipeline_mode<synchronous>, transform_indices = @transform_10, window_bounds = array<i64: 2, 32, 2048>}, {pipeline_mode = #tpu.pipeline_mode<synchronous>, transform_indices = @transform_11, window_bounds = array<i64: 2, 1, 2048>}, {pipeline_mode = #tpu.pipeline_mode<synchronous>, transform_indices = @transform_12, window_bounds = array<i64: 2, 32, 2048>}, {pipeline_mode = #tpu.pipeline_mode<synchronous>, transform_indices = @transform_13, window_bounds = array<i64: 2, 1, 32>}, {pipeline_mode = #tpu.pipeline_mode<synchronous>, transform_indices = @transform_14, window_bounds = array<i64: 2, 1, 32>}, {pipeline_mode = #tpu.pipeline_mode<synchronous>, transform_indices = @transform_15, window_bounds = array<i64: 2, 1, 32>}, {transform_indices = @transform_16, window_bounds = array<i64: 1, 8, 32>}]} {
    %c0 = arith.constant 0 : index
    %c0_0 = arith.constant 0 : index
    %c0_1 = arith.constant 0 : index
    %0 = vector.load %arg1[%c0, %c0_0, %c0_1] : memref<1x8x1xf32, #tpu.memory_space<vmem>>, vector<1x8x1xf32>
    %1 = vector.shape_cast %0 : vector<1x8x1xf32> to vector<8x1xf32>
    %c0_2 = arith.constant 0 : index
    %c0_3 = arith.constant 0 : index
    %2 = vector.load %arg3[%c0_2, %c0_3] : memref<1x32xf32, #tpu.memory_space<vmem>>, vector<1x32xf32>
    %3 = vector.broadcast %1 : vector<8x1xf32> to vector<8x32xf32>
    %4 = vector.broadcast %2 : vector<1x32xf32> to vector<8x32xf32>
    %5 = arith.mulf %3, %4 : vector<8x32xf32>
    %c0_4 = arith.constant 0 : index
    %c0_5 = arith.constant 0 : index
    %6 = vector.load %arg4[%c0_4, %c0_5] : memref<1x32xf32, #tpu.memory_space<vmem>>, vector<1x32xf32>
    %7 = vector.broadcast %6 : vector<1x32xf32> to vector<8x32xf32>
    %8 = arith.addf %5, %7 : vector<8x32xf32>
    %c0_6 = arith.constant 0 : index
    %c0_7 = arith.constant 0 : index
    %9 = vector.load %arg2[%c0_6, %c0_7] : memref<8x32xf32, #tpu.memory_space<vmem>>, vector<8x32xf32>
    %10 = arith.addf %8, %9 : vector<8x32xf32>
    %11 = vector.shape_cast %10 : vector<8x32xf32> to vector<1x8x32xf32>
    %12 = vector.broadcast %11 : vector<1x8x32xf32> to vector<4x8x32xf32>
    %c0_8 = arith.constant 0 : index
    %c0_9 = arith.constant 0 : index
    %c0_10 = arith.constant 0 : index
    %c0_11 = arith.constant 0 : index
    %13 = vector.load %arg5[%c0_8, %c0_9, %c0_10, %c0_11] : memref<2x4x32x24xf32, #tpu.memory_space<vmem>>, vector<1x4x32x24xf32>
    %14 = vector.shape_cast %13 : vector<1x4x32x24xf32> to vector<4x32x24xf32>
    "tpu.trace_start"() <{level = 10 : i32, message = "hsd,hde->hse"}> : () -> ()
    %cst = arith.constant dense<0.000000e+00> : vector<4x8x24xf32>
    %15 = tpu.matmul %12, %14, %cst {dimension_numbers = #tpu.dot_dimension_numbers<[2], [1], [1], [2], [0, 0, 0, 1, 1, 2], [0], [0]>} : vector<4x8x32xf32>, vector<4x32x24xf32>, vector<4x8x24xf32> -> vector<4x8x24xf32>
    "tpu.trace_stop"() : () -> ()
    %c0_12 = arith.constant 0 : index
    %c0_13 = arith.constant 0 : index
    %c0_14 = arith.constant 0 : index
    %c0_15 = arith.constant 0 : index
    %16 = vector.load %arg6[%c0_12, %c0_13, %c0_14, %c0_15] : memref<2x4x1x24xf32, #tpu.memory_space<vmem>>, vector<1x4x1x24xf32>
    %17 = vector.shape_cast %16 : vector<1x4x1x24xf32> to vector<4x1x24xf32>
    %18 = vector.broadcast %17 : vector<4x1x24xf32> to vector<4x8x24xf32>
    %19 = arith.addf %15, %18 : vector<4x8x24xf32>
    %20 = vector.extract_strided_slice %19 {offsets = [0, 0, 0], sizes = [4, 8, 8], strides = [1, 1, 1]} : vector<4x8x24xf32> to vector<4x8x8xf32>
    %cst_16 = arith.constant 0.353553385 : f32
    %21 = vector.broadcast %cst_16 : f32 to vector<4x8x8xf32>
    %22 = arith.mulf %20, %21 : vector<4x8x8xf32>
    %23 = vector.extract_strided_slice %19 {offsets = [0, 0, 8], sizes = [4, 8, 8], strides = [1, 1, 1]} : vector<4x8x24xf32> to vector<4x8x8xf32>
    %24 = vector.extract_strided_slice %19 {offsets = [0, 0, 16], sizes = [4, 8, 8], strides = [1, 1, 1]} : vector<4x8x24xf32> to vector<4x8x8xf32>
    "tpu.trace_start"() <{level = 10 : i32, message = "hqe,hke->hqk"}> : () -> ()
    %cst_17 = arith.constant dense<0.000000e+00> : vector<4x8x8xf32>
    %25 = tpu.matmul %22, %23, %cst_17 {dimension_numbers = #tpu.dot_dimension_numbers<[2], [2], [1], [1], [0, 0, 0, 1, 1, 1], [0], [0]>} : vector<4x8x8xf32>, vector<4x8x8xf32>, vector<4x8x8xf32> -> vector<4x8x8xf32>
    "tpu.trace_stop"() : () -> ()
    %cst_18 = arith.constant dense<0xFF800000> : vector<4x8xf32>
    %26 = vector.multi_reduction <maximumf>, %25, %cst_18 [2] : vector<4x8x8xf32> to vector<4x8xf32>
    %27 = vector.shape_cast %26 : vector<4x8xf32> to vector<4x8x1xf32>
    %28 = vector.broadcast %27 : vector<4x8x1xf32> to vector<4x8x8xf32>
    %29 = arith.subf %25, %28 : vector<4x8x8xf32>
    %30 = math.exp %29 : vector<4x8x8xf32>
    %cst_19 = arith.constant dense<0.000000e+00> : vector<4x8xf32>
    %31 = vector.multi_reduction <add>, %30, %cst_19 [2] : vector<4x8x8xf32> to vector<4x8xf32>
    %32 = vector.shape_cast %31 : vector<4x8xf32> to vector<4x8x1xf32>
    %33 = tpu.reciprocal %32 : vector<4x8x1xf32> -> vector<4x8x1xf32>
    %34 = vector.broadcast %33 : vector<4x8x1xf32> to vector<4x8x8xf32>
    %35 = arith.mulf %30, %34 : vector<4x8x8xf32>
    "tpu.trace_start"() <{level = 10 : i32, message = "hqk,hke->hqe"}> : () -> ()
    %cst_20 = arith.constant dense<0.000000e+00> : vector<4x8x8xf32>
    %36 = tpu.matmul %35, %24, %cst_20 {dimension_numbers = #tpu.dot_dimension_numbers<[2], [1], [1], [2], [0, 0, 0, 1, 1, 2], [0], [0]>} : vector<4x8x8xf32>, vector<4x8x8xf32>, vector<4x8x8xf32> -> vector<4x8x8xf32>
    "tpu.trace_stop"() : () -> ()
    %c0_21 = arith.constant 0 : index
    %c0_22 = arith.constant 0 : index
    %c0_23 = arith.constant 0 : index
    %c0_24 = arith.constant 0 : index
    %37 = vector.load %arg7[%c0_21, %c0_22, %c0_23, %c0_24] : memref<2x4x8x32xf32, #tpu.memory_space<vmem>>, vector<1x4x8x32xf32>
    %38 = vector.shape_cast %37 : vector<1x4x8x32xf32> to vector<4x8x32xf32>
    "tpu.trace_start"() <{level = 10 : i32, message = "hse,hed->hsd"}> : () -> ()
    %cst_25 = arith.constant dense<0.000000e+00> : vector<4x8x32xf32>
    %39 = tpu.matmul %36, %38, %cst_25 {dimension_numbers = #tpu.dot_dimension_numbers<[2], [1], [1], [2], [0, 0, 0, 1, 1, 2], [0], [0]>} : vector<4x8x8xf32>, vector<4x8x32xf32>, vector<4x8x32xf32> -> vector<4x8x32xf32>
    "tpu.trace_stop"() : () -> ()
    %cst_26 = arith.constant dense<0.000000e+00> : vector<8x32xf32>
    %40 = vector.multi_reduction <add>, %39, %cst_26 [0] : vector<4x8x32xf32> to vector<8x32xf32>
    %c0_27 = arith.constant 0 : index
    %c0_28 = arith.constant 0 : index
    %c0_29 = arith.constant 0 : index
    %41 = vector.load %arg8[%c0_27, %c0_28, %c0_29] : memref<2x1x32xf32, #tpu.memory_space<vmem>>, vector<1x1x32xf32>
    %42 = vector.shape_cast %41 : vector<1x1x32xf32> to vector<1x32xf32>
    %43 = vector.broadcast %42 : vector<1x32xf32> to vector<8x32xf32>
    %44 = arith.addf %40, %43 : vector<8x32xf32>
    %45 = arith.addf %10, %44 : vector<8x32xf32>
    %cst_30 = arith.constant dense<0.000000e+00> : vector<8xf32>
    %46 = vector.multi_reduction <add>, %45, %cst_30 [1] : vector<8x32xf32> to vector<8xf32>
    %47 = vector.shape_cast %46 : vector<8xf32> to vector<8x1xf32>
    %cst_31 = arith.constant 3.200000e+01 : f32
    %48 = vector.broadcast %cst_31 : f32 to vector<8x1xf32>
    %49 = arith.divf %47, %48 : vector<8x1xf32>
    %50 = vector.broadcast %49 : vector<8x1xf32> to vector<8x32xf32>
    %51 = arith.subf %45, %50 : vector<8x32xf32>
    %52 = arith.mulf %51, %51 : vector<8x32xf32>
    %cst_32 = arith.constant dense<0.000000e+00> : vector<8xf32>
    %53 = vector.multi_reduction <add>, %52, %cst_32 [1] : vector<8x32xf32> to vector<8xf32>
    %54 = vector.shape_cast %53 : vector<8xf32> to vector<8x1xf32>
    %cst_33 = arith.constant 3.200000e+01 : f32
    %55 = vector.broadcast %cst_33 : f32 to vector<8x1xf32>
    %56 = arith.divf %54, %55 : vector<8x1xf32>
    %57 = vector.broadcast %49 : vector<8x1xf32> to vector<8x32xf32>
    %58 = arith.subf %45, %57 : vector<8x32xf32>
    %cst_34 = arith.constant 9.99999974E-6 : f32
    %59 = vector.broadcast %cst_34 : f32 to vector<8x1xf32>
    %60 = arith.addf %56, %59 : vector<8x1xf32>
    %61 = math.rsqrt %60 : vector<8x1xf32>
    %62 = vector.broadcast %61 : vector<8x1xf32> to vector<8x32xf32>
    %63 = arith.mulf %58, %62 : vector<8x32xf32>
    %c0_35 = arith.constant 0 : index
    %c0_36 = arith.constant 0 : index
    %c0_37 = arith.constant 0 : index
    %64 = vector.load %arg9[%c0_35, %c0_36, %c0_37] : memref<2x1x32xf32, #tpu.memory_space<vmem>>, vector<1x1x32xf32>
    %65 = vector.shape_cast %64 : vector<1x1x32xf32> to vector<1x32xf32>
    %66 = vector.broadcast %65 : vector<1x32xf32> to vector<8x32xf32>
    %67 = arith.mulf %63, %66 : vector<8x32xf32>
    %c0_38 = arith.constant 0 : index
    %c0_39 = arith.constant 0 : index
    %c0_40 = arith.constant 0 : index
    %68 = vector.load %arg10[%c0_38, %c0_39, %c0_40] : memref<2x1x32xf32, #tpu.memory_space<vmem>>, vector<1x1x32xf32>
    %69 = vector.shape_cast %68 : vector<1x1x32xf32> to vector<1x32xf32>
    %70 = vector.broadcast %69 : vector<1x32xf32> to vector<8x32xf32>
    %71 = arith.addf %67, %70 : vector<8x32xf32>
    %c0_41 = arith.constant 0 : index
    %c0_42 = arith.constant 0 : index
    %c0_43 = arith.constant 0 : index
    %72 = vector.load %arg11[%c0_41, %c0_42, %c0_43] : memref<2x32x2048xf32, #tpu.memory_space<vmem>>, vector<1x32x2048xf32>
    %73 = vector.shape_cast %72 : vector<1x32x2048xf32> to vector<32x2048xf32>
    %cst_44 = arith.constant dense<0.000000e+00> : vector<8x2048xf32>
    %74 = tpu.matmul %71, %73, %cst_44 {dimension_numbers = #tpu.dot_dimension_numbers<[1], [0], [0], [1], [0, 0, 1, 1], [], []>} : vector<8x32xf32>, vector<32x2048xf32>, vector<8x2048xf32> -> vector<8x2048xf32>
    %c0_45 = arith.constant 0 : index
    %c0_46 = arith.constant 0 : index
    %c0_47 = arith.constant 0 : index
    %75 = vector.load %arg12[%c0_45, %c0_46, %c0_47] : memref<2x1x2048xf32, #tpu.memory_space<vmem>>, vector<1x1x2048xf32>
    %76 = vector.shape_cast %75 : vector<1x1x2048xf32> to vector<1x2048xf32>
    %77 = vector.broadcast %76 : vector<1x2048xf32> to vector<8x2048xf32>
    %78 = arith.addf %74, %77 : vector<8x2048xf32>
    %cst_48 = arith.constant 0.000000e+00 : f32
    %79 = vector.broadcast %cst_48 : f32 to vector<8x2048xf32>
    %80 = arith.maximumf %78, %79 : vector<8x2048xf32>
    %c0_49 = arith.constant 0 : index
    %c0_50 = arith.constant 0 : index
    %c0_51 = arith.constant 0 : index
    %81 = vector.load %arg13[%c0_49, %c0_50, %c0_51] : memref<2x32x2048xf32, #tpu.memory_space<vmem>>, vector<1x32x2048xf32>
    %82 = vector.shape_cast %81 : vector<1x32x2048xf32> to vector<32x2048xf32>
    %cst_52 = arith.constant dense<0.000000e+00> : vector<8x32xf32>
    %83 = tpu.matmul %80, %82, %cst_52 {dimension_numbers = #tpu.dot_dimension_numbers<[1], [1], [0], [0], [0, 0, 1, 0], [], []>} : vector<8x2048xf32>, vector<32x2048xf32>, vector<8x32xf32> -> vector<8x32xf32>
    %c0_53 = arith.constant 0 : index
    %c0_54 = arith.constant 0 : index
    %c0_55 = arith.constant 0 : index
    %84 = vector.load %arg14[%c0_53, %c0_54, %c0_55] : memref<2x1x32xf32, #tpu.memory_space<vmem>>, vector<1x1x32xf32>
    %85 = vector.shape_cast %84 : vector<1x1x32xf32> to vector<1x32xf32>
    %86 = vector.broadcast %85 : vector<1x32xf32> to vector<8x32xf32>
    %87 = arith.addf %83, %86 : vector<8x32xf32>
    %88 = arith.addf %71, %87 : vector<8x32xf32>
    %cst_56 = arith.constant dense<0.000000e+00> : vector<8xf32>
    %89 = vector.multi_reduction <add>, %88, %cst_56 [1] : vector<8x32xf32> to vector<8xf32>
    %90 = vector.shape_cast %89 : vector<8xf32> to vector<8x1xf32>
    %cst_57 = arith.constant 3.200000e+01 : f32
    %91 = vector.broadcast %cst_57 : f32 to vector<8x1xf32>
    %92 = arith.divf %90, %91 : vector<8x1xf32>
    %93 = vector.broadcast %92 : vector<8x1xf32> to vector<8x32xf32>
    %94 = arith.subf %88, %93 : vector<8x32xf32>
    %95 = arith.mulf %94, %94 : vector<8x32xf32>
    %cst_58 = arith.constant dense<0.000000e+00> : vector<8xf32>
    %96 = vector.multi_reduction <add>, %95, %cst_58 [1] : vector<8x32xf32> to vector<8xf32>
    %97 = vector.shape_cast %96 : vector<8xf32> to vector<8x1xf32>
    %cst_59 = arith.constant 3.200000e+01 : f32
    %98 = vector.broadcast %cst_59 : f32 to vector<8x1xf32>
    %99 = arith.divf %97, %98 : vector<8x1xf32>
    %100 = vector.broadcast %92 : vector<8x1xf32> to vector<8x32xf32>
    %101 = arith.subf %88, %100 : vector<8x32xf32>
    %cst_60 = arith.constant 9.99999974E-6 : f32
    %102 = vector.broadcast %cst_60 : f32 to vector<8x1xf32>
    %103 = arith.addf %99, %102 : vector<8x1xf32>
    %104 = math.rsqrt %103 : vector<8x1xf32>
    %105 = vector.broadcast %104 : vector<8x1xf32> to vector<8x32xf32>
    %106 = arith.mulf %101, %105 : vector<8x32xf32>
    %c0_61 = arith.constant 0 : index
    %c0_62 = arith.constant 0 : index
    %c0_63 = arith.constant 0 : index
    %107 = vector.load %arg15[%c0_61, %c0_62, %c0_63] : memref<2x1x32xf32, #tpu.memory_space<vmem>>, vector<1x1x32xf32>
    %108 = vector.shape_cast %107 : vector<1x1x32xf32> to vector<1x32xf32>
    %109 = vector.broadcast %108 : vector<1x32xf32> to vector<8x32xf32>
    %110 = arith.mulf %106, %109 : vector<8x32xf32>
    %c0_64 = arith.constant 0 : index
    %c0_65 = arith.constant 0 : index
    %c0_66 = arith.constant 0 : index
    %111 = vector.load %arg16[%c0_64, %c0_65, %c0_66] : memref<2x1x32xf32, #tpu.memory_space<vmem>>, vector<1x1x32xf32>
    %112 = vector.shape_cast %111 : vector<1x1x32xf32> to vector<1x32xf32>
    %113 = vector.broadcast %112 : vector<1x32xf32> to vector<8x32xf32>
    %114 = arith.addf %110, %113 : vector<8x32xf32>
    %115 = vector.shape_cast %114 : vector<8x32xf32> to vector<1x8x32xf32>
    %116 = vector.broadcast %115 : vector<1x8x32xf32> to vector<4x8x32xf32>
    %c1 = arith.constant 1 : index
    %c0_67 = arith.constant 0 : index
    %c0_68 = arith.constant 0 : index
    %c0_69 = arith.constant 0 : index
    %117 = vector.load %arg5[%c1, %c0_67, %c0_68, %c0_69] : memref<2x4x32x24xf32, #tpu.memory_space<vmem>>, vector<1x4x32x24xf32>
    %118 = vector.shape_cast %117 : vector<1x4x32x24xf32> to vector<4x32x24xf32>
    "tpu.trace_start"() <{level = 10 : i32, message = "hsd,hde->hse"}> : () -> ()
    %cst_70 = arith.constant dense<0.000000e+00> : vector<4x8x24xf32>
    %119 = tpu.matmul %116, %118, %cst_70 {dimension_numbers = #tpu.dot_dimension_numbers<[2], [1], [1], [2], [0, 0, 0, 1, 1, 2], [0], [0]>} : vector<4x8x32xf32>, vector<4x32x24xf32>, vector<4x8x24xf32> -> vector<4x8x24xf32>
    "tpu.trace_stop"() : () -> ()
    %c1_71 = arith.constant 1 : index
    %c0_72 = arith.constant 0 : index
    %c0_73 = arith.constant 0 : index
    %c0_74 = arith.constant 0 : index
    %120 = vector.load %arg6[%c1_71, %c0_72, %c0_73, %c0_74] : memref<2x4x1x24xf32, #tpu.memory_space<vmem>>, vector<1x4x1x24xf32>
    %121 = vector.shape_cast %120 : vector<1x4x1x24xf32> to vector<4x1x24xf32>
    %122 = vector.broadcast %121 : vector<4x1x24xf32> to vector<4x8x24xf32>
    %123 = arith.addf %119, %122 : vector<4x8x24xf32>
    %124 = vector.extract_strided_slice %123 {offsets = [0, 0, 0], sizes = [4, 8, 8], strides = [1, 1, 1]} : vector<4x8x24xf32> to vector<4x8x8xf32>
    %cst_75 = arith.constant 0.353553385 : f32
    %125 = vector.broadcast %cst_75 : f32 to vector<4x8x8xf32>
    %126 = arith.mulf %124, %125 : vector<4x8x8xf32>
    %127 = vector.extract_strided_slice %123 {offsets = [0, 0, 8], sizes = [4, 8, 8], strides = [1, 1, 1]} : vector<4x8x24xf32> to vector<4x8x8xf32>
    %128 = vector.extract_strided_slice %123 {offsets = [0, 0, 16], sizes = [4, 8, 8], strides = [1, 1, 1]} : vector<4x8x24xf32> to vector<4x8x8xf32>
    "tpu.trace_start"() <{level = 10 : i32, message = "hqe,hke->hqk"}> : () -> ()
    %cst_76 = arith.constant dense<0.000000e+00> : vector<4x8x8xf32>
    %129 = tpu.matmul %126, %127, %cst_76 {dimension_numbers = #tpu.dot_dimension_numbers<[2], [2], [1], [1], [0, 0, 0, 1, 1, 1], [0], [0]>} : vector<4x8x8xf32>, vector<4x8x8xf32>, vector<4x8x8xf32> -> vector<4x8x8xf32>
    "tpu.trace_stop"() : () -> ()
    %cst_77 = arith.constant dense<0xFF800000> : vector<4x8xf32>
    %130 = vector.multi_reduction <maximumf>, %129, %cst_77 [2] : vector<4x8x8xf32> to vector<4x8xf32>
    %131 = vector.shape_cast %130 : vector<4x8xf32> to vector<4x8x1xf32>
    %132 = vector.broadcast %131 : vector<4x8x1xf32> to vector<4x8x8xf32>
    %133 = arith.subf %129, %132 : vector<4x8x8xf32>
    %134 = math.exp %133 : vector<4x8x8xf32>
    %cst_78 = arith.constant dense<0.000000e+00> : vector<4x8xf32>
    %135 = vector.multi_reduction <add>, %134, %cst_78 [2] : vector<4x8x8xf32> to vector<4x8xf32>
    %136 = vector.shape_cast %135 : vector<4x8xf32> to vector<4x8x1xf32>
    %137 = tpu.reciprocal %136 : vector<4x8x1xf32> -> vector<4x8x1xf32>
    %138 = vector.broadcast %137 : vector<4x8x1xf32> to vector<4x8x8xf32>
    %139 = arith.mulf %134, %138 : vector<4x8x8xf32>
    "tpu.trace_start"() <{level = 10 : i32, message = "hqk,hke->hqe"}> : () -> ()
    %cst_79 = arith.constant dense<0.000000e+00> : vector<4x8x8xf32>
    %140 = tpu.matmul %139, %128, %cst_79 {dimension_numbers = #tpu.dot_dimension_numbers<[2], [1], [1], [2], [0, 0, 0, 1, 1, 2], [0], [0]>} : vector<4x8x8xf32>, vector<4x8x8xf32>, vector<4x8x8xf32> -> vector<4x8x8xf32>
    "tpu.trace_stop"() : () -> ()
    %c1_80 = arith.constant 1 : index
    %c0_81 = arith.constant 0 : index
    %c0_82 = arith.constant 0 : index
    %c0_83 = arith.constant 0 : index
    %141 = vector.load %arg7[%c1_80, %c0_81, %c0_82, %c0_83] : memref<2x4x8x32xf32, #tpu.memory_space<vmem>>, vector<1x4x8x32xf32>
    %142 = vector.shape_cast %141 : vector<1x4x8x32xf32> to vector<4x8x32xf32>
    "tpu.trace_start"() <{level = 10 : i32, message = "hse,hed->hsd"}> : () -> ()
    %cst_84 = arith.constant dense<0.000000e+00> : vector<4x8x32xf32>
    %143 = tpu.matmul %140, %142, %cst_84 {dimension_numbers = #tpu.dot_dimension_numbers<[2], [1], [1], [2], [0, 0, 0, 1, 1, 2], [0], [0]>} : vector<4x8x8xf32>, vector<4x8x32xf32>, vector<4x8x32xf32> -> vector<4x8x32xf32>
    "tpu.trace_stop"() : () -> ()
    %cst_85 = arith.constant dense<0.000000e+00> : vector<8x32xf32>
    %144 = vector.multi_reduction <add>, %143, %cst_85 [0] : vector<4x8x32xf32> to vector<8x32xf32>
    %c1_86 = arith.constant 1 : index
    %c0_87 = arith.constant 0 : index
    %c0_88 = arith.constant 0 : index
    %145 = vector.load %arg8[%c1_86, %c0_87, %c0_88] : memref<2x1x32xf32, #tpu.memory_space<vmem>>, vector<1x1x32xf32>
    %146 = vector.shape_cast %145 : vector<1x1x32xf32> to vector<1x32xf32>
    %147 = vector.broadcast %146 : vector<1x32xf32> to vector<8x32xf32>
    %148 = arith.addf %144, %147 : vector<8x32xf32>
    %149 = arith.addf %114, %148 : vector<8x32xf32>
    %cst_89 = arith.constant dense<0.000000e+00> : vector<8xf32>
    %150 = vector.multi_reduction <add>, %149, %cst_89 [1] : vector<8x32xf32> to vector<8xf32>
    %151 = vector.shape_cast %150 : vector<8xf32> to vector<8x1xf32>
    %cst_90 = arith.constant 3.200000e+01 : f32
    %152 = vector.broadcast %cst_90 : f32 to vector<8x1xf32>
    %153 = arith.divf %151, %152 : vector<8x1xf32>
    %154 = vector.broadcast %153 : vector<8x1xf32> to vector<8x32xf32>
    %155 = arith.subf %149, %154 : vector<8x32xf32>
    %156 = arith.mulf %155, %155 : vector<8x32xf32>
    %cst_91 = arith.constant dense<0.000000e+00> : vector<8xf32>
    %157 = vector.multi_reduction <add>, %156, %cst_91 [1] : vector<8x32xf32> to vector<8xf32>
    %158 = vector.shape_cast %157 : vector<8xf32> to vector<8x1xf32>
    %cst_92 = arith.constant 3.200000e+01 : f32
    %159 = vector.broadcast %cst_92 : f32 to vector<8x1xf32>
    %160 = arith.divf %158, %159 : vector<8x1xf32>
    %161 = vector.broadcast %153 : vector<8x1xf32> to vector<8x32xf32>
    %162 = arith.subf %149, %161 : vector<8x32xf32>
    %cst_93 = arith.constant 9.99999974E-6 : f32
    %163 = vector.broadcast %cst_93 : f32 to vector<8x1xf32>
    %164 = arith.addf %160, %163 : vector<8x1xf32>
    %165 = math.rsqrt %164 : vector<8x1xf32>
    %166 = vector.broadcast %165 : vector<8x1xf32> to vector<8x32xf32>
    %167 = arith.mulf %162, %166 : vector<8x32xf32>
    %c1_94 = arith.constant 1 : index
    %c0_95 = arith.constant 0 : index
    %c0_96 = arith.constant 0 : index
    %168 = vector.load %arg9[%c1_94, %c0_95, %c0_96] : memref<2x1x32xf32, #tpu.memory_space<vmem>>, vector<1x1x32xf32>
    %169 = vector.shape_cast %168 : vector<1x1x32xf32> to vector<1x32xf32>
    %170 = vector.broadcast %169 : vector<1x32xf32> to vector<8x32xf32>
    %171 = arith.mulf %167, %170 : vector<8x32xf32>
    %c1_97 = arith.constant 1 : index
    %c0_98 = arith.constant 0 : index
    %c0_99 = arith.constant 0 : index
    %172 = vector.load %arg10[%c1_97, %c0_98, %c0_99] : memref<2x1x32xf32, #tpu.memory_space<vmem>>, vector<1x1x32xf32>
    %173 = vector.shape_cast %172 : vector<1x1x32xf32> to vector<1x32xf32>
    %174 = vector.broadcast %173 : vector<1x32xf32> to vector<8x32xf32>
    %175 = arith.addf %171, %174 : vector<8x32xf32>
    %c1_100 = arith.constant 1 : index
    %c0_101 = arith.constant 0 : index
    %c0_102 = arith.constant 0 : index
    %176 = vector.load %arg11[%c1_100, %c0_101, %c0_102] : memref<2x32x2048xf32, #tpu.memory_space<vmem>>, vector<1x32x2048xf32>
    %177 = vector.shape_cast %176 : vector<1x32x2048xf32> to vector<32x2048xf32>
    %cst_103 = arith.constant dense<0.000000e+00> : vector<8x2048xf32>
    %178 = tpu.matmul %175, %177, %cst_103 {dimension_numbers = #tpu.dot_dimension_numbers<[1], [0], [0], [1], [0, 0, 1, 1], [], []>} : vector<8x32xf32>, vector<32x2048xf32>, vector<8x2048xf32> -> vector<8x2048xf32>
    %c1_104 = arith.constant 1 : index
    %c0_105 = arith.constant 0 : index
    %c0_106 = arith.constant 0 : index
    %179 = vector.load %arg12[%c1_104, %c0_105, %c0_106] : memref<2x1x2048xf32, #tpu.memory_space<vmem>>, vector<1x1x2048xf32>
    %180 = vector.shape_cast %179 : vector<1x1x2048xf32> to vector<1x2048xf32>
    %181 = vector.broadcast %180 : vector<1x2048xf32> to vector<8x2048xf32>
    %182 = arith.addf %178, %181 : vector<8x2048xf32>
    %cst_107 = arith.constant 0.000000e+00 : f32
    %183 = vector.broadcast %cst_107 : f32 to vector<8x2048xf32>
    %184 = arith.maximumf %182, %183 : vector<8x2048xf32>
    %c1_108 = arith.constant 1 : index
    %c0_109 = arith.constant 0 : index
    %c0_110 = arith.constant 0 : index
    %185 = vector.load %arg13[%c1_108, %c0_109, %c0_110] : memref<2x32x2048xf32, #tpu.memory_space<vmem>>, vector<1x32x2048xf32>
    %186 = vector.shape_cast %185 : vector<1x32x2048xf32> to vector<32x2048xf32>
    %cst_111 = arith.constant dense<0.000000e+00> : vector<8x32xf32>
    %187 = tpu.matmul %184, %186, %cst_111 {dimension_numbers = #tpu.dot_dimension_numbers<[1], [1], [0], [0], [0, 0, 1, 0], [], []>} : vector<8x2048xf32>, vector<32x2048xf32>, vector<8x32xf32> -> vector<8x32xf32>
    %c1_112 = arith.constant 1 : index
    %c0_113 = arith.constant 0 : index
    %c0_114 = arith.constant 0 : index
    %188 = vector.load %arg14[%c1_112, %c0_113, %c0_114] : memref<2x1x32xf32, #tpu.memory_space<vmem>>, vector<1x1x32xf32>
    %189 = vector.shape_cast %188 : vector<1x1x32xf32> to vector<1x32xf32>
    %190 = vector.broadcast %189 : vector<1x32xf32> to vector<8x32xf32>
    %191 = arith.addf %187, %190 : vector<8x32xf32>
    %192 = arith.addf %175, %191 : vector<8x32xf32>
    %cst_115 = arith.constant dense<0.000000e+00> : vector<8xf32>
    %193 = vector.multi_reduction <add>, %192, %cst_115 [1] : vector<8x32xf32> to vector<8xf32>
    %194 = vector.shape_cast %193 : vector<8xf32> to vector<8x1xf32>
    %cst_116 = arith.constant 3.200000e+01 : f32
    %195 = vector.broadcast %cst_116 : f32 to vector<8x1xf32>
    %196 = arith.divf %194, %195 : vector<8x1xf32>
    %197 = vector.broadcast %196 : vector<8x1xf32> to vector<8x32xf32>
    %198 = arith.subf %192, %197 : vector<8x32xf32>
    %199 = arith.mulf %198, %198 : vector<8x32xf32>
    %cst_117 = arith.constant dense<0.000000e+00> : vector<8xf32>
    %200 = vector.multi_reduction <add>, %199, %cst_117 [1] : vector<8x32xf32> to vector<8xf32>
    %201 = vector.shape_cast %200 : vector<8xf32> to vector<8x1xf32>
    %cst_118 = arith.constant 3.200000e+01 : f32
    %202 = vector.broadcast %cst_118 : f32 to vector<8x1xf32>
    %203 = arith.divf %201, %202 : vector<8x1xf32>
    %204 = vector.broadcast %196 : vector<8x1xf32> to vector<8x32xf32>
    %205 = arith.subf %192, %204 : vector<8x32xf32>
    %cst_119 = arith.constant 9.99999974E-6 : f32
    %206 = vector.broadcast %cst_119 : f32 to vector<8x1xf32>
    %207 = arith.addf %203, %206 : vector<8x1xf32>
    %208 = math.rsqrt %207 : vector<8x1xf32>
    %209 = vector.broadcast %208 : vector<8x1xf32> to vector<8x32xf32>
    %210 = arith.mulf %205, %209 : vector<8x32xf32>
    %c1_120 = arith.constant 1 : index
    %c0_121 = arith.constant 0 : index
    %c0_122 = arith.constant 0 : index
    %211 = vector.load %arg15[%c1_120, %c0_121, %c0_122] : memref<2x1x32xf32, #tpu.memory_space<vmem>>, vector<1x1x32xf32>
    %212 = vector.shape_cast %211 : vector<1x1x32xf32> to vector<1x32xf32>
    %213 = vector.broadcast %212 : vector<1x32xf32> to vector<8x32xf32>
    %214 = arith.mulf %210, %213 : vector<8x32xf32>
    %c1_123 = arith.constant 1 : index
    %c0_124 = arith.constant 0 : index
    %c0_125 = arith.constant 0 : index
    %215 = vector.load %arg16[%c1_123, %c0_124, %c0_125] : memref<2x1x32xf32, #tpu.memory_space<vmem>>, vector<1x1x32xf32>
    %216 = vector.shape_cast %215 : vector<1x1x32xf32> to vector<1x32xf32>
    %217 = vector.broadcast %216 : vector<1x32xf32> to vector<8x32xf32>
    %218 = arith.addf %214, %217 : vector<8x32xf32>
    %c0_126 = arith.constant 0 : index
    %c0_127 = arith.constant 0 : index
    %c0_128 = arith.constant 0 : index
    %219 = vector.load %arg17[%c0_126, %c0_127, %c0_128] : memref<1x8x32xf32, #tpu.memory_space<vmem>>, vector<1x8x32xf32>
    %220 = vector.shape_cast %219 : vector<1x8x32xf32> to vector<8x32xf32>
    %221 = vector.shape_cast %218 : vector<8x32xf32> to vector<1x8x32xf32>
    tpu.vector_store %arg17[%c0_126, %c0_127, %c0_128], %221 {strides = array<i32>} : memref<1x8x32xf32, #tpu.memory_space<vmem>>, vector<1x8x32xf32>,
    return
  }
  func.func @transform_0(%arg0: i32) -> (i32, i32, i32) {
    %c0_i32 = arith.constant 0 : i32
    %c0_i32_0 = arith.constant 0 : i32
    %c0_i32_1 = arith.constant 0 : i32
    return %arg0, %c0_i32, %c0_i32_0 : i32, i32, i32
  }
  func.func @transform_1(%arg0: i32) -> (i32, i32) {
    %c0_i32 = arith.constant 0 : i32
    %c0_i32_0 = arith.constant 0 : i32
    %c0_i32_1 = arith.constant 0 : i32
    return %c0_i32, %c0_i32_0 : i32, i32
  }
  func.func @transform_2(%arg0: i32) -> (i32, i32) {
    %c0_i32 = arith.constant 0 : i32
    %c0_i32_0 = arith.constant 0 : i32
    %c0_i32_1 = arith.constant 0 : i32
    return %c0_i32, %c0_i32_0 : i32, i32
  }
  func.func @transform_3(%arg0: i32) -> (i32, i32) {
    %c0_i32 = arith.constant 0 : i32
    %c0_i32_0 = arith.constant 0 : i32
    %c0_i32_1 = arith.constant 0 : i32
    return %c0_i32, %c0_i32_0 : i32, i32
  }
  func.func @transform_4(%arg0: i32) -> (i32, i32, i32, i32) {
    %c0_i32 = arith.constant 0 : i32
    %c0_i32_0 = arith.constant 0 : i32
    %c0_i32_1 = arith.constant 0 : i32
    %c0_i32_2 = arith.constant 0 : i32
    %c0_i32_3 = arith.constant 0 : i32
    return %c0_i32, %c0_i32_0, %c0_i32_1, %c0_i32_2 : i32, i32, i32, i32
  }
  func.func @transform_5(%arg0: i32) -> (i32, i32, i32, i32) {
    %c0_i32 = arith.constant 0 : i32
    %c0_i32_0 = arith.constant 0 : i32
    %c0_i32_1 = arith.constant 0 : i32
    %c0_i32_2 = arith.constant 0 : i32
    %c0_i32_3 = arith.constant 0 : i32
    return %c0_i32, %c0_i32_0, %c0_i32_1, %c0_i32_2 : i32, i32, i32, i32
  }
  func.func @transform_6(%arg0: i32) -> (i32, i32, i32, i32) {
    %c0_i32 = arith.constant 0 : i32
    %c0_i32_0 = arith.constant 0 : i32
    %c0_i32_1 = arith.constant 0 : i32
    %c0_i32_2 = arith.constant 0 : i32
    %c0_i32_3 = arith.constant 0 : i32
    return %c0_i32, %c0_i32_0, %c0_i32_1, %c0_i32_2 : i32, i32, i32, i32
  }
  func.func @transform_7(%arg0: i32) -> (i32, i32, i32) {
    %c0_i32 = arith.constant 0 : i32
    %c0_i32_0 = arith.constant 0 : i32
    %c0_i32_1 = arith.constant 0 : i32
    %c0_i32_2 = arith.constant 0 : i32
    return %c0_i32, %c0_i32_0, %c0_i32_1 : i32, i32, i32
  }
  func.func @transform_8(%arg0: i32) -> (i32, i32, i32) {
    %c0_i32 = arith.constant 0 : i32
    %c0_i32_0 = arith.constant 0 : i32
    %c0_i32_1 = arith.constant 0 : i32
    %c0_i32_2 = arith.constant 0 : i32
    return %c0_i32, %c0_i32_0, %c0_i32_1 : i32, i32, i32
  }
  func.func @transform_9(%arg0: i32) -> (i32, i32, i32) {
    %c0_i32 = arith.constant 0 : i32
    %c0_i32_0 = arith.constant 0 : i32
    %c0_i32_1 = arith.constant 0 : i32
    %c0_i32_2 = arith.constant 0 : i32
    return %c0_i32, %c0_i32_0, %c0_i32_1 : i32, i32, i32
  }
  func.func @transform_10(%arg0: i32) -> (i32, i32, i32) {
    %c0_i32 = arith.constant 0 : i32
    %c0_i32_0 = arith.constant 0 : i32
    %c0_i32_1 = arith.constant 0 : i32
    %c0_i32_2 = arith.constant 0 : i32
    return %c0_i32, %c0_i32_0, %c0_i32_1 : i32, i32, i32
  }
  func.func @transform_11(%arg0: i32) -> (i32, i32, i32) {
    %c0_i32 = arith.constant 0 : i32
    %c0_i32_0 = arith.constant 0 : i32
    %c0_i32_1 = arith.constant 0 : i32
    %c0_i32_2 = arith.constant 0 : i32
    return %c0_i32, %c0_i32_0, %c0_i32_1 : i32, i32, i32
  }
  func.func @transform_12(%arg0: i32) -> (i32, i32, i32) {
    %c0_i32 = arith.constant 0 : i32
    %c0_i32_0 = arith.constant 0 : i32
    %c0_i32_1 = arith.constant 0 : i32
    %c0_i32_2 = arith.constant 0 : i32
    return %c0_i32, %c0_i32_0, %c0_i32_1 : i32, i32, i32
  }
  func.func @transform_13(%arg0: i32) -> (i32, i32, i32) {
    %c0_i32 = arith.constant 0 : i32
    %c0_i32_0 = arith.constant 0 : i32
    %c0_i32_1 = arith.constant 0 : i32
    %c0_i32_2 = arith.constant 0 : i32
    return %c0_i32, %c0_i32_0, %c0_i32_1 : i32, i32, i32
  }
  func.func @transform_14(%arg0: i32) -> (i32, i32, i32) {
    %c0_i32 = arith.constant 0 : i32
    %c0_i32_0 = arith.constant 0 : i32
    %c0_i32_1 = arith.constant 0 : i32
    %c0_i32_2 = arith.constant 0 : i32
    return %c0_i32, %c0_i32_0, %c0_i32_1 : i32, i32, i32
  }
  func.func @transform_15(%arg0: i32) -> (i32, i32, i32) {
    %c0_i32 = arith.constant 0 : i32
    %c0_i32_0 = arith.constant 0 : i32
    %c0_i32_1 = arith.constant 0 : i32
    %c0_i32_2 = arith.constant 0 : i32
    return %c0_i32, %c0_i32_0, %c0_i32_1 : i32, i32, i32
  }
  func.func @transform_16(%arg0: i32) -> (i32, i32, i32) {
    %c0_i32 = arith.constant 0 : i32
    %c0_i32_0 = arith.constant 0 : i32
    %c0_i32_1 = arith.constant 0 : i32
    return %arg0, %c0_i32, %c0_i32_0 : i32, i32, i32
  }
}

</mosaic_0001>

<llo_original>
// kernel: squeeze.9
$region0: #{squeeze.9}
  %s0 = inlined_call_operand.vmem [shape: f32[32], index: 0, kind: input, shape index: {}]
  %s1 = inlined_call_operand.vmem [shape: f32[4,1,8], index: 1, kind: output, shape index: {}]
  $region1: #{squeeze.9} parent=0
    #allocation0 [shape = 'u8[4096]{0}', space=vmem, size = 0x1000, scoped, tag = 'scoped mem for output reshape']
    #allocation1 [shape = 'u8[4096]{0}', space=vmem, size = 0x1000, scoped, tag = 'scoped mem for input reshape']
    %s3 = sshll.u32 1, 1
    %s4 = ssub.s32 %s3, 1
    %v5 = vld [vmem:[%s0] sm:%s4]
    %6 = vst [vmem:[#allocation1] sm:%s4] %v5
    %v7 = vld [vmem:[#allocation1] sm:$0x1]
    %vm8 = vcmask 64512
    %9 = vst.msk [vmem:[#allocation0] sm:$0x1] %vm8, %v7
    %v10 = vld [vmem:[#allocation1] sm:$0x1]
    %11 = vrot.lane.b32.xlu0 %v10, 120
    %v12 = vpop.permute.xlu0 %11
    %vm13 = vcmask 64512
    %s14 = scalar_lea.vmem [#allocation0], 1
    %15 = vst.msk [vmem:[%s14] sm:$0x1] %vm13, %v12
    %v16 = vld [vmem:[#allocation1] sm:$0x1]
    %17 = vrot.lane.b32.xlu0 %v16, 112
    %v18 = vpop.permute.xlu0 %17
    %vm19 = vcmask 64512
    %s20 = scalar_lea.vmem [#allocation0], 2
    %21 = vst.msk [vmem:[%s20] sm:$0x1] %vm19, %v18
    %v22 = vld [vmem:[#allocation1] sm:$0x1]
    %23 = vrot.lane.b32.xlu0 %v22, 104
    %v24 = vpop.permute.xlu0 %23
    %vm25 = vcmask 64512
    %s26 = scalar_lea.vmem [#allocation0], 3
    %27 = vst.msk [vmem:[%s26] sm:$0x1] %vm25, %v24
    %s29 = sshll.u32 1, 4
    %s30 = ssub.s32 %s29, 1
    %v32 = vld [vmem:[#allocation0] sm:%s30]
    %s33 = sshll.u32 1, 4
    %s34 = ssub.s32 %s33, 1
    %35 = vst [vmem:[%s1] sm:%s34] %v32

// kernel: _lambda_.1
$region0: #{_lambda_.1}
  #allocation0 [shape = 'u32[]', space=smem, size = 0x4, offset = 0x4, fixed_abs, tag = 'smem constant byte address 0x4 - core index']
  #allocation1 [shape = 'u32[144,128]{1,0:T(1,128)}', space=vmem, size = 0x12000, scoped, tag = 'internal scratch']
  %s0 = inlined_call_operand.vmem [shape: f32[2,8,1], index: 0, kind: input, shape index: {}]
  %s1 = inlined_call_operand.vmem [shape: f32[8,32], index: 1, kind: input, shape index: {}]
  %s2 = inlined_call_operand.vmem [shape: f32[1,32], index: 2, kind: input, shape index: {}]
  %s3 = inlined_call_operand.vmem [shape: f32[1,32], index: 3, kind: input, shape index: {}]
  %s4 = inlined_call_operand.vmem [shape: f32[2,4,32,24], index: 4, kind: input, shape index: {}]
  %s5 = inlined_call_operand.vmem [shape: f32[2,4,1,24], index: 5, kind: input, shape index: {}]
  %s6 = inlined_call_operand.vmem [shape: f32[2,4,8,32], index: 6, kind: input, shape index: {}]
  %s7 = inlined_call_operand.vmem [shape: f32[2,1,32], index: 7, kind: input, shape index: {}]
  %s8 = inlined_call_operand.vmem [shape: f32[2,1,32], index: 8, kind: input, shape index: {}]
  %s9 = inlined_call_operand.vmem [shape: f32[2,1,32], index: 9, kind: input, shape index: {}]
  %s10 = inlined_call_operand.vmem [shape: f32[2,32,2048], index: 10, kind: input, shape index: {}]
  %s11 = inlined_call_operand.vmem [shape: f32[2,1,2048], index: 11, kind: input, shape index: {}]
  %s12 = inlined_call_operand.vmem [shape: f32[2,32,2048], index: 12, kind: input, shape index: {}]
  %s13 = inlined_call_operand.vmem [shape: f32[2,1,32], index: 13, kind: input, shape index: {}]
  %s14 = inlined_call_operand.vmem [shape: f32[2,1,32], index: 14, kind: input, shape index: {}]
  %s15 = inlined_call_operand.vmem [shape: f32[2,1,32], index: 15, kind: input, shape index: {}]
  %s16 = inlined_call_operand.vmem [shape: f32[2,8,32], index: 16, kind: output, shape index: {}]
  %s17 = sld [smem:[#allocation0]]
  $region97: #{_lambda_.1} parent=0
    _
  %s19 = ssub.s32 1, %s17
  %s20 = scalar_select 0, %s19, %s17
  loop: start=0, step=1, limit=4
  $region2: #{_lambda_.1} parent=0 // loop_pre_header
    _
  $region3: #{_lambda_.1} parent=0 // loop_header
    %s22 = sphi 0, %s26
    %p23 = scmp.ge.s32.totalorder %s22, 4
    %s32 = sphi 0, %s34
    %s35 = sphi 0, %s32
    %s36 = sphi 0, %s35
    %s52 = sphi 0, %s36
    %s56 = sphi 0, %s56
    %s58 = sphi 0, %s56
    %s59 = sphi 0, %s58
    %s73 = sphi 0, %s59
    %s77 = sphi 0, %s77
    %s79 = sphi 0, %s77
    %s80 = sphi 0, %s79
    %s94 = sphi 0, %s80
    %s98 = sphi 0, %s98
    %s100 = sphi 0, %s98
    %s101 = sphi 0, %s100
    %s115 = sphi 0, %s101
    %s119 = sphi 0, %s119
    %s121 = sphi 0, %s119
    %s122 = sphi 0, %s121
    %s136 = sphi 0, %s122
    %s140 = sphi 0, %s140
    %s142 = sphi 0, %s140
    %s143 = sphi 0, %s142
    %s157 = sphi 0, %s143
    %s161 = sphi 0, %s161
    %s163 = sphi 0, %s161
    %s164 = sphi 0, %s163
    %s178 = sphi 0, %s164
    %s182 = sphi 0, %s182
    %s184 = sphi 0, %s182
    %s185 = sphi 0, %s184
    %s199 = sphi 0, %s185
    %s203 = sphi 0, %s203
    %s205 = sphi 0, %s203
    %s206 = sphi 0, %s205
    %s220 = sphi 0, %s206
    %s224 = sphi 0, %s224
    %s226 = sphi 0, %s224
    %s227 = sphi 0, %s226
    %s241 = sphi 0, %s227
    %s245 = sphi 0, %s245
    %s247 = sphi 0, %s245
    %s248 = sphi 0, %s247
    %s262 = sphi 0, %s248
    %s266 = sphi 0, %s266
    %s268 = sphi 0, %s266
    %s269 = sphi 0, %s268
    %s283 = sphi 0, %s269
    %s287 = sphi 0, %s287
    %s289 = sphi 0, %s287
    %s290 = sphi 0, %s289
    %s304 = sphi 0, %s290
    %s308 = sphi 0, %s308
    %s310 = sphi 0, %s308
    %s311 = sphi 0, %s310
    %s325 = sphi 0, %s311
    %s329 = sphi 0, %s329
    %s331 = sphi 0, %s329
    %s332 = sphi 0, %s331
    %s346 = sphi 0, %s332
    %s350 = sphi 0, %s350
    %s352 = sphi 0, %s350
    %s353 = sphi 0, %s352
    %s367 = sphi 0, %s353
    %s373 = sphi 0, %s375
    %s376 = sphi 0, %s373
    %s377 = sphi 0, %s376
    %s393 = sphi 0, %s377
  $region4: #{_lambda_.1} parent=0 // loop_header_branch
    %25 = sbr.rel (%p23) target = $region8
  $region5: #{_lambda_.1} parent=0 // loop_body
    %s27 = ssub.s32 %s22, 1
    %s28 = ssub.s32 %s22, 2
    %s29 = sadd.s32 %s22, 1
    %s30 = ssub.s32 %s22, %s29
    %p31 = scmp.eq.s32.totalorder %s30, 0
    %s33 = sadd.s32 %s32, 1
    %s34 = scalar_select %p31, %s32, %s33
    %p37 = pneg %p31
    %p38 = scmp.eq.s32.totalorder %s22, 1
    %p39 = por %p37, %p38
    %p40 = scmp.ne.s32.totalorder %s32, %s35
    %p41 = scmp.eq.s32.totalorder %s22, 0
    %p42 = por %p40, %p41
    %p43 = scmp.ne.s32.totalorder %s32, %s35
    %p44 = scmp.eq.s32.totalorder %s27, 1
    %p45 = por %p43, %p44
    %p46 = scmp.ne.s32.totalorder %s35, %s36
    %p47 = scmp.eq.s32.totalorder %s27, 0
    %p48 = por %p46, %p47
    %p49 = scmp.ne.s32.totalorder %s35, %s36
    %p50 = scmp.eq.s32.totalorder %s28, 1
    %p51 = por %p49, %p50
    %p53 = scmp.ne.s32.totalorder %s36, %s52
    %p54 = scmp.eq.s32.totalorder %s28, 0
    %p55 = por %p53, %p54
    %s57 = sadd.s32 %s56, 1
    %p60 = scmp.eq.s32.totalorder %s22, 1
    %p61 = scmp.ne.s32.totalorder %s56, %s58
    %p62 = scmp.eq.s32.totalorder %s22, 0
    %p63 = por %p61, %p62
    %p64 = scmp.ne.s32.totalorder %s56, %s58
    %p65 = scmp.eq.s32.totalorder %s27, 1
    %p66 = por %p64, %p65
    %p67 = scmp.ne.s32.totalorder %s58, %s59
    %p68 = scmp.eq.s32.totalorder %s27, 0
    %p69 = por %p67, %p68
    %p70 = scmp.ne.s32.totalorder %s58, %s59
    %p71 = scmp.eq.s32.totalorder %s28, 1
    %p72 = por %p70, %p71
    %p74 = scmp.ne.s32.totalorder %s59, %s73
    %p75 = scmp.eq.s32.totalorder %s28, 0
    %p76 = por %p74, %p75
    %s78 = sadd.s32 %s77, 1
    %p81 = scmp.eq.s32.totalorder %s22, 1
    %p82 = scmp.ne.s32.totalorder %s77, %s79
    %p83 = scmp.eq.s32.totalorder %s22, 0
    %p84 = por %p82, %p83
    %p85 = scmp.ne.s32.totalorder %s77, %s79
    %p86 = scmp.eq.s32.totalorder %s27, 1
    %p87 = por %p85, %p86
    %p88 = scmp.ne.s32.totalorder %s79, %s80
    %p89 = scmp.eq.s32.totalorder %s27, 0
    %p90 = por %p88, %p89
    %p91 = scmp.ne.s32.totalorder %s79, %s80
    %p92 = scmp.eq.s32.totalorder %s28, 1
    %p93 = por %p91, %p92
    %p95 = scmp.ne.s32.totalorder %s80, %s94
    %p96 = scmp.eq.s32.totalorder %s28, 0
    %p97 = por %p95, %p96
    %s99 = sadd.s32 %s98, 1
    %p102 = scmp.eq.s32.totalorder %s22, 1
    %p103 = scmp.ne.s32.totalorder %s98, %s100
    %p104 = scmp.eq.s32.totalorder %s22, 0
    %p105 = por %p103, %p104
    %p106 = scmp.ne.s32.totalorder %s98, %s100
    %p107 = scmp.eq.s32.totalorder %s27, 1
    %p108 = por %p106, %p107
    %p109 = scmp.ne.s32.totalorder %s100, %s101
    %p110 = scmp.eq.s32.totalorder %s27, 0
    %p111 = por %p109, %p110
    %p112 = scmp.ne.s32.totalorder %s100, %s101
    %p113 = scmp.eq.s32.totalorder %s28, 1
    %p114 = por %p112, %p113
    %p116 = scmp.ne.s32.totalorder %s101, %s115
    %p117 = scmp.eq.s32.totalorder %s28, 0
    %p118 = por %p116, %p117
    %s120 = sadd.s32 %s119, 1
    %p123 = scmp.eq.s32.totalorder %s22, 1
    %p124 = scmp.ne.s32.totalorder %s119, %s121
    %p125 = scmp.eq.s32.totalorder %s22, 0
    %p126 = por %p124, %p125
    %p127 = scmp.ne.s32.totalorder %s119, %s121
    %p128 = scmp.eq.s32.totalorder %s27, 1
    %p129 = por %p127, %p128
    %p130 = scmp.ne.s32.totalorder %s121, %s122
    %p131 = scmp.eq.s32.totalorder %s27, 0
    %p132 = por %p130, %p131
    %p133 = scmp.ne.s32.totalorder %s121, %s122
    %p134 = scmp.eq.s32.totalorder %s28, 1
    %p135 = por %p133, %p134
    %p137 = scmp.ne.s32.totalorder %s122, %s136
    %p138 = scmp.eq.s32.totalorder %s28, 0
    %p139 = por %p137, %p138
    %s141 = sadd.s32 %s140, 1
    %p144 = scmp.eq.s32.totalorder %s22, 1
    %p145 = scmp.ne.s32.totalorder %s140, %s142
    %p146 = scmp.eq.s32.totalorder %s22, 0
    %p147 = por %p145, %p146
    %p148 = scmp.ne.s32.totalorder %s140, %s142
    %p149 = scmp.eq.s32.totalorder %s27, 1
    %p150 = por %p148, %p149
    %p151 = scmp.ne.s32.totalorder %s142, %s143
    %p152 = scmp.eq.s32.totalorder %s27, 0
    %p153 = por %p151, %p152
    %p154 = scmp.ne.s32.totalorder %s142, %s143
    %p155 = scmp.eq.s32.totalorder %s28, 1
    %p156 = por %p154, %p155
    %p158 = scmp.ne.s32.totalorder %s143, %s157
    %p159 = scmp.eq.s32.totalorder %s28, 0
    %p160 = por %p158, %p159
    %s162 = sadd.s32 %s161, 1
    %p165 = scmp.eq.s32.totalorder %s22, 1
    %p166 = scmp.ne.s32.totalorder %s161, %s163
    %p167 = scmp.eq.s32.totalorder %s22, 0
    %p168 = por %p166, %p167
    %p169 = scmp.ne.s32.totalorder %s161, %s163
    %p170 = scmp.eq.s32.totalorder %s27, 1
    %p171 = por %p169, %p170
    %p172 = scmp.ne.s32.totalorder %s163, %s164
    %p173 = scmp.eq.s32.totalorder %s27, 0
    %p174 = por %p172, %p173
    %p175 = scmp.ne.s32.totalorder %s163, %s164
    %p176 = scmp.eq.s32.totalorder %s28, 1
    %p177 = por %p175, %p176
    %p179 = scmp.ne.s32.totalorder %s164, %s178
    %p180 = scmp.eq.s32.totalorder %s28, 0
    %p181 = por %p179, %p180
    %s183 = sadd.s32 %s182, 1
    %p186 = scmp.eq.s32.totalorder %s22, 1
    %p187 = scmp.ne.s32.totalorder %s182, %s184
    %p188 = scmp.eq.s32.totalorder %s22, 0
    %p189 = por %p187, %p188
    %p190 = scmp.ne.s32.totalorder %s182, %s184
    %p191 = scmp.eq.s32.totalorder %s27, 1
    %p192 = por %p190, %p191
    %p193 = scmp.ne.s32.totalorder %s184, %s185
    %p194 = scmp.eq.s32.totalorder %s27, 0
    %p195 = por %p193, %p194
    %p196 = scmp.ne.s32.totalorder %s184, %s185
    %p197 = scmp.eq.s32.totalorder %s28, 1
    %p198 = por %p196, %p197
    %p200 = scmp.ne.s32.totalorder %s185, %s199
    %p201 = scmp.eq.s32.totalorder %s28, 0
    %p202 = por %p200, %p201
    %s204 = sadd.s32 %s203, 1
    %p207 = scmp.eq.s32.totalorder %s22, 1
    %p208 = scmp.ne.s32.totalorder %s203, %s205
    %p209 = scmp.eq.s32.totalorder %s22, 0
    %p210 = por %p208, %p209
    %p211 = scmp.ne.s32.totalorder %s203, %s205
    %p212 = scmp.eq.s32.totalorder %s27, 1
    %p213 = por %p211, %p212
    %p214 = scmp.ne.s32.totalorder %s205, %s206
    %p215 = scmp.eq.s32.totalorder %s27, 0
    %p216 = por %p214, %p215
    %p217 = scmp.ne.s32.totalorder %s205, %s206
    %p218 = scmp.eq.s32.totalorder %s28, 1
    %p219 = por %p217, %p218
    %p221 = scmp.ne.s32.totalorder %s206, %s220
    %p222 = scmp.eq.s32.totalorder %s28, 0
    %p223 = por %p221, %p222
    %s225 = sadd.s32 %s224, 1
    %p228 = scmp.eq.s32.totalorder %s22, 1
    %p229 = scmp.ne.s32.totalorder %s224, %s226
    %p230 = scmp.eq.s32.totalorder %s22, 0
    %p231 = por %p229, %p230
    %p232 = scmp.ne.s32.totalorder %s224, %s226
    %p233 = scmp.eq.s32.totalorder %s27, 1
    %p234 = por %p232, %p233
    %p235 = scmp.ne.s32.totalorder %s226, %s227
    %p236 = scmp.eq.s32.totalorder %s27, 0
    %p237 = por %p235, %p236
    %p238 = scmp.ne.s32.totalorder %s226, %s227
    %p239 = scmp.eq.s32.totalorder %s28, 1
    %p240 = por %p238, %p239
    %p242 = scmp.ne.s32.totalorder %s227, %s241
    %p243 = scmp.eq.s32.totalorder %s28, 0
    %p244 = por %p242, %p243
    %s246 = sadd.s32 %s245, 1
    %p249 = scmp.eq.s32.totalorder %s22, 1
    %p250 = scmp.ne.s32.totalorder %s245, %s247
    %p251 = scmp.eq.s32.totalorder %s22, 0
    %p252 = por %p250, %p251
    %p253 = scmp.ne.s32.totalorder %s245, %s247
    %p254 = scmp.eq.s32.totalorder %s27, 1
    %p255 = por %p253, %p254
    %p256 = scmp.ne.s32.totalorder %s247, %s248
    %p257 = scmp.eq.s32.totalorder %s27, 0
    %p258 = por %p256, %p257
    %p259 = scmp.ne.s32.totalorder %s247, %s248
    %p260 = scmp.eq.s32.totalorder %s28, 1
    %p261 = por %p259, %p260
    %p263 = scmp.ne.s32.totalorder %s248, %s262
    %p264 = scmp.eq.s32.totalorder %s28, 0
    %p265 = por %p263, %p264
    %s267 = sadd.s32 %s266, 1
    %p270 = scmp.eq.s32.totalorder %s22, 1
    %p271 = scmp.ne.s32.totalorder %s266, %s268
    %p272 = scmp.eq.s32.totalorder %s22, 0
    %p273 = por %p271, %p272
    %p274 = scmp.ne.s32.totalorder %s266, %s268
    %p275 = scmp.eq.s32.totalorder %s27, 1
    %p276 = por %p274, %p275
    %p277 = scmp.ne.s32.totalorder %s268, %s269
    %p278 = scmp.eq.s32.totalorder %s27, 0
    %p279 = por %p277, %p278
    %p280 = scmp.ne.s32.totalorder %s268, %s269
    %p281 = scmp.eq.s32.totalorder %s28, 1
    %p282 = por %p280, %p281
    %p284 = scmp.ne.s32.totalorder %s269, %s283
    %p285 = scmp.eq.s32.totalorder %s28, 0
    %p286 = por %p284, %p285
    %s288 = sadd.s32 %s287, 1
    %p291 = scmp.eq.s32.totalorder %s22, 1
    %p292 = scmp.ne.s32.totalorder %s287, %s289
    %p293 = scmp.eq.s32.totalorder %s22, 0
    %p294 = por %p292, %p293
    %p295 = scmp.ne.s32.totalorder %s287, %s289
    %p296 = scmp.eq.s32.totalorder %s27, 1
    %p297 = por %p295, %p296
    %p298 = scmp.ne.s32.totalorder %s289, %s290
    %p299 = scmp.eq.s32.totalorder %s27, 0
    %p300 = por %p298, %p299
    %p301 = scmp.ne.s32.totalorder %s289, %s290
    %p302 = scmp.eq.s32.totalorder %s28, 1
    %p303 = por %p301, %p302
    %p305 = scmp.ne.s32.totalorder %s290, %s304
    %p306 = scmp.eq.s32.totalorder %s28, 0
    %p307 = por %p305, %p306
    %s309 = sadd.s32 %s308, 1
    %p312 = scmp.eq.s32.totalorder %s22, 1
    %p313 = scmp.ne.s32.totalorder %s308, %s310
    %p314 = scmp.eq.s32.totalorder %s22, 0
    %p315 = por %p313, %p314
    %p316 = scmp.ne.s32.totalorder %s308, %s310
    %p317 = scmp.eq.s32.totalorder %s27, 1
    %p318 = por %p316, %p317
    %p319 = scmp.ne.s32.totalorder %s310, %s311
    %p320 = scmp.eq.s32.totalorder %s27, 0
    %p321 = por %p319, %p320
    %p322 = scmp.ne.s32.totalorder %s310, %s311
    %p323 = scmp.eq.s32.totalorder %s28, 1
    %p324 = por %p322, %p323
    %p326 = scmp.ne.s32.totalorder %s311, %s325
    %p327 = scmp.eq.s32.totalorder %s28, 0
    %p328 = por %p326, %p327
    %s330 = sadd.s32 %s329, 1
    %p333 = scmp.eq.s32.totalorder %s22, 1
    %p334 = scmp.ne.s32.totalorder %s329, %s331
    %p335 = scmp.eq.s32.totalorder %s22, 0
    %p336 = por %p334, %p335
    %p337 = scmp.ne.s32.totalorder %s329, %s331
    %p338 = scmp.eq.s32.totalorder %s27, 1
    %p339 = por %p337, %p338
    %p340 = scmp.ne.s32.totalorder %s331, %s332
    %p341 = scmp.eq.s32.totalorder %s27, 0
    %p342 = por %p340, %p341
    %p343 = scmp.ne.s32.totalorder %s331, %s332
    %p344 = scmp.eq.s32.totalorder %s28, 1
    %p345 = por %p343, %p344
    %p347 = scmp.ne.s32.totalorder %s332, %s346
    %p348 = scmp.eq.s32.totalorder %s28, 0
    %p349 = por %p347, %p348
    %s351 = sadd.s32 %s350, 1
    %p354 = scmp.eq.s32.totalorder %s22, 1
    %p355 = scmp.ne.s32.totalorder %s350, %s352
    %p356 = scmp.eq.s32.totalorder %s22, 0
    %p357 = por %p355, %p356
    %p358 = scmp.ne.s32.totalorder %s350, %s352
    %p359 = scmp.eq.s32.totalorder %s27, 1
    %p360 = por %p358, %p359
    %p361 = scmp.ne.s32.totalorder %s352, %s353
    %p362 = scmp.eq.s32.totalorder %s27, 0
    %p363 = por %p361, %p362
    %p364 = scmp.ne.s32.totalorder %s352, %s353
    %p365 = scmp.eq.s32.totalorder %s28, 1
    %p366 = por %p364, %p365
    %p368 = scmp.ne.s32.totalorder %s353, %s367
    %p369 = scmp.eq.s32.totalorder %s28, 0
    %p370 = por %p368, %p369
    %s371 = ssub.s32 %s22, %s29
    %p372 = scmp.eq.s32.totalorder %s371, 0
    %s374 = sadd.s32 %s373, 1
    %s375 = scalar_select %p372, %s373, %s374
    %p378 = pneg %p372
    %p379 = scmp.eq.s32.totalorder %s22, 1
    %p380 = por %p378, %p379
    %p381 = scmp.ne.s32.totalorder %s373, %s376
    %p382 = scmp.eq.s32.totalorder %s22, 0
    %p383 = por %p381, %p382
    %p384 = scmp.ne.s32.totalorder %s373, %s376
    %p385 = scmp.eq.s32.totalorder %s27, 1
    %p386 = por %p384, %p385
    %p387 = scmp.ne.s32.totalorder %s376, %s377
    %p388 = scmp.eq.s32.totalorder %s27, 0
    %p389 = por %p387, %p388
    %p390 = scmp.ne.s32.totalorder %s376, %s377
    %p391 = scmp.eq.s32.totalorder %s28, 1
    %p392 = por %p390, %p391
    %p394 = scmp.ne.s32.totalorder %s377, %s393
    %p395 = scmp.eq.s32.totalorder %s28, 0
    %p396 = por %p394, %p395
    %p397 = scmp.le.s32.totalorder 1, %s22
    %p398 = scmp.lt.s32.totalorder %s22, 3
    %p399 = pnand %p397, %p398
    %p400 = pneg %p399
    // Predicated region
    $region9: #{_lambda_.1} parent=5 // pred_check
      _
    $region10: #{_lambda_.1} parent=5 // pred_check_branch
      %402 = sbr.rel (%p399) target = $region12
    $region11: #{_lambda_.1} parent=5 // pred_region
      %s403 = ssub.s32 %s22, 1
      // Predicated region
      $region13: #{_lambda_.1} parent=11 // pred_check
        %p404 = pneg %p69
      $region14: #{_lambda_.1} parent=11 // pred_check_branch
        %406 = sbr.rel (%p404) target = $region16
      $region15: #{_lambda_.1} parent=11 // pred_region
        _
      $region16: #{_lambda_.1} parent=11 // pred_fallthru
        _
      // Predicated region
      $region17: #{_lambda_.1} parent=11 // pred_check
        %p407 = pneg %p90
      $region18: #{_lambda_.1} parent=11 // pred_check_branch
        %409 = sbr.rel (%p407) target = $region20
      $region19: #{_lambda_.1} parent=11 // pred_region
        _
      $region20: #{_lambda_.1} parent=11 // pred_fallthru
        _
      // Predicated region
      $region21: #{_lambda_.1} parent=11 // pred_check
        %p410 = pneg %p111
      $region22: #{_lambda_.1} parent=11 // pred_check_branch
        %412 = sbr.rel (%p410) target = $region24
      $region23: #{_lambda_.1} parent=11 // pred_region
        _
      $region24: #{_lambda_.1} parent=11 // pred_fallthru
        _
      // Predicated region
      $region25: #{_lambda_.1} parent=11 // pred_check
        %p413 = pneg %p132
      $region26: #{_lambda_.1} parent=11 // pred_check_branch
        %415 = sbr.rel (%p413) target = $region28
      $region27: #{_lambda_.1} parent=11 // pred_region
        _
      $region28: #{_lambda_.1} parent=11 // pred_fallthru
        _
      // Predicated region
      $region29: #{_lambda_.1} parent=11 // pred_check
        %p416 = pneg %p153
      $region30: #{_lambda_.1} parent=11 // pred_check_branch
        %418 = sbr.rel (%p416) target = $region32
      $region31: #{_lambda_.1} parent=11 // pred_region
        _
      $region32: #{_lambda_.1} parent=11 // pred_fallthru
        _
      // Predicated region
      $region33: #{_lambda_.1} parent=11 // pred_check
        %p419 = pneg %p174
      $region34: #{_lambda_.1} parent=11 // pred_check_branch
        %421 = sbr.rel (%p419) target = $region36
      $region35: #{_lambda_.1} parent=11 // pred_region
        _
      $region36: #{_lambda_.1} parent=11 // pred_fallthru
        _
      // Predicated region
      $region37: #{_lambda_.1} parent=11 // pred_check
        %p422 = pneg %p195
      $region38: #{_lambda_.1} parent=11 // pred_check_branch
        %424 = sbr.rel (%p422) target = $region40
      $region39: #{_lambda_.1} parent=11 // pred_region
        _
      $region40: #{_lambda_.1} parent=11 // pred_fallthru
        _
      // Predicated region
      $region41: #{_lambda_.1} parent=11 // pred_check
        %p425 = pneg %p216
      $region42: #{_lambda_.1} parent=11 // pred_check_branch
        %427 = sbr.rel (%p425) target = $region44
      $region43: #{_lambda_.1} parent=11 // pred_region
        _
      $region44: #{_lambda_.1} parent=11 // pred_fallthru
        _
      // Predicated region
      $region45: #{_lambda_.1} parent=11 // pred_check
        %p428 = pneg %p237
      $region46: #{_lambda_.1} parent=11 // pred_check_branch
        %430 = sbr.rel (%p428) target = $region48
      $region47: #{_lambda_.1} parent=11 // pred_region
        _
      $region48: #{_lambda_.1} parent=11 // pred_fallthru
        _
      // Predicated region
      $region49: #{_lambda_.1} parent=11 // pred_check
        %p431 = pneg %p258
      $region50: #{_lambda_.1} parent=11 // pred_check_branch
        %433 = sbr.rel (%p431) target = $region52
      $region51: #{_lambda_.1} parent=11 // pred_region
        _
      $region52: #{_lambda_.1} parent=11 // pred_fallthru
        _
      // Predicated region
      $region53: #{_lambda_.1} parent=11 // pred_check
        %p434 = pneg %p279
      $region54: #{_lambda_.1} parent=11 // pred_check_branch
        %436 = sbr.rel (%p434) target = $region56
      $region55: #{_lambda_.1} parent=11 // pred_region
        _
      $region56: #{_lambda_.1} parent=11 // pred_fallthru
        _
      // Predicated region
      $region57: #{_lambda_.1} parent=11 // pred_check
        %p437 = pneg %p300
      $region58: #{_lambda_.1} parent=11 // pred_check_branch
        %439 = sbr.rel (%p437) target = $region60
      $region59: #{_lambda_.1} parent=11 // pred_region
        _
      $region60: #{_lambda_.1} parent=11 // pred_fallthru
        _
      // Predicated region
      $region61: #{_lambda_.1} parent=11 // pred_check
        %p440 = pneg %p321
      $region62: #{_lambda_.1} parent=11 // pred_check_branch
        %442 = sbr.rel (%p440) target = $region64
      $region63: #{_lambda_.1} parent=11 // pred_region
        _
      $region64: #{_lambda_.1} parent=11 // pred_fallthru
        _
      // Predicated region
      $region65: #{_lambda_.1} parent=11 // pred_check
        %p443 = pneg %p342
      $region66: #{_lambda_.1} parent=11 // pred_check_branch
        %445 = sbr.rel (%p443) target = $region68
      $region67: #{_lambda_.1} parent=11 // pred_region
        _
      $region68: #{_lambda_.1} parent=11 // pred_fallthru
        _
      // Predicated region
      $region69: #{_lambda_.1} parent=11 // pred_check
        %p446 = pneg %p363
      $region70: #{_lambda_.1} parent=11 // pred_check_branch
        %448 = sbr.rel (%p446) target = $region72
      $region71: #{_lambda_.1} parent=11 // pred_region
        _
      $region72: #{_lambda_.1} parent=11 // pred_fallthru
        _
    $region12: #{_lambda_.1} parent=5 // pred_fallthru
      _
    %p449 = scmp.lt.s32.totalorder %s22, 2
    // Predicated region
    $region73: #{_lambda_.1} parent=5 // pred_check
      %p450 = pneg %p449
    $region74: #{_lambda_.1} parent=5 // pred_check_branch
      %452 = sbr.rel (%p450) target = $region76
    $region75: #{_lambda_.1} parent=5 // pred_region
      // Predicated region
      $region77: #{_lambda_.1} parent=75 // pred_check
        %p453 = pneg %p42
      $region78: #{_lambda_.1} parent=75 // pred_check_branch
        %455 = sbr.rel (%p453) target = $region80
      $region79: #{_lambda_.1} parent=75 // pred_region
        %p456 = scmp.lt.s32.totalorder %s22, 1
        %s457 = scalar_select %p456, %s22, 1
        %s458 = smul.addr %s457, 8
        %s459 = scalar_lea.vmem %s0, %s458
      $region80: #{_lambda_.1} parent=75 // pred_fallthru
        _
    $region76: #{_lambda_.1} parent=5 // pred_fallthru
      _
    %p460 = scmp.le.s32.totalorder 1, %s22
    %p461 = scmp.lt.s32.totalorder %s22, 3
    %p462 = pnand %p460, %p461
    %p463 = pneg %p462
    // Predicated region
    $region81: #{_lambda_.1} parent=5 // pred_check
      _
    $region82: #{_lambda_.1} parent=5 // pred_check_branch
      %465 = sbr.rel (%p462) target = $region84
    $region83: #{_lambda_.1} parent=5 // pred_region
      %s466 = ssub.s32 %s22, 1
      %p467 = scmp.lt.s32.totalorder %s27, 1
      %s468 = scalar_select %p467, %s27, 1
      %s469 = smul.addr %s468, 8
      %s470 = scalar_lea.vmem %s0, %s469
      %p471 = pneg %p48
      %p472 = pneg %p45
      %p473 = pneg %p69
      %p474 = pneg %p66
      %p475 = pneg %p90
      %p476 = pneg %p87
      %p477 = pneg %p111
      %p478 = pneg %p108
      %p479 = pneg %p132
      %p480 = pneg %p129
      %p481 = pneg %p153
      %p482 = pneg %p150
      %p483 = pneg %p174
      %p484 = pneg %p171
      %p485 = pneg %p195
      %p486 = pneg %p192
      %p487 = pneg %p216
      %p488 = pneg %p213
      %p489 = pneg %p237
      %p490 = pneg %p234
      %p491 = pneg %p258
      %p492 = pneg %p255
      %p493 = pneg %p279
      %p494 = pneg %p276
      %p495 = pneg %p300
      %p496 = pneg %p297
      %p497 = pneg %p321
      %p498 = pneg %p318
      %p499 = pneg %p342
      %p500 = pneg %p339
      %p501 = pneg %p363
      %p502 = pneg %p360
      %p503 = pneg %p389
      %p504 = pneg %p386
      %p505 = scmp.lt.s32.totalorder %s27, 1
      %s506 = scalar_select %p505, %s27, 1
      %s507 = smul.addr %s506, 8
      %s508 = scalar_lea.vmem %s16, %s507
      %p509 = scmp.lt.s32.totalorder %s27, 1
      %s510 = scalar_select %p509, %s27, 1
      %s511 = smul.addr %s510, 8
      %s512 = scalar_lea.vmem %s0, %s511
      %p513 = scmp.lt.s32.totalorder %s27, 1
      %s514 = scalar_select %p513, %s27, 1
      %s515 = smul.addr %s514, 8
      %s516 = scalar_lea.vmem %s16, %s515
      %v517 = vld [vmem:[%s512] sm:$0xff]
      %v518 = vld [vmem:[%s2] sm:$0x1]
      %520 = vset.pattern.permute.xlu0 0
      %521 = vperm.xlu0 %520, %v517
      %v522 = vpop.permute.xlu0 %521
      %v525 = vlaneseq
      %v526 = vshrl.u32 %v525, 7
      %v527 = vsub.s32 0, %v526
      %v528 = vrot.slane %v518, %v527
      %v530 = vmul.f32 %v522, %v528
      %v531 = vld [vmem:[%s3] sm:$0x1]
      %v533 = vlaneseq
      %v534 = vshrl.u32 %v533, 7
      %v535 = vsub.s32 0, %v534
      %v536 = vrot.slane %v531, %v535
      %v538 = vadd.f32 %v530, %v536
      %v539 = vld [vmem:[%s1] sm:$0xff]
      %v540 = vadd.f32 %v538, %v539
      %v541 = vld [vmem:[%s4] sm:$0xff]
      %v542 = vld [vmem:[%s4 + $0x8] sm:$0xff]
      %v543 = vld [vmem:[%s4 + $0x10] sm:$0xff]
      %v544 = vld [vmem:[%s4 + $0x18] sm:$0xff]
      %v545 = vld [vmem:[%s4 + $0x20] sm:$0xff]
      %v546 = vld [vmem:[%s4 + $0x28] sm:$0xff]
      %v547 = vld [vmem:[%s4 + $0x30] sm:$0xff]
      %v548 = vld [vmem:[%s4 + $0x38] sm:$0xff]
      %v549 = vld [vmem:[%s4 + $0x40] sm:$0xff]
      %v550 = vld [vmem:[%s4 + $0x48] sm:$0xff]
      %v551 = vld [vmem:[%s4 + $0x50] sm:$0xff]
      %v552 = vld [vmem:[%s4 + $0x58] sm:$0xff]
      %v553 = vld [vmem:[%s4 + $0x60] sm:$0xff]
      %v554 = vld [vmem:[%s4 + $0x68] sm:$0xff]
      %v555 = vld [vmem:[%s4 + $0x70] sm:$0xff]
      %v556 = vld [vmem:[%s4 + $0x78] sm:$0xff]
      %v557 = vld [vmem:[%s5] sm:$0x1]
      %v558 = vld [vmem:[%s5 + $0x1] sm:$0x1]
      %v559 = vld [vmem:[%s5 + $0x2] sm:$0x1]
      %v560 = vld [vmem:[%s5 + $0x3] sm:$0x1]
      %v565 = vlaneseq
      %v566 = vshrl.u32 %v565, 7
      %v567 = vsub.s32 0, %v566
      %v568 = vrot.slane %v557, %v567
      %v569 = vlaneseq
      %v570 = vshrl.u32 %v569, 7
      %v571 = vsub.s32 0, %v570
      %v572 = vrot.slane %v558, %v571
      %v573 = vlaneseq
      %v574 = vshrl.u32 %v573, 7
      %v575 = vsub.s32 0, %v574
      %v576 = vrot.slane %v559, %v575
      %v577 = vlaneseq
      %v578 = vshrl.u32 %v577, 7
      %v579 = vsub.s32 0, %v578
      %v580 = vrot.slane %v560, %v579
      %vm585 = vcmask 261120
      %v587 = vsel %vm585, %v540, 0
      %589 = vmatprep.subr.mxu0 0.0
      %590 = vmatpush1.msra.mxu0 0.0
      %591 = vmatprep.subr.mxu0 0.0
      %592 = vmatpush1.msra.mxu0 0.0
      %593 = vmatprep.subr.mxu0 0.0
      %594 = vmatpush1.msra.mxu0 0.0
      %595 = vmatprep.subr.mxu0 0.0
      %596 = vmatpush1.msra.mxu0 0.0
      %597 = vmatprep.subr.mxu0 0.0
      %598 = vmatpush1.msra.mxu0 0.0
      %599 = vmatprep.subr.mxu0 0.0
      %600 = vmatpush1.msra.mxu0 0.0
      %601 = vmatprep.subr.mxu0 0.0
      %602 = vmatpush1.msra.mxu0 0.0
      %603 = vmatprep.subr.mxu0 0.0
      %604 = vmatpush1.msra.mxu0 0.0
      %605 = vmatprep.subr.mxu0 0.0
      %606 = vmatpush1.msra.mxu0 0.0
      %607 = vmatprep.subr.mxu0 0.0
      %608 = vmatpush1.msra.mxu0 0.0
      %609 = vmatprep.subr.mxu0 0.0
      %610 = vmatpush1.msra.mxu0 0.0
      %611 = vmatprep.subr.mxu0 0.0
      %612 = vmatpush1.msra.mxu0 0.0
      %613 = vmatprep.subr.mxu0 0.0
      %614 = vmatpush1.msra.mxu0 %v544
      %615 = vmatprep.subr.mxu0 0.0
      %616 = vmatpush1.msra.mxu0 %v543
      %617 = vmatprep.subr.mxu0 0.0
      %618 = vmatpush1.msra.mxu0 %v542
      %619 = vmatprep.subr.mxu0 0.0
      %620 = vmatpush1.msra.mxu0 %v541
      %621 = vmatprep.subr.mxu0 0.0
      %622 = vmatpush2.msra.mxu0 0.0
      %623 = vmatprep.subr.mxu0 0.0
      %624 = vmatpush2.msra.mxu0 0.0
      %625 = vmatprep.subr.mxu0 0.0
      %626 = vmatpush2.msra.mxu0 0.0
      %627 = vmatprep.subr.mxu0 0.0
      %628 = vmatpush2.msra.mxu0 0.0
      %629 = vmatprep.subr.mxu0 0.0
      %630 = vmatpush2.msra.mxu0 0.0
      %631 = vmatprep.subr.mxu0 0.0
      %632 = vmatpush2.msra.mxu0 0.0
      %633 = vmatprep.subr.mxu0 0.0
      %634 = vmatpush2.msra.mxu0 0.0
      %635 = vmatprep.subr.mxu0 0.0
      %636 = vmatpush2.msra.mxu0 0.0
      %637 = vmatprep.subr.mxu0 0.0
      %638 = vmatpush2.msra.mxu0 0.0
      %639 = vmatprep.subr.mxu0 0.0
      %640 = vmatpush2.msra.mxu0 0.0
      %641 = vmatprep.subr.mxu0 0.0
      %642 = vmatpush2.msra.mxu0 0.0
      %643 = vmatprep.subr.mxu0 0.0
      %644 = vmatpush2.msra.mxu0 0.0
      %645 = vmatprep.subr.mxu0 0.0
      %646 = vmatpush2.msra.mxu0 0.0
      %647 = vmatprep.subr.mxu0 0.0
      %648 = vmatpush2.msra.mxu0 0.0
      %649 = vmatprep.subr.mxu0 0.0
      %650 = vmatpush2.msra.mxu0 0.0
      %651 = vmatprep.subr.mxu0 0.0
      %652 = vmatpush2.msra.mxu0 0.0
      %653 = vmatprep.mubr.f32.mxu0 0.0
      %654 = vmatmul.mubr.f32.gmra.mxu0 %v587
      %v655 = vpop.f32.mrf.mxu0
      %v656 = vadd.f32 %v568, %v655
      %v657 = vpop.f32.mrf.mxu0
      %658 = vdwg.mxu0
      %659 = vmatprep.subr.mxu0 0.0
      %660 = vmatpush1.msra.mxu0 0.0
      %661 = vmatprep.subr.mxu0 0.0
      %662 = vmatpush1.msra.mxu0 0.0
      %663 = vmatprep.subr.mxu0 0.0
      %664 = vmatpush1.msra.mxu0 0.0
      %665 = vmatprep.subr.mxu0 0.0
      %666 = vmatpush1.msra.mxu0 0.0
      %667 = vmatprep.subr.mxu0 0.0
      %668 = vmatpush1.msra.mxu0 0.0
      %669 = vmatprep.subr.mxu0 0.0
      %670 = vmatpush1.msra.mxu0 0.0
      %671 = vmatprep.subr.mxu0 0.0
      %672 = vmatpush1.msra.mxu0 0.0
      %673 = vmatprep.subr.mxu0 0.0
      %674 = vmatpush1.msra.mxu0 0.0
      %675 = vmatprep.subr.mxu0 0.0
      %676 = vmatpush1.msra.mxu0 0.0
      %677 = vmatprep.subr.mxu0 0.0
      %678 = vmatpush1.msra.mxu0 0.0
      %679 = vmatprep.subr.mxu0 0.0
      %680 = vmatpush1.msra.mxu0 0.0
      %681 = vmatprep.subr.mxu0 0.0
      %682 = vmatpush1.msra.mxu0 0.0
      %683 = vmatprep.subr.mxu0 0.0
      %684 = vmatpush1.msra.mxu0 %v548
      %685 = vmatprep.subr.mxu0 0.0
      %686 = vmatpush1.msra.mxu0 %v547
      %687 = vmatprep.subr.mxu0 0.0
      %688 = vmatpush1.msra.mxu0 %v546
      %689 = vmatprep.subr.mxu0 0.0
      %690 = vmatpush1.msra.mxu0 %v545
      %691 = vmatprep.subr.mxu0 0.0
      %692 = vmatpush2.msra.mxu0 0.0
      %693 = vmatprep.subr.mxu0 0.0
      %694 = vmatpush2.msra.mxu0 0.0
      %695 = vmatprep.subr.mxu0 0.0
      %696 = vmatpush2.msra.mxu0 0.0
      %697 = vmatprep.subr.mxu0 0.0
      %698 = vmatpush2.msra.mxu0 0.0
      %699 = vmatprep.subr.mxu0 0.0
      %700 = vmatpush2.msra.mxu0 0.0
      %701 = vmatprep.subr.mxu0 0.0
      %702 = vmatpush2.msra.mxu0 0.0
      %703 = vmatprep.subr.mxu0 0.0
      %704 = vmatpush2.msra.mxu0 0.0
      %705 = vmatprep.subr.mxu0 0.0
      %706 = vmatpush2.msra.mxu0 0.0
      %707 = vmatprep.subr.mxu0 0.0
      %708 = vmatpush2.msra.mxu0 0.0
      %709 = vmatprep.subr.mxu0 0.0
      %710 = vmatpush2.msra.mxu0 0.0
      %711 = vmatprep.subr.mxu0 0.0
      %712 = vmatpush2.msra.mxu0 0.0
      %713 = vmatprep.subr.mxu0 0.0
      %714 = vmatpush2.msra.mxu0 0.0
      %715 = vmatprep.subr.mxu0 0.0
      %716 = vmatpush2.msra.mxu0 0.0
      %717 = vmatprep.subr.mxu0 0.0
      %718 = vmatpush2.msra.mxu0 0.0
      %719 = vmatprep.subr.mxu0 0.0
      %720 = vmatpush2.msra.mxu0 0.0
      %721 = vmatprep.subr.mxu0 0.0
      %722 = vmatpush2.msra.mxu0 0.0
      %723 = vmatprep.mubr.f32.mxu0 0.0
      %724 = vmatmul.mubr.f32.gmra.mxu0 %v587
      %v725 = vpop.f32.mrf.mxu0
      %v726 = vadd.f32 %v572, %v725
      %v727 = vpop.f32.mrf.mxu0
      %728 = vdwg.mxu0
      %729 = vmatprep.subr.mxu0 0.0
      %730 = vmatpush1.msra.mxu0 0.0
      %731 = vmatprep.subr.mxu0 0.0
      %732 = vmatpush1.msra.mxu0 0.0
      %733 = vmatprep.subr.mxu0 0.0
      %734 = vmatpush1.msra.mxu0 0.0
      %735 = vmatprep.subr.mxu0 0.0
      %736 = vmatpush1.msra.mxu0 0.0
      %737 = vmatprep.subr.mxu0 0.0
      %738 = vmatpush1.msra.mxu0 0.0
      %739 = vmatprep.subr.mxu0 0.0
      %740 = vmatpush1.msra.mxu0 0.0
      %741 = vmatprep.subr.mxu0 0.0
      %742 = vmatpush1.msra.mxu0 0.0
      %743 = vmatprep.subr.mxu0 0.0
      %744 = vmatpush1.msra.mxu0 0.0
      %745 = vmatprep.subr.mxu0 0.0
      %746 = vmatpush1.msra.mxu0 0.0
      %747 = vmatprep.subr.mxu0 0.0
      %748 = vmatpush1.msra.mxu0 0.0
      %749 = vmatprep.subr.mxu0 0.0
      %750 = vmatpush1.msra.mxu0 0.0
      %751 = vmatprep.subr.mxu0 0.0
      %752 = vmatpush1.msra.mxu0 0.0
      %753 = vmatprep.subr.mxu0 0.0
      %754 = vmatpush1.msra.mxu0 %v552
      %755 = vmatprep.subr.mxu0 0.0
      %756 = vmatpush1.msra.mxu0 %v551
      %757 = vmatprep.subr.mxu0 0.0
      %758 = vmatpush1.msra.mxu0 %v550
      %759 = vmatprep.subr.mxu0 0.0
      %760 = vmatpush1.msra.mxu0 %v549
      %761 = vmatprep.subr.mxu0 0.0
      %762 = vmatpush2.msra.mxu0 0.0
      %763 = vmatprep.subr.mxu0 0.0
      %764 = vmatpush2.msra.mxu0 0.0
      %765 = vmatprep.subr.mxu0 0.0
      %766 = vmatpush2.msra.mxu0 0.0
      %767 = vmatprep.subr.mxu0 0.0
      %768 = vmatpush2.msra.mxu0 0.0
      %769 = vmatprep.subr.mxu0 0.0
      %770 = vmatpush2.msra.mxu0 0.0
      %771 = vmatprep.subr.mxu0 0.0
      %772 = vmatpush2.msra.mxu0 0.0
      %773 = vmatprep.subr.mxu0 0.0
      %774 = vmatpush2.msra.mxu0 0.0
      %775 = vmatprep.subr.mxu0 0.0
      %776 = vmatpush2.msra.mxu0 0.0
      %777 = vmatprep.subr.mxu0 0.0
      %778 = vmatpush2.msra.mxu0 0.0
      %779 = vmatprep.subr.mxu0 0.0
      %780 = vmatpush2.msra.mxu0 0.0
      %781 = vmatprep.subr.mxu0 0.0
      %782 = vmatpush2.msra.mxu0 0.0
      %783 = vmatprep.subr.mxu0 0.0
      %784 = vmatpush2.msra.mxu0 0.0
      %785 = vmatprep.subr.mxu0 0.0
      %786 = vmatpush2.msra.mxu0 0.0
      %787 = vmatprep.subr.mxu0 0.0
      %788 = vmatpush2.msra.mxu0 0.0
      %789 = vmatprep.subr.mxu0 0.0
      %790 = vmatpush2.msra.mxu0 0.0
      %791 = vmatprep.subr.mxu0 0.0
      %792 = vmatpush2.msra.mxu0 0.0
      %793 = vmatprep.mubr.f32.mxu0 0.0
      %794 = vmatmul.mubr.f32.gmra.mxu0 %v587
      %v795 = vpop.f32.mrf.mxu0
      %v796 = vadd.f32 %v576, %v795
      %v797 = vpop.f32.mrf.mxu0
      %798 = vdwg.mxu0
      %799 = vmatprep.subr.mxu0 0.0
      %800 = vmatpush1.msra.mxu0 0.0
      %801 = vmatprep.subr.mxu0 0.0
      %802 = vmatpush1.msra.mxu0 0.0
      %803 = vmatprep.subr.mxu0 0.0
      %804 = vmatpush1.msra.mxu0 0.0
      %805 = vmatprep.subr.mxu0 0.0
      %806 = vmatpush1.msra.mxu0 0.0
      %807 = vmatprep.subr.mxu0 0.0
      %808 = vmatpush1.msra.mxu0 0.0
      %809 = vmatprep.subr.mxu0 0.0
      %810 = vmatpush1.msra.mxu0 0.0
      %811 = vmatprep.subr.mxu0 0.0
      %812 = vmatpush1.msra.mxu0 0.0
      %813 = vmatprep.subr.mxu0 0.0
      %814 = vmatpush1.msra.mxu0 0.0
      %815 = vmatprep.subr.mxu0 0.0
      %816 = vmatpush1.msra.mxu0 0.0
      %817 = vmatprep.subr.mxu0 0.0
      %818 = vmatpush1.msra.mxu0 0.0
      %819 = vmatprep.subr.mxu0 0.0
      %820 = vmatpush1.msra.mxu0 0.0
      %821 = vmatprep.subr.mxu0 0.0
      %822 = vmatpush1.msra.mxu0 0.0
      %823 = vmatprep.subr.mxu0 0.0
      %824 = vmatpush1.msra.mxu0 %v556
      %825 = vmatprep.subr.mxu0 0.0
      %826 = vmatpush1.msra.mxu0 %v555
      %827 = vmatprep.subr.mxu0 0.0
      %828 = vmatpush1.msra.mxu0 %v554
      %829 = vmatprep.subr.mxu0 0.0
      %830 = vmatpush1.msra.mxu0 %v553
      %831 = vmatprep.subr.mxu0 0.0
      %832 = vmatpush2.msra.mxu0 0.0
      %833 = vmatprep.subr.mxu0 0.0
      %834 = vmatpush2.msra.mxu0 0.0
      %835 = vmatprep.subr.mxu0 0.0
      %836 = vmatpush2.msra.mxu0 0.0
      %837 = vmatprep.subr.mxu0 0.0
      %838 = vmatpush2.msra.mxu0 0.0
      %839 = vmatprep.subr.mxu0 0.0
      %840 = vmatpush2.msra.mxu0 0.0
      %841 = vmatprep.subr.mxu0 0.0
      %842 = vmatpush2.msra.mxu0 0.0
      %843 = vmatprep.subr.mxu0 0.0
      %844 = vmatpush2.msra.mxu0 0.0
      %845 = vmatprep.subr.mxu0 0.0
      %846 = vmatpush2.msra.mxu0 0.0
      %847 = vmatprep.subr.mxu0 0.0
      %848 = vmatpush2.msra.mxu0 0.0
      %849 = vmatprep.subr.mxu0 0.0
      %850 = vmatpush2.msra.mxu0 0.0
      %851 = vmatprep.subr.mxu0 0.0
      %852 = vmatpush2.msra.mxu0 0.0
      %853 = vmatprep.subr.mxu0 0.0
      %854 = vmatpush2.msra.mxu0 0.0
      %855 = vmatprep.subr.mxu0 0.0
      %856 = vmatpush2.msra.mxu0 0.0
      %857 = vmatprep.subr.mxu0 0.0
      %858 = vmatpush2.msra.mxu0 0.0
      %859 = vmatprep.subr.mxu0 0.0
      %860 = vmatpush2.msra.mxu0 0.0
      %861 = vmatprep.subr.mxu0 0.0
      %862 = vmatpush2.msra.mxu0 0.0
      %863 = vmatprep.mubr.f32.mxu0 0.0
      %864 = vmatmul.mubr.f32.gmra.mxu0 %v587
      %v865 = vpop.f32.mrf.mxu0
      %v866 = vadd.f32 %v580, %v865
      %v867 = vpop.f32.mrf.mxu0
      %868 = vdwg.mxu0
      %v869 = vmul.f32 %v656, 0.35355338
      %v870 = vmul.f32 %v726, 0.35355338
      %v871 = vmul.f32 %v796, 0.35355338
      %v872 = vmul.f32 %v866, 0.35355338
      %874 = vrot.lane.b32.xlu0 %v656, 120
      %v875 = vpop.permute.xlu0 %874
      %vm876 = vcmask 64512
      %v878 = vsel %vm876, %v869, 0
      %v880 = vsel %vm876, %v875, 0
      %882 = vmatprep.subr.mxu0 0.0
      %883 = vmatpush1.xpose.msra.mxu0 0.0
      %884 = vmatprep.subr.mxu0 0.0
      %885 = vmatpush1.xpose.msra.mxu0 0.0
      %886 = vmatprep.subr.mxu0 0.0
      %887 = vmatpush1.xpose.msra.mxu0 0.0
      %888 = vmatprep.subr.mxu0 0.0
      %889 = vmatpush1.xpose.msra.mxu0 0.0
      %890 = vmatprep.subr.mxu0 0.0
      %891 = vmatpush1.xpose.msra.mxu0 0.0
      %892 = vmatprep.subr.mxu0 0.0
      %893 = vmatpush1.xpose.msra.mxu0 0.0
      %894 = vmatprep.subr.mxu0 0.0
      %895 = vmatpush1.xpose.msra.mxu0 0.0
      %896 = vmatprep.subr.mxu0 0.0
      %897 = vmatpush1.xpose.msra.mxu0 0.0
      %898 = vmatprep.subr.mxu0 0.0
      %899 = vmatpush1.xpose.msra.mxu0 0.0
      %900 = vmatprep.subr.mxu0 0.0
      %901 = vmatpush1.xpose.msra.mxu0 0.0
      %902 = vmatprep.subr.mxu0 0.0
      %903 = vmatpush1.xpose.msra.mxu0 0.0
      %904 = vmatprep.subr.mxu0 0.0
      %905 = vmatpush1.xpose.msra.mxu0 0.0
      %906 = vmatprep.subr.mxu0 0.0
      %907 = vmatpush1.xpose.msra.mxu0 0.0
      %908 = vmatprep.subr.mxu0 0.0
      %909 = vmatpush1.xpose.msra.mxu0 0.0
      %910 = vmatprep.subr.mxu0 0.0
      %911 = vmatpush1.xpose.msra.mxu0 0.0
      %912 = vmatprep.subr.mxu0 0.0
      %913 = vmatpush1.xpose.msra.mxu0 %v880
      %914 = vmatprep.subr.mxu0 0.0
      %915 = vmatpush2.xpose.msra.mxu0 0.0
      %916 = vmatprep.subr.mxu0 0.0
      %917 = vmatpush2.xpose.msra.mxu0 0.0
      %918 = vmatprep.subr.mxu0 0.0
      %919 = vmatpush2.xpose.msra.mxu0 0.0
      %920 = vmatprep.subr.mxu0 0.0
      %921 = vmatpush2.xpose.msra.mxu0 0.0
      %922 = vmatprep.subr.mxu0 0.0
      %923 = vmatpush2.xpose.msra.mxu0 0.0
      %924 = vmatprep.subr.mxu0 0.0
      %925 = vmatpush2.xpose.msra.mxu0 0.0
      %926 = vmatprep.subr.mxu0 0.0
      %927 = vmatpush2.xpose.msra.mxu0 0.0
      %928 = vmatprep.subr.mxu0 0.0
      %929 = vmatpush2.xpose.msra.mxu0 0.0
      %930 = vmatprep.subr.mxu0 0.0
      %931 = vmatpush2.xpose.msra.mxu0 0.0
      %932 = vmatprep.subr.mxu0 0.0
      %933 = vmatpush2.xpose.msra.mxu0 0.0
      %934 = vmatprep.subr.mxu0 0.0
      %935 = vmatpush2.xpose.msra.mxu0 0.0
      %936 = vmatprep.subr.mxu0 0.0
      %937 = vmatpush2.xpose.msra.mxu0 0.0
      %938 = vmatprep.subr.mxu0 0.0
      %939 = vmatpush2.xpose.msra.mxu0 0.0
      %940 = vmatprep.subr.mxu0 0.0
      %941 = vmatpush2.xpose.msra.mxu0 0.0
      %942 = vmatprep.subr.mxu0 0.0
      %943 = vmatpush2.xpose.msra.mxu0 0.0
      %944 = vmatprep.subr.mxu0 0.0
      %945 = vmatpush2.xpose.msra.mxu0 0.0
      %946 = vmatprep.mubr.f32.mxu0 0.0
      %947 = vmatmul.mubr.f32.gmra.mxu0 %v878
      %v948 = vpop.f32.mrf.mxu0
      %v949 = vadd.f32 0.0, %v948
      %v950 = vpop.f32.mrf.mxu0
      %951 = vdwg.mxu0
      %953 = vrot.lane.b32.xlu0 %v726, 120
      %v954 = vpop.permute.xlu0 %953
      %v956 = vsel %vm876, %v870, 0
      %v958 = vsel %vm876, %v954, 0
      %960 = vmatprep.subr.mxu0 0.0
      %961 = vmatpush1.xpose.msra.mxu0 0.0
      %962 = vmatprep.subr.mxu0 0.0
      %963 = vmatpush1.xpose.msra.mxu0 0.0
      %964 = vmatprep.subr.mxu0 0.0
      %965 = vmatpush1.xpose.msra.mxu0 0.0
      %966 = vmatprep.subr.mxu0 0.0
      %967 = vmatpush1.xpose.msra.mxu0 0.0
      %968 = vmatprep.subr.mxu0 0.0
      %969 = vmatpush1.xpose.msra.mxu0 0.0
      %970 = vmatprep.subr.mxu0 0.0
      %971 = vmatpush1.xpose.msra.mxu0 0.0
      %972 = vmatprep.subr.mxu0 0.0
      %973 = vmatpush1.xpose.msra.mxu0 0.0
      %974 = vmatprep.subr.mxu0 0.0
      %975 = vmatpush1.xpose.msra.mxu0 0.0
      %976 = vmatprep.subr.mxu0 0.0
      %977 = vmatpush1.xpose.msra.mxu0 0.0
      %978 = vmatprep.subr.mxu0 0.0
      %979 = vmatpush1.xpose.msra.mxu0 0.0
      %980 = vmatprep.subr.mxu0 0.0
      %981 = vmatpush1.xpose.msra.mxu0 0.0
      %982 = vmatprep.subr.mxu0 0.0
      %983 = vmatpush1.xpose.msra.mxu0 0.0
      %984 = vmatprep.subr.mxu0 0.0
      %985 = vmatpush1.xpose.msra.mxu0 0.0
      %986 = vmatprep.subr.mxu0 0.0
      %987 = vmatpush1.xpose.msra.mxu0 0.0
      %988 = vmatprep.subr.mxu0 0.0
      %989 = vmatpush1.xpose.msra.mxu0 0.0
      %990 = vmatprep.subr.mxu0 0.0
      %991 = vmatpush1.xpose.msra.mxu0 %v958
      %992 = vmatprep.subr.mxu0 0.0
      %993 = vmatpush2.xpose.msra.mxu0 0.0
      %994 = vmatprep.subr.mxu0 0.0
      %995 = vmatpush2.xpose.msra.mxu0 0.0
      %996 = vmatprep.subr.mxu0 0.0
      %997 = vmatpush2.xpose.msra.mxu0 0.0
      %998 = vmatprep.subr.mxu0 0.0
      %999 = vmatpush2.xpose.msra.mxu0 0.0
      %1000 = vmatprep.subr.mxu0 0.0
      %1001 = vmatpush2.xpose.msra.mxu0 0.0
      %1002 = vmatprep.subr.mxu0 0.0
      %1003 = vmatpush2.xpose.msra.mxu0 0.0
      %1004 = vmatprep.subr.mxu0 0.0
      %1005 = vmatpush2.xpose.msra.mxu0 0.0
      %1006 = vmatprep.subr.mxu0 0.0
      %1007 = vmatpush2.xpose.msra.mxu0 0.0
      %1008 = vmatprep.subr.mxu0 0.0
      %1009 = vmatpush2.xpose.msra.mxu0 0.0
      %1010 = vmatprep.subr.mxu0 0.0
      %1011 = vmatpush2.xpose.msra.mxu0 0.0
      %1012 = vmatprep.subr.mxu0 0.0
      %1013 = vmatpush2.xpose.msra.mxu0 0.0
      %1014 = vmatprep.subr.mxu0 0.0
      %1015 = vmatpush2.xpose.msra.mxu0 0.0
      %1016 = vmatprep.subr.mxu0 0.0
      %1017 = vmatpush2.xpose.msra.mxu0 0.0
      %1018 = vmatprep.subr.mxu0 0.0
      %1019 = vmatpush2.xpose.msra.mxu0 0.0
      %1020 = vmatprep.subr.mxu0 0.0
      %1021 = vmatpush2.xpose.msra.mxu0 0.0
      %1022 = vmatprep.subr.mxu0 0.0
      %1023 = vmatpush2.xpose.msra.mxu0 0.0
      %1024 = vmatprep.mubr.f32.mxu0 0.0
      %1025 = vmatmul.mubr.f32.gmra.mxu0 %v956
      %v1026 = vpop.f32.mrf.mxu0
      %v1027 = vadd.f32 0.0, %v1026
      %v1028 = vpop.f32.mrf.mxu0
      %1029 = vdwg.mxu0
      %1031 = vrot.lane.b32.xlu0 %v796, 120
      %v1032 = vpop.permute.xlu0 %1031
      %v1034 = vsel %vm876, %v871, 0
      %v1036 = vsel %vm876, %v1032, 0
      %1038 = vmatprep.subr.mxu0 0.0
      %1039 = vmatpush1.xpose.msra.mxu0 0.0
      %1040 = vmatprep.subr.mxu0 0.0
      %1041 = vmatpush1.xpose.msra.mxu0 0.0
      %1042 = vmatprep.subr.mxu0 0.0
      %1043 = vmatpush1.xpose.msra.mxu0 0.0
      %1044 = vmatprep.subr.mxu0 0.0
      %1045 = vmatpush1.xpose.msra.mxu0 0.0
      %1046 = vmatprep.subr.mxu0 0.0
      %1047 = vmatpush1.xpose.msra.mxu0 0.0
      %1048 = vmatprep.subr.mxu0 0.0
      %1049 = vmatpush1.xpose.msra.mxu0 0.0
      %1050 = vmatprep.subr.mxu0 0.0
      %1051 = vmatpush1.xpose.msra.mxu0 0.0
      %1052 = vmatprep.subr.mxu0 0.0
      %1053 = vmatpush1.xpose.msra.mxu0 0.0
      %1054 = vmatprep.subr.mxu0 0.0
      %1055 = vmatpush1.xpose.msra.mxu0 0.0
      %1056 = vmatprep.subr.mxu0 0.0
      %1057 = vmatpush1.xpose.msra.mxu0 0.0
      %1058 = vmatprep.subr.mxu0 0.0
      %1059 = vmatpush1.xpose.msra.mxu0 0.0
      %1060 = vmatprep.subr.mxu0 0.0
      %1061 = vmatpush1.xpose.msra.mxu0 0.0
      %1062 = vmatprep.subr.mxu0 0.0
      %1063 = vmatpush1.xpose.msra.mxu0 0.0
      %1064 = vmatprep.subr.mxu0 0.0
      %1065 = vmatpush1.xpose.msra.mxu0 0.0
      %1066 = vmatprep.subr.mxu0 0.0
      %1067 = vmatpush1.xpose.msra.mxu0 0.0
      %1068 = vmatprep.subr.mxu0 0.0
      %1069 = vmatpush1.xpose.msra.mxu0 %v1036
      %1070 = vmatprep.subr.mxu0 0.0
      %1071 = vmatpush2.xpose.msra.mxu0 0.0
      %1072 = vmatprep.subr.mxu0 0.0
      %1073 = vmatpush2.xpose.msra.mxu0 0.0
      %1074 = vmatprep.subr.mxu0 0.0
      %1075 = vmatpush2.xpose.msra.mxu0 0.0
      %1076 = vmatprep.subr.mxu0 0.0
      %1077 = vmatpush2.xpose.msra.mxu0 0.0
      %1078 = vmatprep.subr.mxu0 0.0
      %1079 = vmatpush2.xpose.msra.mxu0 0.0
      %1080 = vmatprep.subr.mxu0 0.0
      %1081 = vmatpush2.xpose.msra.mxu0 0.0
      %1082 = vmatprep.subr.mxu0 0.0
      %1083 = vmatpush2.xpose.msra.mxu0 0.0
      %1084 = vmatprep.subr.mxu0 0.0
      %1085 = vmatpush2.xpose.msra.mxu0 0.0
      %1086 = vmatprep.subr.mxu0 0.0
      %1087 = vmatpush2.xpose.msra.mxu0 0.0
      %1088 = vmatprep.subr.mxu0 0.0
      %1089 = vmatpush2.xpose.msra.mxu0 0.0
      %1090 = vmatprep.subr.mxu0 0.0
      %1091 = vmatpush2.xpose.msra.mxu0 0.0
      %1092 = vmatprep.subr.mxu0 0.0
      %1093 = vmatpush2.xpose.msra.mxu0 0.0
      %1094 = vmatprep.subr.mxu0 0.0
      %1095 = vmatpush2.xpose.msra.mxu0 0.0
      %1096 = vmatprep.subr.mxu0 0.0
      %1097 = vmatpush2.xpose.msra.mxu0 0.0
      %1098 = vmatprep.subr.mxu0 0.0
      %1099 = vmatpush2.xpose.msra.mxu0 0.0
      %1100 = vmatprep.subr.mxu0 0.0
      %1101 = vmatpush2.xpose.msra.mxu0 0.0
      %1102 = vmatprep.mubr.f32.mxu0 0.0
      %1103 = vmatmul.mubr.f32.gmra.mxu0 %v1034
      %v1104 = vpop.f32.mrf.mxu0
      %v1105 = vadd.f32 0.0, %v1104
      %v1106 = vpop.f32.mrf.mxu0
      %1107 = vdwg.mxu0
      %1109 = vrot.lane.b32.xlu0 %v866, 120
      %v1110 = vpop.permute.xlu0 %1109
      %v1112 = vsel %vm876, %v872, 0
      %v1114 = vsel %vm876, %v1110, 0
      %1116 = vmatprep.subr.mxu0 0.0
      %1117 = vmatpush1.xpose.msra.mxu0 0.0
      %1118 = vmatprep.subr.mxu0 0.0
      %1119 = vmatpush1.xpose.msra.mxu0 0.0
      %1120 = vmatprep.subr.mxu0 0.0
      %1121 = vmatpush1.xpose.msra.mxu0 0.0
      %1122 = vmatprep.subr.mxu0 0.0
      %1123 = vmatpush1.xpose.msra.mxu0 0.0
      %1124 = vmatprep.subr.mxu0 0.0
      %1125 = vmatpush1.xpose.msra.mxu0 0.0
      %1126 = vmatprep.subr.mxu0 0.0
      %1127 = vmatpush1.xpose.msra.mxu0 0.0
      %1128 = vmatprep.subr.mxu0 0.0
      %1129 = vmatpush1.xpose.msra.mxu0 0.0
      %1130 = vmatprep.subr.mxu0 0.0
      %1131 = vmatpush1.xpose.msra.mxu0 0.0
      %1132 = vmatprep.subr.mxu0 0.0
      %1133 = vmatpush1.xpose.msra.mxu0 0.0
      %1134 = vmatprep.subr.mxu0 0.0
      %1135 = vmatpush1.xpose.msra.mxu0 0.0
      %1136 = vmatprep.subr.mxu0 0.0
      %1137 = vmatpush1.xpose.msra.mxu0 0.0
      %1138 = vmatprep.subr.mxu0 0.0
      %1139 = vmatpush1.xpose.msra.mxu0 0.0
      %1140 = vmatprep.subr.mxu0 0.0
      %1141 = vmatpush1.xpose.msra.mxu0 0.0
      %1142 = vmatprep.subr.mxu0 0.0
      %1143 = vmatpush1.xpose.msra.mxu0 0.0
      %1144 = vmatprep.subr.mxu0 0.0
      %1145 = vmatpush1.xpose.msra.mxu0 0.0
      %1146 = vmatprep.subr.mxu0 0.0
      %1147 = vmatpush1.xpose.msra.mxu0 %v1114
      %1148 = vmatprep.subr.mxu0 0.0
      %1149 = vmatpush2.xpose.msra.mxu0 0.0
      %1150 = vmatprep.subr.mxu0 0.0
      %1151 = vmatpush2.xpose.msra.mxu0 0.0
      %1152 = vmatprep.subr.mxu0 0.0
      %1153 = vmatpush2.xpose.msra.mxu0 0.0
      %1154 = vmatprep.subr.mxu0 0.0
      %1155 = vmatpush2.xpose.msra.mxu0 0.0
      %1156 = vmatprep.subr.mxu0 0.0
      %1157 = vmatpush2.xpose.msra.mxu0 0.0
      %1158 = vmatprep.subr.mxu0 0.0
      %1159 = vmatpush2.xpose.msra.mxu0 0.0
      %1160 = vmatprep.subr.mxu0 0.0
      %1161 = vmatpush2.xpose.msra.mxu0 0.0
      %1162 = vmatprep.subr.mxu0 0.0
      %1163 = vmatpush2.xpose.msra.mxu0 0.0
      %1164 = vmatprep.subr.mxu0 0.0
      %1165 = vmatpush2.xpose.msra.mxu0 0.0
      %1166 = vmatprep.subr.mxu0 0.0
      %1167 = vmatpush2.xpose.msra.mxu0 0.0
      %1168 = vmatprep.subr.mxu0 0.0
      %1169 = vmatpush2.xpose.msra.mxu0 0.0
      %1170 = vmatprep.subr.mxu0 0.0
      %1171 = vmatpush2.xpose.msra.mxu0 0.0
      %1172 = vmatprep.subr.mxu0 0.0
      %1173 = vmatpush2.xpose.msra.mxu0 0.0
      %1174 = vmatprep.subr.mxu0 0.0
      %1175 = vmatpush2.xpose.msra.mxu0 0.0
      %1176 = vmatprep.subr.mxu0 0.0
      %1177 = vmatpush2.xpose.msra.mxu0 0.0
      %1178 = vmatprep.subr.mxu0 0.0
      %1179 = vmatpush2.xpose.msra.mxu0 0.0
      %1180 = vmatprep.mubr.f32.mxu0 0.0
      %1181 = vmatmul.mubr.f32.gmra.mxu0 %v1112
      %v1182 = vpop.f32.mrf.mxu0
      %v1183 = vadd.f32 0.0, %v1182
      %v1184 = vpop.f32.mrf.mxu0
      %1185 = vdwg.mxu0
      %v1186 = vsel %vm876, %v949, -inf
      %1187 = vmax.xlane.f32.xlu0 %v1186
      %v1188 = vpop.xlane.xlu0 %1187
      %v1189 = vsel %vm876, %v1027, -inf
      %1190 = vmax.xlane.f32.xlu0 %v1189
      %v1191 = vpop.xlane.xlu0 %1190
      %v1192 = vsel %vm876, %v1105, -inf
      %1193 = vmax.xlane.f32.xlu0 %v1192
      %v1194 = vpop.xlane.xlu0 %1193
      %v1195 = vsel %vm876, %v1183, -inf
      %1196 = vmax.xlane.f32.xlu0 %v1195
      %v1197 = vpop.xlane.xlu0 %1196
      %v1198 = vsub.f32 %v949, %v1188
      %v1199 = vsub.f32 %v1027, %v1191
      %v1200 = vsub.f32 %v1105, %v1194
      %v1201 = vsub.f32 %v1183, %v1197
      %v1202 = vmul.f32 %v1198, 1.442695
      %v1203 = vpow.pop %v1202
      %v1204 = vmul.f32 %v1199, 1.442695
      %v1205 = vpow.pop %v1204
      %v1206 = vmul.f32 %v1200, 1.442695
      %v1207 = vpow.pop %v1206
      %v1208 = vmul.f32 %v1201, 1.442695
      %v1209 = vpow.pop %v1208
      %v1210 = vsel %vm876, %v1203, 0.0
      %1211 = vadd.xlane.f32.xlu0 %v1210
      %v1212 = vpop.xlane.xlu0 %1211
      %v1213 = vsel %vm876, %v1205, 0.0
      %1214 = vadd.xlane.f32.xlu0 %v1213
      %v1215 = vpop.xlane.xlu0 %1214
      %v1216 = vsel %vm876, %v1207, 0.0
      %1217 = vadd.xlane.f32.xlu0 %v1216
      %v1218 = vpop.xlane.xlu0 %1217
      %v1219 = vsel %vm876, %v1209, 0.0
      %1220 = vadd.xlane.f32.xlu0 %v1219
      %v1221 = vpop.xlane.xlu0 %1220
      %v1222 = vrcp.pop %v1212
      %v1223 = vrcp.pop %v1215
      %v1224 = vrcp.pop %v1218
      %v1225 = vrcp.pop %v1221
      %v1226 = vmul.f32 %v1203, %v1222
      %v1227 = vmul.f32 %v1205, %v1223
      %v1228 = vmul.f32 %v1207, %v1224
      %v1229 = vmul.f32 %v1209, %v1225
      %1230 = vrot.lane.b32.xlu0 %v656, 112
      %v1231 = vpop.permute.xlu0 %1230
      %v1234 = vsel %vm876, %v1226, 0
      %1236 = vmatprep.subr.mxu0 0.0
      %1237 = vmatpush1.msra.mxu0 0.0
      %1238 = vmatprep.subr.mxu0 0.0
      %1239 = vmatpush1.msra.mxu0 0.0
      %1240 = vmatprep.subr.mxu0 0.0
      %1241 = vmatpush1.msra.mxu0 0.0
      %1242 = vmatprep.subr.mxu0 0.0
      %1243 = vmatpush1.msra.mxu0 0.0
      %1244 = vmatprep.subr.mxu0 0.0
      %1245 = vmatpush1.msra.mxu0 0.0
      %1246 = vmatprep.subr.mxu0 0.0
      %1247 = vmatpush1.msra.mxu0 0.0
      %1248 = vmatprep.subr.mxu0 0.0
      %1249 = vmatpush1.msra.mxu0 0.0
      %1250 = vmatprep.subr.mxu0 0.0
      %1251 = vmatpush1.msra.mxu0 0.0
      %1252 = vmatprep.subr.mxu0 0.0
      %1253 = vmatpush1.msra.mxu0 0.0
      %1254 = vmatprep.subr.mxu0 0.0
      %1255 = vmatpush1.msra.mxu0 0.0
      %1256 = vmatprep.subr.mxu0 0.0
      %1257 = vmatpush1.msra.mxu0 0.0
      %1258 = vmatprep.subr.mxu0 0.0
      %1259 = vmatpush1.msra.mxu0 0.0
      %1260 = vmatprep.subr.mxu0 0.0
      %1261 = vmatpush1.msra.mxu0 0.0
      %1262 = vmatprep.subr.mxu0 0.0
      %1263 = vmatpush1.msra.mxu0 0.0
      %1264 = vmatprep.subr.mxu0 0.0
      %1265 = vmatpush1.msra.mxu0 0.0
      %1266 = vmatprep.subr.mxu0 0.0
      %1267 = vmatpush1.msra.mxu0 %v1231
      %1268 = vmatprep.subr.mxu0 0.0
      %1269 = vmatpush2.msra.mxu0 0.0
      %1270 = vmatprep.subr.mxu0 0.0
      %1271 = vmatpush2.msra.mxu0 0.0
      %1272 = vmatprep.subr.mxu0 0.0
      %1273 = vmatpush2.msra.mxu0 0.0
      %1274 = vmatprep.subr.mxu0 0.0
      %1275 = vmatpush2.msra.mxu0 0.0
      %1276 = vmatprep.subr.mxu0 0.0
      %1277 = vmatpush2.msra.mxu0 0.0
      %1278 = vmatprep.subr.mxu0 0.0
      %1279 = vmatpush2.msra.mxu0 0.0
      %1280 = vmatprep.subr.mxu0 0.0
      %1281 = vmatpush2.msra.mxu0 0.0
      %1282 = vmatprep.subr.mxu0 0.0
      %1283 = vmatpush2.msra.mxu0 0.0
      %1284 = vmatprep.subr.mxu0 0.0
      %1285 = vmatpush2.msra.mxu0 0.0
      %1286 = vmatprep.subr.mxu0 0.0
      %1287 = vmatpush2.msra.mxu0 0.0
      %1288 = vmatprep.subr.mxu0 0.0
      %1289 = vmatpush2.msra.mxu0 0.0
      %1290 = vmatprep.subr.mxu0 0.0
      %1291 = vmatpush2.msra.mxu0 0.0
      %1292 = vmatprep.subr.mxu0 0.0
      %1293 = vmatpush2.msra.mxu0 0.0
      %1294 = vmatprep.subr.mxu0 0.0
      %1295 = vmatpush2.msra.mxu0 0.0
      %1296 = vmatprep.subr.mxu0 0.0
      %1297 = vmatpush2.msra.mxu0 0.0
      %1298 = vmatprep.subr.mxu0 0.0
      %1299 = vmatpush2.msra.mxu0 0.0
      %1300 = vmatprep.mubr.f32.mxu0 0.0
      %1301 = vmatmul.mubr.f32.gmra.mxu0 %v1234
      %v1302 = vpop.f32.mrf.mxu0
      %v1303 = vadd.f32 0.0, %v1302
      %v1304 = vpop.f32.mrf.mxu0
      %1305 = vdwg.mxu0
      %1306 = vrot.lane.b32.xlu0 %v726, 112
      %v1307 = vpop.permute.xlu0 %1306
      %v1310 = vsel %vm876, %v1227, 0
      %1312 = vmatprep.subr.mxu0 0.0
      %1313 = vmatpush1.msra.mxu0 0.0
      %1314 = vmatprep.subr.mxu0 0.0
      %1315 = vmatpush1.msra.mxu0 0.0
      %1316 = vmatprep.subr.mxu0 0.0
      %1317 = vmatpush1.msra.mxu0 0.0
      %1318 = vmatprep.subr.mxu0 0.0
      %1319 = vmatpush1.msra.mxu0 0.0
      %1320 = vmatprep.subr.mxu0 0.0
      %1321 = vmatpush1.msra.mxu0 0.0
      %1322 = vmatprep.subr.mxu0 0.0
      %1323 = vmatpush1.msra.mxu0 0.0
      %1324 = vmatprep.subr.mxu0 0.0
      %1325 = vmatpush1.msra.mxu0 0.0
      %1326 = vmatprep.subr.mxu0 0.0
      %1327 = vmatpush1.msra.mxu0 0.0
      %1328 = vmatprep.subr.mxu0 0.0
      %1329 = vmatpush1.msra.mxu0 0.0
      %1330 = vmatprep.subr.mxu0 0.0
      %1331 = vmatpush1.msra.mxu0 0.0
      %1332 = vmatprep.subr.mxu0 0.0
      %1333 = vmatpush1.msra.mxu0 0.0
      %1334 = vmatprep.subr.mxu0 0.0
      %1335 = vmatpush1.msra.mxu0 0.0
      %1336 = vmatprep.subr.mxu0 0.0
      %1337 = vmatpush1.msra.mxu0 0.0
      %1338 = vmatprep.subr.mxu0 0.0
      %1339 = vmatpush1.msra.mxu0 0.0
      %1340 = vmatprep.subr.mxu0 0.0
      %1341 = vmatpush1.msra.mxu0 0.0
      %1342 = vmatprep.subr.mxu0 0.0
      %1343 = vmatpush1.msra.mxu0 %v1307
      %1344 = vmatprep.subr.mxu0 0.0
      %1345 = vmatpush2.msra.mxu0 0.0
      %1346 = vmatprep.subr.mxu0 0.0
      %1347 = vmatpush2.msra.mxu0 0.0
      %1348 = vmatprep.subr.mxu0 0.0
      %1349 = vmatpush2.msra.mxu0 0.0
      %1350 = vmatprep.subr.mxu0 0.0
      %1351 = vmatpush2.msra.mxu0 0.0
      %1352 = vmatprep.subr.mxu0 0.0
      %1353 = vmatpush2.msra.mxu0 0.0
      %1354 = vmatprep.subr.mxu0 0.0
      %1355 = vmatpush2.msra.mxu0 0.0
      %1356 = vmatprep.subr.mxu0 0.0
      %1357 = vmatpush2.msra.mxu0 0.0
      %1358 = vmatprep.subr.mxu0 0.0
      %1359 = vmatpush2.msra.mxu0 0.0
      %1360 = vmatprep.subr.mxu0 0.0
      %1361 = vmatpush2.msra.mxu0 0.0
      %1362 = vmatprep.subr.mxu0 0.0
      %1363 = vmatpush2.msra.mxu0 0.0
      %1364 = vmatprep.subr.mxu0 0.0
      %1365 = vmatpush2.msra.mxu0 0.0
      %1366 = vmatprep.subr.mxu0 0.0
      %1367 = vmatpush2.msra.mxu0 0.0
      %1368 = vmatprep.subr.mxu0 0.0
      %1369 = vmatpush2.msra.mxu0 0.0
      %1370 = vmatprep.subr.mxu0 0.0
      %1371 = vmatpush2.msra.mxu0 0.0
      %1372 = vmatprep.subr.mxu0 0.0
      %1373 = vmatpush2.msra.mxu0 0.0
      %1374 = vmatprep.subr.mxu0 0.0
      %1375 = vmatpush2.msra.mxu0 0.0
      %1376 = vmatprep.mubr.f32.mxu0 0.0
      %1377 = vmatmul.mubr.f32.gmra.mxu0 %v1310
      %v1378 = vpop.f32.mrf.mxu0
      %v1379 = vadd.f32 0.0, %v1378
      %v1380 = vpop.f32.mrf.mxu0
      %1381 = vdwg.mxu0
      %1382 = vrot.lane.b32.xlu0 %v796, 112
      %v1383 = vpop.permute.xlu0 %1382
      %v1386 = vsel %vm876, %v1228, 0
      %1388 = vmatprep.subr.mxu0 0.0
      %1389 = vmatpush1.msra.mxu0 0.0
      %1390 = vmatprep.subr.mxu0 0.0
      %1391 = vmatpush1.msra.mxu0 0.0
      %1392 = vmatprep.subr.mxu0 0.0
      %1393 = vmatpush1.msra.mxu0 0.0
      %1394 = vmatprep.subr.mxu0 0.0
      %1395 = vmatpush1.msra.mxu0 0.0
      %1396 = vmatprep.subr.mxu0 0.0
      %1397 = vmatpush1.msra.mxu0 0.0
      %1398 = vmatprep.subr.mxu0 0.0
      %1399 = vmatpush1.msra.mxu0 0.0
      %1400 = vmatprep.subr.mxu0 0.0
      %1401 = vmatpush1.msra.mxu0 0.0
      %1402 = vmatprep.subr.mxu0 0.0
      %1403 = vmatpush1.msra.mxu0 0.0
      %1404 = vmatprep.subr.mxu0 0.0
      %1405 = vmatpush1.msra.mxu0 0.0
      %1406 = vmatprep.subr.mxu0 0.0
      %1407 = vmatpush1.msra.mxu0 0.0
      %1408 = vmatprep.subr.mxu0 0.0
      %1409 = vmatpush1.msra.mxu0 0.0
      %1410 = vmatprep.subr.mxu0 0.0
      %1411 = vmatpush1.msra.mxu0 0.0
      %1412 = vmatprep.subr.mxu0 0.0
      %1413 = vmatpush1.msra.mxu0 0.0
      %1414 = vmatprep.subr.mxu0 0.0
      %1415 = vmatpush1.msra.mxu0 0.0
      %1416 = vmatprep.subr.mxu0 0.0
      %1417 = vmatpush1.msra.mxu0 0.0
      %1418 = vmatprep.subr.mxu0 0.0
      %1419 = vmatpush1.msra.mxu0 %v1383
      %1420 = vmatprep.subr.mxu0 0.0
      %1421 = vmatpush2.msra.mxu0 0.0
      %1422 = vmatprep.subr.mxu0 0.0
      %1423 = vmatpush2.msra.mxu0 0.0
      %1424 = vmatprep.subr.mxu0 0.0
      %1425 = vmatpush2.msra.mxu0 0.0
      %1426 = vmatprep.subr.mxu0 0.0
      %1427 = vmatpush2.msra.mxu0 0.0
      %1428 = vmatprep.subr.mxu0 0.0
      %1429 = vmatpush2.msra.mxu0 0.0
      %1430 = vmatprep.subr.mxu0 0.0
      %1431 = vmatpush2.msra.mxu0 0.0
      %1432 = vmatprep.subr.mxu0 0.0
      %1433 = vmatpush2.msra.mxu0 0.0
      %1434 = vmatprep.subr.mxu0 0.0
      %1435 = vmatpush2.msra.mxu0 0.0
      %1436 = vmatprep.subr.mxu0 0.0
      %1437 = vmatpush2.msra.mxu0 0.0
      %1438 = vmatprep.subr.mxu0 0.0
      %1439 = vmatpush2.msra.mxu0 0.0
      %1440 = vmatprep.subr.mxu0 0.0
      %1441 = vmatpush2.msra.mxu0 0.0
      %1442 = vmatprep.subr.mxu0 0.0
      %1443 = vmatpush2.msra.mxu0 0.0
      %1444 = vmatprep.subr.mxu0 0.0
      %1445 = vmatpush2.msra.mxu0 0.0
      %1446 = vmatprep.subr.mxu0 0.0
      %1447 = vmatpush2.msra.mxu0 0.0
      %1448 = vmatprep.subr.mxu0 0.0
      %1449 = vmatpush2.msra.mxu0 0.0
      %1450 = vmatprep.subr.mxu0 0.0
      %1451 = vmatpush2.msra.mxu0 0.0
      %1452 = vmatprep.mubr.f32.mxu0 0.0
      %1453 = vmatmul.mubr.f32.gmra.mxu0 %v1386
      %v1454 = vpop.f32.mrf.mxu0
      %v1455 = vadd.f32 0.0, %v1454
      %v1456 = vpop.f32.mrf.mxu0
      %1457 = vdwg.mxu0
      %1458 = vrot.lane.b32.xlu0 %v866, 112
      %v1459 = vpop.permute.xlu0 %1458
      %v1462 = vsel %vm876, %v1229, 0
      %1464 = vmatprep.subr.mxu0 0.0
      %1465 = vmatpush1.msra.mxu0 0.0
      %1466 = vmatprep.subr.mxu0 0.0
      %1467 = vmatpush1.msra.mxu0 0.0
      %1468 = vmatprep.subr.mxu0 0.0
      %1469 = vmatpush1.msra.mxu0 0.0
      %1470 = vmatprep.subr.mxu0 0.0
      %1471 = vmatpush1.msra.mxu0 0.0
      %1472 = vmatprep.subr.mxu0 0.0
      %1473 = vmatpush1.msra.mxu0 0.0
      %1474 = vmatprep.subr.mxu0 0.0
      %1475 = vmatpush1.msra.mxu0 0.0
      %1476 = vmatprep.subr.mxu0 0.0
      %1477 = vmatpush1.msra.mxu0 0.0
      %1478 = vmatprep.subr.mxu0 0.0
      %1479 = vmatpush1.msra.mxu0 0.0
      %1480 = vmatprep.subr.mxu0 0.0
      %1481 = vmatpush1.msra.mxu0 0.0
      %1482 = vmatprep.subr.mxu0 0.0
      %1483 = vmatpush1.msra.mxu0 0.0
      %1484 = vmatprep.subr.mxu0 0.0
      %1485 = vmatpush1.msra.mxu0 0.0
      %1486 = vmatprep.subr.mxu0 0.0
      %1487 = vmatpush1.msra.mxu0 0.0
      %1488 = vmatprep.subr.mxu0 0.0
      %1489 = vmatpush1.msra.mxu0 0.0
      %1490 = vmatprep.subr.mxu0 0.0
      %1491 = vmatpush1.msra.mxu0 0.0
      %1492 = vmatprep.subr.mxu0 0.0
      %1493 = vmatpush1.msra.mxu0 0.0
      %1494 = vmatprep.subr.mxu0 0.0
      %1495 = vmatpush1.msra.mxu0 %v1459
      %1496 = vmatprep.subr.mxu0 0.0
      %1497 = vmatpush2.msra.mxu0 0.0
      %1498 = vmatprep.subr.mxu0 0.0
      %1499 = vmatpush2.msra.mxu0 0.0
      %1500 = vmatprep.subr.mxu0 0.0
      %1501 = vmatpush2.msra.mxu0 0.0
      %1502 = vmatprep.subr.mxu0 0.0
      %1503 = vmatpush2.msra.mxu0 0.0
      %1504 = vmatprep.subr.mxu0 0.0
      %1505 = vmatpush2.msra.mxu0 0.0
      %1506 = vmatprep.subr.mxu0 0.0
      %1507 = vmatpush2.msra.mxu0 0.0
      %1508 = vmatprep.subr.mxu0 0.0
      %1509 = vmatpush2.msra.mxu0 0.0
      %1510 = vmatprep.subr.mxu0 0.0
      %1511 = vmatpush2.msra.mxu0 0.0
      %1512 = vmatprep.subr.mxu0 0.0
      %1513 = vmatpush2.msra.mxu0 0.0
      %1514 = vmatprep.subr.mxu0 0.0
      %1515 = vmatpush2.msra.mxu0 0.0
      %1516 = vmatprep.subr.mxu0 0.0
      %1517 = vmatpush2.msra.mxu0 0.0
      %1518 = vmatprep.subr.mxu0 0.0
      %1519 = vmatpush2.msra.mxu0 0.0
      %1520 = vmatprep.subr.mxu0 0.0
      %1521 = vmatpush2.msra.mxu0 0.0
      %1522 = vmatprep.subr.mxu0 0.0
      %1523 = vmatpush2.msra.mxu0 0.0
      %1524 = vmatprep.subr.mxu0 0.0
      %1525 = vmatpush2.msra.mxu0 0.0
      %1526 = vmatprep.subr.mxu0 0.0
      %1527 = vmatpush2.msra.mxu0 0.0
      %1528 = vmatprep.mubr.f32.mxu0 0.0
      %1529 = vmatmul.mubr.f32.gmra.mxu0 %v1462
      %v1530 = vpop.f32.mrf.mxu0
      %v1531 = vadd.f32 0.0, %v1530
      %v1532 = vpop.f32.mrf.mxu0
      %1533 = vdwg.mxu0
      %v1534 = vld [vmem:[%s6] sm:$0xff]
      %v1535 = vld [vmem:[%s6 + $0x8] sm:$0xff]
      %v1536 = vld [vmem:[%s6 + $0x10] sm:$0xff]
      %v1537 = vld [vmem:[%s6 + $0x18] sm:$0xff]
      %v1539 = vsel %vm876, %v1303, 0
      %1541 = vmatprep.subr.mxu0 0.0
      %1542 = vmatpush1.msra.mxu0 0.0
      %1543 = vmatprep.subr.mxu0 0.0
      %1544 = vmatpush1.msra.mxu0 0.0
      %1545 = vmatprep.subr.mxu0 0.0
      %1546 = vmatpush1.msra.mxu0 0.0
      %1547 = vmatprep.subr.mxu0 0.0
      %1548 = vmatpush1.msra.mxu0 0.0
      %1549 = vmatprep.subr.mxu0 0.0
      %1550 = vmatpush1.msra.mxu0 0.0
      %1551 = vmatprep.subr.mxu0 0.0
      %1552 = vmatpush1.msra.mxu0 0.0
      %1553 = vmatprep.subr.mxu0 0.0
      %1554 = vmatpush1.msra.mxu0 0.0
      %1555 = vmatprep.subr.mxu0 0.0
      %1556 = vmatpush1.msra.mxu0 0.0
      %1557 = vmatprep.subr.mxu0 0.0
      %1558 = vmatpush1.msra.mxu0 0.0
      %1559 = vmatprep.subr.mxu0 0.0
      %1560 = vmatpush1.msra.mxu0 0.0
      %1561 = vmatprep.subr.mxu0 0.0
      %1562 = vmatpush1.msra.mxu0 0.0
      %1563 = vmatprep.subr.mxu0 0.0
      %1564 = vmatpush1.msra.mxu0 0.0
      %1565 = vmatprep.subr.mxu0 0.0
      %1566 = vmatpush1.msra.mxu0 0.0
      %1567 = vmatprep.subr.mxu0 0.0
      %1568 = vmatpush1.msra.mxu0 0.0
      %1569 = vmatprep.subr.mxu0 0.0
      %1570 = vmatpush1.msra.mxu0 0.0
      %1571 = vmatprep.subr.mxu0 0.0
      %1572 = vmatpush1.msra.mxu0 %v1534
      %1573 = vmatprep.subr.mxu0 0.0
      %1574 = vmatpush2.msra.mxu0 0.0
      %1575 = vmatprep.subr.mxu0 0.0
      %1576 = vmatpush2.msra.mxu0 0.0
      %1577 = vmatprep.subr.mxu0 0.0
      %1578 = vmatpush2.msra.mxu0 0.0
      %1579 = vmatprep.subr.mxu0 0.0
      %1580 = vmatpush2.msra.mxu0 0.0
      %1581 = vmatprep.subr.mxu0 0.0
      %1582 = vmatpush2.msra.mxu0 0.0
      %1583 = vmatprep.subr.mxu0 0.0
      %1584 = vmatpush2.msra.mxu0 0.0
      %1585 = vmatprep.subr.mxu0 0.0
      %1586 = vmatpush2.msra.mxu0 0.0
      %1587 = vmatprep.subr.mxu0 0.0
      %1588 = vmatpush2.msra.mxu0 0.0
      %1589 = vmatprep.subr.mxu0 0.0
      %1590 = vmatpush2.msra.mxu0 0.0
      %1591 = vmatprep.subr.mxu0 0.0
      %1592 = vmatpush2.msra.mxu0 0.0
      %1593 = vmatprep.subr.mxu0 0.0
      %1594 = vmatpush2.msra.mxu0 0.0
      %1595 = vmatprep.subr.mxu0 0.0
      %1596 = vmatpush2.msra.mxu0 0.0
      %1597 = vmatprep.subr.mxu0 0.0
      %1598 = vmatpush2.msra.mxu0 0.0
      %1599 = vmatprep.subr.mxu0 0.0
      %1600 = vmatpush2.msra.mxu0 0.0
      %1601 = vmatprep.subr.mxu0 0.0
      %1602 = vmatpush2.msra.mxu0 0.0
      %1603 = vmatprep.subr.mxu0 0.0
      %1604 = vmatpush2.msra.mxu0 0.0
      %1605 = vmatprep.mubr.f32.mxu0 0.0
      %1606 = vmatmul.mubr.f32.gmra.mxu0 %v1539
      %v1607 = vpop.f32.mrf.mxu0
      %v1608 = vadd.f32 0.0, %v1607
      %v1609 = vpop.f32.mrf.mxu0
      %1610 = vdwg.mxu0
      %v1612 = vsel %vm876, %v1379, 0
      %1614 = vmatprep.subr.mxu0 0.0
      %1615 = vmatpush1.msra.mxu0 0.0
      %1616 = vmatprep.subr.mxu0 0.0
      %1617 = vmatpush1.msra.mxu0 0.0
      %1618 = vmatprep.subr.mxu0 0.0
      %1619 = vmatpush1.msra.mxu0 0.0
      %1620 = vmatprep.subr.mxu0 0.0
      %1621 = vmatpush1.msra.mxu0 0.0
      %1622 = vmatprep.subr.mxu0 0.0
      %1623 = vmatpush1.msra.mxu0 0.0
      %1624 = vmatprep.subr.mxu0 0.0
      %1625 = vmatpush1.msra.mxu0 0.0
      %1626 = vmatprep.subr.mxu0 0.0
      %1627 = vmatpush1.msra.mxu0 0.0
      %1628 = vmatprep.subr.mxu0 0.0
      %1629 = vmatpush1.msra.mxu0 0.0
      %1630 = vmatprep.subr.mxu0 0.0
      %1631 = vmatpush1.msra.mxu0 0.0
      %1632 = vmatprep.subr.mxu0 0.0
      %1633 = vmatpush1.msra.mxu0 0.0
      %1634 = vmatprep.subr.mxu0 0.0
      %1635 = vmatpush1.msra.mxu0 0.0
      %1636 = vmatprep.subr.mxu0 0.0
      %1637 = vmatpush1.msra.mxu0 0.0
      %1638 = vmatprep.subr.mxu0 0.0
      %1639 = vmatpush1.msra.mxu0 0.0
      %1640 = vmatprep.subr.mxu0 0.0
      %1641 = vmatpush1.msra.mxu0 0.0
      %1642 = vmatprep.subr.mxu0 0.0
      %1643 = vmatpush1.msra.mxu0 0.0
      %1644 = vmatprep.subr.mxu0 0.0
      %1645 = vmatpush1.msra.mxu0 %v1535
      %1646 = vmatprep.subr.mxu0 0.0
      %1647 = vmatpush2.msra.mxu0 0.0
      %1648 = vmatprep.subr.mxu0 0.0
      %1649 = vmatpush2.msra.mxu0 0.0
      %1650 = vmatprep.subr.mxu0 0.0
      %1651 = vmatpush2.msra.mxu0 0.0
      %1652 = vmatprep.subr.mxu0 0.0
      %1653 = vmatpush2.msra.mxu0 0.0
      %1654 = vmatprep.subr.mxu0 0.0
      %1655 = vmatpush2.msra.mxu0 0.0
      %1656 = vmatprep.subr.mxu0 0.0
      %1657 = vmatpush2.msra.mxu0 0.0
      %1658 = vmatprep.subr.mxu0 0.0
      %1659 = vmatpush2.msra.mxu0 0.0
      %1660 = vmatprep.subr.mxu0 0.0
      %1661 = vmatpush2.msra.mxu0 0.0
      %1662 = vmatprep.subr.mxu0 0.0
      %1663 = vmatpush2.msra.mxu0 0.0
      %1664 = vmatprep.subr.mxu0 0.0
      %1665 = vmatpush2.msra.mxu0 0.0
      %1666 = vmatprep.subr.mxu0 0.0
      %1667 = vmatpush2.msra.mxu0 0.0
      %1668 = vmatprep.subr.mxu0 0.0
      %1669 = vmatpush2.msra.mxu0 0.0
      %1670 = vmatprep.subr.mxu0 0.0
      %1671 = vmatpush2.msra.mxu0 0.0
      %1672 = vmatprep.subr.mxu0 0.0
      %1673 = vmatpush2.msra.mxu0 0.0
      %1674 = vmatprep.subr.mxu0 0.0
      %1675 = vmatpush2.msra.mxu0 0.0
      %1676 = vmatprep.subr.mxu0 0.0
      %1677 = vmatpush2.msra.mxu0 0.0
      %1678 = vmatprep.mubr.f32.mxu0 0.0
      %1679 = vmatmul.mubr.f32.gmra.mxu0 %v1612
      %v1680 = vpop.f32.mrf.mxu0
      %v1681 = vadd.f32 0.0, %v1680
      %v1682 = vpop.f32.mrf.mxu0
      %1683 = vdwg.mxu0
      %v1685 = vsel %vm876, %v1455, 0
      %1687 = vmatprep.subr.mxu0 0.0
      %1688 = vmatpush1.msra.mxu0 0.0
      %1689 = vmatprep.subr.mxu0 0.0
      %1690 = vmatpush1.msra.mxu0 0.0
      %1691 = vmatprep.subr.mxu0 0.0
      %1692 = vmatpush1.msra.mxu0 0.0
      %1693 = vmatprep.subr.mxu0 0.0
      %1694 = vmatpush1.msra.mxu0 0.0
      %1695 = vmatprep.subr.mxu0 0.0
      %1696 = vmatpush1.msra.mxu0 0.0
      %1697 = vmatprep.subr.mxu0 0.0
      %1698 = vmatpush1.msra.mxu0 0.0
      %1699 = vmatprep.subr.mxu0 0.0
      %1700 = vmatpush1.msra.mxu0 0.0
      %1701 = vmatprep.subr.mxu0 0.0
      %1702 = vmatpush1.msra.mxu0 0.0
      %1703 = vmatprep.subr.mxu0 0.0
      %1704 = vmatpush1.msra.mxu0 0.0
      %1705 = vmatprep.subr.mxu0 0.0
      %1706 = vmatpush1.msra.mxu0 0.0
      %1707 = vmatprep.subr.mxu0 0.0
      %1708 = vmatpush1.msra.mxu0 0.0
      %1709 = vmatprep.subr.mxu0 0.0
      %1710 = vmatpush1.msra.mxu0 0.0
      %1711 = vmatprep.subr.mxu0 0.0
      %1712 = vmatpush1.msra.mxu0 0.0
      %1713 = vmatprep.subr.mxu0 0.0
      %1714 = vmatpush1.msra.mxu0 0.0
      %1715 = vmatprep.subr.mxu0 0.0
      %1716 = vmatpush1.msra.mxu0 0.0
      %1717 = vmatprep.subr.mxu0 0.0
      %1718 = vmatpush1.msra.mxu0 %v1536
      %1719 = vmatprep.subr.mxu0 0.0
      %1720 = vmatpush2.msra.mxu0 0.0
      %1721 = vmatprep.subr.mxu0 0.0
      %1722 = vmatpush2.msra.mxu0 0.0
      %1723 = vmatprep.subr.mxu0 0.0
      %1724 = vmatpush2.msra.mxu0 0.0
      %1725 = vmatprep.subr.mxu0 0.0
      %1726 = vmatpush2.msra.mxu0 0.0
      %1727 = vmatprep.subr.mxu0 0.0
      %1728 = vmatpush2.msra.mxu0 0.0
      %1729 = vmatprep.subr.mxu0 0.0
      %1730 = vmatpush2.msra.mxu0 0.0
      %1731 = vmatprep.subr.mxu0 0.0
      %1732 = vmatpush2.msra.mxu0 0.0
      %1733 = vmatprep.subr.mxu0 0.0
      %1734 = vmatpush2.msra.mxu0 0.0
      %1735 = vmatprep.subr.mxu0 0.0
      %1736 = vmatpush2.msra.mxu0 0.0
      %1737 = vmatprep.subr.mxu0 0.0
      %1738 = vmatpush2.msra.mxu0 0.0
      %1739 = vmatprep.subr.mxu0 0.0
      %1740 = vmatpush2.msra.mxu0 0.0
      %1741 = vmatprep.subr.mxu0 0.0
      %1742 = vmatpush2.msra.mxu0 0.0
      %1743 = vmatprep.subr.mxu0 0.0
      %1744 = vmatpush2.msra.mxu0 0.0
      %1745 = vmatprep.subr.mxu0 0.0
      %1746 = vmatpush2.msra.mxu0 0.0
      %1747 = vmatprep.subr.mxu0 0.0
      %1748 = vmatpush2.msra.mxu0 0.0
      %1749 = vmatprep.subr.mxu0 0.0
      %1750 = vmatpush2.msra.mxu0 0.0
      %1751 = vmatprep.mubr.f32.mxu0 0.0
      %1752 = vmatmul.mubr.f32.gmra.mxu0 %v1685
      %v1753 = vpop.f32.mrf.mxu0
      %v1754 = vadd.f32 0.0, %v1753
      %v1755 = vpop.f32.mrf.mxu0
      %1756 = vdwg.mxu0
      %v1758 = vsel %vm876, %v1531, 0
      %1760 = vmatprep.subr.mxu0 0.0
      %1761 = vmatpush1.msra.mxu0 0.0
      %1762 = vmatprep.subr.mxu0 0.0
      %1763 = vmatpush1.msra.mxu0 0.0
      %1764 = vmatprep.subr.mxu0 0.0
      %1765 = vmatpush1.msra.mxu0 0.0
      %1766 = vmatprep.subr.mxu0 0.0
      %1767 = vmatpush1.msra.mxu0 0.0
      %1768 = vmatprep.subr.mxu0 0.0
      %1769 = vmatpush1.msra.mxu0 0.0
      %1770 = vmatprep.subr.mxu0 0.0
      %1771 = vmatpush1.msra.mxu0 0.0
      %1772 = vmatprep.subr.mxu0 0.0
      %1773 = vmatpush1.msra.mxu0 0.0
      %1774 = vmatprep.subr.mxu0 0.0
      %1775 = vmatpush1.msra.mxu0 0.0
      %1776 = vmatprep.subr.mxu0 0.0
      %1777 = vmatpush1.msra.mxu0 0.0
      %1778 = vmatprep.subr.mxu0 0.0
      %1779 = vmatpush1.msra.mxu0 0.0
      %1780 = vmatprep.subr.mxu0 0.0
      %1781 = vmatpush1.msra.mxu0 0.0
      %1782 = vmatprep.subr.mxu0 0.0
      %1783 = vmatpush1.msra.mxu0 0.0
      %1784 = vmatprep.subr.mxu0 0.0
      %1785 = vmatpush1.msra.mxu0 0.0
      %1786 = vmatprep.subr.mxu0 0.0
      %1787 = vmatpush1.msra.mxu0 0.0
      %1788 = vmatprep.subr.mxu0 0.0
      %1789 = vmatpush1.msra.mxu0 0.0
      %1790 = vmatprep.subr.mxu0 0.0
      %1791 = vmatpush1.msra.mxu0 %v1537
      %1792 = vmatprep.subr.mxu0 0.0
      %1793 = vmatpush2.msra.mxu0 0.0
      %1794 = vmatprep.subr.mxu0 0.0
      %1795 = vmatpush2.msra.mxu0 0.0
      %1796 = vmatprep.subr.mxu0 0.0
      %1797 = vmatpush2.msra.mxu0 0.0
      %1798 = vmatprep.subr.mxu0 0.0
      %1799 = vmatpush2.msra.mxu0 0.0
      %1800 = vmatprep.subr.mxu0 0.0
      %1801 = vmatpush2.msra.mxu0 0.0
      %1802 = vmatprep.subr.mxu0 0.0
      %1803 = vmatpush2.msra.mxu0 0.0
      %1804 = vmatprep.subr.mxu0 0.0
      %1805 = vmatpush2.msra.mxu0 0.0
      %1806 = vmatprep.subr.mxu0 0.0
      %1807 = vmatpush2.msra.mxu0 0.0
      %1808 = vmatprep.subr.mxu0 0.0
      %1809 = vmatpush2.msra.mxu0 0.0
      %1810 = vmatprep.subr.mxu0 0.0
      %1811 = vmatpush2.msra.mxu0 0.0
      %1812 = vmatprep.subr.mxu0 0.0
      %1813 = vmatpush2.msra.mxu0 0.0
      %1814 = vmatprep.subr.mxu0 0.0
      %1815 = vmatpush2.msra.mxu0 0.0
      %1816 = vmatprep.subr.mxu0 0.0
      %1817 = vmatpush2.msra.mxu0 0.0
      %1818 = vmatprep.subr.mxu0 0.0
      %1819 = vmatpush2.msra.mxu0 0.0
      %1820 = vmatprep.subr.mxu0 0.0
      %1821 = vmatpush2.msra.mxu0 0.0
      %1822 = vmatprep.subr.mxu0 0.0
      %1823 = vmatpush2.msra.mxu0 0.0
      %1824 = vmatprep.mubr.f32.mxu0 0.0
      %1825 = vmatmul.mubr.f32.gmra.mxu0 %v1758
      %v1826 = vpop.f32.mrf.mxu0
      %v1827 = vadd.f32 0.0, %v1826
      %v1828 = vpop.f32.mrf.mxu0
      %1829 = vdwg.mxu0
      %v1830 = vsel %vm585, %v1608, 0.0
      %v1831 = vsel %vm585, %v1681, 0.0
      %v1832 = vadd.f32 %v1830, %v1831
      %v1833 = vsel %vm585, %v1754, 0.0
      %v1834 = vadd.f32 %v1832, %v1833
      %v1835 = vsel %vm585, %v1827, 0.0
      %v1836 = vadd.f32 %v1834, %v1835
      %v1837 = vld [vmem:[%s7] sm:$0x1]
      %v1839 = vlaneseq
      %v1840 = vshrl.u32 %v1839, 7
      %v1841 = vsub.s32 0, %v1840
      %v1842 = vrot.slane %v1837, %v1841
      %v1844 = vadd.f32 %v1836, %v1842
      %v1845 = vadd.f32 %v540, %v1844
      %v1846 = vsel %vm585, %v1845, 0.0
      %1847 = vadd.xlane.f32.xlu0 %v1846
      %v1848 = vpop.xlane.xlu0 %1847
      %v1849 = vrcp.pop 32.0
      %v1850 = vmul.f32 %v1848, %v1849
      %v1851 = vsub.f32 %v1845, %v1850
      %v1852 = vmul.f32 %v1851, %v1851
      %v1853 = vsel %vm585, %v1852, 0.0
      %1854 = vadd.xlane.f32.xlu0 %v1853
      %v1855 = vpop.xlane.xlu0 %1854
      %v1856 = vmul.f32 %v1855, %v1849
      %v1857 = vadd.f32 %v1856, 1e-05
      %v1858 = vrsqrt.pop %v1857
      %v1859 = vmul.f32 %v1851, %v1858
      %v1860 = vld [vmem:[%s8] sm:$0x1]
      %v1862 = vlaneseq
      %v1863 = vshrl.u32 %v1862, 7
      %v1864 = vsub.s32 0, %v1863
      %v1865 = vrot.slane %v1860, %v1864
      %v1867 = vmul.f32 %v1859, %v1865
      %v1868 = vld [vmem:[%s9] sm:$0x1]
      %v1870 = vlaneseq
      %v1871 = vshrl.u32 %v1870, 7
      %v1872 = vsub.s32 0, %v1871
      %v1873 = vrot.slane %v1868, %v1872
      %v1875 = vadd.f32 %v1867, %v1873
      %v1876 = vld [vmem:[%s10] sm:$0xff]
      %v1877 = vld [vmem:[%s10 + $0x8] sm:$0xff]
      %v1878 = vld [vmem:[%s10 + $0x10] sm:$0xff]
      %v1879 = vld [vmem:[%s10 + $0x18] sm:$0xff]
      %v1880 = vld [vmem:[%s10 + $0x20] sm:$0xff]
      %v1881 = vld [vmem:[%s10 + $0x28] sm:$0xff]
      %v1882 = vld [vmem:[%s10 + $0x30] sm:$0xff]
      %v1883 = vld [vmem:[%s10 + $0x38] sm:$0xff]
      %v1884 = vld [vmem:[%s10 + $0x40] sm:$0xff]
      %v1885 = vld [vmem:[%s10 + $0x48] sm:$0xff]
      %v1886 = vld [vmem:[%s10 + $0x50] sm:$0xff]
      %v1887 = vld [vmem:[%s10 + $0x58] sm:$0xff]
      %v1888 = vld [vmem:[%s10 + $0x60] sm:$0xff]
      %v1889 = vld [vmem:[%s10 + $0x68] sm:$0xff]
      %v1890 = vld [vmem:[%s10 + $0x70] sm:$0xff]
      %v1891 = vld [vmem:[%s10 + $0x78] sm:$0xff]
      %v1892 = vld [vmem:[%s10 + $0x80] sm:$0xff]
      %v1893 = vld [vmem:[%s10 + $0x88] sm:$0xff]
      %v1894 = vld [vmem:[%s10 + $0x90] sm:$0xff]
      %v1895 = vld [vmem:[%s10 + $0x98] sm:$0xff]
      %v1896 = vld [vmem:[%s10 + $0xa0] sm:$0xff]
      %v1897 = vld [vmem:[%s10 + $0xa8] sm:$0xff]
      %v1898 = vld [vmem:[%s10 + $0xb0] sm:$0xff]
      %v1899 = vld [vmem:[%s10 + $0xb8] sm:$0xff]
      %v1900 = vld [vmem:[%s10 + $0xc0] sm:$0xff]
      %v1901 = vld [vmem:[%s10 + $0xc8] sm:$0xff]
      %v1902 = vld [vmem:[%s10 + $0xd0] sm:$0xff]
      %v1903 = vld [vmem:[%s10 + $0xd8] sm:$0xff]
      %v1904 = vld [vmem:[%s10 + $0xe0] sm:$0xff]
      %v1905 = vld [vmem:[%s10 + $0xe8] sm:$0xff]
      %v1906 = vld [vmem:[%s10 + $0xf0] sm:$0xff]
      %v1907 = vld [vmem:[%s10 + $0xf8] sm:$0xff]
      %v1908 = vld [vmem:[%s10 + $0x100] sm:$0xff]
      %v1909 = vld [vmem:[%s10 + $0x108] sm:$0xff]
      %v1910 = vld [vmem:[%s10 + $0x110] sm:$0xff]
      %v1911 = vld [vmem:[%s10 + $0x118] sm:$0xff]
      %v1912 = vld [vmem:[%s10 + $0x120] sm:$0xff]
      %v1913 = vld [vmem:[%s10 + $0x128] sm:$0xff]
      %v1914 = vld [vmem:[%s10 + $0x130] sm:$0xff]
      %v1915 = vld [vmem:[%s10 + $0x138] sm:$0xff]
      %v1916 = vld [vmem:[%s10 + $0x140] sm:$0xff]
      %v1917 = vld [vmem:[%s10 + $0x148] sm:$0xff]
      %v1918 = vld [vmem:[%s10 + $0x150] sm:$0xff]
      %v1919 = vld [vmem:[%s10 + $0x158] sm:$0xff]
      %v1920 = vld [vmem:[%s10 + $0x160] sm:$0xff]
      %v1921 = vld [vmem:[%s10 + $0x168] sm:$0xff]
      %v1922 = vld [vmem:[%s10 + $0x170] sm:$0xff]
      %v1923 = vld [vmem:[%s10 + $0x178] sm:$0xff]
      %v1924 = vld [vmem:[%s10 + $0x180] sm:$0xff]
      %v1925 = vld [vmem:[%s10 + $0x188] sm:$0xff]
      %v1926 = vld [vmem:[%s10 + $0x190] sm:$0xff]
      %v1927 = vld [vmem:[%s10 + $0x198] sm:$0xff]
      %v1928 = vld [vmem:[%s10 + $0x1a0] sm:$0xff]
      %v1929 = vld [vmem:[%s10 + $0x1a8] sm:$0xff]
      %v1930 = vld [vmem:[%s10 + $0x1b0] sm:$0xff]
      %v1931 = vld [vmem:[%s10 + $0x1b8] sm:$0xff]
      %v1932 = vld [vmem:[%s10 + $0x1c0] sm:$0xff]
      %v1933 = vld [vmem:[%s10 + $0x1c8] sm:$0xff]
      %v1934 = vld [vmem:[%s10 + $0x1d0] sm:$0xff]
      %v1935 = vld [vmem:[%s10 + $0x1d8] sm:$0xff]
      %v1936 = vld [vmem:[%s10 + $0x1e0] sm:$0xff]
      %v1937 = vld [vmem:[%s10 + $0x1e8] sm:$0xff]
      %v1938 = vld [vmem:[%s10 + $0x1f0] sm:$0xff]
      %v1939 = vld [vmem:[%s10 + $0x1f8] sm:$0xff]
      %v1940 = vld [vmem:[%s11] sm:$0xff]
      %v1941 = vld [vmem:[%s11 + $0x8] sm:$0xff]
      %v1944 = vlaneseq
      %v1945 = vshrl.u32 %v1944, 7
      %v1946 = vsub.s32 0, %v1945
      %v1947 = vrot.slane %v1940, %v1946
      %v1948 = vlaneseq
      %v1949 = vshrl.u32 %v1948, 7
      %v1950 = vsub.s32 1, %v1949
      %v1951 = vrot.slane %v1940, %v1950
      %v1952 = vlaneseq
      %v1953 = vshrl.u32 %v1952, 7
      %v1954 = vsub.s32 2, %v1953
      %v1955 = vrot.slane %v1940, %v1954
      %v1956 = vlaneseq
      %v1957 = vshrl.u32 %v1956, 7
      %v1958 = vsub.s32 3, %v1957
      %v1959 = vrot.slane %v1940, %v1958
      %v1960 = vlaneseq
      %v1961 = vshrl.u32 %v1960, 7
      %v1962 = vsub.s32 4, %v1961
      %v1963 = vrot.slane %v1940, %v1962
      %v1964 = vlaneseq
      %v1965 = vshrl.u32 %v1964, 7
      %v1966 = vsub.s32 5, %v1965
      %v1967 = vrot.slane %v1940, %v1966
      %v1968 = vlaneseq
      %v1969 = vshrl.u32 %v1968, 7
      %v1970 = vsub.s32 6, %v1969
      %v1971 = vrot.slane %v1940, %v1970
      %v1972 = vlaneseq
      %v1973 = vshrl.u32 %v1972, 7
      %v1974 = vsub.s32 7, %v1973
      %v1975 = vrot.slane %v1940, %v1974
      %v1976 = vlaneseq
      %v1977 = vshrl.u32 %v1976, 7
      %v1978 = vsub.s32 0, %v1977
      %v1979 = vrot.slane %v1941, %v1978
      %v1980 = vlaneseq
      %v1981 = vshrl.u32 %v1980, 7
      %v1982 = vsub.s32 1, %v1981
      %v1983 = vrot.slane %v1941, %v1982
      %v1984 = vlaneseq
      %v1985 = vshrl.u32 %v1984, 7
      %v1986 = vsub.s32 2, %v1985
      %v1987 = vrot.slane %v1941, %v1986
      %v1988 = vlaneseq
      %v1989 = vshrl.u32 %v1988, 7
      %v1990 = vsub.s32 3, %v1989
      %v1991 = vrot.slane %v1941, %v1990
      %v1992 = vlaneseq
      %v1993 = vshrl.u32 %v1992, 7
      %v1994 = vsub.s32 4, %v1993
      %v1995 = vrot.slane %v1941, %v1994
      %v1996 = vlaneseq
      %v1997 = vshrl.u32 %v1996, 7
      %v1998 = vsub.s32 5, %v1997
      %v1999 = vrot.slane %v1941, %v1998
      %v2000 = vlaneseq
      %v2001 = vshrl.u32 %v2000, 7
      %v2002 = vsub.s32 6, %v2001
      %v2003 = vrot.slane %v1941, %v2002
      %v2004 = vlaneseq
      %v2005 = vshrl.u32 %v2004, 7
      %v2006 = vsub.s32 7, %v2005
      %v2007 = vrot.slane %v1941, %v2006
      %v2025 = vsel %vm585, %v1875, 0
      %2027 = vmatprep.subr.mxu0 0.0
      %2028 = vmatpush1.msra.mxu0 0.0
      %2029 = vmatprep.subr.mxu0 0.0
      %2030 = vmatpush1.msra.mxu0 0.0
      %2031 = vmatprep.subr.mxu0 0.0
      %2032 = vmatpush1.msra.mxu0 0.0
      %2033 = vmatprep.subr.mxu0 0.0
      %2034 = vmatpush1.msra.mxu0 0.0
      %2035 = vmatprep.subr.mxu0 0.0
      %2036 = vmatpush1.msra.mxu0 0.0
      %2037 = vmatprep.subr.mxu0 0.0
      %2038 = vmatpush1.msra.mxu0 0.0
      %2039 = vmatprep.subr.mxu0 0.0
      %2040 = vmatpush1.msra.mxu0 0.0
      %2041 = vmatprep.subr.mxu0 0.0
      %2042 = vmatpush1.msra.mxu0 0.0
      %2043 = vmatprep.subr.mxu0 0.0
      %2044 = vmatpush1.msra.mxu0 0.0
      %2045 = vmatprep.subr.mxu0 0.0
      %2046 = vmatpush1.msra.mxu0 0.0
      %2047 = vmatprep.subr.mxu0 0.0
      %2048 = vmatpush1.msra.mxu0 0.0
      %2049 = vmatprep.subr.mxu0 0.0
      %2050 = vmatpush1.msra.mxu0 0.0
      %2051 = vmatprep.subr.mxu0 %v1925
      %2052 = vmatpush1.msra.mxu0 %v1924
      %2053 = vmatprep.subr.mxu0 %v1909
      %2054 = vmatpush1.msra.mxu0 %v1908
      %2055 = vmatprep.subr.mxu0 %v1893
      %2056 = vmatpush1.msra.mxu0 %v1892
      %2057 = vmatprep.subr.mxu0 %v1877
      %2058 = vmatpush1.msra.mxu0 %v1876
      %2059 = vmatprep.subr.mxu0 0.0
      %2060 = vmatpush2.msra.mxu0 0.0
      %2061 = vmatprep.subr.mxu0 0.0
      %2062 = vmatpush2.msra.mxu0 0.0
      %2063 = vmatprep.subr.mxu0 0.0
      %2064 = vmatpush2.msra.mxu0 0.0
      %2065 = vmatprep.subr.mxu0 0.0
      %2066 = vmatpush2.msra.mxu0 0.0
      %2067 = vmatprep.subr.mxu0 0.0
      %2068 = vmatpush2.msra.mxu0 0.0
      %2069 = vmatprep.subr.mxu0 0.0
      %2070 = vmatpush2.msra.mxu0 0.0
      %2071 = vmatprep.subr.mxu0 0.0
      %2072 = vmatpush2.msra.mxu0 0.0
      %2073 = vmatprep.subr.mxu0 0.0
      %2074 = vmatpush2.msra.mxu0 0.0
      %2075 = vmatprep.subr.mxu0 0.0
      %2076 = vmatpush2.msra.mxu0 0.0
      %2077 = vmatprep.subr.mxu0 0.0
      %2078 = vmatpush2.msra.mxu0 0.0
      %2079 = vmatprep.subr.mxu0 0.0
      %2080 = vmatpush2.msra.mxu0 0.0
      %2081 = vmatprep.subr.mxu0 0.0
      %2082 = vmatpush2.msra.mxu0 0.0
      %2083 = vmatprep.subr.mxu0 0.0
      %2084 = vmatpush2.msra.mxu0 0.0
      %2085 = vmatprep.subr.mxu0 0.0
      %2086 = vmatpush2.msra.mxu0 0.0
      %2087 = vmatprep.subr.mxu0 0.0
      %2088 = vmatpush2.msra.mxu0 0.0
      %2089 = vmatprep.subr.mxu0 0.0
      %2090 = vmatpush2.msra.mxu0 0.0
      %2091 = vmatprep.mubr.f32.mxu0 0.0
      %2092 = vmatmul.mubr.f32.gmra.mxu0 %v2025
      %v2093 = vpop.f32.mrf.mxu0
      %v2094 = vadd.f32 %v1947, %v2093
      %v2095 = vpop.f32.mrf.mxu0
      %v2096 = vadd.f32 %v1951, %v2095
      %2097 = vdwg.mxu0
      %2098 = vmatprep.subr.mxu0 0.0
      %2099 = vmatpush1.msra.mxu0 0.0
      %2100 = vmatprep.subr.mxu0 0.0
      %2101 = vmatpush1.msra.mxu0 0.0
      %2102 = vmatprep.subr.mxu0 0.0
      %2103 = vmatpush1.msra.mxu0 0.0
      %2104 = vmatprep.subr.mxu0 0.0
      %2105 = vmatpush1.msra.mxu0 0.0
      %2106 = vmatprep.subr.mxu0 0.0
      %2107 = vmatpush1.msra.mxu0 0.0
      %2108 = vmatprep.subr.mxu0 0.0
      %2109 = vmatpush1.msra.mxu0 0.0
      %2110 = vmatprep.subr.mxu0 0.0
      %2111 = vmatpush1.msra.mxu0 0.0
      %2112 = vmatprep.subr.mxu0 0.0
      %2113 = vmatpush1.msra.mxu0 0.0
      %2114 = vmatprep.subr.mxu0 0.0
      %2115 = vmatpush1.msra.mxu0 0.0
      %2116 = vmatprep.subr.mxu0 0.0
      %2117 = vmatpush1.msra.mxu0 0.0
      %2118 = vmatprep.subr.mxu0 0.0
      %2119 = vmatpush1.msra.mxu0 0.0
      %2120 = vmatprep.subr.mxu0 0.0
      %2121 = vmatpush1.msra.mxu0 0.0
      %2122 = vmatprep.subr.mxu0 %v1927
      %2123 = vmatpush1.msra.mxu0 %v1926
      %2124 = vmatprep.subr.mxu0 %v1911
      %2125 = vmatpush1.msra.mxu0 %v1910
      %2126 = vmatprep.subr.mxu0 %v1895
      %2127 = vmatpush1.msra.mxu0 %v1894
      %2128 = vmatprep.subr.mxu0 %v1879
      %2129 = vmatpush1.msra.mxu0 %v1878
      %2130 = vmatprep.subr.mxu0 0.0
      %2131 = vmatpush2.msra.mxu0 0.0
      %2132 = vmatprep.subr.mxu0 0.0
      %2133 = vmatpush2.msra.mxu0 0.0
      %2134 = vmatprep.subr.mxu0 0.0
      %2135 = vmatpush2.msra.mxu0 0.0
      %2136 = vmatprep.subr.mxu0 0.0
      %2137 = vmatpush2.msra.mxu0 0.0
      %2138 = vmatprep.subr.mxu0 0.0
      %2139 = vmatpush2.msra.mxu0 0.0
      %2140 = vmatprep.subr.mxu0 0.0
      %2141 = vmatpush2.msra.mxu0 0.0
      %2142 = vmatprep.subr.mxu0 0.0
      %2143 = vmatpush2.msra.mxu0 0.0
      %2144 = vmatprep.subr.mxu0 0.0
      %2145 = vmatpush2.msra.mxu0 0.0
      %2146 = vmatprep.subr.mxu0 0.0
      %2147 = vmatpush2.msra.mxu0 0.0
      %2148 = vmatprep.subr.mxu0 0.0
      %2149 = vmatpush2.msra.mxu0 0.0
      %2150 = vmatprep.subr.mxu0 0.0
      %2151 = vmatpush2.msra.mxu0 0.0
      %2152 = vmatprep.subr.mxu0 0.0
      %2153 = vmatpush2.msra.mxu0 0.0
      %2154 = vmatprep.subr.mxu0 0.0
      %2155 = vmatpush2.msra.mxu0 0.0
      %2156 = vmatprep.subr.mxu0 0.0
      %2157 = vmatpush2.msra.mxu0 0.0
      %2158 = vmatprep.subr.mxu0 0.0
      %2159 = vmatpush2.msra.mxu0 0.0
      %2160 = vmatprep.subr.mxu0 0.0
      %2161 = vmatpush2.msra.mxu0 0.0
      %2162 = vmatprep.mubr.f32.mxu0 0.0
      %2163 = vmatmul.mubr.f32.gmra.mxu0 %v2025
      %v2164 = vpop.f32.mrf.mxu0
      %v2165 = vadd.f32 %v1955, %v2164
      %v2166 = vpop.f32.mrf.mxu0
      %v2167 = vadd.f32 %v1959, %v2166
      %2168 = vdwg.mxu0
      %2169 = vmatprep.subr.mxu0 0.0
      %2170 = vmatpush1.msra.mxu0 0.0
      %2171 = vmatprep.subr.mxu0 0.0
      %2172 = vmatpush1.msra.mxu0 0.0
      %2173 = vmatprep.subr.mxu0 0.0
      %2174 = vmatpush1.msra.mxu0 0.0
      %2175 = vmatprep.subr.mxu0 0.0
      %2176 = vmatpush1.msra.mxu0 0.0
      %2177 = vmatprep.subr.mxu0 0.0
      %2178 = vmatpush1.msra.mxu0 0.0
      %2179 = vmatprep.subr.mxu0 0.0
      %2180 = vmatpush1.msra.mxu0 0.0
      %2181 = vmatprep.subr.mxu0 0.0
      %2182 = vmatpush1.msra.mxu0 0.0
      %2183 = vmatprep.subr.mxu0 0.0
      %2184 = vmatpush1.msra.mxu0 0.0
      %2185 = vmatprep.subr.mxu0 0.0
      %2186 = vmatpush1.msra.mxu0 0.0
      %2187 = vmatprep.subr.mxu0 0.0
      %2188 = vmatpush1.msra.mxu0 0.0
      %2189 = vmatprep.subr.mxu0 0.0
      %2190 = vmatpush1.msra.mxu0 0.0
      %2191 = vmatprep.subr.mxu0 0.0
      %2192 = vmatpush1.msra.mxu0 0.0
      %2193 = vmatprep.subr.mxu0 %v1929
      %2194 = vmatpush1.msra.mxu0 %v1928
      %2195 = vmatprep.subr.mxu0 %v1913
      %2196 = vmatpush1.msra.mxu0 %v1912
      %2197 = vmatprep.subr.mxu0 %v1897
      %2198 = vmatpush1.msra.mxu0 %v1896
      %2199 = vmatprep.subr.mxu0 %v1881
      %2200 = vmatpush1.msra.mxu0 %v1880
      %2201 = vmatprep.subr.mxu0 0.0
      %2202 = vmatpush2.msra.mxu0 0.0
      %2203 = vmatprep.subr.mxu0 0.0
      %2204 = vmatpush2.msra.mxu0 0.0
      %2205 = vmatprep.subr.mxu0 0.0
      %2206 = vmatpush2.msra.mxu0 0.0
      %2207 = vmatprep.subr.mxu0 0.0
      %2208 = vmatpush2.msra.mxu0 0.0
      %2209 = vmatprep.subr.mxu0 0.0
      %2210 = vmatpush2.msra.mxu0 0.0
      %2211 = vmatprep.subr.mxu0 0.0
      %2212 = vmatpush2.msra.mxu0 0.0
      %2213 = vmatprep.subr.mxu0 0.0
      %2214 = vmatpush2.msra.mxu0 0.0
      %2215 = vmatprep.subr.mxu0 0.0
      %2216 = vmatpush2.msra.mxu0 0.0
      %2217 = vmatprep.subr.mxu0 0.0
      %2218 = vmatpush2.msra.mxu0 0.0
      %2219 = vmatprep.subr.mxu0 0.0
      %2220 = vmatpush2.msra.mxu0 0.0
      %2221 = vmatprep.subr.mxu0 0.0
      %2222 = vmatpush2.msra.mxu0 0.0
      %2223 = vmatprep.subr.mxu0 0.0
      %2224 = vmatpush2.msra.mxu0 0.0
      %2225 = vmatprep.subr.mxu0 0.0
      %2226 = vmatpush2.msra.mxu0 0.0
      %2227 = vmatprep.subr.mxu0 0.0
      %2228 = vmatpush2.msra.mxu0 0.0
      %2229 = vmatprep.subr.mxu0 0.0
      %2230 = vmatpush2.msra.mxu0 0.0
      %2231 = vmatprep.subr.mxu0 0.0
      %2232 = vmatpush2.msra.mxu0 0.0
      %2233 = vmatprep.mubr.f32.mxu0 0.0
      %2234 = vmatmul.mubr.f32.gmra.mxu0 %v2025
      %v2235 = vpop.f32.mrf.mxu0
      %v2236 = vadd.f32 %v1963, %v2235
      %v2237 = vpop.f32.mrf.mxu0
      %v2238 = vadd.f32 %v1967, %v2237
      %2239 = vdwg.mxu0
      %2240 = vmatprep.subr.mxu0 0.0
      %2241 = vmatpush1.msra.mxu0 0.0
      %2242 = vmatprep.subr.mxu0 0.0
      %2243 = vmatpush1.msra.mxu0 0.0
      %2244 = vmatprep.subr.mxu0 0.0
      %2245 = vmatpush1.msra.mxu0 0.0
      %2246 = vmatprep.subr.mxu0 0.0
      %2247 = vmatpush1.msra.mxu0 0.0
      %2248 = vmatprep.subr.mxu0 0.0
      %2249 = vmatpush1.msra.mxu0 0.0
      %2250 = vmatprep.subr.mxu0 0.0
      %2251 = vmatpush1.msra.mxu0 0.0
      %2252 = vmatprep.subr.mxu0 0.0
      %2253 = vmatpush1.msra.mxu0 0.0
      %2254 = vmatprep.subr.mxu0 0.0
      %2255 = vmatpush1.msra.mxu0 0.0
      %2256 = vmatprep.subr.mxu0 0.0
      %2257 = vmatpush1.msra.mxu0 0.0
      %2258 = vmatprep.subr.mxu0 0.0
      %2259 = vmatpush1.msra.mxu0 0.0
      %2260 = vmatprep.subr.mxu0 0.0
      %2261 = vmatpush1.msra.mxu0 0.0
      %2262 = vmatprep.subr.mxu0 0.0
      %2263 = vmatpush1.msra.mxu0 0.0
      %2264 = vmatprep.subr.mxu0 %v1931
      %2265 = vmatpush1.msra.mxu0 %v1930
      %2266 = vmatprep.subr.mxu0 %v1915
      %2267 = vmatpush1.msra.mxu0 %v1914
      %2268 = vmatprep.subr.mxu0 %v1899
      %2269 = vmatpush1.msra.mxu0 %v1898
      %2270 = vmatprep.subr.mxu0 %v1883
      %2271 = vmatpush1.msra.mxu0 %v1882
      %2272 = vmatprep.subr.mxu0 0.0
      %2273 = vmatpush2.msra.mxu0 0.0
      %2274 = vmatprep.subr.mxu0 0.0
      %2275 = vmatpush2.msra.mxu0 0.0
      %2276 = vmatprep.subr.mxu0 0.0
      %2277 = vmatpush2.msra.mxu0 0.0
      %2278 = vmatprep.subr.mxu0 0.0
      %2279 = vmatpush2.msra.mxu0 0.0
      %2280 = vmatprep.subr.mxu0 0.0
      %2281 = vmatpush2.msra.mxu0 0.0
      %2282 = vmatprep.subr.mxu0 0.0
      %2283 = vmatpush2.msra.mxu0 0.0
      %2284 = vmatprep.subr.mxu0 0.0
      %2285 = vmatpush2.msra.mxu0 0.0
      %2286 = vmatprep.subr.mxu0 0.0
      %2287 = vmatpush2.msra.mxu0 0.0
      %2288 = vmatprep.subr.mxu0 0.0
      %2289 = vmatpush2.msra.mxu0 0.0
      %2290 = vmatprep.subr.mxu0 0.0
      %2291 = vmatpush2.msra.mxu0 0.0
      %2292 = vmatprep.subr.mxu0 0.0
      %2293 = vmatpush2.msra.mxu0 0.0
      %2294 = vmatprep.subr.mxu0 0.0
      %2295 = vmatpush2.msra.mxu0 0.0
      %2296 = vmatprep.subr.mxu0 0.0
      %2297 = vmatpush2.msra.mxu0 0.0
      %2298 = vmatprep.subr.mxu0 0.0
      %2299 = vmatpush2.msra.mxu0 0.0
      %2300 = vmatprep.subr.mxu0 0.0
      %2301 = vmatpush2.msra.mxu0 0.0
      %2302 = vmatprep.subr.mxu0 0.0
      %2303 = vmatpush2.msra.mxu0 0.0
      %2304 = vmatprep.mubr.f32.mxu0 0.0
      %2305 = vmatmul.mubr.f32.gmra.mxu0 %v2025
      %v2306 = vpop.f32.mrf.mxu0
      %v2307 = vadd.f32 %v1971, %v2306
      %v2308 = vpop.f32.mrf.mxu0
      %v2309 = vadd.f32 %v1975, %v2308
      %2310 = vdwg.mxu0
      %2311 = vmatprep.subr.mxu0 0.0
      %2312 = vmatpush1.msra.mxu0 0.0
      %2313 = vmatprep.subr.mxu0 0.0
      %2314 = vmatpush1.msra.mxu0 0.0
      %2315 = vmatprep.subr.mxu0 0.0
      %2316 = vmatpush1.msra.mxu0 0.0
      %2317 = vmatprep.subr.mxu0 0.0
      %2318 = vmatpush1.msra.mxu0 0.0
      %2319 = vmatprep.subr.mxu0 0.0
      %2320 = vmatpush1.msra.mxu0 0.0
      %2321 = vmatprep.subr.mxu0 0.0
      %2322 = vmatpush1.msra.mxu0 0.0
      %2323 = vmatprep.subr.mxu0 0.0
      %2324 = vmatpush1.msra.mxu0 0.0
      %2325 = vmatprep.subr.mxu0 0.0
      %2326 = vmatpush1.msra.mxu0 0.0
      %2327 = vmatprep.subr.mxu0 0.0
      %2328 = vmatpush1.msra.mxu0 0.0
      %2329 = vmatprep.subr.mxu0 0.0
      %2330 = vmatpush1.msra.mxu0 0.0
      %2331 = vmatprep.subr.mxu0 0.0
      %2332 = vmatpush1.msra.mxu0 0.0
      %2333 = vmatprep.subr.mxu0 0.0
      %2334 = vmatpush1.msra.mxu0 0.0
      %2335 = vmatprep.subr.mxu0 %v1933
      %2336 = vmatpush1.msra.mxu0 %v1932
      %2337 = vmatprep.subr.mxu0 %v1917
      %2338 = vmatpush1.msra.mxu0 %v1916
      %2339 = vmatprep.subr.mxu0 %v1901
      %2340 = vmatpush1.msra.mxu0 %v1900
      %2341 = vmatprep.subr.mxu0 %v1885
      %2342 = vmatpush1.msra.mxu0 %v1884
      %2343 = vmatprep.subr.mxu0 0.0
      %2344 = vmatpush2.msra.mxu0 0.0
      %2345 = vmatprep.subr.mxu0 0.0
      %2346 = vmatpush2.msra.mxu0 0.0
      %2347 = vmatprep.subr.mxu0 0.0
      %2348 = vmatpush2.msra.mxu0 0.0
      %2349 = vmatprep.subr.mxu0 0.0
      %2350 = vmatpush2.msra.mxu0 0.0
      %2351 = vmatprep.subr.mxu0 0.0
      %2352 = vmatpush2.msra.mxu0 0.0
      %2353 = vmatprep.subr.mxu0 0.0
      %2354 = vmatpush2.msra.mxu0 0.0
      %2355 = vmatprep.subr.mxu0 0.0
      %2356 = vmatpush2.msra.mxu0 0.0
      %2357 = vmatprep.subr.mxu0 0.0
      %2358 = vmatpush2.msra.mxu0 0.0
      %2359 = vmatprep.subr.mxu0 0.0
      %2360 = vmatpush2.msra.mxu0 0.0
      %2361 = vmatprep.subr.mxu0 0.0
      %2362 = vmatpush2.msra.mxu0 0.0
      %2363 = vmatprep.subr.mxu0 0.0
      %2364 = vmatpush2.msra.mxu0 0.0
      %2365 = vmatprep.subr.mxu0 0.0
      %2366 = vmatpush2.msra.mxu0 0.0
      %2367 = vmatprep.subr.mxu0 0.0
      %2368 = vmatpush2.msra.mxu0 0.0
      %2369 = vmatprep.subr.mxu0 0.0
      %2370 = vmatpush2.msra.mxu0 0.0
      %2371 = vmatprep.subr.mxu0 0.0
      %2372 = vmatpush2.msra.mxu0 0.0
      %2373 = vmatprep.subr.mxu0 0.0
      %2374 = vmatpush2.msra.mxu0 0.0
      %2375 = vmatprep.mubr.f32.mxu0 0.0
      %2376 = vmatmul.mubr.f32.gmra.mxu0 %v2025
      %v2377 = vpop.f32.mrf.mxu0
      %v2378 = vadd.f32 %v1979, %v2377
      %v2379 = vpop.f32.mrf.mxu0
      %v2380 = vadd.f32 %v1983, %v2379
      %2381 = vdwg.mxu0
      %2382 = vmatprep.subr.mxu0 0.0
      %2383 = vmatpush1.msra.mxu0 0.0
      %2384 = vmatprep.subr.mxu0 0.0
      %2385 = vmatpush1.msra.mxu0 0.0
      %2386 = vmatprep.subr.mxu0 0.0
      %2387 = vmatpush1.msra.mxu0 0.0
      %2388 = vmatprep.subr.mxu0 0.0
      %2389 = vmatpush1.msra.mxu0 0.0
      %2390 = vmatprep.subr.mxu0 0.0
      %2391 = vmatpush1.msra.mxu0 0.0
      %2392 = vmatprep.subr.mxu0 0.0
      %2393 = vmatpush1.msra.mxu0 0.0
      %2394 = vmatprep.subr.mxu0 0.0
      %2395 = vmatpush1.msra.mxu0 0.0
      %2396 = vmatprep.subr.mxu0 0.0
      %2397 = vmatpush1.msra.mxu0 0.0
      %2398 = vmatprep.subr.mxu0 0.0
      %2399 = vmatpush1.msra.mxu0 0.0
      %2400 = vmatprep.subr.mxu0 0.0
      %2401 = vmatpush1.msra.mxu0 0.0
      %2402 = vmatprep.subr.mxu0 0.0
      %2403 = vmatpush1.msra.mxu0 0.0
      %2404 = vmatprep.subr.mxu0 0.0
      %2405 = vmatpush1.msra.mxu0 0.0
      %2406 = vmatprep.subr.mxu0 %v1935
      %2407 = vmatpush1.msra.mxu0 %v1934
      %2408 = vmatprep.subr.mxu0 %v1919
      %2409 = vmatpush1.msra.mxu0 %v1918
      %2410 = vmatprep.subr.mxu0 %v1903
      %2411 = vmatpush1.msra.mxu0 %v1902
      %2412 = vmatprep.subr.mxu0 %v1887
      %2413 = vmatpush1.msra.mxu0 %v1886
      %2414 = vmatprep.subr.mxu0 0.0
      %2415 = vmatpush2.msra.mxu0 0.0
      %2416 = vmatprep.subr.mxu0 0.0
      %2417 = vmatpush2.msra.mxu0 0.0
      %2418 = vmatprep.subr.mxu0 0.0
      %2419 = vmatpush2.msra.mxu0 0.0
      %2420 = vmatprep.subr.mxu0 0.0
      %2421 = vmatpush2.msra.mxu0 0.0
      %2422 = vmatprep.subr.mxu0 0.0
      %2423 = vmatpush2.msra.mxu0 0.0
      %2424 = vmatprep.subr.mxu0 0.0
      %2425 = vmatpush2.msra.mxu0 0.0
      %2426 = vmatprep.subr.mxu0 0.0
      %2427 = vmatpush2.msra.mxu0 0.0
      %2428 = vmatprep.subr.mxu0 0.0
      %2429 = vmatpush2.msra.mxu0 0.0
      %2430 = vmatprep.subr.mxu0 0.0
      %2431 = vmatpush2.msra.mxu0 0.0
      %2432 = vmatprep.subr.mxu0 0.0
      %2433 = vmatpush2.msra.mxu0 0.0
      %2434 = vmatprep.subr.mxu0 0.0
      %2435 = vmatpush2.msra.mxu0 0.0
      %2436 = vmatprep.subr.mxu0 0.0
      %2437 = vmatpush2.msra.mxu0 0.0
      %2438 = vmatprep.subr.mxu0 0.0
      %2439 = vmatpush2.msra.mxu0 0.0
      %2440 = vmatprep.subr.mxu0 0.0
      %2441 = vmatpush2.msra.mxu0 0.0
      %2442 = vmatprep.subr.mxu0 0.0
      %2443 = vmatpush2.msra.mxu0 0.0
      %2444 = vmatprep.subr.mxu0 0.0
      %2445 = vmatpush2.msra.mxu0 0.0
      %2446 = vmatprep.mubr.f32.mxu0 0.0
      %2447 = vmatmul.mubr.f32.gmra.mxu0 %v2025
      %v2448 = vpop.f32.mrf.mxu0
      %v2449 = vadd.f32 %v1987, %v2448
      %v2450 = vpop.f32.mrf.mxu0
      %v2451 = vadd.f32 %v1991, %v2450
      %2452 = vdwg.mxu0
      %2453 = vmatprep.subr.mxu0 0.0
      %2454 = vmatpush1.msra.mxu0 0.0
      %2455 = vmatprep.subr.mxu0 0.0
      %2456 = vmatpush1.msra.mxu0 0.0
      %2457 = vmatprep.subr.mxu0 0.0
      %2458 = vmatpush1.msra.mxu0 0.0
      %2459 = vmatprep.subr.mxu0 0.0
      %2460 = vmatpush1.msra.mxu0 0.0
      %2461 = vmatprep.subr.mxu0 0.0
      %2462 = vmatpush1.msra.mxu0 0.0
      %2463 = vmatprep.subr.mxu0 0.0
      %2464 = vmatpush1.msra.mxu0 0.0
      %2465 = vmatprep.subr.mxu0 0.0
      %2466 = vmatpush1.msra.mxu0 0.0
      %2467 = vmatprep.subr.mxu0 0.0
      %2468 = vmatpush1.msra.mxu0 0.0
      %2469 = vmatprep.subr.mxu0 0.0
      %2470 = vmatpush1.msra.mxu0 0.0
      %2471 = vmatprep.subr.mxu0 0.0
      %2472 = vmatpush1.msra.mxu0 0.0
      %2473 = vmatprep.subr.mxu0 0.0
      %2474 = vmatpush1.msra.mxu0 0.0
      %2475 = vmatprep.subr.mxu0 0.0
      %2476 = vmatpush1.msra.mxu0 0.0
      %2477 = vmatprep.subr.mxu0 %v1937
      %2478 = vmatpush1.msra.mxu0 %v1936
      %2479 = vmatprep.subr.mxu0 %v1921
      %2480 = vmatpush1.msra.mxu0 %v1920
      %2481 = vmatprep.subr.mxu0 %v1905
      %2482 = vmatpush1.msra.mxu0 %v1904
      %2483 = vmatprep.subr.mxu0 %v1889
      %2484 = vmatpush1.msra.mxu0 %v1888
      %2485 = vmatprep.subr.mxu0 0.0
      %2486 = vmatpush2.msra.mxu0 0.0
      %2487 = vmatprep.subr.mxu0 0.0
      %2488 = vmatpush2.msra.mxu0 0.0
      %2489 = vmatprep.subr.mxu0 0.0
      %2490 = vmatpush2.msra.mxu0 0.0
      %2491 = vmatprep.subr.mxu0 0.0
      %2492 = vmatpush2.msra.mxu0 0.0
      %2493 = vmatprep.subr.mxu0 0.0
      %2494 = vmatpush2.msra.mxu0 0.0
      %2495 = vmatprep.subr.mxu0 0.0
      %2496 = vmatpush2.msra.mxu0 0.0
      %2497 = vmatprep.subr.mxu0 0.0
      %2498 = vmatpush2.msra.mxu0 0.0
      %2499 = vmatprep.subr.mxu0 0.0
      %2500 = vmatpush2.msra.mxu0 0.0
      %2501 = vmatprep.subr.mxu0 0.0
      %2502 = vmatpush2.msra.mxu0 0.0
      %2503 = vmatprep.subr.mxu0 0.0
      %2504 = vmatpush2.msra.mxu0 0.0
      %2505 = vmatprep.subr.mxu0 0.0
      %2506 = vmatpush2.msra.mxu0 0.0
      %2507 = vmatprep.subr.mxu0 0.0
      %2508 = vmatpush2.msra.mxu0 0.0
      %2509 = vmatprep.subr.mxu0 0.0
      %2510 = vmatpush2.msra.mxu0 0.0
      %2511 = vmatprep.subr.mxu0 0.0
      %2512 = vmatpush2.msra.mxu0 0.0
      %2513 = vmatprep.subr.mxu0 0.0
      %2514 = vmatpush2.msra.mxu0 0.0
      %2515 = vmatprep.subr.mxu0 0.0
      %2516 = vmatpush2.msra.mxu0 0.0
      %2517 = vmatprep.mubr.f32.mxu0 0.0
      %2518 = vmatmul.mubr.f32.gmra.mxu0 %v2025
      %v2519 = vpop.f32.mrf.mxu0
      %v2520 = vadd.f32 %v1995, %v2519
      %v2521 = vpop.f32.mrf.mxu0
      %v2522 = vadd.f32 %v1999, %v2521
      %2523 = vdwg.mxu0
      %2524 = vmatprep.subr.mxu0 0.0
      %2525 = vmatpush1.msra.mxu0 0.0
      %2526 = vmatprep.subr.mxu0 0.0
      %2527 = vmatpush1.msra.mxu0 0.0
      %2528 = vmatprep.subr.mxu0 0.0
      %2529 = vmatpush1.msra.mxu0 0.0
      %2530 = vmatprep.subr.mxu0 0.0
      %2531 = vmatpush1.msra.mxu0 0.0
      %2532 = vmatprep.subr.mxu0 0.0
      %2533 = vmatpush1.msra.mxu0 0.0
      %2534 = vmatprep.subr.mxu0 0.0
      %2535 = vmatpush1.msra.mxu0 0.0
      %2536 = vmatprep.subr.mxu0 0.0
      %2537 = vmatpush1.msra.mxu0 0.0
      %2538 = vmatprep.subr.mxu0 0.0
      %2539 = vmatpush1.msra.mxu0 0.0
      %2540 = vmatprep.subr.mxu0 0.0
      %2541 = vmatpush1.msra.mxu0 0.0
      %2542 = vmatprep.subr.mxu0 0.0
      %2543 = vmatpush1.msra.mxu0 0.0
      %2544 = vmatprep.subr.mxu0 0.0
      %2545 = vmatpush1.msra.mxu0 0.0
      %2546 = vmatprep.subr.mxu0 0.0
      %2547 = vmatpush1.msra.mxu0 0.0
      %2548 = vmatprep.subr.mxu0 %v1939
      %2549 = vmatpush1.msra.mxu0 %v1938
      %2550 = vmatprep.subr.mxu0 %v1923
      %2551 = vmatpush1.msra.mxu0 %v1922
      %2552 = vmatprep.subr.mxu0 %v1907
      %2553 = vmatpush1.msra.mxu0 %v1906
      %2554 = vmatprep.subr.mxu0 %v1891
      %2555 = vmatpush1.msra.mxu0 %v1890
      %2556 = vmatprep.subr.mxu0 0.0
      %2557 = vmatpush2.msra.mxu0 0.0
      %2558 = vmatprep.subr.mxu0 0.0
      %2559 = vmatpush2.msra.mxu0 0.0
      %2560 = vmatprep.subr.mxu0 0.0
      %2561 = vmatpush2.msra.mxu0 0.0
      %2562 = vmatprep.subr.mxu0 0.0
      %2563 = vmatpush2.msra.mxu0 0.0
      %2564 = vmatprep.subr.mxu0 0.0
      %2565 = vmatpush2.msra.mxu0 0.0
      %2566 = vmatprep.subr.mxu0 0.0
      %2567 = vmatpush2.msra.mxu0 0.0
      %2568 = vmatprep.subr.mxu0 0.0
      %2569 = vmatpush2.msra.mxu0 0.0
      %2570 = vmatprep.subr.mxu0 0.0
      %2571 = vmatpush2.msra.mxu0 0.0
      %2572 = vmatprep.subr.mxu0 0.0
      %2573 = vmatpush2.msra.mxu0 0.0
      %2574 = vmatprep.subr.mxu0 0.0
      %2575 = vmatpush2.msra.mxu0 0.0
      %2576 = vmatprep.subr.mxu0 0.0
      %2577 = vmatpush2.msra.mxu0 0.0
      %2578 = vmatprep.subr.mxu0 0.0
      %2579 = vmatpush2.msra.mxu0 0.0
      %2580 = vmatprep.subr.mxu0 0.0
      %2581 = vmatpush2.msra.mxu0 0.0
      %2582 = vmatprep.subr.mxu0 0.0
      %2583 = vmatpush2.msra.mxu0 0.0
      %2584 = vmatprep.subr.mxu0 0.0
      %2585 = vmatpush2.msra.mxu0 0.0
      %2586 = vmatprep.subr.mxu0 0.0
      %2587 = vmatpush2.msra.mxu0 0.0
      %2588 = vmatprep.mubr.f32.mxu0 0.0
      %2589 = vmatmul.mubr.f32.gmra.mxu0 %v2025
      %v2590 = vpop.f32.mrf.mxu0
      %v2591 = vadd.f32 %v2003, %v2590
      %v2592 = vpop.f32.mrf.mxu0
      %v2593 = vadd.f32 %v2007, %v2592
      %2594 = vdwg.mxu0
      %v2595 = vmax.f32 %v2094, 0.0
      %v2596 = vmax.f32 %v2096, 0.0
      %v2597 = vmax.f32 %v2165, 0.0
      %v2598 = vmax.f32 %v2167, 0.0
      %v2599 = vmax.f32 %v2236, 0.0
      %v2600 = vmax.f32 %v2238, 0.0
      %v2601 = vmax.f32 %v2307, 0.0
      %v2602 = vmax.f32 %v2309, 0.0
      %v2603 = vmax.f32 %v2378, 0.0
      %v2604 = vmax.f32 %v2380, 0.0
      %v2605 = vmax.f32 %v2449, 0.0
      %v2606 = vmax.f32 %v2451, 0.0
      %v2607 = vmax.f32 %v2520, 0.0
      %v2608 = vmax.f32 %v2522, 0.0
      %v2609 = vmax.f32 %v2591, 0.0
      %v2610 = vmax.f32 %v2593, 0.0
      %v2611 = vld [vmem:[%s12] sm:$0xff]
      %v2612 = vld [vmem:[%s12 + $0x8] sm:$0xff]
      %v2613 = vld [vmem:[%s12 + $0x10] sm:$0xff]
      %v2614 = vld [vmem:[%s12 + $0x18] sm:$0xff]
      %v2615 = vld [vmem:[%s12 + $0x20] sm:$0xff]
      %v2616 = vld [vmem:[%s12 + $0x28] sm:$0xff]
      %v2617 = vld [vmem:[%s12 + $0x30] sm:$0xff]
      %v2618 = vld [vmem:[%s12 + $0x38] sm:$0xff]
      %v2619 = vld [vmem:[%s12 + $0x40] sm:$0xff]
      %v2620 = vld [vmem:[%s12 + $0x48] sm:$0xff]
      %v2621 = vld [vmem:[%s12 + $0x50] sm:$0xff]
      %v2622 = vld [vmem:[%s12 + $0x58] sm:$0xff]
      %v2623 = vld [vmem:[%s12 + $0x60] sm:$0xff]
      %v2624 = vld [vmem:[%s12 + $0x68] sm:$0xff]
      %v2625 = vld [vmem:[%s12 + $0x70] sm:$0xff]
      %v2626 = vld [vmem:[%s12 + $0x78] sm:$0xff]
      %v2627 = vld [vmem:[%s12 + $0x80] sm:$0xff]
      %v2628 = vld [vmem:[%s12 + $0x88] sm:$0xff]
      %v2629 = vld [vmem:[%s12 + $0x90] sm:$0xff]
      %v2630 = vld [vmem:[%s12 + $0x98] sm:$0xff]
      %v2631 = vld [vmem:[%s12 + $0xa0] sm:$0xff]
      %v2632 = vld [vmem:[%s12 + $0xa8] sm:$0xff]
      %v2633 = vld [vmem:[%s12 + $0xb0] sm:$0xff]
      %v2634 = vld [vmem:[%s12 + $0xb8] sm:$0xff]
      %v2635 = vld [vmem:[%s12 + $0xc0] sm:$0xff]
      %v2636 = vld [vmem:[%s12 + $0xc8] sm:$0xff]
      %v2637 = vld [vmem:[%s12 + $0xd0] sm:$0xff]
      %v2638 = vld [vmem:[%s12 + $0xd8] sm:$0xff]
      %v2639 = vld [vmem:[%s12 + $0xe0] sm:$0xff]
      %v2640 = vld [vmem:[%s12 + $0xe8] sm:$0xff]
      %v2641 = vld [vmem:[%s12 + $0xf0] sm:$0xff]
      %v2642 = vld [vmem:[%s12 + $0xf8] sm:$0xff]
      %v2643 = vld [vmem:[%s12 + $0x100] sm:$0xff]
      %v2644 = vld [vmem:[%s12 + $0x108] sm:$0xff]
      %v2645 = vld [vmem:[%s12 + $0x110] sm:$0xff]
      %v2646 = vld [vmem:[%s12 + $0x118] sm:$0xff]
      %v2647 = vld [vmem:[%s12 + $0x120] sm:$0xff]
      %v2648 = vld [vmem:[%s12 + $0x128] sm:$0xff]
      %v2649 = vld [vmem:[%s12 + $0x130] sm:$0xff]
      %v2650 = vld [vmem:[%s12 + $0x138] sm:$0xff]
      %v2651 = vld [vmem:[%s12 + $0x140] sm:$0xff]
      %v2652 = vld [vmem:[%s12 + $0x148] sm:$0xff]
      %v2653 = vld [vmem:[%s12 + $0x150] sm:$0xff]
      %v2654 = vld [vmem:[%s12 + $0x158] sm:$0xff]
      %v2655 = vld [vmem:[%s12 + $0x160] sm:$0xff]
      %v2656 = vld [vmem:[%s12 + $0x168] sm:$0xff]
      %v2657 = vld [vmem:[%s12 + $0x170] sm:$0xff]
      %v2658 = vld [vmem:[%s12 + $0x178] sm:$0xff]
      %v2659 = vld [vmem:[%s12 + $0x180] sm:$0xff]
      %v2660 = vld [vmem:[%s12 + $0x188] sm:$0xff]
      %v2661 = vld [vmem:[%s12 + $0x190] sm:$0xff]
      %v2662 = vld [vmem:[%s12 + $0x198] sm:$0xff]
      %v2663 = vld [vmem:[%s12 + $0x1a0] sm:$0xff]
      %v2664 = vld [vmem:[%s12 + $0x1a8] sm:$0xff]
      %v2665 = vld [vmem:[%s12 + $0x1b0] sm:$0xff]
      %v2666 = vld [vmem:[%s12 + $0x1b8] sm:$0xff]
      %v2667 = vld [vmem:[%s12 + $0x1c0] sm:$0xff]
      %v2668 = vld [vmem:[%s12 + $0x1c8] sm:$0xff]
      %v2669 = vld [vmem:[%s12 + $0x1d0] sm:$0xff]
      %v2670 = vld [vmem:[%s12 + $0x1d8] sm:$0xff]
      %v2671 = vld [vmem:[%s12 + $0x1e0] sm:$0xff]
      %v2672 = vld [vmem:[%s12 + $0x1e8] sm:$0xff]
      %v2673 = vld [vmem:[%s12 + $0x1f0] sm:$0xff]
      %v2674 = vld [vmem:[%s12 + $0x1f8] sm:$0xff]
      %v2675 = vld [vmem:[%s13] sm:$0x1]
      %v2677 = vlaneseq
      %v2678 = vshrl.u32 %v2677, 7
      %v2679 = vsub.s32 0, %v2678
      %v2680 = vrot.slane %v2675, %v2679
      %2682 = vmatprep.subr.mxu0 0.0
      %2683 = vmatpush1.xpose.msra.mxu0 0.0
      %2684 = vmatprep.subr.mxu0 0.0
      %2685 = vmatpush1.xpose.msra.mxu0 0.0
      %2686 = vmatprep.subr.mxu0 0.0
      %2687 = vmatpush1.xpose.msra.mxu0 0.0
      %2688 = vmatprep.subr.mxu0 0.0
      %2689 = vmatpush1.xpose.msra.mxu0 0.0
      %2690 = vmatprep.subr.mxu0 0.0
      %2691 = vmatpush1.xpose.msra.mxu0 0.0
      %2692 = vmatprep.subr.mxu0 0.0
      %2693 = vmatpush1.xpose.msra.mxu0 0.0
      %2694 = vmatprep.subr.mxu0 0.0
      %2695 = vmatpush1.xpose.msra.mxu0 0.0
      %2696 = vmatprep.subr.mxu0 0.0
      %2697 = vmatpush1.xpose.msra.mxu0 0.0
      %2698 = vmatprep.subr.mxu0 0.0
      %2699 = vmatpush1.xpose.msra.mxu0 0.0
      %2700 = vmatprep.subr.mxu0 0.0
      %2701 = vmatpush1.xpose.msra.mxu0 0.0
      %2702 = vmatprep.subr.mxu0 0.0
      %2703 = vmatpush1.xpose.msra.mxu0 0.0
      %2704 = vmatprep.subr.mxu0 0.0
      %2705 = vmatpush1.xpose.msra.mxu0 0.0
      %2706 = vmatprep.subr.mxu0 %v2660
      %2707 = vmatpush1.xpose.msra.mxu0 %v2659
      %2708 = vmatprep.subr.mxu0 %v2644
      %2709 = vmatpush1.xpose.msra.mxu0 %v2643
      %2710 = vmatprep.subr.mxu0 %v2628
      %2711 = vmatpush1.xpose.msra.mxu0 %v2627
      %2712 = vmatprep.subr.mxu0 %v2612
      %2713 = vmatpush1.xpose.msra.mxu0 %v2611
      %2714 = vmatprep.subr.mxu0 0.0
      %2715 = vmatpush2.xpose.msra.mxu0 0.0
      %2716 = vmatprep.subr.mxu0 0.0
      %2717 = vmatpush2.xpose.msra.mxu0 0.0
      %2718 = vmatprep.subr.mxu0 0.0
      %2719 = vmatpush2.xpose.msra.mxu0 0.0
      %2720 = vmatprep.subr.mxu0 0.0
      %2721 = vmatpush2.xpose.msra.mxu0 0.0
      %2722 = vmatprep.subr.mxu0 0.0
      %2723 = vmatpush2.xpose.msra.mxu0 0.0
      %2724 = vmatprep.subr.mxu0 0.0
      %2725 = vmatpush2.xpose.msra.mxu0 0.0
      %2726 = vmatprep.subr.mxu0 0.0
      %2727 = vmatpush2.xpose.msra.mxu0 0.0
      %2728 = vmatprep.subr.mxu0 0.0
      %2729 = vmatpush2.xpose.msra.mxu0 0.0
      %2730 = vmatprep.subr.mxu0 0.0
      %2731 = vmatpush2.xpose.msra.mxu0 0.0
      %2732 = vmatprep.subr.mxu0 0.0
      %2733 = vmatpush2.xpose.msra.mxu0 0.0
      %2734 = vmatprep.subr.mxu0 0.0
      %2735 = vmatpush2.xpose.msra.mxu0 0.0
      %2736 = vmatprep.subr.mxu0 0.0
      %2737 = vmatpush2.xpose.msra.mxu0 0.0
      %2738 = vmatprep.subr.mxu0 0.0
      %2739 = vmatpush2.xpose.msra.mxu0 0.0
      %2740 = vmatprep.subr.mxu0 0.0
      %2741 = vmatpush2.xpose.msra.mxu0 0.0
      %2742 = vmatprep.subr.mxu0 0.0
      %2743 = vmatpush2.xpose.msra.mxu0 0.0
      %2744 = vmatprep.subr.mxu0 0.0
      %2745 = vmatpush2.xpose.msra.mxu0 0.0
      %2746 = vmatprep.mubr.f32.mxu0 %v2596
      %2747 = vmatmul.mubr.f32.gmra.mxu0 %v2595
      %v2748 = vpop.f32.mrf.mxu0
      %v2749 = vadd.f32 %v2680, %v2748
      %v2750 = vpop.f32.mrf.mxu0
      %2751 = vdwg.mxu0
      %2752 = vmatprep.subr.mxu0 0.0
      %2753 = vmatpush1.xpose.msra.mxu0 0.0
      %2754 = vmatprep.subr.mxu0 0.0
      %2755 = vmatpush1.xpose.msra.mxu0 0.0
      %2756 = vmatprep.subr.mxu0 0.0
      %2757 = vmatpush1.xpose.msra.mxu0 0.0
      %2758 = vmatprep.subr.mxu0 0.0
      %2759 = vmatpush1.xpose.msra.mxu0 0.0
      %2760 = vmatprep.subr.mxu0 0.0
      %2761 = vmatpush1.xpose.msra.mxu0 0.0
      %2762 = vmatprep.subr.mxu0 0.0
      %2763 = vmatpush1.xpose.msra.mxu0 0.0
      %2764 = vmatprep.subr.mxu0 0.0
      %2765 = vmatpush1.xpose.msra.mxu0 0.0
      %2766 = vmatprep.subr.mxu0 0.0
      %2767 = vmatpush1.xpose.msra.mxu0 0.0
      %2768 = vmatprep.subr.mxu0 0.0
      %2769 = vmatpush1.xpose.msra.mxu0 0.0
      %2770 = vmatprep.subr.mxu0 0.0
      %2771 = vmatpush1.xpose.msra.mxu0 0.0
      %2772 = vmatprep.subr.mxu0 0.0
      %2773 = vmatpush1.xpose.msra.mxu0 0.0
      %2774 = vmatprep.subr.mxu0 0.0
      %2775 = vmatpush1.xpose.msra.mxu0 0.0
      %2776 = vmatprep.subr.mxu0 %v2662
      %2777 = vmatpush1.xpose.msra.mxu0 %v2661
      %2778 = vmatprep.subr.mxu0 %v2646
      %2779 = vmatpush1.xpose.msra.mxu0 %v2645
      %2780 = vmatprep.subr.mxu0 %v2630
      %2781 = vmatpush1.xpose.msra.mxu0 %v2629
      %2782 = vmatprep.subr.mxu0 %v2614
      %2783 = vmatpush1.xpose.msra.mxu0 %v2613
      %2784 = vmatprep.subr.mxu0 0.0
      %2785 = vmatpush2.xpose.msra.mxu0 0.0
      %2786 = vmatprep.subr.mxu0 0.0
      %2787 = vmatpush2.xpose.msra.mxu0 0.0
      %2788 = vmatprep.subr.mxu0 0.0
      %2789 = vmatpush2.xpose.msra.mxu0 0.0
      %2790 = vmatprep.subr.mxu0 0.0
      %2791 = vmatpush2.xpose.msra.mxu0 0.0
      %2792 = vmatprep.subr.mxu0 0.0
      %2793 = vmatpush2.xpose.msra.mxu0 0.0
      %2794 = vmatprep.subr.mxu0 0.0
      %2795 = vmatpush2.xpose.msra.mxu0 0.0
      %2796 = vmatprep.subr.mxu0 0.0
      %2797 = vmatpush2.xpose.msra.mxu0 0.0
      %2798 = vmatprep.subr.mxu0 0.0
      %2799 = vmatpush2.xpose.msra.mxu0 0.0
      %2800 = vmatprep.subr.mxu0 0.0
      %2801 = vmatpush2.xpose.msra.mxu0 0.0
      %2802 = vmatprep.subr.mxu0 0.0
      %2803 = vmatpush2.xpose.msra.mxu0 0.0
      %2804 = vmatprep.subr.mxu0 0.0
      %2805 = vmatpush2.xpose.msra.mxu0 0.0
      %2806 = vmatprep.subr.mxu0 0.0
      %2807 = vmatpush2.xpose.msra.mxu0 0.0
      %2808 = vmatprep.subr.mxu0 0.0
      %2809 = vmatpush2.xpose.msra.mxu0 0.0
      %2810 = vmatprep.subr.mxu0 0.0
      %2811 = vmatpush2.xpose.msra.mxu0 0.0
      %2812 = vmatprep.subr.mxu0 0.0
      %2813 = vmatpush2.xpose.msra.mxu0 0.0
      %2814 = vmatprep.subr.mxu0 0.0
      %2815 = vmatpush2.xpose.msra.mxu0 0.0
      %2816 = vmatprep.mubr.f32.mxu0 %v2598
      %2817 = vmatmul.mubr.f32.gmra.mxu0 %v2597
      %v2818 = vpop.f32.mrf.mxu0
      %v2819 = vadd.f32 %v2749, %v2818
      %v2820 = vpop.f32.mrf.mxu0
      %2821 = vdwg.mxu0
      %2822 = vmatprep.subr.mxu0 0.0
      %2823 = vmatpush1.xpose.msra.mxu0 0.0
      %2824 = vmatprep.subr.mxu0 0.0
      %2825 = vmatpush1.xpose.msra.mxu0 0.0
      %2826 = vmatprep.subr.mxu0 0.0
      %2827 = vmatpush1.xpose.msra.mxu0 0.0
      %2828 = vmatprep.subr.mxu0 0.0
      %2829 = vmatpush1.xpose.msra.mxu0 0.0
      %2830 = vmatprep.subr.mxu0 0.0
      %2831 = vmatpush1.xpose.msra.mxu0 0.0
      %2832 = vmatprep.subr.mxu0 0.0
      %2833 = vmatpush1.xpose.msra.mxu0 0.0
      %2834 = vmatprep.subr.mxu0 0.0
      %2835 = vmatpush1.xpose.msra.mxu0 0.0
      %2836 = vmatprep.subr.mxu0 0.0
      %2837 = vmatpush1.xpose.msra.mxu0 0.0
      %2838 = vmatprep.subr.mxu0 0.0
      %2839 = vmatpush1.xpose.msra.mxu0 0.0
      %2840 = vmatprep.subr.mxu0 0.0
      %2841 = vmatpush1.xpose.msra.mxu0 0.0
      %2842 = vmatprep.subr.mxu0 0.0
      %2843 = vmatpush1.xpose.msra.mxu0 0.0
      %2844 = vmatprep.subr.mxu0 0.0
      %2845 = vmatpush1.xpose.msra.mxu0 0.0
      %2846 = vmatprep.subr.mxu0 %v2664
      %2847 = vmatpush1.xpose.msra.mxu0 %v2663
      %2848 = vmatprep.subr.mxu0 %v2648
      %2849 = vmatpush1.xpose.msra.mxu0 %v2647
      %2850 = vmatprep.subr.mxu0 %v2632
      %2851 = vmatpush1.xpose.msra.mxu0 %v2631
      %2852 = vmatprep.subr.mxu0 %v2616
      %2853 = vmatpush1.xpose.msra.mxu0 %v2615
      %2854 = vmatprep.subr.mxu0 0.0
      %2855 = vmatpush2.xpose.msra.mxu0 0.0
      %2856 = vmatprep.subr.mxu0 0.0
      %2857 = vmatpush2.xpose.msra.mxu0 0.0
      %2858 = vmatprep.subr.mxu0 0.0
      %2859 = vmatpush2.xpose.msra.mxu0 0.0
      %2860 = vmatprep.subr.mxu0 0.0
      %2861 = vmatpush2.xpose.msra.mxu0 0.0
      %2862 = vmatprep.subr.mxu0 0.0
      %2863 = vmatpush2.xpose.msra.mxu0 0.0
      %2864 = vmatprep.subr.mxu0 0.0
      %2865 = vmatpush2.xpose.msra.mxu0 0.0
      %2866 = vmatprep.subr.mxu0 0.0
      %2867 = vmatpush2.xpose.msra.mxu0 0.0
      %2868 = vmatprep.subr.mxu0 0.0
      %2869 = vmatpush2.xpose.msra.mxu0 0.0
      %2870 = vmatprep.subr.mxu0 0.0
      %2871 = vmatpush2.xpose.msra.mxu0 0.0
      %2872 = vmatprep.subr.mxu0 0.0
      %2873 = vmatpush2.xpose.msra.mxu0 0.0
      %2874 = vmatprep.subr.mxu0 0.0
      %2875 = vmatpush2.xpose.msra.mxu0 0.0
      %2876 = vmatprep.subr.mxu0 0.0
      %2877 = vmatpush2.xpose.msra.mxu0 0.0
      %2878 = vmatprep.subr.mxu0 0.0
      %2879 = vmatpush2.xpose.msra.mxu0 0.0
      %2880 = vmatprep.subr.mxu0 0.0
      %2881 = vmatpush2.xpose.msra.mxu0 0.0
      %2882 = vmatprep.subr.mxu0 0.0
      %2883 = vmatpush2.xpose.msra.mxu0 0.0
      %2884 = vmatprep.subr.mxu0 0.0
      %2885 = vmatpush2.xpose.msra.mxu0 0.0
      %2886 = vmatprep.mubr.f32.mxu0 %v2600
      %2887 = vmatmul.mubr.f32.gmra.mxu0 %v2599
      %v2888 = vpop.f32.mrf.mxu0
      %v2889 = vadd.f32 %v2819, %v2888
      %v2890 = vpop.f32.mrf.mxu0
      %2891 = vdwg.mxu0
      %2892 = vmatprep.subr.mxu0 0.0
      %2893 = vmatpush1.xpose.msra.mxu0 0.0
      %2894 = vmatprep.subr.mxu0 0.0
      %2895 = vmatpush1.xpose.msra.mxu0 0.0
      %2896 = vmatprep.subr.mxu0 0.0
      %2897 = vmatpush1.xpose.msra.mxu0 0.0
      %2898 = vmatprep.subr.mxu0 0.0
      %2899 = vmatpush1.xpose.msra.mxu0 0.0
      %2900 = vmatprep.subr.mxu0 0.0
      %2901 = vmatpush1.xpose.msra.mxu0 0.0
      %2902 = vmatprep.subr.mxu0 0.0
      %2903 = vmatpush1.xpose.msra.mxu0 0.0
      %2904 = vmatprep.subr.mxu0 0.0
      %2905 = vmatpush1.xpose.msra.mxu0 0.0
      %2906 = vmatprep.subr.mxu0 0.0
      %2907 = vmatpush1.xpose.msra.mxu0 0.0
      %2908 = vmatprep.subr.mxu0 0.0
      %2909 = vmatpush1.xpose.msra.mxu0 0.0
      %2910 = vmatprep.subr.mxu0 0.0
      %2911 = vmatpush1.xpose.msra.mxu0 0.0
      %2912 = vmatprep.subr.mxu0 0.0
      %2913 = vmatpush1.xpose.msra.mxu0 0.0
      %2914 = vmatprep.subr.mxu0 0.0
      %2915 = vmatpush1.xpose.msra.mxu0 0.0
      %2916 = vmatprep.subr.mxu0 %v2666
      %2917 = vmatpush1.xpose.msra.mxu0 %v2665
      %2918 = vmatprep.subr.mxu0 %v2650
      %2919 = vmatpush1.xpose.msra.mxu0 %v2649
      %2920 = vmatprep.subr.mxu0 %v2634
      %2921 = vmatpush1.xpose.msra.mxu0 %v2633
      %2922 = vmatprep.subr.mxu0 %v2618
      %2923 = vmatpush1.xpose.msra.mxu0 %v2617
      %2924 = vmatprep.subr.mxu0 0.0
      %2925 = vmatpush2.xpose.msra.mxu0 0.0
      %2926 = vmatprep.subr.mxu0 0.0
      %2927 = vmatpush2.xpose.msra.mxu0 0.0
      %2928 = vmatprep.subr.mxu0 0.0
      %2929 = vmatpush2.xpose.msra.mxu0 0.0
      %2930 = vmatprep.subr.mxu0 0.0
      %2931 = vmatpush2.xpose.msra.mxu0 0.0
      %2932 = vmatprep.subr.mxu0 0.0
      %2933 = vmatpush2.xpose.msra.mxu0 0.0
      %2934 = vmatprep.subr.mxu0 0.0
      %2935 = vmatpush2.xpose.msra.mxu0 0.0
      %2936 = vmatprep.subr.mxu0 0.0
      %2937 = vmatpush2.xpose.msra.mxu0 0.0
      %2938 = vmatprep.subr.mxu0 0.0
      %2939 = vmatpush2.xpose.msra.mxu0 0.0
      %2940 = vmatprep.subr.mxu0 0.0
      %2941 = vmatpush2.xpose.msra.mxu0 0.0
      %2942 = vmatprep.subr.mxu0 0.0
      %2943 = vmatpush2.xpose.msra.mxu0 0.0
      %2944 = vmatprep.subr.mxu0 0.0
      %2945 = vmatpush2.xpose.msra.mxu0 0.0
      %2946 = vmatprep.subr.mxu0 0.0
      %2947 = vmatpush2.xpose.msra.mxu0 0.0
      %2948 = vmatprep.subr.mxu0 0.0
      %2949 = vmatpush2.xpose.msra.mxu0 0.0
      %2950 = vmatprep.subr.mxu0 0.0
      %2951 = vmatpush2.xpose.msra.mxu0 0.0
      %2952 = vmatprep.subr.mxu0 0.0
      %2953 = vmatpush2.xpose.msra.mxu0 0.0
      %2954 = vmatprep.subr.mxu0 0.0
      %2955 = vmatpush2.xpose.msra.mxu0 0.0
      %2956 = vmatprep.mubr.f32.mxu0 %v2602
      %2957 = vmatmul.mubr.f32.gmra.mxu0 %v2601
      %v2958 = vpop.f32.mrf.mxu0
      %v2959 = vadd.f32 %v2889, %v2958
      %v2960 = vpop.f32.mrf.mxu0
      %2961 = vdwg.mxu0
      %2962 = vmatprep.subr.mxu0 0.0
      %2963 = vmatpush1.xpose.msra.mxu0 0.0
      %2964 = vmatprep.subr.mxu0 0.0
      %2965 = vmatpush1.xpose.msra.mxu0 0.0
      %2966 = vmatprep.subr.mxu0 0.0
      %2967 = vmatpush1.xpose.msra.mxu0 0.0
      %2968 = vmatprep.subr.mxu0 0.0
      %2969 = vmatpush1.xpose.msra.mxu0 0.0
      %2970 = vmatprep.subr.mxu0 0.0
      %2971 = vmatpush1.xpose.msra.mxu0 0.0
      %2972 = vmatprep.subr.mxu0 0.0
      %2973 = vmatpush1.xpose.msra.mxu0 0.0
      %2974 = vmatprep.subr.mxu0 0.0
      %2975 = vmatpush1.xpose.msra.mxu0 0.0
      %2976 = vmatprep.subr.mxu0 0.0
      %2977 = vmatpush1.xpose.msra.mxu0 0.0
      %2978 = vmatprep.subr.mxu0 0.0
      %2979 = vmatpush1.xpose.msra.mxu0 0.0
      %2980 = vmatprep.subr.mxu0 0.0
      %2981 = vmatpush1.xpose.msra.mxu0 0.0
      %2982 = vmatprep.subr.mxu0 0.0
      %2983 = vmatpush1.xpose.msra.mxu0 0.0
      %2984 = vmatprep.subr.mxu0 0.0
      %2985 = vmatpush1.xpose.msra.mxu0 0.0
      %2986 = vmatprep.subr.mxu0 %v2668
      %2987 = vmatpush1.xpose.msra.mxu0 %v2667
      %2988 = vmatprep.subr.mxu0 %v2652
      %2989 = vmatpush1.xpose.msra.mxu0 %v2651
      %2990 = vmatprep.subr.mxu0 %v2636
      %2991 = vmatpush1.xpose.msra.mxu0 %v2635
      %2992 = vmatprep.subr.mxu0 %v2620
      %2993 = vmatpush1.xpose.msra.mxu0 %v2619
      %2994 = vmatprep.subr.mxu0 0.0
      %2995 = vmatpush2.xpose.msra.mxu0 0.0
      %2996 = vmatprep.subr.mxu0 0.0
      %2997 = vmatpush2.xpose.msra.mxu0 0.0
      %2998 = vmatprep.subr.mxu0 0.0
      %2999 = vmatpush2.xpose.msra.mxu0 0.0
      %3000 = vmatprep.subr.mxu0 0.0
      %3001 = vmatpush2.xpose.msra.mxu0 0.0
      %3002 = vmatprep.subr.mxu0 0.0
      %3003 = vmatpush2.xpose.msra.mxu0 0.0
      %3004 = vmatprep.subr.mxu0 0.0
      %3005 = vmatpush2.xpose.msra.mxu0 0.0
      %3006 = vmatprep.subr.mxu0 0.0
      %3007 = vmatpush2.xpose.msra.mxu0 0.0
      %3008 = vmatprep.subr.mxu0 0.0
      %3009 = vmatpush2.xpose.msra.mxu0 0.0
      %3010 = vmatprep.subr.mxu0 0.0
      %3011 = vmatpush2.xpose.msra.mxu0 0.0
      %3012 = vmatprep.subr.mxu0 0.0
      %3013 = vmatpush2.xpose.msra.mxu0 0.0
      %3014 = vmatprep.subr.mxu0 0.0
      %3015 = vmatpush2.xpose.msra.mxu0 0.0
      %3016 = vmatprep.subr.mxu0 0.0
      %3017 = vmatpush2.xpose.msra.mxu0 0.0
      %3018 = vmatprep.subr.mxu0 0.0
      %3019 = vmatpush2.xpose.msra.mxu0 0.0
      %3020 = vmatprep.subr.mxu0 0.0
      %3021 = vmatpush2.xpose.msra.mxu0 0.0
      %3022 = vmatprep.subr.mxu0 0.0
      %3023 = vmatpush2.xpose.msra.mxu0 0.0
      %3024 = vmatprep.subr.mxu0 0.0
      %3025 = vmatpush2.xpose.msra.mxu0 0.0
      %3026 = vmatprep.mubr.f32.mxu0 %v2604
      %3027 = vmatmul.mubr.f32.gmra.mxu0 %v2603
      %v3028 = vpop.f32.mrf.mxu0
      %v3029 = vadd.f32 %v2959, %v3028
      %v3030 = vpop.f32.mrf.mxu0
      %3031 = vdwg.mxu0
      %3032 = vmatprep.subr.mxu0 0.0
      %3033 = vmatpush1.xpose.msra.mxu0 0.0
      %3034 = vmatprep.subr.mxu0 0.0
      %3035 = vmatpush1.xpose.msra.mxu0 0.0
      %3036 = vmatprep.subr.mxu0 0.0
      %3037 = vmatpush1.xpose.msra.mxu0 0.0
      %3038 = vmatprep.subr.mxu0 0.0
      %3039 = vmatpush1.xpose.msra.mxu0 0.0
      %3040 = vmatprep.subr.mxu0 0.0
      %3041 = vmatpush1.xpose.msra.mxu0 0.0
      %3042 = vmatprep.subr.mxu0 0.0
      %3043 = vmatpush1.xpose.msra.mxu0 0.0
      %3044 = vmatprep.subr.mxu0 0.0
      %3045 = vmatpush1.xpose.msra.mxu0 0.0
      %3046 = vmatprep.subr.mxu0 0.0
      %3047 = vmatpush1.xpose.msra.mxu0 0.0
      %3048 = vmatprep.subr.mxu0 0.0
      %3049 = vmatpush1.xpose.msra.mxu0 0.0
      %3050 = vmatprep.subr.mxu0 0.0
      %3051 = vmatpush1.xpose.msra.mxu0 0.0
      %3052 = vmatprep.subr.mxu0 0.0
      %3053 = vmatpush1.xpose.msra.mxu0 0.0
      %3054 = vmatprep.subr.mxu0 0.0
      %3055 = vmatpush1.xpose.msra.mxu0 0.0
      %3056 = vmatprep.subr.mxu0 %v2670
      %3057 = vmatpush1.xpose.msra.mxu0 %v2669
      %3058 = vmatprep.subr.mxu0 %v2654
      %3059 = vmatpush1.xpose.msra.mxu0 %v2653
      %3060 = vmatprep.subr.mxu0 %v2638
      %3061 = vmatpush1.xpose.msra.mxu0 %v2637
      %3062 = vmatprep.subr.mxu0 %v2622
      %3063 = vmatpush1.xpose.msra.mxu0 %v2621
      %3064 = vmatprep.subr.mxu0 0.0
      %3065 = vmatpush2.xpose.msra.mxu0 0.0
      %3066 = vmatprep.subr.mxu0 0.0
      %3067 = vmatpush2.xpose.msra.mxu0 0.0
      %3068 = vmatprep.subr.mxu0 0.0
      %3069 = vmatpush2.xpose.msra.mxu0 0.0
      %3070 = vmatprep.subr.mxu0 0.0
      %3071 = vmatpush2.xpose.msra.mxu0 0.0
      %3072 = vmatprep.subr.mxu0 0.0
      %3073 = vmatpush2.xpose.msra.mxu0 0.0
      %3074 = vmatprep.subr.mxu0 0.0
      %3075 = vmatpush2.xpose.msra.mxu0 0.0
      %3076 = vmatprep.subr.mxu0 0.0
      %3077 = vmatpush2.xpose.msra.mxu0 0.0
      %3078 = vmatprep.subr.mxu0 0.0
      %3079 = vmatpush2.xpose.msra.mxu0 0.0
      %3080 = vmatprep.subr.mxu0 0.0
      %3081 = vmatpush2.xpose.msra.mxu0 0.0
      %3082 = vmatprep.subr.mxu0 0.0
      %3083 = vmatpush2.xpose.msra.mxu0 0.0
      %3084 = vmatprep.subr.mxu0 0.0
      %3085 = vmatpush2.xpose.msra.mxu0 0.0
      %3086 = vmatprep.subr.mxu0 0.0
      %3087 = vmatpush2.xpose.msra.mxu0 0.0
      %3088 = vmatprep.subr.mxu0 0.0
      %3089 = vmatpush2.xpose.msra.mxu0 0.0
      %3090 = vmatprep.subr.mxu0 0.0
      %3091 = vmatpush2.xpose.msra.mxu0 0.0
      %3092 = vmatprep.subr.mxu0 0.0
      %3093 = vmatpush2.xpose.msra.mxu0 0.0
      %3094 = vmatprep.subr.mxu0 0.0
      %3095 = vmatpush2.xpose.msra.mxu0 0.0
      %3096 = vmatprep.mubr.f32.mxu0 %v2606
      %3097 = vmatmul.mubr.f32.gmra.mxu0 %v2605
      %v3098 = vpop.f32.mrf.mxu0
      %v3099 = vadd.f32 %v3029, %v3098
      %v3100 = vpop.f32.mrf.mxu0
      %3101 = vdwg.mxu0
      %3102 = vmatprep.subr.mxu0 0.0
      %3103 = vmatpush1.xpose.msra.mxu0 0.0
      %3104 = vmatprep.subr.mxu0 0.0
      %3105 = vmatpush1.xpose.msra.mxu0 0.0
      %3106 = vmatprep.subr.mxu0 0.0
      %3107 = vmatpush1.xpose.msra.mxu0 0.0
      %3108 = vmatprep.subr.mxu0 0.0
      %3109 = vmatpush1.xpose.msra.mxu0 0.0
      %3110 = vmatprep.subr.mxu0 0.0
      %3111 = vmatpush1.xpose.msra.mxu0 0.0
      %3112 = vmatprep.subr.mxu0 0.0
      %3113 = vmatpush1.xpose.msra.mxu0 0.0
      %3114 = vmatprep.subr.mxu0 0.0
      %3115 = vmatpush1.xpose.msra.mxu0 0.0
      %3116 = vmatprep.subr.mxu0 0.0
      %3117 = vmatpush1.xpose.msra.mxu0 0.0
      %3118 = vmatprep.subr.mxu0 0.0
      %3119 = vmatpush1.xpose.msra.mxu0 0.0
      %3120 = vmatprep.subr.mxu0 0.0
      %3121 = vmatpush1.xpose.msra.mxu0 0.0
      %3122 = vmatprep.subr.mxu0 0.0
      %3123 = vmatpush1.xpose.msra.mxu0 0.0
      %3124 = vmatprep.subr.mxu0 0.0
      %3125 = vmatpush1.xpose.msra.mxu0 0.0
      %3126 = vmatprep.subr.mxu0 %v2672
      %3127 = vmatpush1.xpose.msra.mxu0 %v2671
      %3128 = vmatprep.subr.mxu0 %v2656
      %3129 = vmatpush1.xpose.msra.mxu0 %v2655
      %3130 = vmatprep.subr.mxu0 %v2640
      %3131 = vmatpush1.xpose.msra.mxu0 %v2639
      %3132 = vmatprep.subr.mxu0 %v2624
      %3133 = vmatpush1.xpose.msra.mxu0 %v2623
      %3134 = vmatprep.subr.mxu0 0.0
      %3135 = vmatpush2.xpose.msra.mxu0 0.0
      %3136 = vmatprep.subr.mxu0 0.0
      %3137 = vmatpush2.xpose.msra.mxu0 0.0
      %3138 = vmatprep.subr.mxu0 0.0
      %3139 = vmatpush2.xpose.msra.mxu0 0.0
      %3140 = vmatprep.subr.mxu0 0.0
      %3141 = vmatpush2.xpose.msra.mxu0 0.0
      %3142 = vmatprep.subr.mxu0 0.0
      %3143 = vmatpush2.xpose.msra.mxu0 0.0
      %3144 = vmatprep.subr.mxu0 0.0
      %3145 = vmatpush2.xpose.msra.mxu0 0.0
      %3146 = vmatprep.subr.mxu0 0.0
      %3147 = vmatpush2.xpose.msra.mxu0 0.0
      %3148 = vmatprep.subr.mxu0 0.0
      %3149 = vmatpush2.xpose.msra.mxu0 0.0
      %3150 = vmatprep.subr.mxu0 0.0
      %3151 = vmatpush2.xpose.msra.mxu0 0.0
      %3152 = vmatprep.subr.mxu0 0.0
      %3153 = vmatpush2.xpose.msra.mxu0 0.0
      %3154 = vmatprep.subr.mxu0 0.0
      %3155 = vmatpush2.xpose.msra.mxu0 0.0
      %3156 = vmatprep.subr.mxu0 0.0
      %3157 = vmatpush2.xpose.msra.mxu0 0.0
      %3158 = vmatprep.subr.mxu0 0.0
      %3159 = vmatpush2.xpose.msra.mxu0 0.0
      %3160 = vmatprep.subr.mxu0 0.0
      %3161 = vmatpush2.xpose.msra.mxu0 0.0
      %3162 = vmatprep.subr.mxu0 0.0
      %3163 = vmatpush2.xpose.msra.mxu0 0.0
      %3164 = vmatprep.subr.mxu0 0.0
      %3165 = vmatpush2.xpose.msra.mxu0 0.0
      %3166 = vmatprep.mubr.f32.mxu0 %v2608
      %3167 = vmatmul.mubr.f32.gmra.mxu0 %v2607
      %v3168 = vpop.f32.mrf.mxu0
      %v3169 = vadd.f32 %v3099, %v3168
      %v3170 = vpop.f32.mrf.mxu0
      %3171 = vdwg.mxu0
      %3172 = vmatprep.subr.mxu0 0.0
      %3173 = vmatpush1.xpose.msra.mxu0 0.0
      %3174 = vmatprep.subr.mxu0 0.0
      %3175 = vmatpush1.xpose.msra.mxu0 0.0
      %3176 = vmatprep.subr.mxu0 0.0
      %3177 = vmatpush1.xpose.msra.mxu0 0.0
      %3178 = vmatprep.subr.mxu0 0.0
      %3179 = vmatpush1.xpose.msra.mxu0 0.0
      %3180 = vmatprep.subr.mxu0 0.0
      %3181 = vmatpush1.xpose.msra.mxu0 0.0
      %3182 = vmatprep.subr.mxu0 0.0
      %3183 = vmatpush1.xpose.msra.mxu0 0.0
      %3184 = vmatprep.subr.mxu0 0.0
      %3185 = vmatpush1.xpose.msra.mxu0 0.0
      %3186 = vmatprep.subr.mxu0 0.0
      %3187 = vmatpush1.xpose.msra.mxu0 0.0
      %3188 = vmatprep.subr.mxu0 0.0
      %3189 = vmatpush1.xpose.msra.mxu0 0.0
      %3190 = vmatprep.subr.mxu0 0.0
      %3191 = vmatpush1.xpose.msra.mxu0 0.0
      %3192 = vmatprep.subr.mxu0 0.0
      %3193 = vmatpush1.xpose.msra.mxu0 0.0
      %3194 = vmatprep.subr.mxu0 0.0
      %3195 = vmatpush1.xpose.msra.mxu0 0.0
      %3196 = vmatprep.subr.mxu0 %v2674
      %3197 = vmatpush1.xpose.msra.mxu0 %v2673
      %3198 = vmatprep.subr.mxu0 %v2658
      %3199 = vmatpush1.xpose.msra.mxu0 %v2657
      %3200 = vmatprep.subr.mxu0 %v2642
      %3201 = vmatpush1.xpose.msra.mxu0 %v2641
      %3202 = vmatprep.subr.mxu0 %v2626
      %3203 = vmatpush1.xpose.msra.mxu0 %v2625
      %3204 = vmatprep.subr.mxu0 0.0
      %3205 = vmatpush2.xpose.msra.mxu0 0.0
      %3206 = vmatprep.subr.mxu0 0.0
      %3207 = vmatpush2.xpose.msra.mxu0 0.0
      %3208 = vmatprep.subr.mxu0 0.0
      %3209 = vmatpush2.xpose.msra.mxu0 0.0
      %3210 = vmatprep.subr.mxu0 0.0
      %3211 = vmatpush2.xpose.msra.mxu0 0.0
      %3212 = vmatprep.subr.mxu0 0.0
      %3213 = vmatpush2.xpose.msra.mxu0 0.0
      %3214 = vmatprep.subr.mxu0 0.0
      %3215 = vmatpush2.xpose.msra.mxu0 0.0
      %3216 = vmatprep.subr.mxu0 0.0
      %3217 = vmatpush2.xpose.msra.mxu0 0.0
      %3218 = vmatprep.subr.mxu0 0.0
      %3219 = vmatpush2.xpose.msra.mxu0 0.0
      %3220 = vmatprep.subr.mxu0 0.0
      %3221 = vmatpush2.xpose.msra.mxu0 0.0
      %3222 = vmatprep.subr.mxu0 0.0
      %3223 = vmatpush2.xpose.msra.mxu0 0.0
      %3224 = vmatprep.subr.mxu0 0.0
      %3225 = vmatpush2.xpose.msra.mxu0 0.0
      %3226 = vmatprep.subr.mxu0 0.0
      %3227 = vmatpush2.xpose.msra.mxu0 0.0
      %3228 = vmatprep.subr.mxu0 0.0
      %3229 = vmatpush2.xpose.msra.mxu0 0.0
      %3230 = vmatprep.subr.mxu0 0.0
      %3231 = vmatpush2.xpose.msra.mxu0 0.0
      %3232 = vmatprep.subr.mxu0 0.0
      %3233 = vmatpush2.xpose.msra.mxu0 0.0
      %3234 = vmatprep.subr.mxu0 0.0
      %3235 = vmatpush2.xpose.msra.mxu0 0.0
      %3236 = vmatprep.mubr.f32.mxu0 %v2610
      %3237 = vmatmul.mubr.f32.gmra.mxu0 %v2609
      %v3238 = vpop.f32.mrf.mxu0
      %v3239 = vadd.f32 %v3169, %v3238
      %v3240 = vpop.f32.mrf.mxu0
      %3241 = vdwg.mxu0
      %v3242 = vadd.f32 %v1875, %v3239
      %v3243 = vsel %vm585, %v3242, 0.0
      %3244 = vadd.xlane.f32.xlu0 %v3243
      %v3245 = vpop.xlane.xlu0 %3244
      %v3246 = vmul.f32 %v3245, %v1849
      %v3247 = vsub.f32 %v3242, %v3246
      %v3248 = vmul.f32 %v3247, %v3247
      %v3249 = vsel %vm585, %v3248, 0.0
      %3250 = vadd.xlane.f32.xlu0 %v3249
      %v3251 = vpop.xlane.xlu0 %3250
      %v3252 = vmul.f32 %v3251, %v1849
      %v3253 = vadd.f32 %v3252, 1e-05
      %v3254 = vrsqrt.pop %v3253
      %v3255 = vmul.f32 %v3247, %v3254
      %v3256 = vld [vmem:[%s14] sm:$0x1]
      %v3258 = vlaneseq
      %v3259 = vshrl.u32 %v3258, 7
      %v3260 = vsub.s32 0, %v3259
      %v3261 = vrot.slane %v3256, %v3260
      %v3263 = vmul.f32 %v3255, %v3261
      %v3264 = vld [vmem:[%s15] sm:$0x1]
      %v3266 = vlaneseq
      %v3267 = vshrl.u32 %v3266, 7
      %v3268 = vsub.s32 0, %v3267
      %v3269 = vrot.slane %v3264, %v3268
      %v3271 = vadd.f32 %v3263, %v3269
      %s3272 = scalar_lea.vmem %s4, 128
      %v3273 = vld [vmem:[%s3272] sm:$0xff]
      %v3274 = vld [vmem:[%s3272 + $0x8] sm:$0xff]
      %v3275 = vld [vmem:[%s3272 + $0x10] sm:$0xff]
      %v3276 = vld [vmem:[%s3272 + $0x18] sm:$0xff]
      %v3277 = vld [vmem:[%s3272 + $0x20] sm:$0xff]
      %v3278 = vld [vmem:[%s3272 + $0x28] sm:$0xff]
      %v3279 = vld [vmem:[%s3272 + $0x30] sm:$0xff]
      %v3280 = vld [vmem:[%s3272 + $0x38] sm:$0xff]
      %v3281 = vld [vmem:[%s3272 + $0x40] sm:$0xff]
      %v3282 = vld [vmem:[%s3272 + $0x48] sm:$0xff]
      %v3283 = vld [vmem:[%s3272 + $0x50] sm:$0xff]
      %v3284 = vld [vmem:[%s3272 + $0x58] sm:$0xff]
      %v3285 = vld [vmem:[%s3272 + $0x60] sm:$0xff]
      %v3286 = vld [vmem:[%s3272 + $0x68] sm:$0xff]
      %v3287 = vld [vmem:[%s3272 + $0x70] sm:$0xff]
      %v3288 = vld [vmem:[%s3272 + $0x78] sm:$0xff]
      %s3289 = scalar_lea.vmem %s5, 4
      %v3290 = vld [vmem:[%s3289] sm:$0x1]
      %v3291 = vld [vmem:[%s3289 + $0x1] sm:$0x1]
      %v3292 = vld [vmem:[%s3289 + $0x2] sm:$0x1]
      %v3293 = vld [vmem:[%s3289 + $0x3] sm:$0x1]
      %v3298 = vlaneseq
      %v3299 = vshrl.u32 %v3298, 7
      %v3300 = vsub.s32 0, %v3299
      %v3301 = vrot.slane %v3290, %v3300
      %v3302 = vlaneseq
      %v3303 = vshrl.u32 %v3302, 7
      %v3304 = vsub.s32 0, %v3303
      %v3305 = vrot.slane %v3291, %v3304
      %v3306 = vlaneseq
      %v3307 = vshrl.u32 %v3306, 7
      %v3308 = vsub.s32 0, %v3307
      %v3309 = vrot.slane %v3292, %v3308
      %v3310 = vlaneseq
      %v3311 = vshrl.u32 %v3310, 7
      %v3312 = vsub.s32 0, %v3311
      %v3313 = vrot.slane %v3293, %v3312
      %v3319 = vsel %vm585, %v3271, 0
      %3321 = vmatprep.subr.mxu0 0.0
      %3322 = vmatpush1.msra.mxu0 0.0
      %3323 = vmatprep.subr.mxu0 0.0
      %3324 = vmatpush1.msra.mxu0 0.0
      %3325 = vmatprep.subr.mxu0 0.0
      %3326 = vmatpush1.msra.mxu0 0.0
      %3327 = vmatprep.subr.mxu0 0.0
      %3328 = vmatpush1.msra.mxu0 0.0
      %3329 = vmatprep.subr.mxu0 0.0
      %3330 = vmatpush1.msra.mxu0 0.0
      %3331 = vmatprep.subr.mxu0 0.0
      %3332 = vmatpush1.msra.mxu0 0.0
      %3333 = vmatprep.subr.mxu0 0.0
      %3334 = vmatpush1.msra.mxu0 0.0
      %3335 = vmatprep.subr.mxu0 0.0
      %3336 = vmatpush1.msra.mxu0 0.0
      %3337 = vmatprep.subr.mxu0 0.0
      %3338 = vmatpush1.msra.mxu0 0.0
      %3339 = vmatprep.subr.mxu0 0.0
      %3340 = vmatpush1.msra.mxu0 0.0
      %3341 = vmatprep.subr.mxu0 0.0
      %3342 = vmatpush1.msra.mxu0 0.0
      %3343 = vmatprep.subr.mxu0 0.0
      %3344 = vmatpush1.msra.mxu0 0.0
      %3345 = vmatprep.subr.mxu0 0.0
      %3346 = vmatpush1.msra.mxu0 %v3276
      %3347 = vmatprep.subr.mxu0 0.0
      %3348 = vmatpush1.msra.mxu0 %v3275
      %3349 = vmatprep.subr.mxu0 0.0
      %3350 = vmatpush1.msra.mxu0 %v3274
      %3351 = vmatprep.subr.mxu0 0.0
      %3352 = vmatpush1.msra.mxu0 %v3273
      %3353 = vmatprep.subr.mxu0 0.0
      %3354 = vmatpush2.msra.mxu0 0.0
      %3355 = vmatprep.subr.mxu0 0.0
      %3356 = vmatpush2.msra.mxu0 0.0
      %3357 = vmatprep.subr.mxu0 0.0
      %3358 = vmatpush2.msra.mxu0 0.0
      %3359 = vmatprep.subr.mxu0 0.0
      %3360 = vmatpush2.msra.mxu0 0.0
      %3361 = vmatprep.subr.mxu0 0.0
      %3362 = vmatpush2.msra.mxu0 0.0
      %3363 = vmatprep.subr.mxu0 0.0
      %3364 = vmatpush2.msra.mxu0 0.0
      %3365 = vmatprep.subr.mxu0 0.0
      %3366 = vmatpush2.msra.mxu0 0.0
      %3367 = vmatprep.subr.mxu0 0.0
      %3368 = vmatpush2.msra.mxu0 0.0
      %3369 = vmatprep.subr.mxu0 0.0
      %3370 = vmatpush2.msra.mxu0 0.0
      %3371 = vmatprep.subr.mxu0 0.0
      %3372 = vmatpush2.msra.mxu0 0.0
      %3373 = vmatprep.subr.mxu0 0.0
      %3374 = vmatpush2.msra.mxu0 0.0
      %3375 = vmatprep.subr.mxu0 0.0
      %3376 = vmatpush2.msra.mxu0 0.0
      %3377 = vmatprep.subr.mxu0 0.0
      %3378 = vmatpush2.msra.mxu0 0.0
      %3379 = vmatprep.subr.mxu0 0.0
      %3380 = vmatpush2.msra.mxu0 0.0
      %3381 = vmatprep.subr.mxu0 0.0
      %3382 = vmatpush2.msra.mxu0 0.0
      %3383 = vmatprep.subr.mxu0 0.0
      %3384 = vmatpush2.msra.mxu0 0.0
      %3385 = vmatprep.mubr.f32.mxu0 0.0
      %3386 = vmatmul.mubr.f32.gmra.mxu0 %v3319
      %v3387 = vpop.f32.mrf.mxu0
      %v3388 = vadd.f32 %v3301, %v3387
      %v3389 = vpop.f32.mrf.mxu0
      %3390 = vdwg.mxu0
      %3391 = vmatprep.subr.mxu0 0.0
      %3392 = vmatpush1.msra.mxu0 0.0
      %3393 = vmatprep.subr.mxu0 0.0
      %3394 = vmatpush1.msra.mxu0 0.0
      %3395 = vmatprep.subr.mxu0 0.0
      %3396 = vmatpush1.msra.mxu0 0.0
      %3397 = vmatprep.subr.mxu0 0.0
      %3398 = vmatpush1.msra.mxu0 0.0
      %3399 = vmatprep.subr.mxu0 0.0
      %3400 = vmatpush1.msra.mxu0 0.0
      %3401 = vmatprep.subr.mxu0 0.0
      %3402 = vmatpush1.msra.mxu0 0.0
      %3403 = vmatprep.subr.mxu0 0.0
      %3404 = vmatpush1.msra.mxu0 0.0
      %3405 = vmatprep.subr.mxu0 0.0
      %3406 = vmatpush1.msra.mxu0 0.0
      %3407 = vmatprep.subr.mxu0 0.0
      %3408 = vmatpush1.msra.mxu0 0.0
      %3409 = vmatprep.subr.mxu0 0.0
      %3410 = vmatpush1.msra.mxu0 0.0
      %3411 = vmatprep.subr.mxu0 0.0
      %3412 = vmatpush1.msra.mxu0 0.0
      %3413 = vmatprep.subr.mxu0 0.0
      %3414 = vmatpush1.msra.mxu0 0.0
      %3415 = vmatprep.subr.mxu0 0.0
      %3416 = vmatpush1.msra.mxu0 %v3280
      %3417 = vmatprep.subr.mxu0 0.0
      %3418 = vmatpush1.msra.mxu0 %v3279
      %3419 = vmatprep.subr.mxu0 0.0
      %3420 = vmatpush1.msra.mxu0 %v3278
      %3421 = vmatprep.subr.mxu0 0.0
      %3422 = vmatpush1.msra.mxu0 %v3277
      %3423 = vmatprep.subr.mxu0 0.0
      %3424 = vmatpush2.msra.mxu0 0.0
      %3425 = vmatprep.subr.mxu0 0.0
      %3426 = vmatpush2.msra.mxu0 0.0
      %3427 = vmatprep.subr.mxu0 0.0
      %3428 = vmatpush2.msra.mxu0 0.0
      %3429 = vmatprep.subr.mxu0 0.0
      %3430 = vmatpush2.msra.mxu0 0.0
      %3431 = vmatprep.subr.mxu0 0.0
      %3432 = vmatpush2.msra.mxu0 0.0
      %3433 = vmatprep.subr.mxu0 0.0
      %3434 = vmatpush2.msra.mxu0 0.0
      %3435 = vmatprep.subr.mxu0 0.0
      %3436 = vmatpush2.msra.mxu0 0.0
      %3437 = vmatprep.subr.mxu0 0.0
      %3438 = vmatpush2.msra.mxu0 0.0
      %3439 = vmatprep.subr.mxu0 0.0
      %3440 = vmatpush2.msra.mxu0 0.0
      %3441 = vmatprep.subr.mxu0 0.0
      %3442 = vmatpush2.msra.mxu0 0.0
      %3443 = vmatprep.subr.mxu0 0.0
      %3444 = vmatpush2.msra.mxu0 0.0
      %3445 = vmatprep.subr.mxu0 0.0
      %3446 = vmatpush2.msra.mxu0 0.0
      %3447 = vmatprep.subr.mxu0 0.0
      %3448 = vmatpush2.msra.mxu0 0.0
      %3449 = vmatprep.subr.mxu0 0.0
      %3450 = vmatpush2.msra.mxu0 0.0
      %3451 = vmatprep.subr.mxu0 0.0
      %3452 = vmatpush2.msra.mxu0 0.0
      %3453 = vmatprep.subr.mxu0 0.0
      %3454 = vmatpush2.msra.mxu0 0.0
      %3455 = vmatprep.mubr.f32.mxu0 0.0
      %3456 = vmatmul.mubr.f32.gmra.mxu0 %v3319
      %v3457 = vpop.f32.mrf.mxu0
      %v3458 = vadd.f32 %v3305, %v3457
      %v3459 = vpop.f32.mrf.mxu0
      %3460 = vdwg.mxu0
      %3461 = vmatprep.subr.mxu0 0.0
      %3462 = vmatpush1.msra.mxu0 0.0
      %3463 = vmatprep.subr.mxu0 0.0
      %3464 = vmatpush1.msra.mxu0 0.0
      %3465 = vmatprep.subr.mxu0 0.0
      %3466 = vmatpush1.msra.mxu0 0.0
      %3467 = vmatprep.subr.mxu0 0.0
      %3468 = vmatpush1.msra.mxu0 0.0
      %3469 = vmatprep.subr.mxu0 0.0
      %3470 = vmatpush1.msra.mxu0 0.0
      %3471 = vmatprep.subr.mxu0 0.0
      %3472 = vmatpush1.msra.mxu0 0.0
      %3473 = vmatprep.subr.mxu0 0.0
      %3474 = vmatpush1.msra.mxu0 0.0
      %3475 = vmatprep.subr.mxu0 0.0
      %3476 = vmatpush1.msra.mxu0 0.0
      %3477 = vmatprep.subr.mxu0 0.0
      %3478 = vmatpush1.msra.mxu0 0.0
      %3479 = vmatprep.subr.mxu0 0.0
      %3480 = vmatpush1.msra.mxu0 0.0
      %3481 = vmatprep.subr.mxu0 0.0
      %3482 = vmatpush1.msra.mxu0 0.0
      %3483 = vmatprep.subr.mxu0 0.0
      %3484 = vmatpush1.msra.mxu0 0.0
      %3485 = vmatprep.subr.mxu0 0.0
      %3486 = vmatpush1.msra.mxu0 %v3284
      %3487 = vmatprep.subr.mxu0 0.0
      %3488 = vmatpush1.msra.mxu0 %v3283
      %3489 = vmatprep.subr.mxu0 0.0
      %3490 = vmatpush1.msra.mxu0 %v3282
      %3491 = vmatprep.subr.mxu0 0.0
      %3492 = vmatpush1.msra.mxu0 %v3281
      %3493 = vmatprep.subr.mxu0 0.0
      %3494 = vmatpush2.msra.mxu0 0.0
      %3495 = vmatprep.subr.mxu0 0.0
      %3496 = vmatpush2.msra.mxu0 0.0
      %3497 = vmatprep.subr.mxu0 0.0
      %3498 = vmatpush2.msra.mxu0 0.0
      %3499 = vmatprep.subr.mxu0 0.0
      %3500 = vmatpush2.msra.mxu0 0.0
      %3501 = vmatprep.subr.mxu0 0.0
      %3502 = vmatpush2.msra.mxu0 0.0
      %3503 = vmatprep.subr.mxu0 0.0
      %3504 = vmatpush2.msra.mxu0 0.0
      %3505 = vmatprep.subr.mxu0 0.0
      %3506 = vmatpush2.msra.mxu0 0.0
      %3507 = vmatprep.subr.mxu0 0.0
      %3508 = vmatpush2.msra.mxu0 0.0
      %3509 = vmatprep.subr.mxu0 0.0
      %3510 = vmatpush2.msra.mxu0 0.0
      %3511 = vmatprep.subr.mxu0 0.0
      %3512 = vmatpush2.msra.mxu0 0.0
      %3513 = vmatprep.subr.mxu0 0.0
      %3514 = vmatpush2.msra.mxu0 0.0
      %3515 = vmatprep.subr.mxu0 0.0
      %3516 = vmatpush2.msra.mxu0 0.0
      %3517 = vmatprep.subr.mxu0 0.0
      %3518 = vmatpush2.msra.mxu0 0.0
      %3519 = vmatprep.subr.mxu0 0.0
      %3520 = vmatpush2.msra.mxu0 0.0
      %3521 = vmatprep.subr.mxu0 0.0
      %3522 = vmatpush2.msra.mxu0 0.0
      %3523 = vmatprep.subr.mxu0 0.0
      %3524 = vmatpush2.msra.mxu0 0.0
      %3525 = vmatprep.mubr.f32.mxu0 0.0
      %3526 = vmatmul.mubr.f32.gmra.mxu0 %v3319
      %v3527 = vpop.f32.mrf.mxu0
      %v3528 = vadd.f32 %v3309, %v3527
      %v3529 = vpop.f32.mrf.mxu0
      %3530 = vdwg.mxu0
      %3531 = vmatprep.subr.mxu0 0.0
      %3532 = vmatpush1.msra.mxu0 0.0
      %3533 = vmatprep.subr.mxu0 0.0
      %3534 = vmatpush1.msra.mxu0 0.0
      %3535 = vmatprep.subr.mxu0 0.0
      %3536 = vmatpush1.msra.mxu0 0.0
      %3537 = vmatprep.subr.mxu0 0.0
      %3538 = vmatpush1.msra.mxu0 0.0
      %3539 = vmatprep.subr.mxu0 0.0
      %3540 = vmatpush1.msra.mxu0 0.0
      %3541 = vmatprep.subr.mxu0 0.0
      %3542 = vmatpush1.msra.mxu0 0.0
      %3543 = vmatprep.subr.mxu0 0.0
      %3544 = vmatpush1.msra.mxu0 0.0
      %3545 = vmatprep.subr.mxu0 0.0
      %3546 = vmatpush1.msra.mxu0 0.0
      %3547 = vmatprep.subr.mxu0 0.0
      %3548 = vmatpush1.msra.mxu0 0.0
      %3549 = vmatprep.subr.mxu0 0.0
      %3550 = vmatpush1.msra.mxu0 0.0
      %3551 = vmatprep.subr.mxu0 0.0
      %3552 = vmatpush1.msra.mxu0 0.0
      %3553 = vmatprep.subr.mxu0 0.0
      %3554 = vmatpush1.msra.mxu0 0.0
      %3555 = vmatprep.subr.mxu0 0.0
      %3556 = vmatpush1.msra.mxu0 %v3288
      %3557 = vmatprep.subr.mxu0 0.0
      %3558 = vmatpush1.msra.mxu0 %v3287
      %3559 = vmatprep.subr.mxu0 0.0
      %3560 = vmatpush1.msra.mxu0 %v3286
      %3561 = vmatprep.subr.mxu0 0.0
      %3562 = vmatpush1.msra.mxu0 %v3285
      %3563 = vmatprep.subr.mxu0 0.0
      %3564 = vmatpush2.msra.mxu0 0.0
      %3565 = vmatprep.subr.mxu0 0.0
      %3566 = vmatpush2.msra.mxu0 0.0
      %3567 = vmatprep.subr.mxu0 0.0
      %3568 = vmatpush2.msra.mxu0 0.0
      %3569 = vmatprep.subr.mxu0 0.0
      %3570 = vmatpush2.msra.mxu0 0.0
      %3571 = vmatprep.subr.mxu0 0.0
      %3572 = vmatpush2.msra.mxu0 0.0
      %3573 = vmatprep.subr.mxu0 0.0
      %3574 = vmatpush2.msra.mxu0 0.0
      %3575 = vmatprep.subr.mxu0 0.0
      %3576 = vmatpush2.msra.mxu0 0.0
      %3577 = vmatprep.subr.mxu0 0.0
      %3578 = vmatpush2.msra.mxu0 0.0
      %3579 = vmatprep.subr.mxu0 0.0
      %3580 = vmatpush2.msra.mxu0 0.0
      %3581 = vmatprep.subr.mxu0 0.0
      %3582 = vmatpush2.msra.mxu0 0.0
      %3583 = vmatprep.subr.mxu0 0.0
      %3584 = vmatpush2.msra.mxu0 0.0
      %3585 = vmatprep.subr.mxu0 0.0
      %3586 = vmatpush2.msra.mxu0 0.0
      %3587 = vmatprep.subr.mxu0 0.0
      %3588 = vmatpush2.msra.mxu0 0.0
      %3589 = vmatprep.subr.mxu0 0.0
      %3590 = vmatpush2.msra.mxu0 0.0
      %3591 = vmatprep.subr.mxu0 0.0
      %3592 = vmatpush2.msra.mxu0 0.0
      %3593 = vmatprep.subr.mxu0 0.0
      %3594 = vmatpush2.msra.mxu0 0.0
      %3595 = vmatprep.mubr.f32.mxu0 0.0
      %3596 = vmatmul.mubr.f32.gmra.mxu0 %v3319
      %v3597 = vpop.f32.mrf.mxu0
      %v3598 = vadd.f32 %v3313, %v3597
      %v3599 = vpop.f32.mrf.mxu0
      %3600 = vdwg.mxu0
      %v3601 = vmul.f32 %v3388, 0.35355338
      %v3602 = vmul.f32 %v3458, 0.35355338
      %v3603 = vmul.f32 %v3528, 0.35355338
      %v3604 = vmul.f32 %v3598, 0.35355338
      %3606 = vrot.lane.b32.xlu0 %v3388, 120
      %v3607 = vpop.permute.xlu0 %3606
      %v3609 = vsel %vm876, %v3601, 0
      %v3611 = vsel %vm876, %v3607, 0
      %3613 = vmatprep.subr.mxu0 0.0
      %3614 = vmatpush1.xpose.msra.mxu0 0.0
      %3615 = vmatprep.subr.mxu0 0.0
      %3616 = vmatpush1.xpose.msra.mxu0 0.0
      %3617 = vmatprep.subr.mxu0 0.0
      %3618 = vmatpush1.xpose.msra.mxu0 0.0
      %3619 = vmatprep.subr.mxu0 0.0
      %3620 = vmatpush1.xpose.msra.mxu0 0.0
      %3621 = vmatprep.subr.mxu0 0.0
      %3622 = vmatpush1.xpose.msra.mxu0 0.0
      %3623 = vmatprep.subr.mxu0 0.0
      %3624 = vmatpush1.xpose.msra.mxu0 0.0
      %3625 = vmatprep.subr.mxu0 0.0
      %3626 = vmatpush1.xpose.msra.mxu0 0.0
      %3627 = vmatprep.subr.mxu0 0.0
      %3628 = vmatpush1.xpose.msra.mxu0 0.0
      %3629 = vmatprep.subr.mxu0 0.0
      %3630 = vmatpush1.xpose.msra.mxu0 0.0
      %3631 = vmatprep.subr.mxu0 0.0
      %3632 = vmatpush1.xpose.msra.mxu0 0.0
      %3633 = vmatprep.subr.mxu0 0.0
      %3634 = vmatpush1.xpose.msra.mxu0 0.0
      %3635 = vmatprep.subr.mxu0 0.0
      %3636 = vmatpush1.xpose.msra.mxu0 0.0
      %3637 = vmatprep.subr.mxu0 0.0
      %3638 = vmatpush1.xpose.msra.mxu0 0.0
      %3639 = vmatprep.subr.mxu0 0.0
      %3640 = vmatpush1.xpose.msra.mxu0 0.0
      %3641 = vmatprep.subr.mxu0 0.0
      %3642 = vmatpush1.xpose.msra.mxu0 0.0
      %3643 = vmatprep.subr.mxu0 0.0
      %3644 = vmatpush1.xpose.msra.mxu0 %v3611
      %3645 = vmatprep.subr.mxu0 0.0
      %3646 = vmatpush2.xpose.msra.mxu0 0.0
      %3647 = vmatprep.subr.mxu0 0.0
      %3648 = vmatpush2.xpose.msra.mxu0 0.0
      %3649 = vmatprep.subr.mxu0 0.0
      %3650 = vmatpush2.xpose.msra.mxu0 0.0
      %3651 = vmatprep.subr.mxu0 0.0
      %3652 = vmatpush2.xpose.msra.mxu0 0.0
      %3653 = vmatprep.subr.mxu0 0.0
      %3654 = vmatpush2.xpose.msra.mxu0 0.0
      %3655 = vmatprep.subr.mxu0 0.0
      %3656 = vmatpush2.xpose.msra.mxu0 0.0
      %3657 = vmatprep.subr.mxu0 0.0
      %3658 = vmatpush2.xpose.msra.mxu0 0.0
      %3659 = vmatprep.subr.mxu0 0.0
      %3660 = vmatpush2.xpose.msra.mxu0 0.0
      %3661 = vmatprep.subr.mxu0 0.0
      %3662 = vmatpush2.xpose.msra.mxu0 0.0
      %3663 = vmatprep.subr.mxu0 0.0
      %3664 = vmatpush2.xpose.msra.mxu0 0.0
      %3665 = vmatprep.subr.mxu0 0.0
      %3666 = vmatpush2.xpose.msra.mxu0 0.0
      %3667 = vmatprep.subr.mxu0 0.0
      %3668 = vmatpush2.xpose.msra.mxu0 0.0
      %3669 = vmatprep.subr.mxu0 0.0
      %3670 = vmatpush2.xpose.msra.mxu0 0.0
      %3671 = vmatprep.subr.mxu0 0.0
      %3672 = vmatpush2.xpose.msra.mxu0 0.0
      %3673 = vmatprep.subr.mxu0 0.0
      %3674 = vmatpush2.xpose.msra.mxu0 0.0
      %3675 = vmatprep.subr.mxu0 0.0
      %3676 = vmatpush2.xpose.msra.mxu0 0.0
      %3677 = vmatprep.mubr.f32.mxu0 0.0
      %3678 = vmatmul.mubr.f32.gmra.mxu0 %v3609
      %v3679 = vpop.f32.mrf.mxu0
      %v3680 = vadd.f32 0.0, %v3679
      %v3681 = vpop.f32.mrf.mxu0
      %3682 = vdwg.mxu0
      %3684 = vrot.lane.b32.xlu0 %v3458, 120
      %v3685 = vpop.permute.xlu0 %3684
      %v3687 = vsel %vm876, %v3602, 0
      %v3689 = vsel %vm876, %v3685, 0
      %3691 = vmatprep.subr.mxu0 0.0
      %3692 = vmatpush1.xpose.msra.mxu0 0.0
      %3693 = vmatprep.subr.mxu0 0.0
      %3694 = vmatpush1.xpose.msra.mxu0 0.0
      %3695 = vmatprep.subr.mxu0 0.0
      %3696 = vmatpush1.xpose.msra.mxu0 0.0
      %3697 = vmatprep.subr.mxu0 0.0
      %3698 = vmatpush1.xpose.msra.mxu0 0.0
      %3699 = vmatprep.subr.mxu0 0.0
      %3700 = vmatpush1.xpose.msra.mxu0 0.0
      %3701 = vmatprep.subr.mxu0 0.0
      %3702 = vmatpush1.xpose.msra.mxu0 0.0
      %3703 = vmatprep.subr.mxu0 0.0
      %3704 = vmatpush1.xpose.msra.mxu0 0.0
      %3705 = vmatprep.subr.mxu0 0.0
      %3706 = vmatpush1.xpose.msra.mxu0 0.0
      %3707 = vmatprep.subr.mxu0 0.0
      %3708 = vmatpush1.xpose.msra.mxu0 0.0
      %3709 = vmatprep.subr.mxu0 0.0
      %3710 = vmatpush1.xpose.msra.mxu0 0.0
      %3711 = vmatprep.subr.mxu0 0.0
      %3712 = vmatpush1.xpose.msra.mxu0 0.0
      %3713 = vmatprep.subr.mxu0 0.0
      %3714 = vmatpush1.xpose.msra.mxu0 0.0
      %3715 = vmatprep.subr.mxu0 0.0
      %3716 = vmatpush1.xpose.msra.mxu0 0.0
      %3717 = vmatprep.subr.mxu0 0.0
      %3718 = vmatpush1.xpose.msra.mxu0 0.0
      %3719 = vmatprep.subr.mxu0 0.0
      %3720 = vmatpush1.xpose.msra.mxu0 0.0
      %3721 = vmatprep.subr.mxu0 0.0
      %3722 = vmatpush1.xpose.msra.mxu0 %v3689
      %3723 = vmatprep.subr.mxu0 0.0
      %3724 = vmatpush2.xpose.msra.mxu0 0.0
      %3725 = vmatprep.subr.mxu0 0.0
      %3726 = vmatpush2.xpose.msra.mxu0 0.0
      %3727 = vmatprep.subr.mxu0 0.0
      %3728 = vmatpush2.xpose.msra.mxu0 0.0
      %3729 = vmatprep.subr.mxu0 0.0
      %3730 = vmatpush2.xpose.msra.mxu0 0.0
      %3731 = vmatprep.subr.mxu0 0.0
      %3732 = vmatpush2.xpose.msra.mxu0 0.0
      %3733 = vmatprep.subr.mxu0 0.0
      %3734 = vmatpush2.xpose.msra.mxu0 0.0
      %3735 = vmatprep.subr.mxu0 0.0
      %3736 = vmatpush2.xpose.msra.mxu0 0.0
      %3737 = vmatprep.subr.mxu0 0.0
      %3738 = vmatpush2.xpose.msra.mxu0 0.0
      %3739 = vmatprep.subr.mxu0 0.0
      %3740 = vmatpush2.xpose.msra.mxu0 0.0
      %3741 = vmatprep.subr.mxu0 0.0
      %3742 = vmatpush2.xpose.msra.mxu0 0.0
      %3743 = vmatprep.subr.mxu0 0.0
      %3744 = vmatpush2.xpose.msra.mxu0 0.0
      %3745 = vmatprep.subr.mxu0 0.0
      %3746 = vmatpush2.xpose.msra.mxu0 0.0
      %3747 = vmatprep.subr.mxu0 0.0
      %3748 = vmatpush2.xpose.msra.mxu0 0.0
      %3749 = vmatprep.subr.mxu0 0.0
      %3750 = vmatpush2.xpose.msra.mxu0 0.0
      %3751 = vmatprep.subr.mxu0 0.0
      %3752 = vmatpush2.xpose.msra.mxu0 0.0
      %3753 = vmatprep.subr.mxu0 0.0
      %3754 = vmatpush2.xpose.msra.mxu0 0.0
      %3755 = vmatprep.mubr.f32.mxu0 0.0
      %3756 = vmatmul.mubr.f32.gmra.mxu0 %v3687
      %v3757 = vpop.f32.mrf.mxu0
      %v3758 = vadd.f32 0.0, %v3757
      %v3759 = vpop.f32.mrf.mxu0
      %3760 = vdwg.mxu0
      %3762 = vrot.lane.b32.xlu0 %v3528, 120
      %v3763 = vpop.permute.xlu0 %3762
      %v3765 = vsel %vm876, %v3603, 0
      %v3767 = vsel %vm876, %v3763, 0
      %3769 = vmatprep.subr.mxu0 0.0
      %3770 = vmatpush1.xpose.msra.mxu0 0.0
      %3771 = vmatprep.subr.mxu0 0.0
      %3772 = vmatpush1.xpose.msra.mxu0 0.0
      %3773 = vmatprep.subr.mxu0 0.0
      %3774 = vmatpush1.xpose.msra.mxu0 0.0
      %3775 = vmatprep.subr.mxu0 0.0
      %3776 = vmatpush1.xpose.msra.mxu0 0.0
      %3777 = vmatprep.subr.mxu0 0.0
      %3778 = vmatpush1.xpose.msra.mxu0 0.0
      %3779 = vmatprep.subr.mxu0 0.0
      %3780 = vmatpush1.xpose.msra.mxu0 0.0
      %3781 = vmatprep.subr.mxu0 0.0
      %3782 = vmatpush1.xpose.msra.mxu0 0.0
      %3783 = vmatprep.subr.mxu0 0.0
      %3784 = vmatpush1.xpose.msra.mxu0 0.0
      %3785 = vmatprep.subr.mxu0 0.0
      %3786 = vmatpush1.xpose.msra.mxu0 0.0
      %3787 = vmatprep.subr.mxu0 0.0
      %3788 = vmatpush1.xpose.msra.mxu0 0.0
      %3789 = vmatprep.subr.mxu0 0.0
      %3790 = vmatpush1.xpose.msra.mxu0 0.0
      %3791 = vmatprep.subr.mxu0 0.0
      %3792 = vmatpush1.xpose.msra.mxu0 0.0
      %3793 = vmatprep.subr.mxu0 0.0
      %3794 = vmatpush1.xpose.msra.mxu0 0.0
      %3795 = vmatprep.subr.mxu0 0.0
      %3796 = vmatpush1.xpose.msra.mxu0 0.0
      %3797 = vmatprep.subr.mxu0 0.0
      %3798 = vmatpush1.xpose.msra.mxu0 0.0
      %3799 = vmatprep.subr.mxu0 0.0
      %3800 = vmatpush1.xpose.msra.mxu0 %v3767
      %3801 = vmatprep.subr.mxu0 0.0
      %3802 = vmatpush2.xpose.msra.mxu0 0.0
      %3803 = vmatprep.subr.mxu0 0.0
      %3804 = vmatpush2.xpose.msra.mxu0 0.0
      %3805 = vmatprep.subr.mxu0 0.0
      %3806 = vmatpush2.xpose.msra.mxu0 0.0
      %3807 = vmatprep.subr.mxu0 0.0
      %3808 = vmatpush2.xpose.msra.mxu0 0.0
      %3809 = vmatprep.subr.mxu0 0.0
      %3810 = vmatpush2.xpose.msra.mxu0 0.0
      %3811 = vmatprep.subr.mxu0 0.0
      %3812 = vmatpush2.xpose.msra.mxu0 0.0
      %3813 = vmatprep.subr.mxu0 0.0
      %3814 = vmatpush2.xpose.msra.mxu0 0.0
      %3815 = vmatprep.subr.mxu0 0.0
      %3816 = vmatpush2.xpose.msra.mxu0 0.0
      %3817 = vmatprep.subr.mxu0 0.0
      %3818 = vmatpush2.xpose.msra.mxu0 0.0
      %3819 = vmatprep.subr.mxu0 0.0
      %3820 = vmatpush2.xpose.msra.mxu0 0.0
      %3821 = vmatprep.subr.mxu0 0.0
      %3822 = vmatpush2.xpose.msra.mxu0 0.0
      %3823 = vmatprep.subr.mxu0 0.0
      %3824 = vmatpush2.xpose.msra.mxu0 0.0
      %3825 = vmatprep.subr.mxu0 0.0
      %3826 = vmatpush2.xpose.msra.mxu0 0.0
      %3827 = vmatprep.subr.mxu0 0.0
      %3828 = vmatpush2.xpose.msra.mxu0 0.0
      %3829 = vmatprep.subr.mxu0 0.0
      %3830 = vmatpush2.xpose.msra.mxu0 0.0
      %3831 = vmatprep.subr.mxu0 0.0
      %3832 = vmatpush2.xpose.msra.mxu0 0.0
      %3833 = vmatprep.mubr.f32.mxu0 0.0
      %3834 = vmatmul.mubr.f32.gmra.mxu0 %v3765
      %v3835 = vpop.f32.mrf.mxu0
      %v3836 = vadd.f32 0.0, %v3835
      %v3837 = vpop.f32.mrf.mxu0
      %3838 = vdwg.mxu0
      %3840 = vrot.lane.b32.xlu0 %v3598, 120
      %v3841 = vpop.permute.xlu0 %3840
      %v3843 = vsel %vm876, %v3604, 0
      %v3845 = vsel %vm876, %v3841, 0
      %3847 = vmatprep.subr.mxu0 0.0
      %3848 = vmatpush1.xpose.msra.mxu0 0.0
      %3849 = vmatprep.subr.mxu0 0.0
      %3850 = vmatpush1.xpose.msra.mxu0 0.0
      %3851 = vmatprep.subr.mxu0 0.0
      %3852 = vmatpush1.xpose.msra.mxu0 0.0
      %3853 = vmatprep.subr.mxu0 0.0
      %3854 = vmatpush1.xpose.msra.mxu0 0.0
      %3855 = vmatprep.subr.mxu0 0.0
      %3856 = vmatpush1.xpose.msra.mxu0 0.0
      %3857 = vmatprep.subr.mxu0 0.0
      %3858 = vmatpush1.xpose.msra.mxu0 0.0
      %3859 = vmatprep.subr.mxu0 0.0
      %3860 = vmatpush1.xpose.msra.mxu0 0.0
      %3861 = vmatprep.subr.mxu0 0.0
      %3862 = vmatpush1.xpose.msra.mxu0 0.0
      %3863 = vmatprep.subr.mxu0 0.0
      %3864 = vmatpush1.xpose.msra.mxu0 0.0
      %3865 = vmatprep.subr.mxu0 0.0
      %3866 = vmatpush1.xpose.msra.mxu0 0.0
      %3867 = vmatprep.subr.mxu0 0.0
      %3868 = vmatpush1.xpose.msra.mxu0 0.0
      %3869 = vmatprep.subr.mxu0 0.0
      %3870 = vmatpush1.xpose.msra.mxu0 0.0
      %3871 = vmatprep.subr.mxu0 0.0
      %3872 = vmatpush1.xpose.msra.mxu0 0.0
      %3873 = vmatprep.subr.mxu0 0.0
      %3874 = vmatpush1.xpose.msra.mxu0 0.0
      %3875 = vmatprep.subr.mxu0 0.0
      %3876 = vmatpush1.xpose.msra.mxu0 0.0
      %3877 = vmatprep.subr.mxu0 0.0
      %3878 = vmatpush1.xpose.msra.mxu0 %v3845
      %3879 = vmatprep.subr.mxu0 0.0
      %3880 = vmatpush2.xpose.msra.mxu0 0.0
      %3881 = vmatprep.subr.mxu0 0.0
      %3882 = vmatpush2.xpose.msra.mxu0 0.0
      %3883 = vmatprep.subr.mxu0 0.0
      %3884 = vmatpush2.xpose.msra.mxu0 0.0
      %3885 = vmatprep.subr.mxu0 0.0
      %3886 = vmatpush2.xpose.msra.mxu0 0.0
      %3887 = vmatprep.subr.mxu0 0.0
      %3888 = vmatpush2.xpose.msra.mxu0 0.0
      %3889 = vmatprep.subr.mxu0 0.0
      %3890 = vmatpush2.xpose.msra.mxu0 0.0
      %3891 = vmatprep.subr.mxu0 0.0
      %3892 = vmatpush2.xpose.msra.mxu0 0.0
      %3893 = vmatprep.subr.mxu0 0.0
      %3894 = vmatpush2.xpose.msra.mxu0 0.0
      %3895 = vmatprep.subr.mxu0 0.0
      %3896 = vmatpush2.xpose.msra.mxu0 0.0
      %3897 = vmatprep.subr.mxu0 0.0
      %3898 = vmatpush2.xpose.msra.mxu0 0.0
      %3899 = vmatprep.subr.mxu0 0.0
      %3900 = vmatpush2.xpose.msra.mxu0 0.0
      %3901 = vmatprep.subr.mxu0 0.0
      %3902 = vmatpush2.xpose.msra.mxu0 0.0
      %3903 = vmatprep.subr.mxu0 0.0
      %3904 = vmatpush2.xpose.msra.mxu0 0.0
      %3905 = vmatprep.subr.mxu0 0.0
      %3906 = vmatpush2.xpose.msra.mxu0 0.0
      %3907 = vmatprep.subr.mxu0 0.0
      %3908 = vmatpush2.xpose.msra.mxu0 0.0
      %3909 = vmatprep.subr.mxu0 0.0
      %3910 = vmatpush2.xpose.msra.mxu0 0.0
      %3911 = vmatprep.mubr.f32.mxu0 0.0
      %3912 = vmatmul.mubr.f32.gmra.mxu0 %v3843
      %v3913 = vpop.f32.mrf.mxu0
      %v3914 = vadd.f32 0.0, %v3913
      %v3915 = vpop.f32.mrf.mxu0
      %3916 = vdwg.mxu0
      %v3917 = vsel %vm876, %v3680, -inf
      %3918 = vmax.xlane.f32.xlu0 %v3917
      %v3919 = vpop.xlane.xlu0 %3918
      %v3920 = vsel %vm876, %v3758, -inf
      %3921 = vmax.xlane.f32.xlu0 %v3920
      %v3922 = vpop.xlane.xlu0 %3921
      %v3923 = vsel %vm876, %v3836, -inf
      %3924 = vmax.xlane.f32.xlu0 %v3923
      %v3925 = vpop.xlane.xlu0 %3924
      %v3926 = vsel %vm876, %v3914, -inf
      %3927 = vmax.xlane.f32.xlu0 %v3926
      %v3928 = vpop.xlane.xlu0 %3927
      %v3929 = vsub.f32 %v3680, %v3919
      %v3930 = vsub.f32 %v3758, %v3922
      %v3931 = vsub.f32 %v3836, %v3925
      %v3932 = vsub.f32 %v3914, %v3928
      %v3933 = vmul.f32 %v3929, 1.442695
      %v3934 = vpow.pop %v3933
      %v3935 = vmul.f32 %v3930, 1.442695
      %v3936 = vpow.pop %v3935
      %v3937 = vmul.f32 %v3931, 1.442695
      %v3938 = vpow.pop %v3937
      %v3939 = vmul.f32 %v3932, 1.442695
      %v3940 = vpow.pop %v3939
      %v3941 = vsel %vm876, %v3934, 0.0
      %3942 = vadd.xlane.f32.xlu0 %v3941
      %v3943 = vpop.xlane.xlu0 %3942
      %v3944 = vsel %vm876, %v3936, 0.0
      %3945 = vadd.xlane.f32.xlu0 %v3944
      %v3946 = vpop.xlane.xlu0 %3945
      %v3947 = vsel %vm876, %v3938, 0.0
      %3948 = vadd.xlane.f32.xlu0 %v3947
      %v3949 = vpop.xlane.xlu0 %3948
      %v3950 = vsel %vm876, %v3940, 0.0
      %3951 = vadd.xlane.f32.xlu0 %v3950
      %v3952 = vpop.xlane.xlu0 %3951
      %v3953 = vrcp.pop %v3943
      %v3954 = vrcp.pop %v3946
      %v3955 = vrcp.pop %v3949
      %v3956 = vrcp.pop %v3952
      %v3957 = vmul.f32 %v3934, %v3953
      %v3958 = vmul.f32 %v3936, %v3954
      %v3959 = vmul.f32 %v3938, %v3955
      %v3960 = vmul.f32 %v3940, %v3956
      %3961 = vrot.lane.b32.xlu0 %v3388, 112
      %v3962 = vpop.permute.xlu0 %3961
      %v3965 = vsel %vm876, %v3957, 0
      %3967 = vmatprep.subr.mxu0 0.0
      %3968 = vmatpush1.msra.mxu0 0.0
      %3969 = vmatprep.subr.mxu0 0.0
      %3970 = vmatpush1.msra.mxu0 0.0
      %3971 = vmatprep.subr.mxu0 0.0
      %3972 = vmatpush1.msra.mxu0 0.0
      %3973 = vmatprep.subr.mxu0 0.0
      %3974 = vmatpush1.msra.mxu0 0.0
      %3975 = vmatprep.subr.mxu0 0.0
      %3976 = vmatpush1.msra.mxu0 0.0
      %3977 = vmatprep.subr.mxu0 0.0
      %3978 = vmatpush1.msra.mxu0 0.0
      %3979 = vmatprep.subr.mxu0 0.0
      %3980 = vmatpush1.msra.mxu0 0.0
      %3981 = vmatprep.subr.mxu0 0.0
      %3982 = vmatpush1.msra.mxu0 0.0
      %3983 = vmatprep.subr.mxu0 0.0
      %3984 = vmatpush1.msra.mxu0 0.0
      %3985 = vmatprep.subr.mxu0 0.0
      %3986 = vmatpush1.msra.mxu0 0.0
      %3987 = vmatprep.subr.mxu0 0.0
      %3988 = vmatpush1.msra.mxu0 0.0
      %3989 = vmatprep.subr.mxu0 0.0
      %3990 = vmatpush1.msra.mxu0 0.0
      %3991 = vmatprep.subr.mxu0 0.0
      %3992 = vmatpush1.msra.mxu0 0.0
      %3993 = vmatprep.subr.mxu0 0.0
      %3994 = vmatpush1.msra.mxu0 0.0
      %3995 = vmatprep.subr.mxu0 0.0
      %3996 = vmatpush1.msra.mxu0 0.0
      %3997 = vmatprep.subr.mxu0 0.0
      %3998 = vmatpush1.msra.mxu0 %v3962
      %3999 = vmatprep.subr.mxu0 0.0
      %4000 = vmatpush2.msra.mxu0 0.0
      %4001 = vmatprep.subr.mxu0 0.0
      %4002 = vmatpush2.msra.mxu0 0.0
      %4003 = vmatprep.subr.mxu0 0.0
      %4004 = vmatpush2.msra.mxu0 0.0
      %4005 = vmatprep.subr.mxu0 0.0
      %4006 = vmatpush2.msra.mxu0 0.0
      %4007 = vmatprep.subr.mxu0 0.0
      %4008 = vmatpush2.msra.mxu0 0.0
      %4009 = vmatprep.subr.mxu0 0.0
      %4010 = vmatpush2.msra.mxu0 0.0
      %4011 = vmatprep.subr.mxu0 0.0
      %4012 = vmatpush2.msra.mxu0 0.0
      %4013 = vmatprep.subr.mxu0 0.0
      %4014 = vmatpush2.msra.mxu0 0.0
      %4015 = vmatprep.subr.mxu0 0.0
      %4016 = vmatpush2.msra.mxu0 0.0
      %4017 = vmatprep.subr.mxu0 0.0
      %4018 = vmatpush2.msra.mxu0 0.0
      %4019 = vmatprep.subr.mxu0 0.0
      %4020 = vmatpush2.msra.mxu0 0.0
      %4021 = vmatprep.subr.mxu0 0.0
      %4022 = vmatpush2.msra.mxu0 0.0
      %4023 = vmatprep.subr.mxu0 0.0
      %4024 = vmatpush2.msra.mxu0 0.0
      %4025 = vmatprep.subr.mxu0 0.0
      %4026 = vmatpush2.msra.mxu0 0.0
      %4027 = vmatprep.subr.mxu0 0.0
      %4028 = vmatpush2.msra.mxu0 0.0
      %4029 = vmatprep.subr.mxu0 0.0
      %4030 = vmatpush2.msra.mxu0 0.0
      %4031 = vmatprep.mubr.f32.mxu0 0.0
      %4032 = vmatmul.mubr.f32.gmra.mxu0 %v3965
      %v4033 = vpop.f32.mrf.mxu0
      %v4034 = vadd.f32 0.0, %v4033
      %v4035 = vpop.f32.mrf.mxu0
      %4036 = vdwg.mxu0
      %4037 = vrot.lane.b32.xlu0 %v3458, 112
      %v4038 = vpop.permute.xlu0 %4037
      %v4041 = vsel %vm876, %v3958, 0
      %4043 = vmatprep.subr.mxu0 0.0
      %4044 = vmatpush1.msra.mxu0 0.0
      %4045 = vmatprep.subr.mxu0 0.0
      %4046 = vmatpush1.msra.mxu0 0.0
      %4047 = vmatprep.subr.mxu0 0.0
      %4048 = vmatpush1.msra.mxu0 0.0
      %4049 = vmatprep.subr.mxu0 0.0
      %4050 = vmatpush1.msra.mxu0 0.0
      %4051 = vmatprep.subr.mxu0 0.0
      %4052 = vmatpush1.msra.mxu0 0.0
      %4053 = vmatprep.subr.mxu0 0.0
      %4054 = vmatpush1.msra.mxu0 0.0
      %4055 = vmatprep.subr.mxu0 0.0
      %4056 = vmatpush1.msra.mxu0 0.0
      %4057 = vmatprep.subr.mxu0 0.0
      %4058 = vmatpush1.msra.mxu0 0.0
      %4059 = vmatprep.subr.mxu0 0.0
      %4060 = vmatpush1.msra.mxu0 0.0
      %4061 = vmatprep.subr.mxu0 0.0
      %4062 = vmatpush1.msra.mxu0 0.0
      %4063 = vmatprep.subr.mxu0 0.0
      %4064 = vmatpush1.msra.mxu0 0.0
      %4065 = vmatprep.subr.mxu0 0.0
      %4066 = vmatpush1.msra.mxu0 0.0
      %4067 = vmatprep.subr.mxu0 0.0
      %4068 = vmatpush1.msra.mxu0 0.0
      %4069 = vmatprep.subr.mxu0 0.0
      %4070 = vmatpush1.msra.mxu0 0.0
      %4071 = vmatprep.subr.mxu0 0.0
      %4072 = vmatpush1.msra.mxu0 0.0
      %4073 = vmatprep.subr.mxu0 0.0
      %4074 = vmatpush1.msra.mxu0 %v4038
      %4075 = vmatprep.subr.mxu0 0.0
      %4076 = vmatpush2.msra.mxu0 0.0
      %4077 = vmatprep.subr.mxu0 0.0
      %4078 = vmatpush2.msra.mxu0 0.0
      %4079 = vmatprep.subr.mxu0 0.0
      %4080 = vmatpush2.msra.mxu0 0.0
      %4081 = vmatprep.subr.mxu0 0.0
      %4082 = vmatpush2.msra.mxu0 0.0
      %4083 = vmatprep.subr.mxu0 0.0
      %4084 = vmatpush2.msra.mxu0 0.0
      %4085 = vmatprep.subr.mxu0 0.0
      %4086 = vmatpush2.msra.mxu0 0.0
      %4087 = vmatprep.subr.mxu0 0.0
      %4088 = vmatpush2.msra.mxu0 0.0
      %4089 = vmatprep.subr.mxu0 0.0
      %4090 = vmatpush2.msra.mxu0 0.0
      %4091 = vmatprep.subr.mxu0 0.0
      %4092 = vmatpush2.msra.mxu0 0.0
      %4093 = vmatprep.subr.mxu0 0.0
      %4094 = vmatpush2.msra.mxu0 0.0
      %4095 = vmatprep.subr.mxu0 0.0
      %4096 = vmatpush2.msra.mxu0 0.0
      %4097 = vmatprep.subr.mxu0 0.0
      %4098 = vmatpush2.msra.mxu0 0.0
      %4099 = vmatprep.subr.mxu0 0.0
      %4100 = vmatpush2.msra.mxu0 0.0
      %4101 = vmatprep.subr.mxu0 0.0
      %4102 = vmatpush2.msra.mxu0 0.0
      %4103 = vmatprep.subr.mxu0 0.0
      %4104 = vmatpush2.msra.mxu0 0.0
      %4105 = vmatprep.subr.mxu0 0.0
      %4106 = vmatpush2.msra.mxu0 0.0
      %4107 = vmatprep.mubr.f32.mxu0 0.0
      %4108 = vmatmul.mubr.f32.gmra.mxu0 %v4041
      %v4109 = vpop.f32.mrf.mxu0
      %v4110 = vadd.f32 0.0, %v4109
      %v4111 = vpop.f32.mrf.mxu0
      %4112 = vdwg.mxu0
      %4113 = vrot.lane.b32.xlu0 %v3528, 112
      %v4114 = vpop.permute.xlu0 %4113
      %v4117 = vsel %vm876, %v3959, 0
      %4119 = vmatprep.subr.mxu0 0.0
      %4120 = vmatpush1.msra.mxu0 0.0
      %4121 = vmatprep.subr.mxu0 0.0
      %4122 = vmatpush1.msra.mxu0 0.0
      %4123 = vmatprep.subr.mxu0 0.0
      %4124 = vmatpush1.msra.mxu0 0.0
      %4125 = vmatprep.subr.mxu0 0.0
      %4126 = vmatpush1.msra.mxu0 0.0
      %4127 = vmatprep.subr.mxu0 0.0
      %4128 = vmatpush1.msra.mxu0 0.0
      %4129 = vmatprep.subr.mxu0 0.0
      %4130 = vmatpush1.msra.mxu0 0.0
      %4131 = vmatprep.subr.mxu0 0.0
      %4132 = vmatpush1.msra.mxu0 0.0
      %4133 = vmatprep.subr.mxu0 0.0
      %4134 = vmatpush1.msra.mxu0 0.0
      %4135 = vmatprep.subr.mxu0 0.0
      %4136 = vmatpush1.msra.mxu0 0.0
      %4137 = vmatprep.subr.mxu0 0.0
      %4138 = vmatpush1.msra.mxu0 0.0
      %4139 = vmatprep.subr.mxu0 0.0
      %4140 = vmatpush1.msra.mxu0 0.0
      %4141 = vmatprep.subr.mxu0 0.0
      %4142 = vmatpush1.msra.mxu0 0.0
      %4143 = vmatprep.subr.mxu0 0.0
      %4144 = vmatpush1.msra.mxu0 0.0
      %4145 = vmatprep.subr.mxu0 0.0
      %4146 = vmatpush1.msra.mxu0 0.0
      %4147 = vmatprep.subr.mxu0 0.0
      %4148 = vmatpush1.msra.mxu0 0.0
      %4149 = vmatprep.subr.mxu0 0.0
      %4150 = vmatpush1.msra.mxu0 %v4114
      %4151 = vmatprep.subr.mxu0 0.0
      %4152 = vmatpush2.msra.mxu0 0.0
      %4153 = vmatprep.subr.mxu0 0.0
      %4154 = vmatpush2.msra.mxu0 0.0
      %4155 = vmatprep.subr.mxu0 0.0
      %4156 = vmatpush2.msra.mxu0 0.0
      %4157 = vmatprep.subr.mxu0 0.0
      %4158 = vmatpush2.msra.mxu0 0.0
      %4159 = vmatprep.subr.mxu0 0.0
      %4160 = vmatpush2.msra.mxu0 0.0
      %4161 = vmatprep.subr.mxu0 0.0
      %4162 = vmatpush2.msra.mxu0 0.0
      %4163 = vmatprep.subr.mxu0 0.0
      %4164 = vmatpush2.msra.mxu0 0.0
      %4165 = vmatprep.subr.mxu0 0.0
      %4166 = vmatpush2.msra.mxu0 0.0
      %4167 = vmatprep.subr.mxu0 0.0
      %4168 = vmatpush2.msra.mxu0 0.0
      %4169 = vmatprep.subr.mxu0 0.0
      %4170 = vmatpush2.msra.mxu0 0.0
      %4171 = vmatprep.subr.mxu0 0.0
      %4172 = vmatpush2.msra.mxu0 0.0
      %4173 = vmatprep.subr.mxu0 0.0
      %4174 = vmatpush2.msra.mxu0 0.0
      %4175 = vmatprep.subr.mxu0 0.0
      %4176 = vmatpush2.msra.mxu0 0.0
      %4177 = vmatprep.subr.mxu0 0.0
      %4178 = vmatpush2.msra.mxu0 0.0
      %4179 = vmatprep.subr.mxu0 0.0
      %4180 = vmatpush2.msra.mxu0 0.0
      %4181 = vmatprep.subr.mxu0 0.0
      %4182 = vmatpush2.msra.mxu0 0.0
      %4183 = vmatprep.mubr.f32.mxu0 0.0
      %4184 = vmatmul.mubr.f32.gmra.mxu0 %v4117
      %v4185 = vpop.f32.mrf.mxu0
      %v4186 = vadd.f32 0.0, %v4185
      %v4187 = vpop.f32.mrf.mxu0
      %4188 = vdwg.mxu0
      %4189 = vrot.lane.b32.xlu0 %v3598, 112
      %v4190 = vpop.permute.xlu0 %4189
      %v4193 = vsel %vm876, %v3960, 0
      %4195 = vmatprep.subr.mxu0 0.0
      %4196 = vmatpush1.msra.mxu0 0.0
      %4197 = vmatprep.subr.mxu0 0.0
      %4198 = vmatpush1.msra.mxu0 0.0
      %4199 = vmatprep.subr.mxu0 0.0
      %4200 = vmatpush1.msra.mxu0 0.0
      %4201 = vmatprep.subr.mxu0 0.0
      %4202 = vmatpush1.msra.mxu0 0.0
      %4203 = vmatprep.subr.mxu0 0.0
      %4204 = vmatpush1.msra.mxu0 0.0
      %4205 = vmatprep.subr.mxu0 0.0
      %4206 = vmatpush1.msra.mxu0 0.0
      %4207 = vmatprep.subr.mxu0 0.0
      %4208 = vmatpush1.msra.mxu0 0.0
      %4209 = vmatprep.subr.mxu0 0.0
      %4210 = vmatpush1.msra.mxu0 0.0
      %4211 = vmatprep.subr.mxu0 0.0
      %4212 = vmatpush1.msra.mxu0 0.0
      %4213 = vmatprep.subr.mxu0 0.0
      %4214 = vmatpush1.msra.mxu0 0.0
      %4215 = vmatprep.subr.mxu0 0.0
      %4216 = vmatpush1.msra.mxu0 0.0
      %4217 = vmatprep.subr.mxu0 0.0
      %4218 = vmatpush1.msra.mxu0 0.0
      %4219 = vmatprep.subr.mxu0 0.0
      %4220 = vmatpush1.msra.mxu0 0.0
      %4221 = vmatprep.subr.mxu0 0.0
      %4222 = vmatpush1.msra.mxu0 0.0
      %4223 = vmatprep.subr.mxu0 0.0
      %4224 = vmatpush1.msra.mxu0 0.0
      %4225 = vmatprep.subr.mxu0 0.0
      %4226 = vmatpush1.msra.mxu0 %v4190
      %4227 = vmatprep.subr.mxu0 0.0
      %4228 = vmatpush2.msra.mxu0 0.0
      %4229 = vmatprep.subr.mxu0 0.0
      %4230 = vmatpush2.msra.mxu0 0.0
      %4231 = vmatprep.subr.mxu0 0.0
      %4232 = vmatpush2.msra.mxu0 0.0
      %4233 = vmatprep.subr.mxu0 0.0
      %4234 = vmatpush2.msra.mxu0 0.0
      %4235 = vmatprep.subr.mxu0 0.0
      %4236 = vmatpush2.msra.mxu0 0.0
      %4237 = vmatprep.subr.mxu0 0.0
      %4238 = vmatpush2.msra.mxu0 0.0
      %4239 = vmatprep.subr.mxu0 0.0
      %4240 = vmatpush2.msra.mxu0 0.0
      %4241 = vmatprep.subr.mxu0 0.0
      %4242 = vmatpush2.msra.mxu0 0.0
      %4243 = vmatprep.subr.mxu0 0.0
      %4244 = vmatpush2.msra.mxu0 0.0
      %4245 = vmatprep.subr.mxu0 0.0
      %4246 = vmatpush2.msra.mxu0 0.0
      %4247 = vmatprep.subr.mxu0 0.0
      %4248 = vmatpush2.msra.mxu0 0.0
      %4249 = vmatprep.subr.mxu0 0.0
      %4250 = vmatpush2.msra.mxu0 0.0
      %4251 = vmatprep.subr.mxu0 0.0
      %4252 = vmatpush2.msra.mxu0 0.0
      %4253 = vmatprep.subr.mxu0 0.0
      %4254 = vmatpush2.msra.mxu0 0.0
      %4255 = vmatprep.subr.mxu0 0.0
      %4256 = vmatpush2.msra.mxu0 0.0
      %4257 = vmatprep.subr.mxu0 0.0
      %4258 = vmatpush2.msra.mxu0 0.0
      %4259 = vmatprep.mubr.f32.mxu0 0.0
      %4260 = vmatmul.mubr.f32.gmra.mxu0 %v4193
      %v4261 = vpop.f32.mrf.mxu0
      %v4262 = vadd.f32 0.0, %v4261
      %v4263 = vpop.f32.mrf.mxu0
      %4264 = vdwg.mxu0
      %s4265 = scalar_lea.vmem %s6, 32
      %v4266 = vld [vmem:[%s4265] sm:$0xff]
      %v4267 = vld [vmem:[%s4265 + $0x8] sm:$0xff]
      %v4268 = vld [vmem:[%s4265 + $0x10] sm:$0xff]
      %v4269 = vld [vmem:[%s4265 + $0x18] sm:$0xff]
      %v4271 = vsel %vm876, %v4034, 0
      %4273 = vmatprep.subr.mxu0 0.0
      %4274 = vmatpush1.msra.mxu0 0.0
      %4275 = vmatprep.subr.mxu0 0.0
      %4276 = vmatpush1.msra.mxu0 0.0
      %4277 = vmatprep.subr.mxu0 0.0
      %4278 = vmatpush1.msra.mxu0 0.0
      %4279 = vmatprep.subr.mxu0 0.0
      %4280 = vmatpush1.msra.mxu0 0.0
      %4281 = vmatprep.subr.mxu0 0.0
      %4282 = vmatpush1.msra.mxu0 0.0
      %4283 = vmatprep.subr.mxu0 0.0
      %4284 = vmatpush1.msra.mxu0 0.0
      %4285 = vmatprep.subr.mxu0 0.0
      %4286 = vmatpush1.msra.mxu0 0.0
      %4287 = vmatprep.subr.mxu0 0.0
      %4288 = vmatpush1.msra.mxu0 0.0
      %4289 = vmatprep.subr.mxu0 0.0
      %4290 = vmatpush1.msra.mxu0 0.0
      %4291 = vmatprep.subr.mxu0 0.0
      %4292 = vmatpush1.msra.mxu0 0.0
      %4293 = vmatprep.subr.mxu0 0.0
      %4294 = vmatpush1.msra.mxu0 0.0
      %4295 = vmatprep.subr.mxu0 0.0
      %4296 = vmatpush1.msra.mxu0 0.0
      %4297 = vmatprep.subr.mxu0 0.0
      %4298 = vmatpush1.msra.mxu0 0.0
      %4299 = vmatprep.subr.mxu0 0.0
      %4300 = vmatpush1.msra.mxu0 0.0
      %4301 = vmatprep.subr.mxu0 0.0
      %4302 = vmatpush1.msra.mxu0 0.0
      %4303 = vmatprep.subr.mxu0 0.0
      %4304 = vmatpush1.msra.mxu0 %v4266
      %4305 = vmatprep.subr.mxu0 0.0
      %4306 = vmatpush2.msra.mxu0 0.0
      %4307 = vmatprep.subr.mxu0 0.0
      %4308 = vmatpush2.msra.mxu0 0.0
      %4309 = vmatprep.subr.mxu0 0.0
      %4310 = vmatpush2.msra.mxu0 0.0
      %4311 = vmatprep.subr.mxu0 0.0
      %4312 = vmatpush2.msra.mxu0 0.0
      %4313 = vmatprep.subr.mxu0 0.0
      %4314 = vmatpush2.msra.mxu0 0.0
      %4315 = vmatprep.subr.mxu0 0.0
      %4316 = vmatpush2.msra.mxu0 0.0
      %4317 = vmatprep.subr.mxu0 0.0
      %4318 = vmatpush2.msra.mxu0 0.0
      %4319 = vmatprep.subr.mxu0 0.0
      %4320 = vmatpush2.msra.mxu0 0.0
      %4321 = vmatprep.subr.mxu0 0.0
      %4322 = vmatpush2.msra.mxu0 0.0
      %4323 = vmatprep.subr.mxu0 0.0
      %4324 = vmatpush2.msra.mxu0 0.0
      %4325 = vmatprep.subr.mxu0 0.0
      %4326 = vmatpush2.msra.mxu0 0.0
      %4327 = vmatprep.subr.mxu0 0.0
      %4328 = vmatpush2.msra.mxu0 0.0
      %4329 = vmatprep.subr.mxu0 0.0
      %4330 = vmatpush2.msra.mxu0 0.0
      %4331 = vmatprep.subr.mxu0 0.0
      %4332 = vmatpush2.msra.mxu0 0.0
      %4333 = vmatprep.subr.mxu0 0.0
      %4334 = vmatpush2.msra.mxu0 0.0
      %4335 = vmatprep.subr.mxu0 0.0
      %4336 = vmatpush2.msra.mxu0 0.0
      %4337 = vmatprep.mubr.f32.mxu0 0.0
      %4338 = vmatmul.mubr.f32.gmra.mxu0 %v4271
      %v4339 = vpop.f32.mrf.mxu0
      %v4340 = vadd.f32 0.0, %v4339
      %v4341 = vpop.f32.mrf.mxu0
      %4342 = vdwg.mxu0
      %v4344 = vsel %vm876, %v4110, 0
      %4346 = vmatprep.subr.mxu0 0.0
      %4347 = vmatpush1.msra.mxu0 0.0
      %4348 = vmatprep.subr.mxu0 0.0
      %4349 = vmatpush1.msra.mxu0 0.0
      %4350 = vmatprep.subr.mxu0 0.0
      %4351 = vmatpush1.msra.mxu0 0.0
      %4352 = vmatprep.subr.mxu0 0.0
      %4353 = vmatpush1.msra.mxu0 0.0
      %4354 = vmatprep.subr.mxu0 0.0
      %4355 = vmatpush1.msra.mxu0 0.0
      %4356 = vmatprep.subr.mxu0 0.0
      %4357 = vmatpush1.msra.mxu0 0.0
      %4358 = vmatprep.subr.mxu0 0.0
      %4359 = vmatpush1.msra.mxu0 0.0
      %4360 = vmatprep.subr.mxu0 0.0
      %4361 = vmatpush1.msra.mxu0 0.0
      %4362 = vmatprep.subr.mxu0 0.0
      %4363 = vmatpush1.msra.mxu0 0.0
      %4364 = vmatprep.subr.mxu0 0.0
      %4365 = vmatpush1.msra.mxu0 0.0
      %4366 = vmatprep.subr.mxu0 0.0
      %4367 = vmatpush1.msra.mxu0 0.0
      %4368 = vmatprep.subr.mxu0 0.0
      %4369 = vmatpush1.msra.mxu0 0.0
      %4370 = vmatprep.subr.mxu0 0.0
      %4371 = vmatpush1.msra.mxu0 0.0
      %4372 = vmatprep.subr.mxu0 0.0
      %4373 = vmatpush1.msra.mxu0 0.0
      %4374 = vmatprep.subr.mxu0 0.0
      %4375 = vmatpush1.msra.mxu0 0.0
      %4376 = vmatprep.subr.mxu0 0.0
      %4377 = vmatpush1.msra.mxu0 %v4267
      %4378 = vmatprep.subr.mxu0 0.0
      %4379 = vmatpush2.msra.mxu0 0.0
      %4380 = vmatprep.subr.mxu0 0.0
      %4381 = vmatpush2.msra.mxu0 0.0
      %4382 = vmatprep.subr.mxu0 0.0
      %4383 = vmatpush2.msra.mxu0 0.0
      %4384 = vmatprep.subr.mxu0 0.0
      %4385 = vmatpush2.msra.mxu0 0.0
      %4386 = vmatprep.subr.mxu0 0.0
      %4387 = vmatpush2.msra.mxu0 0.0
      %4388 = vmatprep.subr.mxu0 0.0
      %4389 = vmatpush2.msra.mxu0 0.0
      %4390 = vmatprep.subr.mxu0 0.0
      %4391 = vmatpush2.msra.mxu0 0.0
      %4392 = vmatprep.subr.mxu0 0.0
      %4393 = vmatpush2.msra.mxu0 0.0
      %4394 = vmatprep.subr.mxu0 0.0
      %4395 = vmatpush2.msra.mxu0 0.0
      %4396 = vmatprep.subr.mxu0 0.0
      %4397 = vmatpush2.msra.mxu0 0.0
      %4398 = vmatprep.subr.mxu0 0.0
      %4399 = vmatpush2.msra.mxu0 0.0
      %4400 = vmatprep.subr.mxu0 0.0
      %4401 = vmatpush2.msra.mxu0 0.0
      %4402 = vmatprep.subr.mxu0 0.0
      %4403 = vmatpush2.msra.mxu0 0.0
      %4404 = vmatprep.subr.mxu0 0.0
      %4405 = vmatpush2.msra.mxu0 0.0
      %4406 = vmatprep.subr.mxu0 0.0
      %4407 = vmatpush2.msra.mxu0 0.0
      %4408 = vmatprep.subr.mxu0 0.0
      %4409 = vmatpush2.msra.mxu0 0.0
      %4410 = vmatprep.mubr.f32.mxu0 0.0
      %4411 = vmatmul.mubr.f32.gmra.mxu0 %v4344
      %v4412 = vpop.f32.mrf.mxu0
      %v4413 = vadd.f32 0.0, %v4412
      %v4414 = vpop.f32.mrf.mxu0
      %4415 = vdwg.mxu0
      %v4417 = vsel %vm876, %v4186, 0
      %4419 = vmatprep.subr.mxu0 0.0
      %4420 = vmatpush1.msra.mxu0 0.0
      %4421 = vmatprep.subr.mxu0 0.0
      %4422 = vmatpush1.msra.mxu0 0.0
      %4423 = vmatprep.subr.mxu0 0.0
      %4424 = vmatpush1.msra.mxu0 0.0
      %4425 = vmatprep.subr.mxu0 0.0
      %4426 = vmatpush1.msra.mxu0 0.0
      %4427 = vmatprep.subr.mxu0 0.0
      %4428 = vmatpush1.msra.mxu0 0.0
      %4429 = vmatprep.subr.mxu0 0.0
      %4430 = vmatpush1.msra.mxu0 0.0
      %4431 = vmatprep.subr.mxu0 0.0
      %4432 = vmatpush1.msra.mxu0 0.0
      %4433 = vmatprep.subr.mxu0 0.0
      %4434 = vmatpush1.msra.mxu0 0.0
      %4435 = vmatprep.subr.mxu0 0.0
      %4436 = vmatpush1.msra.mxu0 0.0
      %4437 = vmatprep.subr.mxu0 0.0
      %4438 = vmatpush1.msra.mxu0 0.0
      %4439 = vmatprep.subr.mxu0 0.0
      %4440 = vmatpush1.msra.mxu0 0.0
      %4441 = vmatprep.subr.mxu0 0.0
      %4442 = vmatpush1.msra.mxu0 0.0
      %4443 = vmatprep.subr.mxu0 0.0
      %4444 = vmatpush1.msra.mxu0 0.0
      %4445 = vmatprep.subr.mxu0 0.0
      %4446 = vmatpush1.msra.mxu0 0.0
      %4447 = vmatprep.subr.mxu0 0.0
      %4448 = vmatpush1.msra.mxu0 0.0
      %4449 = vmatprep.subr.mxu0 0.0
      %4450 = vmatpush1.msra.mxu0 %v4268
      %4451 = vmatprep.subr.mxu0 0.0
      %4452 = vmatpush2.msra.mxu0 0.0
      %4453 = vmatprep.subr.mxu0 0.0
      %4454 = vmatpush2.msra.mxu0 0.0
      %4455 = vmatprep.subr.mxu0 0.0
      %4456 = vmatpush2.msra.mxu0 0.0
      %4457 = vmatprep.subr.mxu0 0.0
      %4458 = vmatpush2.msra.mxu0 0.0
      %4459 = vmatprep.subr.mxu0 0.0
      %4460 = vmatpush2.msra.mxu0 0.0
      %4461 = vmatprep.subr.mxu0 0.0
      %4462 = vmatpush2.msra.mxu0 0.0
      %4463 = vmatprep.subr.mxu0 0.0
      %4464 = vmatpush2.msra.mxu0 0.0
      %4465 = vmatprep.subr.mxu0 0.0
      %4466 = vmatpush2.msra.mxu0 0.0
      %4467 = vmatprep.subr.mxu0 0.0
      %4468 = vmatpush2.msra.mxu0 0.0
      %4469 = vmatprep.subr.mxu0 0.0
      %4470 = vmatpush2.msra.mxu0 0.0
      %4471 = vmatprep.subr.mxu0 0.0
      %4472 = vmatpush2.msra.mxu0 0.0
      %4473 = vmatprep.subr.mxu0 0.0
      %4474 = vmatpush2.msra.mxu0 0.0
      %4475 = vmatprep.subr.mxu0 0.0
      %4476 = vmatpush2.msra.mxu0 0.0
      %4477 = vmatprep.subr.mxu0 0.0
      %4478 = vmatpush2.msra.mxu0 0.0
      %4479 = vmatprep.subr.mxu0 0.0
      %4480 = vmatpush2.msra.mxu0 0.0
      %4481 = vmatprep.subr.mxu0 0.0
      %4482 = vmatpush2.msra.mxu0 0.0
      %4483 = vmatprep.mubr.f32.mxu0 0.0
      %4484 = vmatmul.mubr.f32.gmra.mxu0 %v4417
      %v4485 = vpop.f32.mrf.mxu0
      %v4486 = vadd.f32 0.0, %v4485
      %v4487 = vpop.f32.mrf.mxu0
      %4488 = vdwg.mxu0
      %v4490 = vsel %vm876, %v4262, 0
      %4492 = vmatprep.subr.mxu0 0.0
      %4493 = vmatpush1.msra.mxu0 0.0
      %4494 = vmatprep.subr.mxu0 0.0
      %4495 = vmatpush1.msra.mxu0 0.0
      %4496 = vmatprep.subr.mxu0 0.0
      %4497 = vmatpush1.msra.mxu0 0.0
      %4498 = vmatprep.subr.mxu0 0.0
      %4499 = vmatpush1.msra.mxu0 0.0
      %4500 = vmatprep.subr.mxu0 0.0
      %4501 = vmatpush1.msra.mxu0 0.0
      %4502 = vmatprep.subr.mxu0 0.0
      %4503 = vmatpush1.msra.mxu0 0.0
      %4504 = vmatprep.subr.mxu0 0.0
      %4505 = vmatpush1.msra.mxu0 0.0
      %4506 = vmatprep.subr.mxu0 0.0
      %4507 = vmatpush1.msra.mxu0 0.0
      %4508 = vmatprep.subr.mxu0 0.0
      %4509 = vmatpush1.msra.mxu0 0.0
      %4510 = vmatprep.subr.mxu0 0.0
      %4511 = vmatpush1.msra.mxu0 0.0
      %4512 = vmatprep.subr.mxu0 0.0
      %4513 = vmatpush1.msra.mxu0 0.0
      %4514 = vmatprep.subr.mxu0 0.0
      %4515 = vmatpush1.msra.mxu0 0.0
      %4516 = vmatprep.subr.mxu0 0.0
      %4517 = vmatpush1.msra.mxu0 0.0
      %4518 = vmatprep.subr.mxu0 0.0
      %4519 = vmatpush1.msra.mxu0 0.0
      %4520 = vmatprep.subr.mxu0 0.0
      %4521 = vmatpush1.msra.mxu0 0.0
      %4522 = vmatprep.subr.mxu0 0.0
      %4523 = vmatpush1.msra.mxu0 %v4269
      %4524 = vmatprep.subr.mxu0 0.0
      %4525 = vmatpush2.msra.mxu0 0.0
      %4526 = vmatprep.subr.mxu0 0.0
      %4527 = vmatpush2.msra.mxu0 0.0
      %4528 = vmatprep.subr.mxu0 0.0
      %4529 = vmatpush2.msra.mxu0 0.0
      %4530 = vmatprep.subr.mxu0 0.0
      %4531 = vmatpush2.msra.mxu0 0.0
      %4532 = vmatprep.subr.mxu0 0.0
      %4533 = vmatpush2.msra.mxu0 0.0
      %4534 = vmatprep.subr.mxu0 0.0
      %4535 = vmatpush2.msra.mxu0 0.0
      %4536 = vmatprep.subr.mxu0 0.0
      %4537 = vmatpush2.msra.mxu0 0.0
      %4538 = vmatprep.subr.mxu0 0.0
      %4539 = vmatpush2.msra.mxu0 0.0
      %4540 = vmatprep.subr.mxu0 0.0
      %4541 = vmatpush2.msra.mxu0 0.0
      %4542 = vmatprep.subr.mxu0 0.0
      %4543 = vmatpush2.msra.mxu0 0.0
      %4544 = vmatprep.subr.mxu0 0.0
      %4545 = vmatpush2.msra.mxu0 0.0
      %4546 = vmatprep.subr.mxu0 0.0
      %4547 = vmatpush2.msra.mxu0 0.0
      %4548 = vmatprep.subr.mxu0 0.0
      %4549 = vmatpush2.msra.mxu0 0.0
      %4550 = vmatprep.subr.mxu0 0.0
      %4551 = vmatpush2.msra.mxu0 0.0
      %4552 = vmatprep.subr.mxu0 0.0
      %4553 = vmatpush2.msra.mxu0 0.0
      %4554 = vmatprep.subr.mxu0 0.0
      %4555 = vmatpush2.msra.mxu0 0.0
      %4556 = vmatprep.mubr.f32.mxu0 0.0
      %4557 = vmatmul.mubr.f32.gmra.mxu0 %v4490
      %v4558 = vpop.f32.mrf.mxu0
      %v4559 = vadd.f32 0.0, %v4558
      %v4560 = vpop.f32.mrf.mxu0
      %4561 = vdwg.mxu0
      %v4562 = vsel %vm585, %v4340, 0.0
      %v4563 = vsel %vm585, %v4413, 0.0
      %v4564 = vadd.f32 %v4562, %v4563
      %v4565 = vsel %vm585, %v4486, 0.0
      %v4566 = vadd.f32 %v4564, %v4565
      %v4567 = vsel %vm585, %v4559, 0.0
      %v4568 = vadd.f32 %v4566, %v4567
      %s4569 = scalar_lea.vmem %s7, 1
      %v4570 = vld [vmem:[%s4569] sm:$0x1]
      %v4572 = vlaneseq
      %v4573 = vshrl.u32 %v4572, 7
      %v4574 = vsub.s32 0, %v4573
      %v4575 = vrot.slane %v4570, %v4574
      %v4577 = vadd.f32 %v4568, %v4575
      %v4578 = vadd.f32 %v3271, %v4577
      %v4579 = vsel %vm585, %v4578, 0.0
      %4580 = vadd.xlane.f32.xlu0 %v4579
      %v4581 = vpop.xlane.xlu0 %4580
      %v4582 = vmul.f32 %v4581, %v1849
      %v4583 = vsub.f32 %v4578, %v4582
      %v4584 = vmul.f32 %v4583, %v4583
      %v4585 = vsel %vm585, %v4584, 0.0
      %4586 = vadd.xlane.f32.xlu0 %v4585
      %v4587 = vpop.xlane.xlu0 %4586
      %v4588 = vmul.f32 %v4587, %v1849
      %v4589 = vadd.f32 %v4588, 1e-05
      %v4590 = vrsqrt.pop %v4589
      %v4591 = vmul.f32 %v4583, %v4590
      %s4592 = scalar_lea.vmem %s8, 1
      %v4593 = vld [vmem:[%s4592] sm:$0x1]
      %v4595 = vlaneseq
      %v4596 = vshrl.u32 %v4595, 7
      %v4597 = vsub.s32 0, %v4596
      %v4598 = vrot.slane %v4593, %v4597
      %v4600 = vmul.f32 %v4591, %v4598
      %s4601 = scalar_lea.vmem %s9, 1
      %v4602 = vld [vmem:[%s4601] sm:$0x1]
      %v4604 = vlaneseq
      %v4605 = vshrl.u32 %v4604, 7
      %v4606 = vsub.s32 0, %v4605
      %v4607 = vrot.slane %v4602, %v4606
      %v4609 = vadd.f32 %v4600, %v4607
      %s4610 = scalar_lea.vmem %s10, 512
      %v4611 = vld [vmem:[%s4610] sm:$0xff]
      %v4612 = vld [vmem:[%s4610 + $0x8] sm:$0xff]
      %v4613 = vld [vmem:[%s4610 + $0x10] sm:$0xff]
      %v4614 = vld [vmem:[%s4610 + $0x18] sm:$0xff]
      %v4615 = vld [vmem:[%s4610 + $0x20] sm:$0xff]
      %v4616 = vld [vmem:[%s4610 + $0x28] sm:$0xff]
      %v4617 = vld [vmem:[%s4610 + $0x30] sm:$0xff]
      %v4618 = vld [vmem:[%s4610 + $0x38] sm:$0xff]
      %v4619 = vld [vmem:[%s4610 + $0x40] sm:$0xff]
      %v4620 = vld [vmem:[%s4610 + $0x48] sm:$0xff]
      %v4621 = vld [vmem:[%s4610 + $0x50] sm:$0xff]
      %v4622 = vld [vmem:[%s4610 + $0x58] sm:$0xff]
      %v4623 = vld [vmem:[%s4610 + $0x60] sm:$0xff]
      %v4624 = vld [vmem:[%s4610 + $0x68] sm:$0xff]
      %v4625 = vld [vmem:[%s4610 + $0x70] sm:$0xff]
      %v4626 = vld [vmem:[%s4610 + $0x78] sm:$0xff]
      %v4627 = vld [vmem:[%s4610 + $0x80] sm:$0xff]
      %v4628 = vld [vmem:[%s4610 + $0x88] sm:$0xff]
      %v4629 = vld [vmem:[%s4610 + $0x90] sm:$0xff]
      %v4630 = vld [vmem:[%s4610 + $0x98] sm:$0xff]
      %v4631 = vld [vmem:[%s4610 + $0xa0] sm:$0xff]
      %v4632 = vld [vmem:[%s4610 + $0xa8] sm:$0xff]
      %v4633 = vld [vmem:[%s4610 + $0xb0] sm:$0xff]
      %v4634 = vld [vmem:[%s4610 + $0xb8] sm:$0xff]
      %v4635 = vld [vmem:[%s4610 + $0xc0] sm:$0xff]
      %v4636 = vld [vmem:[%s4610 + $0xc8] sm:$0xff]
      %v4637 = vld [vmem:[%s4610 + $0xd0] sm:$0xff]
      %v4638 = vld [vmem:[%s4610 + $0xd8] sm:$0xff]
      %v4639 = vld [vmem:[%s4610 + $0xe0] sm:$0xff]
      %v4640 = vld [vmem:[%s4610 + $0xe8] sm:$0xff]
      %v4641 = vld [vmem:[%s4610 + $0xf0] sm:$0xff]
      %v4642 = vld [vmem:[%s4610 + $0xf8] sm:$0xff]
      %v4643 = vld [vmem:[%s4610 + $0x100] sm:$0xff]
      %v4644 = vld [vmem:[%s4610 + $0x108] sm:$0xff]
      %v4645 = vld [vmem:[%s4610 + $0x110] sm:$0xff]
      %v4646 = vld [vmem:[%s4610 + $0x118] sm:$0xff]
      %v4647 = vld [vmem:[%s4610 + $0x120] sm:$0xff]
      %v4648 = vld [vmem:[%s4610 + $0x128] sm:$0xff]
      %v4649 = vld [vmem:[%s4610 + $0x130] sm:$0xff]
      %v4650 = vld [vmem:[%s4610 + $0x138] sm:$0xff]
      %v4651 = vld [vmem:[%s4610 + $0x140] sm:$0xff]
      %v4652 = vld [vmem:[%s4610 + $0x148] sm:$0xff]
      %v4653 = vld [vmem:[%s4610 + $0x150] sm:$0xff]
      %v4654 = vld [vmem:[%s4610 + $0x158] sm:$0xff]
      %v4655 = vld [vmem:[%s4610 + $0x160] sm:$0xff]
      %v4656 = vld [vmem:[%s4610 + $0x168] sm:$0xff]
      %v4657 = vld [vmem:[%s4610 + $0x170] sm:$0xff]
      %v4658 = vld [vmem:[%s4610 + $0x178] sm:$0xff]
      %v4659 = vld [vmem:[%s4610 + $0x180] sm:$0xff]
      %v4660 = vld [vmem:[%s4610 + $0x188] sm:$0xff]
      %v4661 = vld [vmem:[%s4610 + $0x190] sm:$0xff]
      %v4662 = vld [vmem:[%s4610 + $0x198] sm:$0xff]
      %v4663 = vld [vmem:[%s4610 + $0x1a0] sm:$0xff]
      %v4664 = vld [vmem:[%s4610 + $0x1a8] sm:$0xff]
      %v4665 = vld [vmem:[%s4610 + $0x1b0] sm:$0xff]
      %v4666 = vld [vmem:[%s4610 + $0x1b8] sm:$0xff]
      %v4667 = vld [vmem:[%s4610 + $0x1c0] sm:$0xff]
      %v4668 = vld [vmem:[%s4610 + $0x1c8] sm:$0xff]
      %v4669 = vld [vmem:[%s4610 + $0x1d0] sm:$0xff]
      %v4670 = vld [vmem:[%s4610 + $0x1d8] sm:$0xff]
      %v4671 = vld [vmem:[%s4610 + $0x1e0] sm:$0xff]
      %v4672 = vld [vmem:[%s4610 + $0x1e8] sm:$0xff]
      %v4673 = vld [vmem:[%s4610 + $0x1f0] sm:$0xff]
      %v4674 = vld [vmem:[%s4610 + $0x1f8] sm:$0xff]
      %s4675 = scalar_lea.vmem %s11, 16
      %v4676 = vld [vmem:[%s4675] sm:$0xff]
      %v4677 = vld [vmem:[%s4675 + $0x8] sm:$0xff]
      %v4680 = vlaneseq
      %v4681 = vshrl.u32 %v4680, 7
      %v4682 = vsub.s32 0, %v4681
      %v4683 = vrot.slane %v4676, %v4682
      %v4684 = vlaneseq
      %v4685 = vshrl.u32 %v4684, 7
      %v4686 = vsub.s32 1, %v4685
      %v4687 = vrot.slane %v4676, %v4686
      %v4688 = vlaneseq
      %v4689 = vshrl.u32 %v4688, 7
      %v4690 = vsub.s32 2, %v4689
      %v4691 = vrot.slane %v4676, %v4690
      %v4692 = vlaneseq
      %v4693 = vshrl.u32 %v4692, 7
      %v4694 = vsub.s32 3, %v4693
      %v4695 = vrot.slane %v4676, %v4694
      %v4696 = vlaneseq
      %v4697 = vshrl.u32 %v4696, 7
      %v4698 = vsub.s32 4, %v4697
      %v4699 = vrot.slane %v4676, %v4698
      %v4700 = vlaneseq
      %v4701 = vshrl.u32 %v4700, 7
      %v4702 = vsub.s32 5, %v4701
      %v4703 = vrot.slane %v4676, %v4702
      %v4704 = vlaneseq
      %v4705 = vshrl.u32 %v4704, 7
      %v4706 = vsub.s32 6, %v4705
      %v4707 = vrot.slane %v4676, %v4706
      %v4708 = vlaneseq
      %v4709 = vshrl.u32 %v4708, 7
      %v4710 = vsub.s32 7, %v4709
      %v4711 = vrot.slane %v4676, %v4710
      %v4712 = vlaneseq
      %v4713 = vshrl.u32 %v4712, 7
      %v4714 = vsub.s32 0, %v4713
      %v4715 = vrot.slane %v4677, %v4714
      %v4716 = vlaneseq
      %v4717 = vshrl.u32 %v4716, 7
      %v4718 = vsub.s32 1, %v4717
      %v4719 = vrot.slane %v4677, %v4718
      %v4720 = vlaneseq
      %v4721 = vshrl.u32 %v4720, 7
      %v4722 = vsub.s32 2, %v4721
      %v4723 = vrot.slane %v4677, %v4722
      %v4724 = vlaneseq
      %v4725 = vshrl.u32 %v4724, 7
      %v4726 = vsub.s32 3, %v4725
      %v4727 = vrot.slane %v4677, %v4726
      %v4728 = vlaneseq
      %v4729 = vshrl.u32 %v4728, 7
      %v4730 = vsub.s32 4, %v4729
      %v4731 = vrot.slane %v4677, %v4730
      %v4732 = vlaneseq
      %v4733 = vshrl.u32 %v4732, 7
      %v4734 = vsub.s32 5, %v4733
      %v4735 = vrot.slane %v4677, %v4734
      %v4736 = vlaneseq
      %v4737 = vshrl.u32 %v4736, 7
      %v4738 = vsub.s32 6, %v4737
      %v4739 = vrot.slane %v4677, %v4738
      %v4740 = vlaneseq
      %v4741 = vshrl.u32 %v4740, 7
      %v4742 = vsub.s32 7, %v4741
      %v4743 = vrot.slane %v4677, %v4742
      %v4761 = vsel %vm585, %v4609, 0
      %4763 = vmatprep.subr.mxu0 0.0
      %4764 = vmatpush1.msra.mxu0 0.0
      %4765 = vmatprep.subr.mxu0 0.0
      %4766 = vmatpush1.msra.mxu0 0.0
      %4767 = vmatprep.subr.mxu0 0.0
      %4768 = vmatpush1.msra.mxu0 0.0
      %4769 = vmatprep.subr.mxu0 0.0
      %4770 = vmatpush1.msra.mxu0 0.0
      %4771 = vmatprep.subr.mxu0 0.0
      %4772 = vmatpush1.msra.mxu0 0.0
      %4773 = vmatprep.subr.mxu0 0.0
      %4774 = vmatpush1.msra.mxu0 0.0
      %4775 = vmatprep.subr.mxu0 0.0
      %4776 = vmatpush1.msra.mxu0 0.0
      %4777 = vmatprep.subr.mxu0 0.0
      %4778 = vmatpush1.msra.mxu0 0.0
      %4779 = vmatprep.subr.mxu0 0.0
      %4780 = vmatpush1.msra.mxu0 0.0
      %4781 = vmatprep.subr.mxu0 0.0
      %4782 = vmatpush1.msra.mxu0 0.0
      %4783 = vmatprep.subr.mxu0 0.0
      %4784 = vmatpush1.msra.mxu0 0.0
      %4785 = vmatprep.subr.mxu0 0.0
      %4786 = vmatpush1.msra.mxu0 0.0
      %4787 = vmatprep.subr.mxu0 %v4660
      %4788 = vmatpush1.msra.mxu0 %v4659
      %4789 = vmatprep.subr.mxu0 %v4644
      %4790 = vmatpush1.msra.mxu0 %v4643
      %4791 = vmatprep.subr.mxu0 %v4628
      %4792 = vmatpush1.msra.mxu0 %v4627
      %4793 = vmatprep.subr.mxu0 %v4612
      %4794 = vmatpush1.msra.mxu0 %v4611
      %4795 = vmatprep.subr.mxu0 0.0
      %4796 = vmatpush2.msra.mxu0 0.0
      %4797 = vmatprep.subr.mxu0 0.0
      %4798 = vmatpush2.msra.mxu0 0.0
      %4799 = vmatprep.subr.mxu0 0.0
      %4800 = vmatpush2.msra.mxu0 0.0
      %4801 = vmatprep.subr.mxu0 0.0
      %4802 = vmatpush2.msra.mxu0 0.0
      %4803 = vmatprep.subr.mxu0 0.0
      %4804 = vmatpush2.msra.mxu0 0.0
      %4805 = vmatprep.subr.mxu0 0.0
      %4806 = vmatpush2.msra.mxu0 0.0
      %4807 = vmatprep.subr.mxu0 0.0
      %4808 = vmatpush2.msra.mxu0 0.0
      %4809 = vmatprep.subr.mxu0 0.0
      %4810 = vmatpush2.msra.mxu0 0.0
      %4811 = vmatprep.subr.mxu0 0.0
      %4812 = vmatpush2.msra.mxu0 0.0
      %4813 = vmatprep.subr.mxu0 0.0
      %4814 = vmatpush2.msra.mxu0 0.0
      %4815 = vmatprep.subr.mxu0 0.0
      %4816 = vmatpush2.msra.mxu0 0.0
      %4817 = vmatprep.subr.mxu0 0.0
      %4818 = vmatpush2.msra.mxu0 0.0
      %4819 = vmatprep.subr.mxu0 0.0
      %4820 = vmatpush2.msra.mxu0 0.0
      %4821 = vmatprep.subr.mxu0 0.0
      %4822 = vmatpush2.msra.mxu0 0.0
      %4823 = vmatprep.subr.mxu0 0.0
      %4824 = vmatpush2.msra.mxu0 0.0
      %4825 = vmatprep.subr.mxu0 0.0
      %4826 = vmatpush2.msra.mxu0 0.0
      %4827 = vmatprep.mubr.f32.mxu0 0.0
      %4828 = vmatmul.mubr.f32.gmra.mxu0 %v4761
      %v4829 = vpop.f32.mrf.mxu0
      %v4830 = vadd.f32 %v4683, %v4829
      %v4831 = vpop.f32.mrf.mxu0
      %v4832 = vadd.f32 %v4687, %v4831
      %4833 = vdwg.mxu0
      %4834 = vmatprep.subr.mxu0 0.0
      %4835 = vmatpush1.msra.mxu0 0.0
      %4836 = vmatprep.subr.mxu0 0.0
      %4837 = vmatpush1.msra.mxu0 0.0
      %4838 = vmatprep.subr.mxu0 0.0
      %4839 = vmatpush1.msra.mxu0 0.0
      %4840 = vmatprep.subr.mxu0 0.0
      %4841 = vmatpush1.msra.mxu0 0.0
      %4842 = vmatprep.subr.mxu0 0.0
      %4843 = vmatpush1.msra.mxu0 0.0
      %4844 = vmatprep.subr.mxu0 0.0
      %4845 = vmatpush1.msra.mxu0 0.0
      %4846 = vmatprep.subr.mxu0 0.0
      %4847 = vmatpush1.msra.mxu0 0.0
      %4848 = vmatprep.subr.mxu0 0.0
      %4849 = vmatpush1.msra.mxu0 0.0
      %4850 = vmatprep.subr.mxu0 0.0
      %4851 = vmatpush1.msra.mxu0 0.0
      %4852 = vmatprep.subr.mxu0 0.0
      %4853 = vmatpush1.msra.mxu0 0.0
      %4854 = vmatprep.subr.mxu0 0.0
      %4855 = vmatpush1.msra.mxu0 0.0
      %4856 = vmatprep.subr.mxu0 0.0
      %4857 = vmatpush1.msra.mxu0 0.0
      %4858 = vmatprep.subr.mxu0 %v4662
      %4859 = vmatpush1.msra.mxu0 %v4661
      %4860 = vmatprep.subr.mxu0 %v4646
      %4861 = vmatpush1.msra.mxu0 %v4645
      %4862 = vmatprep.subr.mxu0 %v4630
      %4863 = vmatpush1.msra.mxu0 %v4629
      %4864 = vmatprep.subr.mxu0 %v4614
      %4865 = vmatpush1.msra.mxu0 %v4613
      %4866 = vmatprep.subr.mxu0 0.0
      %4867 = vmatpush2.msra.mxu0 0.0
      %4868 = vmatprep.subr.mxu0 0.0
      %4869 = vmatpush2.msra.mxu0 0.0
      %4870 = vmatprep.subr.mxu0 0.0
      %4871 = vmatpush2.msra.mxu0 0.0
      %4872 = vmatprep.subr.mxu0 0.0
      %4873 = vmatpush2.msra.mxu0 0.0
      %4874 = vmatprep.subr.mxu0 0.0
      %4875 = vmatpush2.msra.mxu0 0.0
      %4876 = vmatprep.subr.mxu0 0.0
      %4877 = vmatpush2.msra.mxu0 0.0
      %4878 = vmatprep.subr.mxu0 0.0
      %4879 = vmatpush2.msra.mxu0 0.0
      %4880 = vmatprep.subr.mxu0 0.0
      %4881 = vmatpush2.msra.mxu0 0.0
      %4882 = vmatprep.subr.mxu0 0.0
      %4883 = vmatpush2.msra.mxu0 0.0
      %4884 = vmatprep.subr.mxu0 0.0
      %4885 = vmatpush2.msra.mxu0 0.0
      %4886 = vmatprep.subr.mxu0 0.0
      %4887 = vmatpush2.msra.mxu0 0.0
      %4888 = vmatprep.subr.mxu0 0.0
      %4889 = vmatpush2.msra.mxu0 0.0
      %4890 = vmatprep.subr.mxu0 0.0
      %4891 = vmatpush2.msra.mxu0 0.0
      %4892 = vmatprep.subr.mxu0 0.0
      %4893 = vmatpush2.msra.mxu0 0.0
      %4894 = vmatprep.subr.mxu0 0.0
      %4895 = vmatpush2.msra.mxu0 0.0
      %4896 = vmatprep.subr.mxu0 0.0
      %4897 = vmatpush2.msra.mxu0 0.0
      %4898 = vmatprep.mubr.f32.mxu0 0.0
      %4899 = vmatmul.mubr.f32.gmra.mxu0 %v4761
      %v4900 = vpop.f32.mrf.mxu0
      %v4901 = vadd.f32 %v4691, %v4900
      %v4902 = vpop.f32.mrf.mxu0
      %v4903 = vadd.f32 %v4695, %v4902
      %4904 = vdwg.mxu0
      %4905 = vmatprep.subr.mxu0 0.0
      %4906 = vmatpush1.msra.mxu0 0.0
      %4907 = vmatprep.subr.mxu0 0.0
      %4908 = vmatpush1.msra.mxu0 0.0
      %4909 = vmatprep.subr.mxu0 0.0
      %4910 = vmatpush1.msra.mxu0 0.0
      %4911 = vmatprep.subr.mxu0 0.0
      %4912 = vmatpush1.msra.mxu0 0.0
      %4913 = vmatprep.subr.mxu0 0.0
      %4914 = vmatpush1.msra.mxu0 0.0
      %4915 = vmatprep.subr.mxu0 0.0
      %4916 = vmatpush1.msra.mxu0 0.0
      %4917 = vmatprep.subr.mxu0 0.0
      %4918 = vmatpush1.msra.mxu0 0.0
      %4919 = vmatprep.subr.mxu0 0.0
      %4920 = vmatpush1.msra.mxu0 0.0
      %4921 = vmatprep.subr.mxu0 0.0
      %4922 = vmatpush1.msra.mxu0 0.0
      %4923 = vmatprep.subr.mxu0 0.0
      %4924 = vmatpush1.msra.mxu0 0.0
      %4925 = vmatprep.subr.mxu0 0.0
      %4926 = vmatpush1.msra.mxu0 0.0
      %4927 = vmatprep.subr.mxu0 0.0
      %4928 = vmatpush1.msra.mxu0 0.0
      %4929 = vmatprep.subr.mxu0 %v4664
      %4930 = vmatpush1.msra.mxu0 %v4663
      %4931 = vmatprep.subr.mxu0 %v4648
      %4932 = vmatpush1.msra.mxu0 %v4647
      %4933 = vmatprep.subr.mxu0 %v4632
      %4934 = vmatpush1.msra.mxu0 %v4631
      %4935 = vmatprep.subr.mxu0 %v4616
      %4936 = vmatpush1.msra.mxu0 %v4615
      %4937 = vmatprep.subr.mxu0 0.0
      %4938 = vmatpush2.msra.mxu0 0.0
      %4939 = vmatprep.subr.mxu0 0.0
      %4940 = vmatpush2.msra.mxu0 0.0
      %4941 = vmatprep.subr.mxu0 0.0
      %4942 = vmatpush2.msra.mxu0 0.0
      %4943 = vmatprep.subr.mxu0 0.0
      %4944 = vmatpush2.msra.mxu0 0.0
      %4945 = vmatprep.subr.mxu0 0.0
      %4946 = vmatpush2.msra.mxu0 0.0
      %4947 = vmatprep.subr.mxu0 0.0
      %4948 = vmatpush2.msra.mxu0 0.0
      %4949 = vmatprep.subr.mxu0 0.0
      %4950 = vmatpush2.msra.mxu0 0.0
      %4951 = vmatprep.subr.mxu0 0.0
      %4952 = vmatpush2.msra.mxu0 0.0
      %4953 = vmatprep.subr.mxu0 0.0
      %4954 = vmatpush2.msra.mxu0 0.0
      %4955 = vmatprep.subr.mxu0 0.0
      %4956 = vmatpush2.msra.mxu0 0.0
      %4957 = vmatprep.subr.mxu0 0.0
      %4958 = vmatpush2.msra.mxu0 0.0
      %4959 = vmatprep.subr.mxu0 0.0
      %4960 = vmatpush2.msra.mxu0 0.0
      %4961 = vmatprep.subr.mxu0 0.0
      %4962 = vmatpush2.msra.mxu0 0.0
      %4963 = vmatprep.subr.mxu0 0.0
      %4964 = vmatpush2.msra.mxu0 0.0
      %4965 = vmatprep.subr.mxu0 0.0
      %4966 = vmatpush2.msra.mxu0 0.0
      %4967 = vmatprep.subr.mxu0 0.0
      %4968 = vmatpush2.msra.mxu0 0.0
      %4969 = vmatprep.mubr.f32.mxu0 0.0
      %4970 = vmatmul.mubr.f32.gmra.mxu0 %v4761
      %v4971 = vpop.f32.mrf.mxu0
      %v4972 = vadd.f32 %v4699, %v4971
      %v4973 = vpop.f32.mrf.mxu0
      %v4974 = vadd.f32 %v4703, %v4973
      %4975 = vdwg.mxu0
      %4976 = vmatprep.subr.mxu0 0.0
      %4977 = vmatpush1.msra.mxu0 0.0
      %4978 = vmatprep.subr.mxu0 0.0
      %4979 = vmatpush1.msra.mxu0 0.0
      %4980 = vmatprep.subr.mxu0 0.0
      %4981 = vmatpush1.msra.mxu0 0.0
      %4982 = vmatprep.subr.mxu0 0.0
      %4983 = vmatpush1.msra.mxu0 0.0
      %4984 = vmatprep.subr.mxu0 0.0
      %4985 = vmatpush1.msra.mxu0 0.0
      %4986 = vmatprep.subr.mxu0 0.0
      %4987 = vmatpush1.msra.mxu0 0.0
      %4988 = vmatprep.subr.mxu0 0.0
      %4989 = vmatpush1.msra.mxu0 0.0
      %4990 = vmatprep.subr.mxu0 0.0
      %4991 = vmatpush1.msra.mxu0 0.0
      %4992 = vmatprep.subr.mxu0 0.0
      %4993 = vmatpush1.msra.mxu0 0.0
      %4994 = vmatprep.subr.mxu0 0.0
      %4995 = vmatpush1.msra.mxu0 0.0
      %4996 = vmatprep.subr.mxu0 0.0
      %4997 = vmatpush1.msra.mxu0 0.0
      %4998 = vmatprep.subr.mxu0 0.0
      %4999 = vmatpush1.msra.mxu0 0.0
      %5000 = vmatprep.subr.mxu0 %v4666
      %5001 = vmatpush1.msra.mxu0 %v4665
      %5002 = vmatprep.subr.mxu0 %v4650
      %5003 = vmatpush1.msra.mxu0 %v4649
      %5004 = vmatprep.subr.mxu0 %v4634
      %5005 = vmatpush1.msra.mxu0 %v4633
      %5006 = vmatprep.subr.mxu0 %v4618
      %5007 = vmatpush1.msra.mxu0 %v4617
      %5008 = vmatprep.subr.mxu0 0.0
      %5009 = vmatpush2.msra.mxu0 0.0
      %5010 = vmatprep.subr.mxu0 0.0
      %5011 = vmatpush2.msra.mxu0 0.0
      %5012 = vmatprep.subr.mxu0 0.0
      %5013 = vmatpush2.msra.mxu0 0.0
      %5014 = vmatprep.subr.mxu0 0.0
      %5015 = vmatpush2.msra.mxu0 0.0
      %5016 = vmatprep.subr.mxu0 0.0
      %5017 = vmatpush2.msra.mxu0 0.0
      %5018 = vmatprep.subr.mxu0 0.0
      %5019 = vmatpush2.msra.mxu0 0.0
      %5020 = vmatprep.subr.mxu0 0.0
      %5021 = vmatpush2.msra.mxu0 0.0
      %5022 = vmatprep.subr.mxu0 0.0
      %5023 = vmatpush2.msra.mxu0 0.0
      %5024 = vmatprep.subr.mxu0 0.0
      %5025 = vmatpush2.msra.mxu0 0.0
      %5026 = vmatprep.subr.mxu0 0.0
      %5027 = vmatpush2.msra.mxu0 0.0
      %5028 = vmatprep.subr.mxu0 0.0
      %5029 = vmatpush2.msra.mxu0 0.0
      %5030 = vmatprep.subr.mxu0 0.0
      %5031 = vmatpush2.msra.mxu0 0.0
      %5032 = vmatprep.subr.mxu0 0.0
      %5033 = vmatpush2.msra.mxu0 0.0
      %5034 = vmatprep.subr.mxu0 0.0
      %5035 = vmatpush2.msra.mxu0 0.0
      %5036 = vmatprep.subr.mxu0 0.0
      %5037 = vmatpush2.msra.mxu0 0.0
      %5038 = vmatprep.subr.mxu0 0.0
      %5039 = vmatpush2.msra.mxu0 0.0
      %5040 = vmatprep.mubr.f32.mxu0 0.0
      %5041 = vmatmul.mubr.f32.gmra.mxu0 %v4761
      %v5042 = vpop.f32.mrf.mxu0
      %v5043 = vadd.f32 %v4707, %v5042
      %v5044 = vpop.f32.mrf.mxu0
      %v5045 = vadd.f32 %v4711, %v5044
      %5046 = vdwg.mxu0
      %5047 = vmatprep.subr.mxu0 0.0
      %5048 = vmatpush1.msra.mxu0 0.0
      %5049 = vmatprep.subr.mxu0 0.0
      %5050 = vmatpush1.msra.mxu0 0.0
      %5051 = vmatprep.subr.mxu0 0.0
      %5052 = vmatpush1.msra.mxu0 0.0
      %5053 = vmatprep.subr.mxu0 0.0
      %5054 = vmatpush1.msra.mxu0 0.0
      %5055 = vmatprep.subr.mxu0 0.0
      %5056 = vmatpush1.msra.mxu0 0.0
      %5057 = vmatprep.subr.mxu0 0.0
      %5058 = vmatpush1.msra.mxu0 0.0
      %5059 = vmatprep.subr.mxu0 0.0
      %5060 = vmatpush1.msra.mxu0 0.0
      %5061 = vmatprep.subr.mxu0 0.0
      %5062 = vmatpush1.msra.mxu0 0.0
      %5063 = vmatprep.subr.mxu0 0.0
      %5064 = vmatpush1.msra.mxu0 0.0
      %5065 = vmatprep.subr.mxu0 0.0
      %5066 = vmatpush1.msra.mxu0 0.0
      %5067 = vmatprep.subr.mxu0 0.0
      %5068 = vmatpush1.msra.mxu0 0.0
      %5069 = vmatprep.subr.mxu0 0.0
      %5070 = vmatpush1.msra.mxu0 0.0
      %5071 = vmatprep.subr.mxu0 %v4668
      %5072 = vmatpush1.msra.mxu0 %v4667
      %5073 = vmatprep.subr.mxu0 %v4652
      %5074 = vmatpush1.msra.mxu0 %v4651
      %5075 = vmatprep.subr.mxu0 %v4636
      %5076 = vmatpush1.msra.mxu0 %v4635
      %5077 = vmatprep.subr.mxu0 %v4620
      %5078 = vmatpush1.msra.mxu0 %v4619
      %5079 = vmatprep.subr.mxu0 0.0
      %5080 = vmatpush2.msra.mxu0 0.0
      %5081 = vmatprep.subr.mxu0 0.0
      %5082 = vmatpush2.msra.mxu0 0.0
      %5083 = vmatprep.subr.mxu0 0.0
      %5084 = vmatpush2.msra.mxu0 0.0
      %5085 = vmatprep.subr.mxu0 0.0
      %5086 = vmatpush2.msra.mxu0 0.0
      %5087 = vmatprep.subr.mxu0 0.0
      %5088 = vmatpush2.msra.mxu0 0.0
      %5089 = vmatprep.subr.mxu0 0.0
      %5090 = vmatpush2.msra.mxu0 0.0
      %5091 = vmatprep.subr.mxu0 0.0
      %5092 = vmatpush2.msra.mxu0 0.0
      %5093 = vmatprep.subr.mxu0 0.0
      %5094 = vmatpush2.msra.mxu0 0.0
      %5095 = vmatprep.subr.mxu0 0.0
      %5096 = vmatpush2.msra.mxu0 0.0
      %5097 = vmatprep.subr.mxu0 0.0
      %5098 = vmatpush2.msra.mxu0 0.0
      %5099 = vmatprep.subr.mxu0 0.0
      %5100 = vmatpush2.msra.mxu0 0.0
      %5101 = vmatprep.subr.mxu0 0.0
      %5102 = vmatpush2.msra.mxu0 0.0
      %5103 = vmatprep.subr.mxu0 0.0
      %5104 = vmatpush2.msra.mxu0 0.0
      %5105 = vmatprep.subr.mxu0 0.0
      %5106 = vmatpush2.msra.mxu0 0.0
      %5107 = vmatprep.subr.mxu0 0.0
      %5108 = vmatpush2.msra.mxu0 0.0
      %5109 = vmatprep.subr.mxu0 0.0
      %5110 = vmatpush2.msra.mxu0 0.0
      %5111 = vmatprep.mubr.f32.mxu0 0.0
      %5112 = vmatmul.mubr.f32.gmra.mxu0 %v4761
      %v5113 = vpop.f32.mrf.mxu0
      %v5114 = vadd.f32 %v4715, %v5113
      %v5115 = vpop.f32.mrf.mxu0
      %v5116 = vadd.f32 %v4719, %v5115
      %5117 = vdwg.mxu0
      %5118 = vmatprep.subr.mxu0 0.0
      %5119 = vmatpush1.msra.mxu0 0.0
      %5120 = vmatprep.subr.mxu0 0.0
      %5121 = vmatpush1.msra.mxu0 0.0
      %5122 = vmatprep.subr.mxu0 0.0
      %5123 = vmatpush1.msra.mxu0 0.0
      %5124 = vmatprep.subr.mxu0 0.0
      %5125 = vmatpush1.msra.mxu0 0.0
      %5126 = vmatprep.subr.mxu0 0.0
      %5127 = vmatpush1.msra.mxu0 0.0
      %5128 = vmatprep.subr.mxu0 0.0
      %5129 = vmatpush1.msra.mxu0 0.0
      %5130 = vmatprep.subr.mxu0 0.0
      %5131 = vmatpush1.msra.mxu0 0.0
      %5132 = vmatprep.subr.mxu0 0.0
      %5133 = vmatpush1.msra.mxu0 0.0
      %5134 = vmatprep.subr.mxu0 0.0
      %5135 = vmatpush1.msra.mxu0 0.0
      %5136 = vmatprep.subr.mxu0 0.0
      %5137 = vmatpush1.msra.mxu0 0.0
      %5138 = vmatprep.subr.mxu0 0.0
      %5139 = vmatpush1.msra.mxu0 0.0
      %5140 = vmatprep.subr.mxu0 0.0
      %5141 = vmatpush1.msra.mxu0 0.0
      %5142 = vmatprep.subr.mxu0 %v4670
      %5143 = vmatpush1.msra.mxu0 %v4669
      %5144 = vmatprep.subr.mxu0 %v4654
      %5145 = vmatpush1.msra.mxu0 %v4653
      %5146 = vmatprep.subr.mxu0 %v4638
      %5147 = vmatpush1.msra.mxu0 %v4637
      %5148 = vmatprep.subr.mxu0 %v4622
      %5149 = vmatpush1.msra.mxu0 %v4621
      %5150 = vmatprep.subr.mxu0 0.0
      %5151 = vmatpush2.msra.mxu0 0.0
      %5152 = vmatprep.subr.mxu0 0.0
      %5153 = vmatpush2.msra.mxu0 0.0
      %5154 = vmatprep.subr.mxu0 0.0
      %5155 = vmatpush2.msra.mxu0 0.0
      %5156 = vmatprep.subr.mxu0 0.0
      %5157 = vmatpush2.msra.mxu0 0.0
      %5158 = vmatprep.subr.mxu0 0.0
      %5159 = vmatpush2.msra.mxu0 0.0
      %5160 = vmatprep.subr.mxu0 0.0
      %5161 = vmatpush2.msra.mxu0 0.0
      %5162 = vmatprep.subr.mxu0 0.0
      %5163 = vmatpush2.msra.mxu0 0.0
      %5164 = vmatprep.subr.mxu0 0.0
      %5165 = vmatpush2.msra.mxu0 0.0
      %5166 = vmatprep.subr.mxu0 0.0
      %5167 = vmatpush2.msra.mxu0 0.0
      %5168 = vmatprep.subr.mxu0 0.0
      %5169 = vmatpush2.msra.mxu0 0.0
      %5170 = vmatprep.subr.mxu0 0.0
      %5171 = vmatpush2.msra.mxu0 0.0
      %5172 = vmatprep.subr.mxu0 0.0
      %5173 = vmatpush2.msra.mxu0 0.0
      %5174 = vmatprep.subr.mxu0 0.0
      %5175 = vmatpush2.msra.mxu0 0.0
      %5176 = vmatprep.subr.mxu0 0.0
      %5177 = vmatpush2.msra.mxu0 0.0
      %5178 = vmatprep.subr.mxu0 0.0
      %5179 = vmatpush2.msra.mxu0 0.0
      %5180 = vmatprep.subr.mxu0 0.0
      %5181 = vmatpush2.msra.mxu0 0.0
      %5182 = vmatprep.mubr.f32.mxu0 0.0
      %5183 = vmatmul.mubr.f32.gmra.mxu0 %v4761
      %v5184 = vpop.f32.mrf.mxu0
      %v5185 = vadd.f32 %v4723, %v5184
      %v5186 = vpop.f32.mrf.mxu0
      %v5187 = vadd.f32 %v4727, %v5186
      %5188 = vdwg.mxu0
      %5189 = vmatprep.subr.mxu0 0.0
      %5190 = vmatpush1.msra.mxu0 0.0
      %5191 = vmatprep.subr.mxu0 0.0
      %5192 = vmatpush1.msra.mxu0 0.0
      %5193 = vmatprep.subr.mxu0 0.0
      %5194 = vmatpush1.msra.mxu0 0.0
      %5195 = vmatprep.subr.mxu0 0.0
      %5196 = vmatpush1.msra.mxu0 0.0
      %5197 = vmatprep.subr.mxu0 0.0
      %5198 = vmatpush1.msra.mxu0 0.0
      %5199 = vmatprep.subr.mxu0 0.0
      %5200 = vmatpush1.msra.mxu0 0.0
      %5201 = vmatprep.subr.mxu0 0.0
      %5202 = vmatpush1.msra.mxu0 0.0
      %5203 = vmatprep.subr.mxu0 0.0
      %5204 = vmatpush1.msra.mxu0 0.0
      %5205 = vmatprep.subr.mxu0 0.0
      %5206 = vmatpush1.msra.mxu0 0.0
      %5207 = vmatprep.subr.mxu0 0.0
      %5208 = vmatpush1.msra.mxu0 0.0
      %5209 = vmatprep.subr.mxu0 0.0
      %5210 = vmatpush1.msra.mxu0 0.0
      %5211 = vmatprep.subr.mxu0 0.0
      %5212 = vmatpush1.msra.mxu0 0.0
      %5213 = vmatprep.subr.mxu0 %v4672
      %5214 = vmatpush1.msra.mxu0 %v4671
      %5215 = vmatprep.subr.mxu0 %v4656
      %5216 = vmatpush1.msra.mxu0 %v4655
      %5217 = vmatprep.subr.mxu0 %v4640
      %5218 = vmatpush1.msra.mxu0 %v4639
      %5219 = vmatprep.subr.mxu0 %v4624
      %5220 = vmatpush1.msra.mxu0 %v4623
      %5221 = vmatprep.subr.mxu0 0.0
      %5222 = vmatpush2.msra.mxu0 0.0
      %5223 = vmatprep.subr.mxu0 0.0
      %5224 = vmatpush2.msra.mxu0 0.0
      %5225 = vmatprep.subr.mxu0 0.0
      %5226 = vmatpush2.msra.mxu0 0.0
      %5227 = vmatprep.subr.mxu0 0.0
      %5228 = vmatpush2.msra.mxu0 0.0
      %5229 = vmatprep.subr.mxu0 0.0
      %5230 = vmatpush2.msra.mxu0 0.0
      %5231 = vmatprep.subr.mxu0 0.0
      %5232 = vmatpush2.msra.mxu0 0.0
      %5233 = vmatprep.subr.mxu0 0.0
      %5234 = vmatpush2.msra.mxu0 0.0
      %5235 = vmatprep.subr.mxu0 0.0
      %5236 = vmatpush2.msra.mxu0 0.0
      %5237 = vmatprep.subr.mxu0 0.0
      %5238 = vmatpush2.msra.mxu0 0.0
      %5239 = vmatprep.subr.mxu0 0.0
      %5240 = vmatpush2.msra.mxu0 0.0
      %5241 = vmatprep.subr.mxu0 0.0
      %5242 = vmatpush2.msra.mxu0 0.0
      %5243 = vmatprep.subr.mxu0 0.0
      %5244 = vmatpush2.msra.mxu0 0.0
      %5245 = vmatprep.subr.mxu0 0.0
      %5246 = vmatpush2.msra.mxu0 0.0
      %5247 = vmatprep.subr.mxu0 0.0
      %5248 = vmatpush2.msra.mxu0 0.0
      %5249 = vmatprep.subr.mxu0 0.0
      %5250 = vmatpush2.msra.mxu0 0.0
      %5251 = vmatprep.subr.mxu0 0.0
      %5252 = vmatpush2.msra.mxu0 0.0
      %5253 = vmatprep.mubr.f32.mxu0 0.0
      %5254 = vmatmul.mubr.f32.gmra.mxu0 %v4761
      %v5255 = vpop.f32.mrf.mxu0
      %v5256 = vadd.f32 %v4731, %v5255
      %v5257 = vpop.f32.mrf.mxu0
      %v5258 = vadd.f32 %v4735, %v5257
      %5259 = vdwg.mxu0
      %5260 = vmatprep.subr.mxu0 0.0
      %5261 = vmatpush1.msra.mxu0 0.0
      %5262 = vmatprep.subr.mxu0 0.0
      %5263 = vmatpush1.msra.mxu0 0.0
      %5264 = vmatprep.subr.mxu0 0.0
      %5265 = vmatpush1.msra.mxu0 0.0
      %5266 = vmatprep.subr.mxu0 0.0
      %5267 = vmatpush1.msra.mxu0 0.0
      %5268 = vmatprep.subr.mxu0 0.0
      %5269 = vmatpush1.msra.mxu0 0.0
      %5270 = vmatprep.subr.mxu0 0.0
      %5271 = vmatpush1.msra.mxu0 0.0
      %5272 = vmatprep.subr.mxu0 0.0
      %5273 = vmatpush1.msra.mxu0 0.0
      %5274 = vmatprep.subr.mxu0 0.0
      %5275 = vmatpush1.msra.mxu0 0.0
      %5276 = vmatprep.subr.mxu0 0.0
      %5277 = vmatpush1.msra.mxu0 0.0
      %5278 = vmatprep.subr.mxu0 0.0
      %5279 = vmatpush1.msra.mxu0 0.0
      %5280 = vmatprep.subr.mxu0 0.0
      %5281 = vmatpush1.msra.mxu0 0.0
      %5282 = vmatprep.subr.mxu0 0.0
      %5283 = vmatpush1.msra.mxu0 0.0
      %5284 = vmatprep.subr.mxu0 %v4674
      %5285 = vmatpush1.msra.mxu0 %v4673
      %5286 = vmatprep.subr.mxu0 %v4658
      %5287 = vmatpush1.msra.mxu0 %v4657
      %5288 = vmatprep.subr.mxu0 %v4642
      %5289 = vmatpush1.msra.mxu0 %v4641
      %5290 = vmatprep.subr.mxu0 %v4626
      %5291 = vmatpush1.msra.mxu0 %v4625
      %5292 = vmatprep.subr.mxu0 0.0
      %5293 = vmatpush2.msra.mxu0 0.0
      %5294 = vmatprep.subr.mxu0 0.0
      %5295 = vmatpush2.msra.mxu0 0.0
      %5296 = vmatprep.subr.mxu0 0.0
      %5297 = vmatpush2.msra.mxu0 0.0
      %5298 = vmatprep.subr.mxu0 0.0
      %5299 = vmatpush2.msra.mxu0 0.0
      %5300 = vmatprep.subr.mxu0 0.0
      %5301 = vmatpush2.msra.mxu0 0.0
      %5302 = vmatprep.subr.mxu0 0.0
      %5303 = vmatpush2.msra.mxu0 0.0
      %5304 = vmatprep.subr.mxu0 0.0
      %5305 = vmatpush2.msra.mxu0 0.0
      %5306 = vmatprep.subr.mxu0 0.0
      %5307 = vmatpush2.msra.mxu0 0.0
      %5308 = vmatprep.subr.mxu0 0.0
      %5309 = vmatpush2.msra.mxu0 0.0
      %5310 = vmatprep.subr.mxu0 0.0
      %5311 = vmatpush2.msra.mxu0 0.0
      %5312 = vmatprep.subr.mxu0 0.0
      %5313 = vmatpush2.msra.mxu0 0.0
      %5314 = vmatprep.subr.mxu0 0.0
      %5315 = vmatpush2.msra.mxu0 0.0
      %5316 = vmatprep.subr.mxu0 0.0
      %5317 = vmatpush2.msra.mxu0 0.0
      %5318 = vmatprep.subr.mxu0 0.0
      %5319 = vmatpush2.msra.mxu0 0.0
      %5320 = vmatprep.subr.mxu0 0.0
      %5321 = vmatpush2.msra.mxu0 0.0
      %5322 = vmatprep.subr.mxu0 0.0
      %5323 = vmatpush2.msra.mxu0 0.0
      %5324 = vmatprep.mubr.f32.mxu0 0.0
      %5325 = vmatmul.mubr.f32.gmra.mxu0 %v4761
      %v5326 = vpop.f32.mrf.mxu0
      %v5327 = vadd.f32 %v4739, %v5326
      %v5328 = vpop.f32.mrf.mxu0
      %v5329 = vadd.f32 %v4743, %v5328
      %5330 = vdwg.mxu0
      %v5331 = vmax.f32 %v4830, 0.0
      %v5332 = vmax.f32 %v4832, 0.0
      %v5333 = vmax.f32 %v4901, 0.0
      %v5334 = vmax.f32 %v4903, 0.0
      %v5335 = vmax.f32 %v4972, 0.0
      %v5336 = vmax.f32 %v4974, 0.0
      %v5337 = vmax.f32 %v5043, 0.0
      %v5338 = vmax.f32 %v5045, 0.0
      %v5339 = vmax.f32 %v5114, 0.0
      %v5340 = vmax.f32 %v5116, 0.0
      %v5341 = vmax.f32 %v5185, 0.0
      %v5342 = vmax.f32 %v5187, 0.0
      %v5343 = vmax.f32 %v5256, 0.0
      %v5344 = vmax.f32 %v5258, 0.0
      %v5345 = vmax.f32 %v5327, 0.0
      %v5346 = vmax.f32 %v5329, 0.0
      %s5347 = scalar_lea.vmem %s12, 512
      %v5348 = vld [vmem:[%s5347] sm:$0xff]
      %v5349 = vld [vmem:[%s5347 + $0x8] sm:$0xff]
      %v5350 = vld [vmem:[%s5347 + $0x10] sm:$0xff]
      %v5351 = vld [vmem:[%s5347 + $0x18] sm:$0xff]
      %v5352 = vld [vmem:[%s5347 + $0x20] sm:$0xff]
      %v5353 = vld [vmem:[%s5347 + $0x28] sm:$0xff]
      %v5354 = vld [vmem:[%s5347 + $0x30] sm:$0xff]
      %v5355 = vld [vmem:[%s5347 + $0x38] sm:$0xff]
      %v5356 = vld [vmem:[%s5347 + $0x40] sm:$0xff]
      %v5357 = vld [vmem:[%s5347 + $0x48] sm:$0xff]
      %v5358 = vld [vmem:[%s5347 + $0x50] sm:$0xff]
      %v5359 = vld [vmem:[%s5347 + $0x58] sm:$0xff]
      %v5360 = vld [vmem:[%s5347 + $0x60] sm:$0xff]
      %v5361 = vld [vmem:[%s5347 + $0x68] sm:$0xff]
      %v5362 = vld [vmem:[%s5347 + $0x70] sm:$0xff]
      %v5363 = vld [vmem:[%s5347 + $0x78] sm:$0xff]
      %v5364 = vld [vmem:[%s5347 + $0x80] sm:$0xff]
      %v5365 = vld [vmem:[%s5347 + $0x88] sm:$0xff]
      %v5366 = vld [vmem:[%s5347 + $0x90] sm:$0xff]
      %v5367 = vld [vmem:[%s5347 + $0x98] sm:$0xff]
      %v5368 = vld [vmem:[%s5347 + $0xa0] sm:$0xff]
      %v5369 = vld [vmem:[%s5347 + $0xa8] sm:$0xff]
      %v5370 = vld [vmem:[%s5347 + $0xb0] sm:$0xff]
      %v5371 = vld [vmem:[%s5347 + $0xb8] sm:$0xff]
      %v5372 = vld [vmem:[%s5347 + $0xc0] sm:$0xff]
      %v5373 = vld [vmem:[%s5347 + $0xc8] sm:$0xff]
      %v5374 = vld [vmem:[%s5347 + $0xd0] sm:$0xff]
      %v5375 = vld [vmem:[%s5347 + $0xd8] sm:$0xff]
      %v5376 = vld [vmem:[%s5347 + $0xe0] sm:$0xff]
      %v5377 = vld [vmem:[%s5347 + $0xe8] sm:$0xff]
      %v5378 = vld [vmem:[%s5347 + $0xf0] sm:$0xff]
      %v5379 = vld [vmem:[%s5347 + $0xf8] sm:$0xff]
      %v5380 = vld [vmem:[%s5347 + $0x100] sm:$0xff]
      %v5381 = vld [vmem:[%s5347 + $0x108] sm:$0xff]
      %v5382 = vld [vmem:[%s5347 + $0x110] sm:$0xff]
      %v5383 = vld [vmem:[%s5347 + $0x118] sm:$0xff]
      %v5384 = vld [vmem:[%s5347 + $0x120] sm:$0xff]
      %v5385 = vld [vmem:[%s5347 + $0x128] sm:$0xff]
      %v5386 = vld [vmem:[%s5347 + $0x130] sm:$0xff]
      %v5387 = vld [vmem:[%s5347 + $0x138] sm:$0xff]
      %v5388 = vld [vmem:[%s5347 + $0x140] sm:$0xff]
      %v5389 = vld [vmem:[%s5347 + $0x148] sm:$0xff]
      %v5390 = vld [vmem:[%s5347 + $0x150] sm:$0xff]
      %v5391 = vld [vmem:[%s5347 + $0x158] sm:$0xff]
      %v5392 = vld [vmem:[%s5347 + $0x160] sm:$0xff]
      %v5393 = vld [vmem:[%s5347 + $0x168] sm:$0xff]
      %v5394 = vld [vmem:[%s5347 + $0x170] sm:$0xff]
      %v5395 = vld [vmem:[%s5347 + $0x178] sm:$0xff]
      %v5396 = vld [vmem:[%s5347 + $0x180] sm:$0xff]
      %v5397 = vld [vmem:[%s5347 + $0x188] sm:$0xff]
      %v5398 = vld [vmem:[%s5347 + $0x190] sm:$0xff]
      %v5399 = vld [vmem:[%s5347 + $0x198] sm:$0xff]
      %v5400 = vld [vmem:[%s5347 + $0x1a0] sm:$0xff]
      %v5401 = vld [vmem:[%s5347 + $0x1a8] sm:$0xff]
      %v5402 = vld [vmem:[%s5347 + $0x1b0] sm:$0xff]
      %v5403 = vld [vmem:[%s5347 + $0x1b8] sm:$0xff]
      %v5404 = vld [vmem:[%s5347 + $0x1c0] sm:$0xff]
      %v5405 = vld [vmem:[%s5347 + $0x1c8] sm:$0xff]
      %v5406 = vld [vmem:[%s5347 + $0x1d0] sm:$0xff]
      %v5407 = vld [vmem:[%s5347 + $0x1d8] sm:$0xff]
      %v5408 = vld [vmem:[%s5347 + $0x1e0] sm:$0xff]
      %v5409 = vld [vmem:[%s5347 + $0x1e8] sm:$0xff]
      %v5410 = vld [vmem:[%s5347 + $0x1f0] sm:$0xff]
      %v5411 = vld [vmem:[%s5347 + $0x1f8] sm:$0xff]
      %s5412 = scalar_lea.vmem %s13, 1
      %v5413 = vld [vmem:[%s5412] sm:$0x1]
      %v5415 = vlaneseq
      %v5416 = vshrl.u32 %v5415, 7
      %v5417 = vsub.s32 0, %v5416
      %v5418 = vrot.slane %v5413, %v5417
      %5420 = vmatprep.subr.mxu0 0.0
      %5421 = vmatpush1.xpose.msra.mxu0 0.0
      %5422 = vmatprep.subr.mxu0 0.0
      %5423 = vmatpush1.xpose.msra.mxu0 0.0
      %5424 = vmatprep.subr.mxu0 0.0
      %5425 = vmatpush1.xpose.msra.mxu0 0.0
      %5426 = vmatprep.subr.mxu0 0.0
      %5427 = vmatpush1.xpose.msra.mxu0 0.0
      %5428 = vmatprep.subr.mxu0 0.0
      %5429 = vmatpush1.xpose.msra.mxu0 0.0
      %5430 = vmatprep.subr.mxu0 0.0
      %5431 = vmatpush1.xpose.msra.mxu0 0.0
      %5432 = vmatprep.subr.mxu0 0.0
      %5433 = vmatpush1.xpose.msra.mxu0 0.0
      %5434 = vmatprep.subr.mxu0 0.0
      %5435 = vmatpush1.xpose.msra.mxu0 0.0
      %5436 = vmatprep.subr.mxu0 0.0
      %5437 = vmatpush1.xpose.msra.mxu0 0.0
      %5438 = vmatprep.subr.mxu0 0.0
      %5439 = vmatpush1.xpose.msra.mxu0 0.0
      %5440 = vmatprep.subr.mxu0 0.0
      %5441 = vmatpush1.xpose.msra.mxu0 0.0
      %5442 = vmatprep.subr.mxu0 0.0
      %5443 = vmatpush1.xpose.msra.mxu0 0.0
      %5444 = vmatprep.subr.mxu0 %v5397
      %5445 = vmatpush1.xpose.msra.mxu0 %v5396
      %5446 = vmatprep.subr.mxu0 %v5381
      %5447 = vmatpush1.xpose.msra.mxu0 %v5380
      %5448 = vmatprep.subr.mxu0 %v5365
      %5449 = vmatpush1.xpose.msra.mxu0 %v5364
      %5450 = vmatprep.subr.mxu0 %v5349
      %5451 = vmatpush1.xpose.msra.mxu0 %v5348
      %5452 = vmatprep.subr.mxu0 0.0
      %5453 = vmatpush2.xpose.msra.mxu0 0.0
      %5454 = vmatprep.subr.mxu0 0.0
      %5455 = vmatpush2.xpose.msra.mxu0 0.0
      %5456 = vmatprep.subr.mxu0 0.0
      %5457 = vmatpush2.xpose.msra.mxu0 0.0
      %5458 = vmatprep.subr.mxu0 0.0
      %5459 = vmatpush2.xpose.msra.mxu0 0.0
      %5460 = vmatprep.subr.mxu0 0.0
      %5461 = vmatpush2.xpose.msra.mxu0 0.0
      %5462 = vmatprep.subr.mxu0 0.0
      %5463 = vmatpush2.xpose.msra.mxu0 0.0
      %5464 = vmatprep.subr.mxu0 0.0
      %5465 = vmatpush2.xpose.msra.mxu0 0.0
      %5466 = vmatprep.subr.mxu0 0.0
      %5467 = vmatpush2.xpose.msra.mxu0 0.0
      %5468 = vmatprep.subr.mxu0 0.0
      %5469 = vmatpush2.xpose.msra.mxu0 0.0
      %5470 = vmatprep.subr.mxu0 0.0
      %5471 = vmatpush2.xpose.msra.mxu0 0.0
      %5472 = vmatprep.subr.mxu0 0.0
      %5473 = vmatpush2.xpose.msra.mxu0 0.0
      %5474 = vmatprep.subr.mxu0 0.0
      %5475 = vmatpush2.xpose.msra.mxu0 0.0
      %5476 = vmatprep.subr.mxu0 0.0
      %5477 = vmatpush2.xpose.msra.mxu0 0.0
      %5478 = vmatprep.subr.mxu0 0.0
      %5479 = vmatpush2.xpose.msra.mxu0 0.0
      %5480 = vmatprep.subr.mxu0 0.0
      %5481 = vmatpush2.xpose.msra.mxu0 0.0
      %5482 = vmatprep.subr.mxu0 0.0
      %5483 = vmatpush2.xpose.msra.mxu0 0.0
      %5484 = vmatprep.mubr.f32.mxu0 %v5332
      %5485 = vmatmul.mubr.f32.gmra.mxu0 %v5331
      %v5486 = vpop.f32.mrf.mxu0
      %v5487 = vadd.f32 %v5418, %v5486
      %v5488 = vpop.f32.mrf.mxu0
      %5489 = vdwg.mxu0
      %5490 = vmatprep.subr.mxu0 0.0
      %5491 = vmatpush1.xpose.msra.mxu0 0.0
      %5492 = vmatprep.subr.mxu0 0.0
      %5493 = vmatpush1.xpose.msra.mxu0 0.0
      %5494 = vmatprep.subr.mxu0 0.0
      %5495 = vmatpush1.xpose.msra.mxu0 0.0
      %5496 = vmatprep.subr.mxu0 0.0
      %5497 = vmatpush1.xpose.msra.mxu0 0.0
      %5498 = vmatprep.subr.mxu0 0.0
      %5499 = vmatpush1.xpose.msra.mxu0 0.0
      %5500 = vmatprep.subr.mxu0 0.0
      %5501 = vmatpush1.xpose.msra.mxu0 0.0
      %5502 = vmatprep.subr.mxu0 0.0
      %5503 = vmatpush1.xpose.msra.mxu0 0.0
      %5504 = vmatprep.subr.mxu0 0.0
      %5505 = vmatpush1.xpose.msra.mxu0 0.0
      %5506 = vmatprep.subr.mxu0 0.0
      %5507 = vmatpush1.xpose.msra.mxu0 0.0
      %5508 = vmatprep.subr.mxu0 0.0
      %5509 = vmatpush1.xpose.msra.mxu0 0.0
      %5510 = vmatprep.subr.mxu0 0.0
      %5511 = vmatpush1.xpose.msra.mxu0 0.0
      %5512 = vmatprep.subr.mxu0 0.0
      %5513 = vmatpush1.xpose.msra.mxu0 0.0
      %5514 = vmatprep.subr.mxu0 %v5399
      %5515 = vmatpush1.xpose.msra.mxu0 %v5398
      %5516 = vmatprep.subr.mxu0 %v5383
      %5517 = vmatpush1.xpose.msra.mxu0 %v5382
      %5518 = vmatprep.subr.mxu0 %v5367
      %5519 = vmatpush1.xpose.msra.mxu0 %v5366
      %5520 = vmatprep.subr.mxu0 %v5351
      %5521 = vmatpush1.xpose.msra.mxu0 %v5350
      %5522 = vmatprep.subr.mxu0 0.0
      %5523 = vmatpush2.xpose.msra.mxu0 0.0
      %5524 = vmatprep.subr.mxu0 0.0
      %5525 = vmatpush2.xpose.msra.mxu0 0.0
      %5526 = vmatprep.subr.mxu0 0.0
      %5527 = vmatpush2.xpose.msra.mxu0 0.0
      %5528 = vmatprep.subr.mxu0 0.0
      %5529 = vmatpush2.xpose.msra.mxu0 0.0
      %5530 = vmatprep.subr.mxu0 0.0
      %5531 = vmatpush2.xpose.msra.mxu0 0.0
      %5532 = vmatprep.subr.mxu0 0.0
      %5533 = vmatpush2.xpose.msra.mxu0 0.0
      %5534 = vmatprep.subr.mxu0 0.0
      %5535 = vmatpush2.xpose.msra.mxu0 0.0
      %5536 = vmatprep.subr.mxu0 0.0
      %5537 = vmatpush2.xpose.msra.mxu0 0.0
      %5538 = vmatprep.subr.mxu0 0.0
      %5539 = vmatpush2.xpose.msra.mxu0 0.0
      %5540 = vmatprep.subr.mxu0 0.0
      %5541 = vmatpush2.xpose.msra.mxu0 0.0
      %5542 = vmatprep.subr.mxu0 0.0
      %5543 = vmatpush2.xpose.msra.mxu0 0.0
      %5544 = vmatprep.subr.mxu0 0.0
      %5545 = vmatpush2.xpose.msra.mxu0 0.0
      %5546 = vmatprep.subr.mxu0 0.0
      %5547 = vmatpush2.xpose.msra.mxu0 0.0
      %5548 = vmatprep.subr.mxu0 0.0
      %5549 = vmatpush2.xpose.msra.mxu0 0.0
      %5550 = vmatprep.subr.mxu0 0.0
      %5551 = vmatpush2.xpose.msra.mxu0 0.0
      %5552 = vmatprep.subr.mxu0 0.0
      %5553 = vmatpush2.xpose.msra.mxu0 0.0
      %5554 = vmatprep.mubr.f32.mxu0 %v5334
      %5555 = vmatmul.mubr.f32.gmra.mxu0 %v5333
      %v5556 = vpop.f32.mrf.mxu0
      %v5557 = vadd.f32 %v5487, %v5556
      %v5558 = vpop.f32.mrf.mxu0
      %5559 = vdwg.mxu0
      %5560 = vmatprep.subr.mxu0 0.0
      %5561 = vmatpush1.xpose.msra.mxu0 0.0
      %5562 = vmatprep.subr.mxu0 0.0
      %5563 = vmatpush1.xpose.msra.mxu0 0.0
      %5564 = vmatprep.subr.mxu0 0.0
      %5565 = vmatpush1.xpose.msra.mxu0 0.0
      %5566 = vmatprep.subr.mxu0 0.0
      %5567 = vmatpush1.xpose.msra.mxu0 0.0
      %5568 = vmatprep.subr.mxu0 0.0
      %5569 = vmatpush1.xpose.msra.mxu0 0.0
      %5570 = vmatprep.subr.mxu0 0.0
      %5571 = vmatpush1.xpose.msra.mxu0 0.0
      %5572 = vmatprep.subr.mxu0 0.0
      %5573 = vmatpush1.xpose.msra.mxu0 0.0
      %5574 = vmatprep.subr.mxu0 0.0
      %5575 = vmatpush1.xpose.msra.mxu0 0.0
      %5576 = vmatprep.subr.mxu0 0.0
      %5577 = vmatpush1.xpose.msra.mxu0 0.0
      %5578 = vmatprep.subr.mxu0 0.0
      %5579 = vmatpush1.xpose.msra.mxu0 0.0
      %5580 = vmatprep.subr.mxu0 0.0
      %5581 = vmatpush1.xpose.msra.mxu0 0.0
      %5582 = vmatprep.subr.mxu0 0.0
      %5583 = vmatpush1.xpose.msra.mxu0 0.0
      %5584 = vmatprep.subr.mxu0 %v5401
      %5585 = vmatpush1.xpose.msra.mxu0 %v5400
      %5586 = vmatprep.subr.mxu0 %v5385
      %5587 = vmatpush1.xpose.msra.mxu0 %v5384
      %5588 = vmatprep.subr.mxu0 %v5369
      %5589 = vmatpush1.xpose.msra.mxu0 %v5368
      %5590 = vmatprep.subr.mxu0 %v5353
      %5591 = vmatpush1.xpose.msra.mxu0 %v5352
      %5592 = vmatprep.subr.mxu0 0.0
      %5593 = vmatpush2.xpose.msra.mxu0 0.0
      %5594 = vmatprep.subr.mxu0 0.0
      %5595 = vmatpush2.xpose.msra.mxu0 0.0
      %5596 = vmatprep.subr.mxu0 0.0
      %5597 = vmatpush2.xpose.msra.mxu0 0.0
      %5598 = vmatprep.subr.mxu0 0.0
      %5599 = vmatpush2.xpose.msra.mxu0 0.0
      %5600 = vmatprep.subr.mxu0 0.0
      %5601 = vmatpush2.xpose.msra.mxu0 0.0
      %5602 = vmatprep.subr.mxu0 0.0
      %5603 = vmatpush2.xpose.msra.mxu0 0.0
      %5604 = vmatprep.subr.mxu0 0.0
      %5605 = vmatpush2.xpose.msra.mxu0 0.0
      %5606 = vmatprep.subr.mxu0 0.0
      %5607 = vmatpush2.xpose.msra.mxu0 0.0
      %5608 = vmatprep.subr.mxu0 0.0
      %5609 = vmatpush2.xpose.msra.mxu0 0.0
      %5610 = vmatprep.subr.mxu0 0.0
      %5611 = vmatpush2.xpose.msra.mxu0 0.0
      %5612 = vmatprep.subr.mxu0 0.0
      %5613 = vmatpush2.xpose.msra.mxu0 0.0
      %5614 = vmatprep.subr.mxu0 0.0
      %5615 = vmatpush2.xpose.msra.mxu0 0.0
      %5616 = vmatprep.subr.mxu0 0.0
      %5617 = vmatpush2.xpose.msra.mxu0 0.0
      %5618 = vmatprep.subr.mxu0 0.0
      %5619 = vmatpush2.xpose.msra.mxu0 0.0
      %5620 = vmatprep.subr.mxu0 0.0
      %5621 = vmatpush2.xpose.msra.mxu0 0.0
      %5622 = vmatprep.subr.mxu0 0.0
      %5623 = vmatpush2.xpose.msra.mxu0 0.0
      %5624 = vmatprep.mubr.f32.mxu0 %v5336
      %5625 = vmatmul.mubr.f32.gmra.mxu0 %v5335
      %v5626 = vpop.f32.mrf.mxu0
      %v5627 = vadd.f32 %v5557, %v5626
      %v5628 = vpop.f32.mrf.mxu0
      %5629 = vdwg.mxu0
      %5630 = vmatprep.subr.mxu0 0.0
      %5631 = vmatpush1.xpose.msra.mxu0 0.0
      %5632 = vmatprep.subr.mxu0 0.0
      %5633 = vmatpush1.xpose.msra.mxu0 0.0
      %5634 = vmatprep.subr.mxu0 0.0
      %5635 = vmatpush1.xpose.msra.mxu0 0.0
      %5636 = vmatprep.subr.mxu0 0.0
      %5637 = vmatpush1.xpose.msra.mxu0 0.0
      %5638 = vmatprep.subr.mxu0 0.0
      %5639 = vmatpush1.xpose.msra.mxu0 0.0
      %5640 = vmatprep.subr.mxu0 0.0
      %5641 = vmatpush1.xpose.msra.mxu0 0.0
      %5642 = vmatprep.subr.mxu0 0.0
      %5643 = vmatpush1.xpose.msra.mxu0 0.0
      %5644 = vmatprep.subr.mxu0 0.0
      %5645 = vmatpush1.xpose.msra.mxu0 0.0
      %5646 = vmatprep.subr.mxu0 0.0
      %5647 = vmatpush1.xpose.msra.mxu0 0.0
      %5648 = vmatprep.subr.mxu0 0.0
      %5649 = vmatpush1.xpose.msra.mxu0 0.0
      %5650 = vmatprep.subr.mxu0 0.0
      %5651 = vmatpush1.xpose.msra.mxu0 0.0
      %5652 = vmatprep.subr.mxu0 0.0
      %5653 = vmatpush1.xpose.msra.mxu0 0.0
      %5654 = vmatprep.subr.mxu0 %v5403
      %5655 = vmatpush1.xpose.msra.mxu0 %v5402
      %5656 = vmatprep.subr.mxu0 %v5387
      %5657 = vmatpush1.xpose.msra.mxu0 %v5386
      %5658 = vmatprep.subr.mxu0 %v5371
      %5659 = vmatpush1.xpose.msra.mxu0 %v5370
      %5660 = vmatprep.subr.mxu0 %v5355
      %5661 = vmatpush1.xpose.msra.mxu0 %v5354
      %5662 = vmatprep.subr.mxu0 0.0
      %5663 = vmatpush2.xpose.msra.mxu0 0.0
      %5664 = vmatprep.subr.mxu0 0.0
      %5665 = vmatpush2.xpose.msra.mxu0 0.0
      %5666 = vmatprep.subr.mxu0 0.0
      %5667 = vmatpush2.xpose.msra.mxu0 0.0
      %5668 = vmatprep.subr.mxu0 0.0
      %5669 = vmatpush2.xpose.msra.mxu0 0.0
      %5670 = vmatprep.subr.mxu0 0.0
      %5671 = vmatpush2.xpose.msra.mxu0 0.0
      %5672 = vmatprep.subr.mxu0 0.0
      %5673 = vmatpush2.xpose.msra.mxu0 0.0
      %5674 = vmatprep.subr.mxu0 0.0
      %5675 = vmatpush2.xpose.msra.mxu0 0.0
      %5676 = vmatprep.subr.mxu0 0.0
      %5677 = vmatpush2.xpose.msra.mxu0 0.0
      %5678 = vmatprep.subr.mxu0 0.0
      %5679 = vmatpush2.xpose.msra.mxu0 0.0
      %5680 = vmatprep.subr.mxu0 0.0
      %5681 = vmatpush2.xpose.msra.mxu0 0.0
      %5682 = vmatprep.subr.mxu0 0.0
      %5683 = vmatpush2.xpose.msra.mxu0 0.0
      %5684 = vmatprep.subr.mxu0 0.0
      %5685 = vmatpush2.xpose.msra.mxu0 0.0
      %5686 = vmatprep.subr.mxu0 0.0
      %5687 = vmatpush2.xpose.msra.mxu0 0.0
      %5688 = vmatprep.subr.mxu0 0.0
      %5689 = vmatpush2.xpose.msra.mxu0 0.0
      %5690 = vmatprep.subr.mxu0 0.0
      %5691 = vmatpush2.xpose.msra.mxu0 0.0
      %5692 = vmatprep.subr.mxu0 0.0
      %5693 = vmatpush2.xpose.msra.mxu0 0.0
      %5694 = vmatprep.mubr.f32.mxu0 %v5338
      %5695 = vmatmul.mubr.f32.gmra.mxu0 %v5337
      %v5696 = vpop.f32.mrf.mxu0
      %v5697 = vadd.f32 %v5627, %v5696
      %v5698 = vpop.f32.mrf.mxu0
      %5699 = vdwg.mxu0
      %5700 = vmatprep.subr.mxu0 0.0
      %5701 = vmatpush1.xpose.msra.mxu0 0.0
      %5702 = vmatprep.subr.mxu0 0.0
      %5703 = vmatpush1.xpose.msra.mxu0 0.0
      %5704 = vmatprep.subr.mxu0 0.0
      %5705 = vmatpush1.xpose.msra.mxu0 0.0
      %5706 = vmatprep.subr.mxu0 0.0
      %5707 = vmatpush1.xpose.msra.mxu0 0.0
      %5708 = vmatprep.subr.mxu0 0.0
      %5709 = vmatpush1.xpose.msra.mxu0 0.0
      %5710 = vmatprep.subr.mxu0 0.0
      %5711 = vmatpush1.xpose.msra.mxu0 0.0
      %5712 = vmatprep.subr.mxu0 0.0
      %5713 = vmatpush1.xpose.msra.mxu0 0.0
      %5714 = vmatprep.subr.mxu0 0.0
      %5715 = vmatpush1.xpose.msra.mxu0 0.0
      %5716 = vmatprep.subr.mxu0 0.0
      %5717 = vmatpush1.xpose.msra.mxu0 0.0
      %5718 = vmatprep.subr.mxu0 0.0
      %5719 = vmatpush1.xpose.msra.mxu0 0.0
      %5720 = vmatprep.subr.mxu0 0.0
      %5721 = vmatpush1.xpose.msra.mxu0 0.0
      %5722 = vmatprep.subr.mxu0 0.0
      %5723 = vmatpush1.xpose.msra.mxu0 0.0
      %5724 = vmatprep.subr.mxu0 %v5405
      %5725 = vmatpush1.xpose.msra.mxu0 %v5404
      %5726 = vmatprep.subr.mxu0 %v5389
      %5727 = vmatpush1.xpose.msra.mxu0 %v5388
      %5728 = vmatprep.subr.mxu0 %v5373
      %5729 = vmatpush1.xpose.msra.mxu0 %v5372
      %5730 = vmatprep.subr.mxu0 %v5357
      %5731 = vmatpush1.xpose.msra.mxu0 %v5356
      %5732 = vmatprep.subr.mxu0 0.0
      %5733 = vmatpush2.xpose.msra.mxu0 0.0
      %5734 = vmatprep.subr.mxu0 0.0
      %5735 = vmatpush2.xpose.msra.mxu0 0.0
      %5736 = vmatprep.subr.mxu0 0.0
      %5737 = vmatpush2.xpose.msra.mxu0 0.0
      %5738 = vmatprep.subr.mxu0 0.0
      %5739 = vmatpush2.xpose.msra.mxu0 0.0
      %5740 = vmatprep.subr.mxu0 0.0
      %5741 = vmatpush2.xpose.msra.mxu0 0.0
      %5742 = vmatprep.subr.mxu0 0.0
      %5743 = vmatpush2.xpose.msra.mxu0 0.0
      %5744 = vmatprep.subr.mxu0 0.0
      %5745 = vmatpush2.xpose.msra.mxu0 0.0
      %5746 = vmatprep.subr.mxu0 0.0
      %5747 = vmatpush2.xpose.msra.mxu0 0.0
      %5748 = vmatprep.subr.mxu0 0.0
      %5749 = vmatpush2.xpose.msra.mxu0 0.0
      %5750 = vmatprep.subr.mxu0 0.0
      %5751 = vmatpush2.xpose.msra.mxu0 0.0
      %5752 = vmatprep.subr.mxu0 0.0
      %5753 = vmatpush2.xpose.msra.mxu0 0.0
      %5754 = vmatprep.subr.mxu0 0.0
      %5755 = vmatpush2.xpose.msra.mxu0 0.0
      %5756 = vmatprep.subr.mxu0 0.0
      %5757 = vmatpush2.xpose.msra.mxu0 0.0
      %5758 = vmatprep.subr.mxu0 0.0
      %5759 = vmatpush2.xpose.msra.mxu0 0.0
      %5760 = vmatprep.subr.mxu0 0.0
      %5761 = vmatpush2.xpose.msra.mxu0 0.0
      %5762 = vmatprep.subr.mxu0 0.0
      %5763 = vmatpush2.xpose.msra.mxu0 0.0
      %5764 = vmatprep.mubr.f32.mxu0 %v5340
      %5765 = vmatmul.mubr.f32.gmra.mxu0 %v5339
      %v5766 = vpop.f32.mrf.mxu0
      %v5767 = vadd.f32 %v5697, %v5766
      %v5768 = vpop.f32.mrf.mxu0
      %5769 = vdwg.mxu0
      %5770 = vmatprep.subr.mxu0 0.0
      %5771 = vmatpush1.xpose.msra.mxu0 0.0
      %5772 = vmatprep.subr.mxu0 0.0
      %5773 = vmatpush1.xpose.msra.mxu0 0.0
      %5774 = vmatprep.subr.mxu0 0.0
      %5775 = vmatpush1.xpose.msra.mxu0 0.0
      %5776 = vmatprep.subr.mxu0 0.0
      %5777 = vmatpush1.xpose.msra.mxu0 0.0
      %5778 = vmatprep.subr.mxu0 0.0
      %5779 = vmatpush1.xpose.msra.mxu0 0.0
      %5780 = vmatprep.subr.mxu0 0.0
      %5781 = vmatpush1.xpose.msra.mxu0 0.0
      %5782 = vmatprep.subr.mxu0 0.0
      %5783 = vmatpush1.xpose.msra.mxu0 0.0
      %5784 = vmatprep.subr.mxu0 0.0
      %5785 = vmatpush1.xpose.msra.mxu0 0.0
      %5786 = vmatprep.subr.mxu0 0.0
      %5787 = vmatpush1.xpose.msra.mxu0 0.0
      %5788 = vmatprep.subr.mxu0 0.0
      %5789 = vmatpush1.xpose.msra.mxu0 0.0
      %5790 = vmatprep.subr.mxu0 0.0
      %5791 = vmatpush1.xpose.msra.mxu0 0.0
      %5792 = vmatprep.subr.mxu0 0.0
      %5793 = vmatpush1.xpose.msra.mxu0 0.0
      %5794 = vmatprep.subr.mxu0 %v5407
      %5795 = vmatpush1.xpose.msra.mxu0 %v5406
      %5796 = vmatprep.subr.mxu0 %v5391
      %5797 = vmatpush1.xpose.msra.mxu0 %v5390
      %5798 = vmatprep.subr.mxu0 %v5375
      %5799 = vmatpush1.xpose.msra.mxu0 %v5374
      %5800 = vmatprep.subr.mxu0 %v5359
      %5801 = vmatpush1.xpose.msra.mxu0 %v5358
      %5802 = vmatprep.subr.mxu0 0.0
      %5803 = vmatpush2.xpose.msra.mxu0 0.0
      %5804 = vmatprep.subr.mxu0 0.0
      %5805 = vmatpush2.xpose.msra.mxu0 0.0
      %5806 = vmatprep.subr.mxu0 0.0
      %5807 = vmatpush2.xpose.msra.mxu0 0.0
      %5808 = vmatprep.subr.mxu0 0.0
      %5809 = vmatpush2.xpose.msra.mxu0 0.0
      %5810 = vmatprep.subr.mxu0 0.0
      %5811 = vmatpush2.xpose.msra.mxu0 0.0
      %5812 = vmatprep.subr.mxu0 0.0
      %5813 = vmatpush2.xpose.msra.mxu0 0.0
      %5814 = vmatprep.subr.mxu0 0.0
      %5815 = vmatpush2.xpose.msra.mxu0 0.0
      %5816 = vmatprep.subr.mxu0 0.0
      %5817 = vmatpush2.xpose.msra.mxu0 0.0
      %5818 = vmatprep.subr.mxu0 0.0
      %5819 = vmatpush2.xpose.msra.mxu0 0.0
      %5820 = vmatprep.subr.mxu0 0.0
      %5821 = vmatpush2.xpose.msra.mxu0 0.0
      %5822 = vmatprep.subr.mxu0 0.0
      %5823 = vmatpush2.xpose.msra.mxu0 0.0
      %5824 = vmatprep.subr.mxu0 0.0
      %5825 = vmatpush2.xpose.msra.mxu0 0.0
      %5826 = vmatprep.subr.mxu0 0.0
      %5827 = vmatpush2.xpose.msra.mxu0 0.0
      %5828 = vmatprep.subr.mxu0 0.0
      %5829 = vmatpush2.xpose.msra.mxu0 0.0
      %5830 = vmatprep.subr.mxu0 0.0
      %5831 = vmatpush2.xpose.msra.mxu0 0.0
      %5832 = vmatprep.subr.mxu0 0.0
      %5833 = vmatpush2.xpose.msra.mxu0 0.0
      %5834 = vmatprep.mubr.f32.mxu0 %v5342
      %5835 = vmatmul.mubr.f32.gmra.mxu0 %v5341
      %v5836 = vpop.f32.mrf.mxu0
      %v5837 = vadd.f32 %v5767, %v5836
      %v5838 = vpop.f32.mrf.mxu0
      %5839 = vdwg.mxu0
      %5840 = vmatprep.subr.mxu0 0.0
      %5841 = vmatpush1.xpose.msra.mxu0 0.0
      %5842 = vmatprep.subr.mxu0 0.0
      %5843 = vmatpush1.xpose.msra.mxu0 0.0
      %5844 = vmatprep.subr.mxu0 0.0
      %5845 = vmatpush1.xpose.msra.mxu0 0.0
      %5846 = vmatprep.subr.mxu0 0.0
      %5847 = vmatpush1.xpose.msra.mxu0 0.0
      %5848 = vmatprep.subr.mxu0 0.0
      %5849 = vmatpush1.xpose.msra.mxu0 0.0
      %5850 = vmatprep.subr.mxu0 0.0
      %5851 = vmatpush1.xpose.msra.mxu0 0.0
      %5852 = vmatprep.subr.mxu0 0.0
      %5853 = vmatpush1.xpose.msra.mxu0 0.0
      %5854 = vmatprep.subr.mxu0 0.0
      %5855 = vmatpush1.xpose.msra.mxu0 0.0
      %5856 = vmatprep.subr.mxu0 0.0
      %5857 = vmatpush1.xpose.msra.mxu0 0.0
      %5858 = vmatprep.subr.mxu0 0.0
      %5859 = vmatpush1.xpose.msra.mxu0 0.0
      %5860 = vmatprep.subr.mxu0 0.0
      %5861 = vmatpush1.xpose.msra.mxu0 0.0
      %5862 = vmatprep.subr.mxu0 0.0
      %5863 = vmatpush1.xpose.msra.mxu0 0.0
      %5864 = vmatprep.subr.mxu0 %v5409
      %5865 = vmatpush1.xpose.msra.mxu0 %v5408
      %5866 = vmatprep.subr.mxu0 %v5393
      %5867 = vmatpush1.xpose.msra.mxu0 %v5392
      %5868 = vmatprep.subr.mxu0 %v5377
      %5869 = vmatpush1.xpose.msra.mxu0 %v5376
      %5870 = vmatprep.subr.mxu0 %v5361
      %5871 = vmatpush1.xpose.msra.mxu0 %v5360
      %5872 = vmatprep.subr.mxu0 0.0
      %5873 = vmatpush2.xpose.msra.mxu0 0.0
      %5874 = vmatprep.subr.mxu0 0.0
      %5875 = vmatpush2.xpose.msra.mxu0 0.0
      %5876 = vmatprep.subr.mxu0 0.0
      %5877 = vmatpush2.xpose.msra.mxu0 0.0
      %5878 = vmatprep.subr.mxu0 0.0
      %5879 = vmatpush2.xpose.msra.mxu0 0.0
      %5880 = vmatprep.subr.mxu0 0.0
      %5881 = vmatpush2.xpose.msra.mxu0 0.0
      %5882 = vmatprep.subr.mxu0 0.0
      %5883 = vmatpush2.xpose.msra.mxu0 0.0
      %5884 = vmatprep.subr.mxu0 0.0
      %5885 = vmatpush2.xpose.msra.mxu0 0.0
      %5886 = vmatprep.subr.mxu0 0.0
      %5887 = vmatpush2.xpose.msra.mxu0 0.0
      %5888 = vmatprep.subr.mxu0 0.0
      %5889 = vmatpush2.xpose.msra.mxu0 0.0
      %5890 = vmatprep.subr.mxu0 0.0
      %5891 = vmatpush2.xpose.msra.mxu0 0.0
      %5892 = vmatprep.subr.mxu0 0.0
      %5893 = vmatpush2.xpose.msra.mxu0 0.0
      %5894 = vmatprep.subr.mxu0 0.0
      %5895 = vmatpush2.xpose.msra.mxu0 0.0
      %5896 = vmatprep.subr.mxu0 0.0
      %5897 = vmatpush2.xpose.msra.mxu0 0.0
      %5898 = vmatprep.subr.mxu0 0.0
      %5899 = vmatpush2.xpose.msra.mxu0 0.0
      %5900 = vmatprep.subr.mxu0 0.0
      %5901 = vmatpush2.xpose.msra.mxu0 0.0
      %5902 = vmatprep.subr.mxu0 0.0
      %5903 = vmatpush2.xpose.msra.mxu0 0.0
      %5904 = vmatprep.mubr.f32.mxu0 %v5344
      %5905 = vmatmul.mubr.f32.gmra.mxu0 %v5343
      %v5906 = vpop.f32.mrf.mxu0
      %v5907 = vadd.f32 %v5837, %v5906
      %v5908 = vpop.f32.mrf.mxu0
      %5909 = vdwg.mxu0
      %5910 = vmatprep.subr.mxu0 0.0
      %5911 = vmatpush1.xpose.msra.mxu0 0.0
      %5912 = vmatprep.subr.mxu0 0.0
      %5913 = vmatpush1.xpose.msra.mxu0 0.0
      %5914 = vmatprep.subr.mxu0 0.0
      %5915 = vmatpush1.xpose.msra.mxu0 0.0
      %5916 = vmatprep.subr.mxu0 0.0
      %5917 = vmatpush1.xpose.msra.mxu0 0.0
      %5918 = vmatprep.subr.mxu0 0.0
      %5919 = vmatpush1.xpose.msra.mxu0 0.0
      %5920 = vmatprep.subr.mxu0 0.0
      %5921 = vmatpush1.xpose.msra.mxu0 0.0
      %5922 = vmatprep.subr.mxu0 0.0
      %5923 = vmatpush1.xpose.msra.mxu0 0.0
      %5924 = vmatprep.subr.mxu0 0.0
      %5925 = vmatpush1.xpose.msra.mxu0 0.0
      %5926 = vmatprep.subr.mxu0 0.0
      %5927 = vmatpush1.xpose.msra.mxu0 0.0
      %5928 = vmatprep.subr.mxu0 0.0
      %5929 = vmatpush1.xpose.msra.mxu0 0.0
      %5930 = vmatprep.subr.mxu0 0.0
      %5931 = vmatpush1.xpose.msra.mxu0 0.0
      %5932 = vmatprep.subr.mxu0 0.0
      %5933 = vmatpush1.xpose.msra.mxu0 0.0
      %5934 = vmatprep.subr.mxu0 %v5411
      %5935 = vmatpush1.xpose.msra.mxu0 %v5410
      %5936 = vmatprep.subr.mxu0 %v5395
      %5937 = vmatpush1.xpose.msra.mxu0 %v5394
      %5938 = vmatprep.subr.mxu0 %v5379
      %5939 = vmatpush1.xpose.msra.mxu0 %v5378
      %5940 = vmatprep.subr.mxu0 %v5363
      %5941 = vmatpush1.xpose.msra.mxu0 %v5362
      %5942 = vmatprep.subr.mxu0 0.0
      %5943 = vmatpush2.xpose.msra.mxu0 0.0
      %5944 = vmatprep.subr.mxu0 0.0
      %5945 = vmatpush2.xpose.msra.mxu0 0.0
      %5946 = vmatprep.subr.mxu0 0.0
      %5947 = vmatpush2.xpose.msra.mxu0 0.0
      %5948 = vmatprep.subr.mxu0 0.0
      %5949 = vmatpush2.xpose.msra.mxu0 0.0
      %5950 = vmatprep.subr.mxu0 0.0
      %5951 = vmatpush2.xpose.msra.mxu0 0.0
      %5952 = vmatprep.subr.mxu0 0.0
      %5953 = vmatpush2.xpose.msra.mxu0 0.0
      %5954 = vmatprep.subr.mxu0 0.0
      %5955 = vmatpush2.xpose.msra.mxu0 0.0
      %5956 = vmatprep.subr.mxu0 0.0
      %5957 = vmatpush2.xpose.msra.mxu0 0.0
      %5958 = vmatprep.subr.mxu0 0.0
      %5959 = vmatpush2.xpose.msra.mxu0 0.0
      %5960 = vmatprep.subr.mxu0 0.0
      %5961 = vmatpush2.xpose.msra.mxu0 0.0
      %5962 = vmatprep.subr.mxu0 0.0
      %5963 = vmatpush2.xpose.msra.mxu0 0.0
      %5964 = vmatprep.subr.mxu0 0.0
      %5965 = vmatpush2.xpose.msra.mxu0 0.0
      %5966 = vmatprep.subr.mxu0 0.0
      %5967 = vmatpush2.xpose.msra.mxu0 0.0
      %5968 = vmatprep.subr.mxu0 0.0
      %5969 = vmatpush2.xpose.msra.mxu0 0.0
      %5970 = vmatprep.subr.mxu0 0.0
      %5971 = vmatpush2.xpose.msra.mxu0 0.0
      %5972 = vmatprep.subr.mxu0 0.0
      %5973 = vmatpush2.xpose.msra.mxu0 0.0
      %5974 = vmatprep.mubr.f32.mxu0 %v5346
      %5975 = vmatmul.mubr.f32.gmra.mxu0 %v5345
      %v5976 = vpop.f32.mrf.mxu0
      %v5977 = vadd.f32 %v5907, %v5976
      %v5978 = vpop.f32.mrf.mxu0
      %5979 = vdwg.mxu0
      %v5980 = vadd.f32 %v4609, %v5977
      %v5981 = vsel %vm585, %v5980, 0.0
      %5982 = vadd.xlane.f32.xlu0 %v5981
      %v5983 = vpop.xlane.xlu0 %5982
      %v5984 = vmul.f32 %v5983, %v1849
      %v5985 = vsub.f32 %v5980, %v5984
      %v5986 = vmul.f32 %v5985, %v5985
      %v5987 = vsel %vm585, %v5986, 0.0
      %5988 = vadd.xlane.f32.xlu0 %v5987
      %v5989 = vpop.xlane.xlu0 %5988
      %v5990 = vmul.f32 %v5989, %v1849
      %v5991 = vadd.f32 %v5990, 1e-05
      %v5992 = vrsqrt.pop %v5991
      %v5993 = vmul.f32 %v5985, %v5992
      %s5994 = scalar_lea.vmem %s14, 1
      %v5995 = vld [vmem:[%s5994] sm:$0x1]
      %v5997 = vlaneseq
      %v5998 = vshrl.u32 %v5997, 7
      %v5999 = vsub.s32 0, %v5998
      %v6000 = vrot.slane %v5995, %v5999
      %v6002 = vmul.f32 %v5993, %v6000
      %s6003 = scalar_lea.vmem %s15, 1
      %v6004 = vld [vmem:[%s6003] sm:$0x1]
      %v6006 = vlaneseq
      %v6007 = vshrl.u32 %v6006, 7
      %v6008 = vsub.s32 0, %v6007
      %v6009 = vrot.slane %v6004, %v6008
      %v6011 = vadd.f32 %v6002, %v6009
      %6012 = vst.msk [vmem:[%s516] sm:$0xff] %vm585, %v6011
      %p6013 = scmp.lt.s32.totalorder %s27, 1
      %s6014 = scalar_select %p6013, %s27, 1
      %s6015 = smul.addr %s6014, 8
      %s6016 = scalar_lea.vmem %s16, %s6015
      // Predicated region
      $region85: #{_lambda_.1} parent=83 // pred_check
        %p6017 = pneg %p386
      $region86: #{_lambda_.1} parent=83 // pred_check_branch
        %6019 = sbr.rel (%p6017) target = $region88
      $region87: #{_lambda_.1} parent=83 // pred_region
        _
      $region88: #{_lambda_.1} parent=83 // pred_fallthru
        _
    $region84: #{_lambda_.1} parent=5 // pred_fallthru
      _
    %p6020 = scmp.le.s32.totalorder 2, %s22
    // Predicated region
    $region89: #{_lambda_.1} parent=5 // pred_check
      %p6021 = pneg %p6020
    $region90: #{_lambda_.1} parent=5 // pred_check_branch
      %6023 = sbr.rel (%p6021) target = $region92
    $region91: #{_lambda_.1} parent=5 // pred_region
      %s6024 = ssub.s32 %s22, 2
      // Predicated region
      $region93: #{_lambda_.1} parent=91 // pred_check
        %p6025 = pneg %p392
      $region94: #{_lambda_.1} parent=91 // pred_check_branch
        %6027 = sbr.rel (%p6025) target = $region96
      $region95: #{_lambda_.1} parent=91 // pred_region
        %p6028 = scmp.lt.s32.totalorder %s28, 1
        %s6029 = scalar_select %p6028, %s28, 1
        %s6030 = smul.addr %s6029, 8
        %s6031 = scalar_lea.vmem %s16, %s6030
      $region96: #{_lambda_.1} parent=91 // pred_fallthru
        _
    $region92: #{_lambda_.1} parent=5 // pred_fallthru
      _
  $region6: #{_lambda_.1} parent=0 // loop_footer
    %s26 = sadd.s32 1, %s22
  $region7: #{_lambda_.1} parent=0 // loop_footer_branch
    %21 = sbr.rel target = $region3
  $region8: #{_lambda_.1} parent=0 // loop_exit
    _

</llo_original>
